<compile_context>
chip_gen: v7x
topology: tpu7x:2x2x1
jax: 0.10.0
libtpu: 0.0.40
codegen_flags: <defaults>
</compile_context>

<pallas_src>
import functools
import math

import jax
import jax.numpy as jnp
from jax import lax
from jax.experimental import pallas as pl
from jax.experimental.pallas import tpu as pltpu


def _fingerprint_kernel(x_ref, w1_ref, b1_ref, w2_ref, b2_ref,
                        wfc1_ref, bfc1_ref, wfc2_ref, bfc2_ref, out_ref):
    """One batch tile: the whole network as 4 lane-dense MXU matmuls."""
    f32 = jnp.float32

    def mm(a, w):
        # Cast the activation to the (pre-cast) weight dtype; accumulate in f32.
        return jnp.dot(a.astype(w.dtype), w, preferred_element_type=f32)

    xp = x_ref[...]                                        # (TB, LP) f32, zero padded

    # ---- conv1 (k=5, stride=2, pad=2) as one matmul.  Columns are ordered
    #      [h=0 | h=1] x [q, par, c] so pool1 is a max of contiguous halves. ---
    h1 = mm(xp, w1_ref[...])                               # (TB, 2*N1)
    n1 = b1_ref.shape[-1]
    p1 = jnp.maximum(jnp.maximum(h1[:, :n1], h1[:, n1:]) + b1_ref[...], 0.0)

    # ---- conv2 (k=5, stride=1, pad=2) as one block-banded matmul.  Columns
    #      are [parity=0 | parity=1] x [p, o] so pool2 is a max of halves. -----
    h2 = mm(p1, w2_ref[...])                               # (TB, 2*N2)
    n2 = b2_ref.shape[-1]
    p2 = jnp.maximum(jnp.maximum(h2[:, :n2], h2[:, n2:]) + b2_ref[...], 0.0)

    # ---- fc1 + ReLU (flatten order folded into the weight; H padded to 128) --
    a1 = jnp.maximum(mm(p2, wfc1_ref[...]) + bfc1_ref[...], 0.0)

    # TODO(synk): train-mode Dropout(0.5) (PRNG mask + 2x scaling) is not
    # implemented; eval-mode dropout is the identity, which is what we compute.

    # ---- fc2 (num_classes padded to a lane-dense 128; wrapper slices back) ---
    out = mm(a1, wfc2_ref[...]) + bfc2_ref[...]
    out_ref[...] = out.astype(out_ref.dtype)


def fingerprint_forward(x, params, *, block_b=256, mxu_dtype=jnp.bfloat16):
    """x: (B, input_size) -> (B, num_classes); eval-mode forward pass."""
    B, L = x.shape
    assert L % 8 == 0 and L >= 8, "input_size must be a multiple of 8"

    w1, b1 = params["w1"], params["b1"]            # (32, 1, 5), (32,)
    w2, b2 = params["w2"], params["b2"]            # (64, 32, 5), (64,)
    wfc1, bfc1 = params["wfc1"], params["bfc1"]    # (H, FC_IN), (H,)
    wfc2, bfc2 = params["wfc2"], params["bfc2"]    # (NC, H), (NC,)

    C1, _, K = w1.shape                            # 32, 1, 5
    C2 = w2.shape[0]                               # 64
    H, FC_IN = wfc1.shape
    NC = wfc2.shape[0]
    Q = L // 8                                     # positions after pool2 (L3)
    L1, L2 = L // 2, L // 4
    assert FC_IN == C2 * Q

    def rup(a, m):
        return (a + m - 1) // m * m

    f32 = jnp.float32
    wdt = f32 if mxu_dtype is None else mxu_dtype

    # ---- batch tiling: TB multiple of 8; >=2 grid steps whenever possible so
    #      the "parallel" axis can be split across v7x's two TensorCores. ------
    half = rup(max(1, -(-B // 2)), 8)
    TB = max(8, min(rup(block_b, 8), half))
    B_pad = rup(B, TB)

    # ---- input: zero pad (conv1 padding=2 + batch/lane pad) -> dense block ---
    LP = rup(L + 4, 128)
    xp = jnp.zeros((B_pad, LP), f32).at[:B, 2:2 + L].set(x.astype(f32))

    # ---- conv1 weight as a block-structured matmul weight --------------------
    # column = h*(Q*2*C1) + q*(2*C1) + par*C1 + c  for conv1 output position
    # t1 = 4q + 2*par + h;  W1big[m, col] = w1[c, 0, m - 2*t1] (else 0).
    t1 = jnp.arange(L1)
    kk1 = jnp.arange(LP)[:, None] - 2 * t1[None, :]                 # (LP, L1)
    valid1 = ((kk1 >= 0) & (kk1 < K))[:, :, None]
    w1k = jnp.transpose(w1[:, 0, :], (1, 0)).astype(f32)            # (K, C1)
    W1 = jnp.where(valid1, w1k[jnp.clip(kk1, 0, K - 1)], 0.0)       # (m, t1, c)
    W1big = (W1.reshape(LP, Q, 2, 2, C1)
               .transpose(0, 3, 1, 2, 4)                            # (m, h, q, par, c)
               .reshape(LP, 2 * Q * 2 * C1)).astype(wdt)
    b1w = jnp.tile(b1.astype(f32), 2 * Q)[None, :]                  # (1, Q*2*C1)

    # ---- conv2 weight as a block-banded matmul weight -------------------------
    # row = u*C1 + c (pool1 position u, channel c);
    # column = parity*(Q*C2) + p*C2 + o for conv2 output position t2 = 2p+parity;
    # W2big[row, col] = w2[o, c, u - t2 + 2] (else 0).
    u = jnp.arange(L2)
    kk2 = u[:, None] - u[None, :] + (K // 2)                        # (L2, L2)
    valid2 = ((kk2 >= 0) & (kk2 < K))[:, :, None, None]
    w2k = jnp.transpose(w2, (2, 1, 0)).astype(f32)                  # (K, C1, C2)
    W2 = jnp.where(valid2, w2k[jnp.clip(kk2, 0, K - 1)], 0.0)       # (u, t2, c, o)
    W2big = (W2.transpose(0, 2, 1, 3)                               # (u, c, t2, o)
               .reshape(L2 * C1, Q, 2, C2)
               .transpose(0, 2, 1, 3)                               # (row, parity, p, o)
               .reshape(L2 * C1, 2 * Q * C2)).astype(wdt)
    b2w = jnp.tile(b2.astype(f32), Q)[None, :]                      # (1, Q*C2)

    # ---- fc weights: fold PyTorch channel-major flatten; pad H/NC to 128 -----
    HP = rup(H, 128)
    NCP = rup(NC, 128)
    wfc1p = (wfc1.astype(f32).reshape(H, C2, Q)
                 .transpose(2, 1, 0)                                # (p, o, h)
                 .reshape(Q * C2, H))
    wfc1p = jnp.zeros((Q * C2, HP), f32).at[:, :H].set(wfc1p).astype(wdt)
    bfc1p = jnp.zeros((1, HP), f32).at[:, :H].set(bfc1.astype(f32)[None, :])
    wfc2p = jnp.zeros((HP, NCP), f32).at[:H, :NC].set(
        jnp.transpose(wfc2.astype(f32))).astype(wdt)
    bfc2p = jnp.zeros((1, NCP), f32).at[:, :NC].set(bfc2.astype(f32)[None, :])

    N1 = 2 * Q * C1                                                 # = Q*64
    N2 = Q * C2                                                     # = Q*64

    out_padded = pl.pallas_call(
        _fingerprint_kernel,
        out_shape=jax.ShapeDtypeStruct((B_pad, NCP), f32),
        grid=(B_pad // TB,),
        in_specs=[
            pl.BlockSpec((TB, LP), lambda i: (i, 0)),
            pl.BlockSpec((LP, 2 * N1), lambda i: (0, 0)),
            pl.BlockSpec((1, N1), lambda i: (0, 0)),
            pl.BlockSpec((N1, 2 * N2), lambda i: (0, 0)),
            pl.BlockSpec((1, N2), lambda i: (0, 0)),
            pl.BlockSpec((N2, HP), lambda i: (0, 0)),
            pl.BlockSpec((1, HP), lambda i: (0, 0)),
            pl.BlockSpec((HP, NCP), lambda i: (0, 0)),
            pl.BlockSpec((1, NCP), lambda i: (0, 0)),
        ],
        out_specs=pl.BlockSpec((TB, NCP), lambda i: (i, 0)),
        compiler_params=pltpu.CompilerParams(
            dimension_semantics=("parallel",),
            vmem_limit_bytes=48 * 1024 * 1024),
    )(xp, W1big, b1w, W2big, b2w, wfc1p, bfc1p, wfc2p, bfc2p)

    return out_padded[:B, :NC]


def reference_forward(x, p):
    """Pure-JAX reference matching the PyTorch forward exactly (eval mode)."""
    hp = lax.Precision.HIGHEST
    B, L = x.shape
    C1, C2 = 32, 64
    L1, L2, L3 = L // 2, L // 4, L // 8
    xp = jnp.pad(x, ((0, 0), (2, 2)))
    idx1 = 2 * jnp.arange(L1)[:, None] + jnp.arange(5)[None, :]
    patches1 = xp[:, idx1]                                        # (B, L1, 5)
    h1 = jnp.einsum("blk,ck->bcl", patches1, p["w1"][:, 0, :], precision=hp)
    h1 = jnp.maximum(h1 + p["b1"][None, :, None], 0.0)
    p1 = jnp.max(h1.reshape(B, C1, L2, 2), axis=-1)
    p1p = jnp.pad(p1, ((0, 0), (0, 0), (2, 2)))
    idx2 = jnp.arange(L2)[:, None] + jnp.arange(5)[None, :]
    patches2 = p1p[:, :, idx2]                                    # (B, C1, L2, 5)
    h2 = jnp.einsum("bilk,oik->bol", patches2, p["w2"], precision=hp)
    h2 = jnp.maximum(h2 + p["b2"][None, :, None], 0.0)
    p2 = jnp.max(h2.reshape(B, C2, L3, 2), axis=-1)
    flat = p2.reshape(B, C2 * L3)                                 # channel-major
    a1 = jnp.maximum(jnp.dot(flat, p["wfc1"].T, precision=hp) + p["bfc1"], 0.0)
    return jnp.dot(a1, p["wfc2"].T, precision=hp) + p["bfc2"]


if __name__ == "__main__":
    INPUT_SIZE = 128          # multiple of 8, as the module's arithmetic assumes
    HIDDEN = 32
    NUM_CLASSES = 8
    BATCH = 2
    FC_IN = (INPUT_SIZE // 8) * 64

    key = jax.random.PRNGKey(0)
    keys = jax.random.split(key, 9)

    def _uniform(k, shape, fan_in):
        bound = 1.0 / math.sqrt(fan_in)
        return jax.random.uniform(k, shape, jnp.float32, -bound, bound)

    params = {
        "w1": _uniform(keys[0], (32, 1, 5), 1 * 5),
        "b1": _uniform(keys[1], (32,), 1 * 5),
        "w2": _uniform(keys[2], (64, 32, 5), 32 * 5),
        "b2": _uniform(keys[3], (64,), 32 * 5),
        "wfc1": _uniform(keys[4], (HIDDEN, FC_IN), FC_IN),
        "bfc1": _uniform(keys[5], (HIDDEN,), FC_IN),
        "wfc2": _uniform(keys[6], (NUM_CLASSES, HIDDEN), HIDDEN),
        "bfc2": _uniform(keys[7], (NUM_CLASSES,), HIDDEN),
    }
    x = jax.random.normal(keys[8], (BATCH, INPUT_SIZE), jnp.float32)

    ref = jax.block_until_ready(reference_forward(x, params))

    # f32-MXU validation path and default bf16-MXU performance path.
    out_f32 = jax.block_until_ready(
        fingerprint_forward(x, params, mxu_dtype=None))
    out_bf16 = jax.block_until_ready(fingerprint_forward(x, params))

    assert out_f32.shape == (BATCH, NUM_CLASSES)
    assert out_bf16.shape == (BATCH, NUM_CLASSES)
    assert bool(jnp.all(jnp.isfinite(out_f32)))
    assert bool(jnp.all(jnp.isfinite(out_bf16)))
    assert bool(jnp.allclose(out_f32, ref, rtol=1e-2, atol=1e-2)), (
        "f32 max abs err = %g" % float(jnp.max(jnp.abs(out_f32 - ref))))
    assert bool(jnp.allclose(out_bf16, ref, rtol=2e-2, atol=2e-2)), (
        "bf16 max abs err = %g" % float(jnp.max(jnp.abs(out_bf16 - ref))))
    print("KERNEL_OK")
</pallas_src>

<mosaic_0001>
module attributes {stable_mosaic.version = 11 : i64} {
  func.func @_fingerprint_kernel(%arg0: i32, %arg1: memref<8x256xf32, #tpu.memory_space<vmem>>, %arg2: memref<256x2048xf32, #tpu.memory_space<vmem>>, %arg3: memref<1x1024xf32, #tpu.memory_space<vmem>>, %arg4: memref<1024x2048xf32, #tpu.memory_space<vmem>>, %arg5: memref<1x1024xf32, #tpu.memory_space<vmem>>, %arg6: memref<1024x128xf32, #tpu.memory_space<vmem>>, %arg7: memref<1x128xf32, #tpu.memory_space<vmem>>, %arg8: memref<128x128xf32, #tpu.memory_space<vmem>>, %arg9: memref<1x128xf32, #tpu.memory_space<vmem>>, %arg10: memref<8x128xf32, #tpu.memory_space<vmem>>) attributes {dimension_semantics = [#tpu.dimension_semantics<parallel>], iteration_bounds = array<i64: 1>, scalar_prefetch = 0 : i64, scratch_operands = 0 : i64, tpu.core_type = #tpu.core_type<tc>, window_params = [{transform_indices = @transform_0, window_bounds = array<i64: 8, 256>}, {pipeline_mode = #tpu.pipeline_mode<synchronous>, transform_indices = @transform_1, window_bounds = array<i64: 256, 2048>}, {pipeline_mode = #tpu.pipeline_mode<synchronous>, transform_indices = @transform_2, window_bounds = array<i64: 1, 1024>}, {pipeline_mode = #tpu.pipeline_mode<synchronous>, transform_indices = @transform_3, window_bounds = array<i64: 1024, 2048>}, {pipeline_mode = #tpu.pipeline_mode<synchronous>, transform_indices = @transform_4, window_bounds = array<i64: 1, 1024>}, {pipeline_mode = #tpu.pipeline_mode<synchronous>, transform_indices = @transform_5, window_bounds = array<i64: 1024, 128>}, {pipeline_mode = #tpu.pipeline_mode<synchronous>, transform_indices = @transform_6, window_bounds = array<i64: 1, 128>}, {pipeline_mode = #tpu.pipeline_mode<synchronous>, transform_indices = @transform_7, window_bounds = array<i64: 128, 128>}, {pipeline_mode = #tpu.pipeline_mode<synchronous>, transform_indices = @transform_8, window_bounds = array<i64: 1, 128>}, {transform_indices = @transform_9, window_bounds = array<i64: 8, 128>}]} {
    %c0 = arith.constant 0 : index
    %c0_0 = arith.constant 0 : index
    %0 = vector.load %arg1[%c0, %c0_0] : memref<8x256xf32, #tpu.memory_space<vmem>>, vector<8x256xf32>
    %c0_1 = arith.constant 0 : index
    %c0_2 = arith.constant 0 : index
    %1 = vector.load %arg2[%c0_1, %c0_2] : memref<256x2048xf32, #tpu.memory_space<vmem>>, vector<256x2048xf32>
    %cst = arith.constant dense<0.000000e+00> : vector<8x2048xf32>
    %2 = tpu.matmul %0, %1, %cst {dimension_numbers = #tpu.dot_dimension_numbers<[1], [0], [0], [1], [0, 0, 1, 1], [], []>} : vector<8x256xf32>, vector<256x2048xf32>, vector<8x2048xf32> -> vector<8x2048xf32>
    %3 = vector.extract_strided_slice %2 {offsets = [0, 0], sizes = [8, 1024], strides = [1, 1]} : vector<8x2048xf32> to vector<8x1024xf32>
    %4 = vector.extract_strided_slice %2 {offsets = [0, 1024], sizes = [8, 1024], strides = [1, 1]} : vector<8x2048xf32> to vector<8x1024xf32>
    %5 = arith.maximumf %3, %4 : vector<8x1024xf32>
    %c0_3 = arith.constant 0 : index
    %c0_4 = arith.constant 0 : index
    %6 = vector.load %arg3[%c0_3, %c0_4] : memref<1x1024xf32, #tpu.memory_space<vmem>>, vector<1x1024xf32>
    %7 = vector.broadcast %6 : vector<1x1024xf32> to vector<8x1024xf32>
    %8 = arith.addf %5, %7 : vector<8x1024xf32>
    %cst_5 = arith.constant 0.000000e+00 : f32
    %9 = vector.broadcast %cst_5 : f32 to vector<8x1024xf32>
    %10 = arith.maximumf %8, %9 : vector<8x1024xf32>
    %c0_6 = arith.constant 0 : index
    %c0_7 = arith.constant 0 : index
    %11 = vector.load %arg4[%c0_6, %c0_7] : memref<1024x2048xf32, #tpu.memory_space<vmem>>, vector<1024x2048xf32>
    %cst_8 = arith.constant dense<0.000000e+00> : vector<8x2048xf32>
    %12 = tpu.matmul %10, %11, %cst_8 {dimension_numbers = #tpu.dot_dimension_numbers<[1], [0], [0], [1], [0, 0, 1, 1], [], []>} : vector<8x1024xf32>, vector<1024x2048xf32>, vector<8x2048xf32> -> vector<8x2048xf32>
    %13 = vector.extract_strided_slice %12 {offsets = [0, 0], sizes = [8, 1024], strides = [1, 1]} : vector<8x2048xf32> to vector<8x1024xf32>
    %14 = vector.extract_strided_slice %12 {offsets = [0, 1024], sizes = [8, 1024], strides = [1, 1]} : vector<8x2048xf32> to vector<8x1024xf32>
    %15 = arith.maximumf %13, %14 : vector<8x1024xf32>
    %c0_9 = arith.constant 0 : index
    %c0_10 = arith.constant 0 : index
    %16 = vector.load %arg5[%c0_9, %c0_10] : memref<1x1024xf32, #tpu.memory_space<vmem>>, vector<1x1024xf32>
    %17 = vector.broadcast %16 : vector<1x1024xf32> to vector<8x1024xf32>
    %18 = arith.addf %15, %17 : vector<8x1024xf32>
    %cst_11 = arith.constant 0.000000e+00 : f32
    %19 = vector.broadcast %cst_11 : f32 to vector<8x1024xf32>
    %20 = arith.maximumf %18, %19 : vector<8x1024xf32>
    %c0_12 = arith.constant 0 : index
    %c0_13 = arith.constant 0 : index
    %21 = vector.load %arg6[%c0_12, %c0_13] : memref<1024x128xf32, #tpu.memory_space<vmem>>, vector<1024x128xf32>
    %cst_14 = arith.constant dense<0.000000e+00> : vector<8x128xf32>
    %22 = tpu.matmul %20, %21, %cst_14 {dimension_numbers = #tpu.dot_dimension_numbers<[1], [0], [0], [1], [0, 0, 1, 1], [], []>} : vector<8x1024xf32>, vector<1024x128xf32>, vector<8x128xf32> -> vector<8x128xf32>
    %c0_15 = arith.constant 0 : index
    %c0_16 = arith.constant 0 : index
    %23 = vector.load %arg7[%c0_15, %c0_16] : memref<1x128xf32, #tpu.memory_space<vmem>>, vector<1x128xf32>
    %24 = vector.broadcast %23 : vector<1x128xf32> to vector<8x128xf32>
    %25 = arith.addf %22, %24 : vector<8x128xf32>
    %cst_17 = arith.constant 0.000000e+00 : f32
    %26 = vector.broadcast %cst_17 : f32 to vector<8x128xf32>
    %27 = arith.maximumf %25, %26 : vector<8x128xf32>
    %c0_18 = arith.constant 0 : index
    %c0_19 = arith.constant 0 : index
    %28 = vector.load %arg8[%c0_18, %c0_19] : memref<128x128xf32, #tpu.memory_space<vmem>>, vector<128x128xf32>
    %cst_20 = arith.constant dense<0.000000e+00> : vector<8x128xf32>
    %29 = tpu.matmul %27, %28, %cst_20 {dimension_numbers = #tpu.dot_dimension_numbers<[1], [0], [0], [1], [0, 0, 1, 1], [], []>} : vector<8x128xf32>, vector<128x128xf32>, vector<8x128xf32> -> vector<8x128xf32>
    %c0_21 = arith.constant 0 : index
    %c0_22 = arith.constant 0 : index
    %30 = vector.load %arg9[%c0_21, %c0_22] : memref<1x128xf32, #tpu.memory_space<vmem>>, vector<1x128xf32>
    %31 = vector.broadcast %30 : vector<1x128xf32> to vector<8x128xf32>
    %32 = arith.addf %29, %31 : vector<8x128xf32>
    %c0_23 = arith.constant 0 : index
    %c0_24 = arith.constant 0 : index
    %33 = vector.load %arg10[%c0_23, %c0_24] : memref<8x128xf32, #tpu.memory_space<vmem>>, vector<8x128xf32>
    tpu.vector_store %arg10[%c0_23, %c0_24], %32 {strides = array<i32>} : memref<8x128xf32, #tpu.memory_space<vmem>>, vector<8x128xf32>,
    return
  }
  func.func @transform_0(%arg0: i32) -> (i32, i32) {
    %c0_i32 = arith.constant 0 : i32
    %c0_i32_0 = arith.constant 0 : i32
    return %arg0, %c0_i32 : i32, i32
  }
  func.func @transform_1(%arg0: i32) -> (i32, i32) {
    %c0_i32 = arith.constant 0 : i32
    %c0_i32_0 = arith.constant 0 : i32
    %c0_i32_1 = arith.constant 0 : i32
    return %c0_i32, %c0_i32_0 : i32, i32
  }
  func.func @transform_2(%arg0: i32) -> (i32, i32) {
    %c0_i32 = arith.constant 0 : i32
    %c0_i32_0 = arith.constant 0 : i32
    %c0_i32_1 = arith.constant 0 : i32
    return %c0_i32, %c0_i32_0 : i32, i32
  }
  func.func @transform_3(%arg0: i32) -> (i32, i32) {
    %c0_i32 = arith.constant 0 : i32
    %c0_i32_0 = arith.constant 0 : i32
    %c0_i32_1 = arith.constant 0 : i32
    return %c0_i32, %c0_i32_0 : i32, i32
  }
  func.func @transform_4(%arg0: i32) -> (i32, i32) {
    %c0_i32 = arith.constant 0 : i32
    %c0_i32_0 = arith.constant 0 : i32
    %c0_i32_1 = arith.constant 0 : i32
    return %c0_i32, %c0_i32_0 : i32, i32
  }
  func.func @transform_5(%arg0: i32) -> (i32, i32) {
    %c0_i32 = arith.constant 0 : i32
    %c0_i32_0 = arith.constant 0 : i32
    %c0_i32_1 = arith.constant 0 : i32
    return %c0_i32, %c0_i32_0 : i32, i32
  }
  func.func @transform_6(%arg0: i32) -> (i32, i32) {
    %c0_i32 = arith.constant 0 : i32
    %c0_i32_0 = arith.constant 0 : i32
    %c0_i32_1 = arith.constant 0 : i32
    return %c0_i32, %c0_i32_0 : i32, i32
  }
  func.func @transform_7(%arg0: i32) -> (i32, i32) {
    %c0_i32 = arith.constant 0 : i32
    %c0_i32_0 = arith.constant 0 : i32
    %c0_i32_1 = arith.constant 0 : i32
    return %c0_i32, %c0_i32_0 : i32, i32
  }
  func.func @transform_8(%arg0: i32) -> (i32, i32) {
    %c0_i32 = arith.constant 0 : i32
    %c0_i32_0 = arith.constant 0 : i32
    %c0_i32_1 = arith.constant 0 : i32
    return %c0_i32, %c0_i32_0 : i32, i32
  }
  func.func @transform_9(%arg0: i32) -> (i32, i32) {
    %c0_i32 = arith.constant 0 : i32
    %c0_i32_0 = arith.constant 0 : i32
    return %arg0, %c0_i32 : i32, i32
  }
}

</mosaic_0001>

<llo_original>
// kernel: tpu_custom_call.1
$region0: #{tpu_custom_call.1}
  #allocation0 [shape = 'u32[]', space=smem, size = 0x4, offset = 0x4, fixed_abs, tag = 'smem constant byte address 0x4 - core index']
  #allocation1 [shape = 'u32[144,128]{1,0:T(1,128)}', space=vmem, size = 0x12000, scoped, tag = 'internal scratch']
  %s0 = inlined_call_operand.hbm [shape: f32[8,256], index: 0, kind: input, shape index: {}]
  %s1 = inlined_call_operand.hbm [shape: f32[256,2048], index: 1, kind: input, shape index: {}]
  %s2 = inlined_call_operand.hbm [shape: f32[1,1024], index: 2, kind: input, shape index: {}]
  %s3 = inlined_call_operand.hbm [shape: f32[1024,2048], index: 3, kind: input, shape index: {}]
  %s4 = inlined_call_operand.hbm [shape: f32[1,1024], index: 4, kind: input, shape index: {}]
  %s5 = inlined_call_operand.hbm [shape: f32[1024,128], index: 5, kind: input, shape index: {}]
  %s6 = inlined_call_operand.hbm [shape: f32[1,128], index: 6, kind: input, shape index: {}]
  %s7 = inlined_call_operand.hbm [shape: f32[128,128], index: 7, kind: input, shape index: {}]
  %s8 = inlined_call_operand.hbm [shape: f32[1,128], index: 8, kind: input, shape index: {}]
  %s9 = inlined_call_operand.hbm [shape: f32[8,128], index: 9, kind: output, shape index: {}]
  %s10 = sld [smem:[#allocation0]]
  $region82: #{tpu_custom_call.1} parent=0
    _
  %s12 = ssub.s32 1, %s10
  %s13 = scalar_select 0, %s12, %s10
  $region1: #{tpu_custom_call.1} parent=0
    #allocation2 [shape = 'u8[8192]{0}', space=vmem, size = 0x2000, scoped, tag = 'input window, operand 0, single buffered']
    #allocation3 [shape = 's32[1]{0}', space=sflag, size = 0x4, scoped, tag = 'scoped memory for tpu_custom_call.1']
    #allocation4 [shape = 's32[1]{0}', space=sflag, size = 0x4, scoped, tag = 'scoped memory for tpu_custom_call.1']
    #allocation5 [shape = 'u8[2097152]{0}', space=vmem, size = 0x200000, scoped, tag = 'input window, operand 1, single buffered']
    #allocation6 [shape = 's32[1]{0}', space=sflag, size = 0x4, scoped, tag = 'scoped memory for tpu_custom_call.1']
    #allocation7 [shape = 'u8[4096]{0}', space=vmem, size = 0x1000, scoped, tag = 'input window, operand 2, single buffered']
    #allocation8 [shape = 'u8[8388608]{0}', space=vmem, size = 0x800000, scoped, tag = 'input window, operand 3, single buffered']
    #allocation9 [shape = 's32[1]{0}', space=sflag, size = 0x4, scoped, tag = 'scoped memory for tpu_custom_call.1']
    #allocation10 [shape = 'u8[4096]{0}', space=vmem, size = 0x1000, scoped, tag = 'input window, operand 4, single buffered']
    #allocation11 [shape = 'u8[524288]{0}', space=vmem, size = 0x80000, scoped, tag = 'input window, operand 5, single buffered']
    #allocation12 [shape = 's32[1]{0}', space=sflag, size = 0x4, scoped, tag = 'scoped memory for tpu_custom_call.1']
    #allocation13 [shape = 'u8[512]{0}', space=vmem, size = 0x400, scoped, tag = 'input window, operand 6, single buffered']
    #allocation14 [shape = 'u8[65536]{0}', space=vmem, size = 0x10000, scoped, tag = 'input window, operand 7, single buffered']
    #allocation15 [shape = 's32[1]{0}', space=sflag, size = 0x4, scoped, tag = 'scoped memory for tpu_custom_call.1']
    #allocation16 [shape = 'u8[512]{0}', space=vmem, size = 0x400, scoped, tag = 'input window, operand 8, single buffered']
    #allocation17 [shape = 'u8[4096]{0}', space=vmem, size = 0x1000, scoped, tag = 'output window, operand 0, single buffered']
    %14 = vsyncpa [#allocation3], 0
    %15 = vsyncpa [#allocation6], 0
    %16 = vsyncpa [#allocation9], 0
    %17 = vsyncpa [#allocation12], 0
    %18 = vsyncpa [#allocation15], 0
    %19 = vsyncpa [#allocation4], 0
    // Predicated region
    $region2: #{tpu_custom_call.1} parent=1 // pred_check
      _
    $region3: #{tpu_custom_call.1} parent=1 // pred_check_branch
      %21 = sbr.rel (0) target = $region5
    $region4: #{tpu_custom_call.1} parent=1 // pred_region
      %s23 = ssub.s32 256, 256
      %24 = vsyncadd [#allocation3], %s23
      %s26 = sshll.u32 [#allocation2], 4
      %s27 = int_to_ptr.vmem [resolvable:$true] %s26
      %29 = dma.hbm_to_vmem [thread:$0]  %s0, 256, %s27, [#allocation3]
    $region5: #{tpu_custom_call.1} parent=1 // pred_fallthru
      _
    // Predicated region
    $region6: #{tpu_custom_call.1} parent=1 // pred_check
      _
    $region7: #{tpu_custom_call.1} parent=1 // pred_check_branch
      %31 = sbr.rel (0) target = $region9
    $region8: #{tpu_custom_call.1} parent=1 // pred_region
      %s33 = ssub.s32 65536, 65536
      %34 = vsyncadd [#allocation6], %s33
      %s35 = sshll.u32 [#allocation5], 4
      %s36 = int_to_ptr.vmem [resolvable:$true] %s35
      %41 = dma.hbm_to_vmem [thread:$0]  %s1, 65536, %s36, [#allocation6], 2048, 2048, 128
    $region9: #{tpu_custom_call.1} parent=1 // pred_fallthru
      _
    // Predicated region
    $region10: #{tpu_custom_call.1} parent=1 // pred_check
      _
    $region11: #{tpu_custom_call.1} parent=1 // pred_check_branch
      %43 = sbr.rel (0) target = $region13
    $region12: #{tpu_custom_call.1} parent=1 // pred_region
      %s45 = ssub.s32 128, 128
      %46 = vsyncadd [#allocation6], %s45
      %s48 = sshll.u32 [#allocation7], 4
      %s49 = int_to_ptr.vmem [resolvable:$true] %s48
      %51 = dma.hbm_to_vmem [thread:$0]  %s2, 128, %s49, [#allocation6]
    $region13: #{tpu_custom_call.1} parent=1 // pred_fallthru
      _
    // Predicated region
    $region14: #{tpu_custom_call.1} parent=1 // pred_check
      _
    $region15: #{tpu_custom_call.1} parent=1 // pred_check_branch
      %53 = sbr.rel (0) target = $region17
    $region16: #{tpu_custom_call.1} parent=1 // pred_region
      %s55 = ssub.s32 262144, 262144
      %56 = vsyncadd [#allocation9], %s55
      %s57 = sshll.u32 [#allocation8], 4
      %s58 = int_to_ptr.vmem [resolvable:$true] %s57
      %63 = dma.hbm_to_vmem [thread:$0]  %s3, 262144, %s58, [#allocation9], 2048, 2048, 128
    $region17: #{tpu_custom_call.1} parent=1 // pred_fallthru
      _
    // Predicated region
    $region18: #{tpu_custom_call.1} parent=1 // pred_check
      _
    $region19: #{tpu_custom_call.1} parent=1 // pred_check_branch
      %65 = sbr.rel (0) target = $region21
    $region20: #{tpu_custom_call.1} parent=1 // pred_region
      %s67 = ssub.s32 128, 128
      %68 = vsyncadd [#allocation9], %s67
      %s70 = sshll.u32 [#allocation10], 4
      %s71 = int_to_ptr.vmem [resolvable:$true] %s70
      %73 = dma.hbm_to_vmem [thread:$0]  %s4, 128, %s71, [#allocation9]
    $region21: #{tpu_custom_call.1} parent=1 // pred_fallthru
      _
    // Predicated region
    $region22: #{tpu_custom_call.1} parent=1 // pred_check
      _
    $region23: #{tpu_custom_call.1} parent=1 // pred_check_branch
      %75 = sbr.rel (0) target = $region25
    $region24: #{tpu_custom_call.1} parent=1 // pred_region
      %s77 = ssub.s32 16384, 16384
      %78 = vsyncadd [#allocation12], %s77
      %s79 = sshll.u32 [#allocation11], 4
      %s80 = int_to_ptr.vmem [resolvable:$true] %s79
      %85 = dma.hbm_to_vmem [thread:$0]  %s5, 16384, %s80, [#allocation12], 128, 128, 8
    $region25: #{tpu_custom_call.1} parent=1 // pred_fallthru
      _
    // Predicated region
    $region26: #{tpu_custom_call.1} parent=1 // pred_check
      _
    $region27: #{tpu_custom_call.1} parent=1 // pred_check_branch
      %87 = sbr.rel (0) target = $region29
    $region28: #{tpu_custom_call.1} parent=1 // pred_region
      %s89 = ssub.s32 16, 16
      %90 = vsyncadd [#allocation12], %s89
      %s92 = sshll.u32 [#allocation13], 4
      %s93 = int_to_ptr.vmem [resolvable:$true] %s92
      %95 = dma.hbm_to_vmem [thread:$0]  %s6, 16, %s93, [#allocation12]
    $region29: #{tpu_custom_call.1} parent=1 // pred_fallthru
      _
    // Predicated region
    $region30: #{tpu_custom_call.1} parent=1 // pred_check
      _
    $region31: #{tpu_custom_call.1} parent=1 // pred_check_branch
      %97 = sbr.rel (0) target = $region33
    $region32: #{tpu_custom_call.1} parent=1 // pred_region
      %s99 = ssub.s32 2048, 2048
      %100 = vsyncadd [#allocation15], %s99
      %s101 = sshll.u32 [#allocation14], 4
      %s102 = int_to_ptr.vmem [resolvable:$true] %s101
      %107 = dma.hbm_to_vmem [thread:$0]  %s7, 2048, %s102, [#allocation15], 128, 128, 8
    $region33: #{tpu_custom_call.1} parent=1 // pred_fallthru
      _
    // Predicated region
    $region34: #{tpu_custom_call.1} parent=1 // pred_check
      _
    $region35: #{tpu_custom_call.1} parent=1 // pred_check_branch
      %109 = sbr.rel (0) target = $region37
    $region36: #{tpu_custom_call.1} parent=1 // pred_region
      %s111 = ssub.s32 16, 16
      %112 = vsyncadd [#allocation15], %s111
      %s114 = sshll.u32 [#allocation16], 4
      %s115 = int_to_ptr.vmem [resolvable:$true] %s114
      %117 = dma.hbm_to_vmem [thread:$0]  %s8, 16, %s115, [#allocation15]
    $region37: #{tpu_custom_call.1} parent=1 // pred_fallthru
      _
    // Predicated region
    $region38: #{tpu_custom_call.1} parent=1 // pred_check
      _
    $region39: #{tpu_custom_call.1} parent=1 // pred_check_branch
      %119 = sbr.rel (0) target = $region41
    $region40: #{tpu_custom_call.1} parent=1 // pred_region
      %120 = dma.done [#allocation3], 256
    $region41: #{tpu_custom_call.1} parent=1 // pred_fallthru
      _
    // Predicated region
    $region42: #{tpu_custom_call.1} parent=1 // pred_check
      _
    $region43: #{tpu_custom_call.1} parent=1 // pred_check_branch
      %122 = sbr.rel (0) target = $region45
    $region44: #{tpu_custom_call.1} parent=1 // pred_region
      %123 = dma.done [#allocation6], 65536
    $region45: #{tpu_custom_call.1} parent=1 // pred_fallthru
      _
    // Predicated region
    $region46: #{tpu_custom_call.1} parent=1 // pred_check
      _
    $region47: #{tpu_custom_call.1} parent=1 // pred_check_branch
      %125 = sbr.rel (0) target = $region49
    $region48: #{tpu_custom_call.1} parent=1 // pred_region
      %126 = dma.done [#allocation6], 128
    $region49: #{tpu_custom_call.1} parent=1 // pred_fallthru
      _
    // Predicated region
    $region50: #{tpu_custom_call.1} parent=1 // pred_check
      _
    $region51: #{tpu_custom_call.1} parent=1 // pred_check_branch
      %128 = sbr.rel (0) target = $region53
    $region52: #{tpu_custom_call.1} parent=1 // pred_region
      %129 = dma.done [#allocation9], 262144
    $region53: #{tpu_custom_call.1} parent=1 // pred_fallthru
      _
    // Predicated region
    $region54: #{tpu_custom_call.1} parent=1 // pred_check
      _
    $region55: #{tpu_custom_call.1} parent=1 // pred_check_branch
      %131 = sbr.rel (0) target = $region57
    $region56: #{tpu_custom_call.1} parent=1 // pred_region
      %132 = dma.done [#allocation9], 128
    $region57: #{tpu_custom_call.1} parent=1 // pred_fallthru
      _
    // Predicated region
    $region58: #{tpu_custom_call.1} parent=1 // pred_check
      _
    $region59: #{tpu_custom_call.1} parent=1 // pred_check_branch
      %134 = sbr.rel (0) target = $region61
    $region60: #{tpu_custom_call.1} parent=1 // pred_region
      %135 = dma.done [#allocation12], 16384
    $region61: #{tpu_custom_call.1} parent=1 // pred_fallthru
      _
    // Predicated region
    $region62: #{tpu_custom_call.1} parent=1 // pred_check
      _
    $region63: #{tpu_custom_call.1} parent=1 // pred_check_branch
      %137 = sbr.rel (0) target = $region65
    $region64: #{tpu_custom_call.1} parent=1 // pred_region
      %138 = dma.done [#allocation12], 16
    $region65: #{tpu_custom_call.1} parent=1 // pred_fallthru
      _
    // Predicated region
    $region66: #{tpu_custom_call.1} parent=1 // pred_check
      _
    $region67: #{tpu_custom_call.1} parent=1 // pred_check_branch
      %140 = sbr.rel (0) target = $region69
    $region68: #{tpu_custom_call.1} parent=1 // pred_region
      %141 = dma.done [#allocation15], 2048
    $region69: #{tpu_custom_call.1} parent=1 // pred_fallthru
      _
    // Predicated region
    $region70: #{tpu_custom_call.1} parent=1 // pred_check
      _
    $region71: #{tpu_custom_call.1} parent=1 // pred_check_branch
      %143 = sbr.rel (0) target = $region73
    $region72: #{tpu_custom_call.1} parent=1 // pred_region
      %144 = dma.done [#allocation15], 16
    $region73: #{tpu_custom_call.1} parent=1 // pred_fallthru
      _
    %v145 = vld [vmem:[#allocation2] sm:$0xff]
    %v146 = vld [vmem:[#allocation2 + $0x8] sm:$0xff]
    %v147 = vld [vmem:[#allocation5] sm:$0xff]
    %v148 = vld [vmem:[#allocation5 + $0x8] sm:$0xff]
    %v149 = vld [vmem:[#allocation5 + $0x10] sm:$0xff]
    %v150 = vld [vmem:[#allocation5 + $0x18] sm:$0xff]
    %v151 = vld [vmem:[#allocation5 + $0x20] sm:$0xff]
    %v152 = vld [vmem:[#allocation5 + $0x28] sm:$0xff]
    %v153 = vld [vmem:[#allocation5 + $0x30] sm:$0xff]
    %v154 = vld [vmem:[#allocation5 + $0x38] sm:$0xff]
    %v155 = vld [vmem:[#allocation5 + $0x40] sm:$0xff]
    %v156 = vld [vmem:[#allocation5 + $0x48] sm:$0xff]
    %v157 = vld [vmem:[#allocation5 + $0x50] sm:$0xff]
    %v158 = vld [vmem:[#allocation5 + $0x58] sm:$0xff]
    %v159 = vld [vmem:[#allocation5 + $0x60] sm:$0xff]
    %v160 = vld [vmem:[#allocation5 + $0x68] sm:$0xff]
    %v161 = vld [vmem:[#allocation5 + $0x70] sm:$0xff]
    %v162 = vld [vmem:[#allocation5 + $0x78] sm:$0xff]
    %v163 = vld [vmem:[#allocation5 + $0x80] sm:$0xff]
    %v164 = vld [vmem:[#allocation5 + $0x88] sm:$0xff]
    %v165 = vld [vmem:[#allocation5 + $0x90] sm:$0xff]
    %v166 = vld [vmem:[#allocation5 + $0x98] sm:$0xff]
    %v167 = vld [vmem:[#allocation5 + $0xa0] sm:$0xff]
    %v168 = vld [vmem:[#allocation5 + $0xa8] sm:$0xff]
    %v169 = vld [vmem:[#allocation5 + $0xb0] sm:$0xff]
    %v170 = vld [vmem:[#allocation5 + $0xb8] sm:$0xff]
    %v171 = vld [vmem:[#allocation5 + $0xc0] sm:$0xff]
    %v172 = vld [vmem:[#allocation5 + $0xc8] sm:$0xff]
    %v173 = vld [vmem:[#allocation5 + $0xd0] sm:$0xff]
    %v174 = vld [vmem:[#allocation5 + $0xd8] sm:$0xff]
    %v175 = vld [vmem:[#allocation5 + $0xe0] sm:$0xff]
    %v176 = vld [vmem:[#allocation5 + $0xe8] sm:$0xff]
    %v177 = vld [vmem:[#allocation5 + $0xf0] sm:$0xff]
    %v178 = vld [vmem:[#allocation5 + $0xf8] sm:$0xff]
    %v179 = vld [vmem:[#allocation5 + $0x100] sm:$0xff]
    %v180 = vld [vmem:[#allocation5 + $0x108] sm:$0xff]
    %v181 = vld [vmem:[#allocation5 + $0x110] sm:$0xff]
    %v182 = vld [vmem:[#allocation5 + $0x118] sm:$0xff]
    %v183 = vld [vmem:[#allocation5 + $0x120] sm:$0xff]
    %v184 = vld [vmem:[#allocation5 + $0x128] sm:$0xff]
    %v185 = vld [vmem:[#allocation5 + $0x130] sm:$0xff]
    %v186 = vld [vmem:[#allocation5 + $0x138] sm:$0xff]
    %v187 = vld [vmem:[#allocation5 + $0x140] sm:$0xff]
    %v188 = vld [vmem:[#allocation5 + $0x148] sm:$0xff]
    %v189 = vld [vmem:[#allocation5 + $0x150] sm:$0xff]
    %v190 = vld [vmem:[#allocation5 + $0x158] sm:$0xff]
    %v191 = vld [vmem:[#allocation5 + $0x160] sm:$0xff]
    %v192 = vld [vmem:[#allocation5 + $0x168] sm:$0xff]
    %v193 = vld [vmem:[#allocation5 + $0x170] sm:$0xff]
    %v194 = vld [vmem:[#allocation5 + $0x178] sm:$0xff]
    %v195 = vld [vmem:[#allocation5 + $0x180] sm:$0xff]
    %v196 = vld [vmem:[#allocation5 + $0x188] sm:$0xff]
    %v197 = vld [vmem:[#allocation5 + $0x190] sm:$0xff]
    %v198 = vld [vmem:[#allocation5 + $0x198] sm:$0xff]
    %v199 = vld [vmem:[#allocation5 + $0x1a0] sm:$0xff]
    %v200 = vld [vmem:[#allocation5 + $0x1a8] sm:$0xff]
    %v201 = vld [vmem:[#allocation5 + $0x1b0] sm:$0xff]
    %v202 = vld [vmem:[#allocation5 + $0x1b8] sm:$0xff]
    %v203 = vld [vmem:[#allocation5 + $0x1c0] sm:$0xff]
    %v204 = vld [vmem:[#allocation5 + $0x1c8] sm:$0xff]
    %v205 = vld [vmem:[#allocation5 + $0x1d0] sm:$0xff]
    %v206 = vld [vmem:[#allocation5 + $0x1d8] sm:$0xff]
    %v207 = vld [vmem:[#allocation5 + $0x1e0] sm:$0xff]
    %v208 = vld [vmem:[#allocation5 + $0x1e8] sm:$0xff]
    %v209 = vld [vmem:[#allocation5 + $0x1f0] sm:$0xff]
    %v210 = vld [vmem:[#allocation5 + $0x1f8] sm:$0xff]
    %v211 = vld [vmem:[#allocation5 + $0x200] sm:$0xff]
    %v212 = vld [vmem:[#allocation5 + $0x208] sm:$0xff]
    %v213 = vld [vmem:[#allocation5 + $0x210] sm:$0xff]
    %v214 = vld [vmem:[#allocation5 + $0x218] sm:$0xff]
    %v215 = vld [vmem:[#allocation5 + $0x220] sm:$0xff]
    %v216 = vld [vmem:[#allocation5 + $0x228] sm:$0xff]
    %v217 = vld [vmem:[#allocation5 + $0x230] sm:$0xff]
    %v218 = vld [vmem:[#allocation5 + $0x238] sm:$0xff]
    %v219 = vld [vmem:[#allocation5 + $0x240] sm:$0xff]
    %v220 = vld [vmem:[#allocation5 + $0x248] sm:$0xff]
    %v221 = vld [vmem:[#allocation5 + $0x250] sm:$0xff]
    %v222 = vld [vmem:[#allocation5 + $0x258] sm:$0xff]
    %v223 = vld [vmem:[#allocation5 + $0x260] sm:$0xff]
    %v224 = vld [vmem:[#allocation5 + $0x268] sm:$0xff]
    %v225 = vld [vmem:[#allocation5 + $0x270] sm:$0xff]
    %v226 = vld [vmem:[#allocation5 + $0x278] sm:$0xff]
    %v227 = vld [vmem:[#allocation5 + $0x280] sm:$0xff]
    %v228 = vld [vmem:[#allocation5 + $0x288] sm:$0xff]
    %v229 = vld [vmem:[#allocation5 + $0x290] sm:$0xff]
    %v230 = vld [vmem:[#allocation5 + $0x298] sm:$0xff]
    %v231 = vld [vmem:[#allocation5 + $0x2a0] sm:$0xff]
    %v232 = vld [vmem:[#allocation5 + $0x2a8] sm:$0xff]
    %v233 = vld [vmem:[#allocation5 + $0x2b0] sm:$0xff]
    %v234 = vld [vmem:[#allocation5 + $0x2b8] sm:$0xff]
    %v235 = vld [vmem:[#allocation5 + $0x2c0] sm:$0xff]
    %v236 = vld [vmem:[#allocation5 + $0x2c8] sm:$0xff]
    %v237 = vld [vmem:[#allocation5 + $0x2d0] sm:$0xff]
    %v238 = vld [vmem:[#allocation5 + $0x2d8] sm:$0xff]
    %v239 = vld [vmem:[#allocation5 + $0x2e0] sm:$0xff]
    %v240 = vld [vmem:[#allocation5 + $0x2e8] sm:$0xff]
    %v241 = vld [vmem:[#allocation5 + $0x2f0] sm:$0xff]
    %v242 = vld [vmem:[#allocation5 + $0x2f8] sm:$0xff]
    %v243 = vld [vmem:[#allocation5 + $0x300] sm:$0xff]
    %v244 = vld [vmem:[#allocation5 + $0x308] sm:$0xff]
    %v245 = vld [vmem:[#allocation5 + $0x310] sm:$0xff]
    %v246 = vld [vmem:[#allocation5 + $0x318] sm:$0xff]
    %v247 = vld [vmem:[#allocation5 + $0x320] sm:$0xff]
    %v248 = vld [vmem:[#allocation5 + $0x328] sm:$0xff]
    %v249 = vld [vmem:[#allocation5 + $0x330] sm:$0xff]
    %v250 = vld [vmem:[#allocation5 + $0x338] sm:$0xff]
    %v251 = vld [vmem:[#allocation5 + $0x340] sm:$0xff]
    %v252 = vld [vmem:[#allocation5 + $0x348] sm:$0xff]
    %v253 = vld [vmem:[#allocation5 + $0x350] sm:$0xff]
    %v254 = vld [vmem:[#allocation5 + $0x358] sm:$0xff]
    %v255 = vld [vmem:[#allocation5 + $0x360] sm:$0xff]
    %v256 = vld [vmem:[#allocation5 + $0x368] sm:$0xff]
    %v257 = vld [vmem:[#allocation5 + $0x370] sm:$0xff]
    %v258 = vld [vmem:[#allocation5 + $0x378] sm:$0xff]
    %v259 = vld [vmem:[#allocation5 + $0x380] sm:$0xff]
    %v260 = vld [vmem:[#allocation5 + $0x388] sm:$0xff]
    %v261 = vld [vmem:[#allocation5 + $0x390] sm:$0xff]
    %v262 = vld [vmem:[#allocation5 + $0x398] sm:$0xff]
    %v263 = vld [vmem:[#allocation5 + $0x3a0] sm:$0xff]
    %v264 = vld [vmem:[#allocation5 + $0x3a8] sm:$0xff]
    %v265 = vld [vmem:[#allocation5 + $0x3b0] sm:$0xff]
    %v266 = vld [vmem:[#allocation5 + $0x3b8] sm:$0xff]
    %v267 = vld [vmem:[#allocation5 + $0x3c0] sm:$0xff]
    %v268 = vld [vmem:[#allocation5 + $0x3c8] sm:$0xff]
    %v269 = vld [vmem:[#allocation5 + $0x3d0] sm:$0xff]
    %v270 = vld [vmem:[#allocation5 + $0x3d8] sm:$0xff]
    %v271 = vld [vmem:[#allocation5 + $0x3e0] sm:$0xff]
    %v272 = vld [vmem:[#allocation5 + $0x3e8] sm:$0xff]
    %v273 = vld [vmem:[#allocation5 + $0x3f0] sm:$0xff]
    %v274 = vld [vmem:[#allocation5 + $0x3f8] sm:$0xff]
    %v275 = vld [vmem:[#allocation5 + $0x400] sm:$0xff]
    %v276 = vld [vmem:[#allocation5 + $0x408] sm:$0xff]
    %v277 = vld [vmem:[#allocation5 + $0x410] sm:$0xff]
    %v278 = vld [vmem:[#allocation5 + $0x418] sm:$0xff]
    %v279 = vld [vmem:[#allocation5 + $0x420] sm:$0xff]
    %v280 = vld [vmem:[#allocation5 + $0x428] sm:$0xff]
    %v281 = vld [vmem:[#allocation5 + $0x430] sm:$0xff]
    %v282 = vld [vmem:[#allocation5 + $0x438] sm:$0xff]
    %v283 = vld [vmem:[#allocation5 + $0x440] sm:$0xff]
    %v284 = vld [vmem:[#allocation5 + $0x448] sm:$0xff]
    %v285 = vld [vmem:[#allocation5 + $0x450] sm:$0xff]
    %v286 = vld [vmem:[#allocation5 + $0x458] sm:$0xff]
    %v287 = vld [vmem:[#allocation5 + $0x460] sm:$0xff]
    %v288 = vld [vmem:[#allocation5 + $0x468] sm:$0xff]
    %v289 = vld [vmem:[#allocation5 + $0x470] sm:$0xff]
    %v290 = vld [vmem:[#allocation5 + $0x478] sm:$0xff]
    %v291 = vld [vmem:[#allocation5 + $0x480] sm:$0xff]
    %v292 = vld [vmem:[#allocation5 + $0x488] sm:$0xff]
    %v293 = vld [vmem:[#allocation5 + $0x490] sm:$0xff]
    %v294 = vld [vmem:[#allocation5 + $0x498] sm:$0xff]
    %v295 = vld [vmem:[#allocation5 + $0x4a0] sm:$0xff]
    %v296 = vld [vmem:[#allocation5 + $0x4a8] sm:$0xff]
    %v297 = vld [vmem:[#allocation5 + $0x4b0] sm:$0xff]
    %v298 = vld [vmem:[#allocation5 + $0x4b8] sm:$0xff]
    %v299 = vld [vmem:[#allocation5 + $0x4c0] sm:$0xff]
    %v300 = vld [vmem:[#allocation5 + $0x4c8] sm:$0xff]
    %v301 = vld [vmem:[#allocation5 + $0x4d0] sm:$0xff]
    %v302 = vld [vmem:[#allocation5 + $0x4d8] sm:$0xff]
    %v303 = vld [vmem:[#allocation5 + $0x4e0] sm:$0xff]
    %v304 = vld [vmem:[#allocation5 + $0x4e8] sm:$0xff]
    %v305 = vld [vmem:[#allocation5 + $0x4f0] sm:$0xff]
    %v306 = vld [vmem:[#allocation5 + $0x4f8] sm:$0xff]
    %v307 = vld [vmem:[#allocation5 + $0x500] sm:$0xff]
    %v308 = vld [vmem:[#allocation5 + $0x508] sm:$0xff]
    %v309 = vld [vmem:[#allocation5 + $0x510] sm:$0xff]
    %v310 = vld [vmem:[#allocation5 + $0x518] sm:$0xff]
    %v311 = vld [vmem:[#allocation5 + $0x520] sm:$0xff]
    %v312 = vld [vmem:[#allocation5 + $0x528] sm:$0xff]
    %v313 = vld [vmem:[#allocation5 + $0x530] sm:$0xff]
    %v314 = vld [vmem:[#allocation5 + $0x538] sm:$0xff]
    %v315 = vld [vmem:[#allocation5 + $0x540] sm:$0xff]
    %v316 = vld [vmem:[#allocation5 + $0x548] sm:$0xff]
    %v317 = vld [vmem:[#allocation5 + $0x550] sm:$0xff]
    %v318 = vld [vmem:[#allocation5 + $0x558] sm:$0xff]
    %v319 = vld [vmem:[#allocation5 + $0x560] sm:$0xff]
    %v320 = vld [vmem:[#allocation5 + $0x568] sm:$0xff]
    %v321 = vld [vmem:[#allocation5 + $0x570] sm:$0xff]
    %v322 = vld [vmem:[#allocation5 + $0x578] sm:$0xff]
    %v323 = vld [vmem:[#allocation5 + $0x580] sm:$0xff]
    %v324 = vld [vmem:[#allocation5 + $0x588] sm:$0xff]
    %v325 = vld [vmem:[#allocation5 + $0x590] sm:$0xff]
    %v326 = vld [vmem:[#allocation5 + $0x598] sm:$0xff]
    %v327 = vld [vmem:[#allocation5 + $0x5a0] sm:$0xff]
    %v328 = vld [vmem:[#allocation5 + $0x5a8] sm:$0xff]
    %v329 = vld [vmem:[#allocation5 + $0x5b0] sm:$0xff]
    %v330 = vld [vmem:[#allocation5 + $0x5b8] sm:$0xff]
    %v331 = vld [vmem:[#allocation5 + $0x5c0] sm:$0xff]
    %v332 = vld [vmem:[#allocation5 + $0x5c8] sm:$0xff]
    %v333 = vld [vmem:[#allocation5 + $0x5d0] sm:$0xff]
    %v334 = vld [vmem:[#allocation5 + $0x5d8] sm:$0xff]
    %v335 = vld [vmem:[#allocation5 + $0x5e0] sm:$0xff]
    %v336 = vld [vmem:[#allocation5 + $0x5e8] sm:$0xff]
    %v337 = vld [vmem:[#allocation5 + $0x5f0] sm:$0xff]
    %v338 = vld [vmem:[#allocation5 + $0x5f8] sm:$0xff]
    %v339 = vld [vmem:[#allocation5 + $0x600] sm:$0xff]
    %v340 = vld [vmem:[#allocation5 + $0x608] sm:$0xff]
    %v341 = vld [vmem:[#allocation5 + $0x610] sm:$0xff]
    %v342 = vld [vmem:[#allocation5 + $0x618] sm:$0xff]
    %v343 = vld [vmem:[#allocation5 + $0x620] sm:$0xff]
    %v344 = vld [vmem:[#allocation5 + $0x628] sm:$0xff]
    %v345 = vld [vmem:[#allocation5 + $0x630] sm:$0xff]
    %v346 = vld [vmem:[#allocation5 + $0x638] sm:$0xff]
    %v347 = vld [vmem:[#allocation5 + $0x640] sm:$0xff]
    %v348 = vld [vmem:[#allocation5 + $0x648] sm:$0xff]
    %v349 = vld [vmem:[#allocation5 + $0x650] sm:$0xff]
    %v350 = vld [vmem:[#allocation5 + $0x658] sm:$0xff]
    %v351 = vld [vmem:[#allocation5 + $0x660] sm:$0xff]
    %v352 = vld [vmem:[#allocation5 + $0x668] sm:$0xff]
    %v353 = vld [vmem:[#allocation5 + $0x670] sm:$0xff]
    %v354 = vld [vmem:[#allocation5 + $0x678] sm:$0xff]
    %v355 = vld [vmem:[#allocation5 + $0x680] sm:$0xff]
    %v356 = vld [vmem:[#allocation5 + $0x688] sm:$0xff]
    %v357 = vld [vmem:[#allocation5 + $0x690] sm:$0xff]
    %v358 = vld [vmem:[#allocation5 + $0x698] sm:$0xff]
    %v359 = vld [vmem:[#allocation5 + $0x6a0] sm:$0xff]
    %v360 = vld [vmem:[#allocation5 + $0x6a8] sm:$0xff]
    %v361 = vld [vmem:[#allocation5 + $0x6b0] sm:$0xff]
    %v362 = vld [vmem:[#allocation5 + $0x6b8] sm:$0xff]
    %v363 = vld [vmem:[#allocation5 + $0x6c0] sm:$0xff]
    %v364 = vld [vmem:[#allocation5 + $0x6c8] sm:$0xff]
    %v365 = vld [vmem:[#allocation5 + $0x6d0] sm:$0xff]
    %v366 = vld [vmem:[#allocation5 + $0x6d8] sm:$0xff]
    %v367 = vld [vmem:[#allocation5 + $0x6e0] sm:$0xff]
    %v368 = vld [vmem:[#allocation5 + $0x6e8] sm:$0xff]
    %v369 = vld [vmem:[#allocation5 + $0x6f0] sm:$0xff]
    %v370 = vld [vmem:[#allocation5 + $0x6f8] sm:$0xff]
    %v371 = vld [vmem:[#allocation5 + $0x700] sm:$0xff]
    %v372 = vld [vmem:[#allocation5 + $0x708] sm:$0xff]
    %v373 = vld [vmem:[#allocation5 + $0x710] sm:$0xff]
    %v374 = vld [vmem:[#allocation5 + $0x718] sm:$0xff]
    %v375 = vld [vmem:[#allocation5 + $0x720] sm:$0xff]
    %v376 = vld [vmem:[#allocation5 + $0x728] sm:$0xff]
    %v377 = vld [vmem:[#allocation5 + $0x730] sm:$0xff]
    %v378 = vld [vmem:[#allocation5 + $0x738] sm:$0xff]
    %v379 = vld [vmem:[#allocation5 + $0x740] sm:$0xff]
    %v380 = vld [vmem:[#allocation5 + $0x748] sm:$0xff]
    %v381 = vld [vmem:[#allocation5 + $0x750] sm:$0xff]
    %v382 = vld [vmem:[#allocation5 + $0x758] sm:$0xff]
    %v383 = vld [vmem:[#allocation5 + $0x760] sm:$0xff]
    %v384 = vld [vmem:[#allocation5 + $0x768] sm:$0xff]
    %v385 = vld [vmem:[#allocation5 + $0x770] sm:$0xff]
    %v386 = vld [vmem:[#allocation5 + $0x778] sm:$0xff]
    %v387 = vld [vmem:[#allocation5 + $0x780] sm:$0xff]
    %v388 = vld [vmem:[#allocation5 + $0x788] sm:$0xff]
    %v389 = vld [vmem:[#allocation5 + $0x790] sm:$0xff]
    %v390 = vld [vmem:[#allocation5 + $0x798] sm:$0xff]
    %v391 = vld [vmem:[#allocation5 + $0x7a0] sm:$0xff]
    %v392 = vld [vmem:[#allocation5 + $0x7a8] sm:$0xff]
    %v393 = vld [vmem:[#allocation5 + $0x7b0] sm:$0xff]
    %v394 = vld [vmem:[#allocation5 + $0x7b8] sm:$0xff]
    %v395 = vld [vmem:[#allocation5 + $0x7c0] sm:$0xff]
    %v396 = vld [vmem:[#allocation5 + $0x7c8] sm:$0xff]
    %v397 = vld [vmem:[#allocation5 + $0x7d0] sm:$0xff]
    %v398 = vld [vmem:[#allocation5 + $0x7d8] sm:$0xff]
    %v399 = vld [vmem:[#allocation5 + $0x7e0] sm:$0xff]
    %v400 = vld [vmem:[#allocation5 + $0x7e8] sm:$0xff]
    %v401 = vld [vmem:[#allocation5 + $0x7f0] sm:$0xff]
    %v402 = vld [vmem:[#allocation5 + $0x7f8] sm:$0xff]
    %v403 = vld [vmem:[#allocation5 + $0x800] sm:$0xff]
    %v404 = vld [vmem:[#allocation5 + $0x808] sm:$0xff]
    %v405 = vld [vmem:[#allocation5 + $0x810] sm:$0xff]
    %v406 = vld [vmem:[#allocation5 + $0x818] sm:$0xff]
    %v407 = vld [vmem:[#allocation5 + $0x820] sm:$0xff]
    %v408 = vld [vmem:[#allocation5 + $0x828] sm:$0xff]
    %v409 = vld [vmem:[#allocation5 + $0x830] sm:$0xff]
    %v410 = vld [vmem:[#allocation5 + $0x838] sm:$0xff]
    %v411 = vld [vmem:[#allocation5 + $0x840] sm:$0xff]
    %v412 = vld [vmem:[#allocation5 + $0x848] sm:$0xff]
    %v413 = vld [vmem:[#allocation5 + $0x850] sm:$0xff]
    %v414 = vld [vmem:[#allocation5 + $0x858] sm:$0xff]
    %v415 = vld [vmem:[#allocation5 + $0x860] sm:$0xff]
    %v416 = vld [vmem:[#allocation5 + $0x868] sm:$0xff]
    %v417 = vld [vmem:[#allocation5 + $0x870] sm:$0xff]
    %v418 = vld [vmem:[#allocation5 + $0x878] sm:$0xff]
    %v419 = vld [vmem:[#allocation5 + $0x880] sm:$0xff]
    %v420 = vld [vmem:[#allocation5 + $0x888] sm:$0xff]
    %v421 = vld [vmem:[#allocation5 + $0x890] sm:$0xff]
    %v422 = vld [vmem:[#allocation5 + $0x898] sm:$0xff]
    %v423 = vld [vmem:[#allocation5 + $0x8a0] sm:$0xff]
    %v424 = vld [vmem:[#allocation5 + $0x8a8] sm:$0xff]
    %v425 = vld [vmem:[#allocation5 + $0x8b0] sm:$0xff]
    %v426 = vld [vmem:[#allocation5 + $0x8b8] sm:$0xff]
    %v427 = vld [vmem:[#allocation5 + $0x8c0] sm:$0xff]
    %v428 = vld [vmem:[#allocation5 + $0x8c8] sm:$0xff]
    %v429 = vld [vmem:[#allocation5 + $0x8d0] sm:$0xff]
    %v430 = vld [vmem:[#allocation5 + $0x8d8] sm:$0xff]
    %v431 = vld [vmem:[#allocation5 + $0x8e0] sm:$0xff]
    %v432 = vld [vmem:[#allocation5 + $0x8e8] sm:$0xff]
    %v433 = vld [vmem:[#allocation5 + $0x8f0] sm:$0xff]
    %v434 = vld [vmem:[#allocation5 + $0x8f8] sm:$0xff]
    %v435 = vld [vmem:[#allocation5 + $0x900] sm:$0xff]
    %v436 = vld [vmem:[#allocation5 + $0x908] sm:$0xff]
    %v437 = vld [vmem:[#allocation5 + $0x910] sm:$0xff]
    %v438 = vld [vmem:[#allocation5 + $0x918] sm:$0xff]
    %v439 = vld [vmem:[#allocation5 + $0x920] sm:$0xff]
    %v440 = vld [vmem:[#allocation5 + $0x928] sm:$0xff]
    %v441 = vld [vmem:[#allocation5 + $0x930] sm:$0xff]
    %v442 = vld [vmem:[#allocation5 + $0x938] sm:$0xff]
    %v443 = vld [vmem:[#allocation5 + $0x940] sm:$0xff]
    %v444 = vld [vmem:[#allocation5 + $0x948] sm:$0xff]
    %v445 = vld [vmem:[#allocation5 + $0x950] sm:$0xff]
    %v446 = vld [vmem:[#allocation5 + $0x958] sm:$0xff]
    %v447 = vld [vmem:[#allocation5 + $0x960] sm:$0xff]
    %v448 = vld [vmem:[#allocation5 + $0x968] sm:$0xff]
    %v449 = vld [vmem:[#allocation5 + $0x970] sm:$0xff]
    %v450 = vld [vmem:[#allocation5 + $0x978] sm:$0xff]
    %v451 = vld [vmem:[#allocation5 + $0x980] sm:$0xff]
    %v452 = vld [vmem:[#allocation5 + $0x988] sm:$0xff]
    %v453 = vld [vmem:[#allocation5 + $0x990] sm:$0xff]
    %v454 = vld [vmem:[#allocation5 + $0x998] sm:$0xff]
    %v455 = vld [vmem:[#allocation5 + $0x9a0] sm:$0xff]
    %v456 = vld [vmem:[#allocation5 + $0x9a8] sm:$0xff]
    %v457 = vld [vmem:[#allocation5 + $0x9b0] sm:$0xff]
    %v458 = vld [vmem:[#allocation5 + $0x9b8] sm:$0xff]
    %v459 = vld [vmem:[#allocation5 + $0x9c0] sm:$0xff]
    %v460 = vld [vmem:[#allocation5 + $0x9c8] sm:$0xff]
    %v461 = vld [vmem:[#allocation5 + $0x9d0] sm:$0xff]
    %v462 = vld [vmem:[#allocation5 + $0x9d8] sm:$0xff]
    %v463 = vld [vmem:[#allocation5 + $0x9e0] sm:$0xff]
    %v464 = vld [vmem:[#allocation5 + $0x9e8] sm:$0xff]
    %v465 = vld [vmem:[#allocation5 + $0x9f0] sm:$0xff]
    %v466 = vld [vmem:[#allocation5 + $0x9f8] sm:$0xff]
    %v467 = vld [vmem:[#allocation5 + $0xa00] sm:$0xff]
    %v468 = vld [vmem:[#allocation5 + $0xa08] sm:$0xff]
    %v469 = vld [vmem:[#allocation5 + $0xa10] sm:$0xff]
    %v470 = vld [vmem:[#allocation5 + $0xa18] sm:$0xff]
    %v471 = vld [vmem:[#allocation5 + $0xa20] sm:$0xff]
    %v472 = vld [vmem:[#allocation5 + $0xa28] sm:$0xff]
    %v473 = vld [vmem:[#allocation5 + $0xa30] sm:$0xff]
    %v474 = vld [vmem:[#allocation5 + $0xa38] sm:$0xff]
    %v475 = vld [vmem:[#allocation5 + $0xa40] sm:$0xff]
    %v476 = vld [vmem:[#allocation5 + $0xa48] sm:$0xff]
    %v477 = vld [vmem:[#allocation5 + $0xa50] sm:$0xff]
    %v478 = vld [vmem:[#allocation5 + $0xa58] sm:$0xff]
    %v479 = vld [vmem:[#allocation5 + $0xa60] sm:$0xff]
    %v480 = vld [vmem:[#allocation5 + $0xa68] sm:$0xff]
    %v481 = vld [vmem:[#allocation5 + $0xa70] sm:$0xff]
    %v482 = vld [vmem:[#allocation5 + $0xa78] sm:$0xff]
    %v483 = vld [vmem:[#allocation5 + $0xa80] sm:$0xff]
    %v484 = vld [vmem:[#allocation5 + $0xa88] sm:$0xff]
    %v485 = vld [vmem:[#allocation5 + $0xa90] sm:$0xff]
    %v486 = vld [vmem:[#allocation5 + $0xa98] sm:$0xff]
    %v487 = vld [vmem:[#allocation5 + $0xaa0] sm:$0xff]
    %v488 = vld [vmem:[#allocation5 + $0xaa8] sm:$0xff]
    %v489 = vld [vmem:[#allocation5 + $0xab0] sm:$0xff]
    %v490 = vld [vmem:[#allocation5 + $0xab8] sm:$0xff]
    %v491 = vld [vmem:[#allocation5 + $0xac0] sm:$0xff]
    %v492 = vld [vmem:[#allocation5 + $0xac8] sm:$0xff]
    %v493 = vld [vmem:[#allocation5 + $0xad0] sm:$0xff]
    %v494 = vld [vmem:[#allocation5 + $0xad8] sm:$0xff]
    %v495 = vld [vmem:[#allocation5 + $0xae0] sm:$0xff]
    %v496 = vld [vmem:[#allocation5 + $0xae8] sm:$0xff]
    %v497 = vld [vmem:[#allocation5 + $0xaf0] sm:$0xff]
    %v498 = vld [vmem:[#allocation5 + $0xaf8] sm:$0xff]
    %v499 = vld [vmem:[#allocation5 + $0xb00] sm:$0xff]
    %v500 = vld [vmem:[#allocation5 + $0xb08] sm:$0xff]
    %v501 = vld [vmem:[#allocation5 + $0xb10] sm:$0xff]
    %v502 = vld [vmem:[#allocation5 + $0xb18] sm:$0xff]
    %v503 = vld [vmem:[#allocation5 + $0xb20] sm:$0xff]
    %v504 = vld [vmem:[#allocation5 + $0xb28] sm:$0xff]
    %v505 = vld [vmem:[#allocation5 + $0xb30] sm:$0xff]
    %v506 = vld [vmem:[#allocation5 + $0xb38] sm:$0xff]
    %v507 = vld [vmem:[#allocation5 + $0xb40] sm:$0xff]
    %v508 = vld [vmem:[#allocation5 + $0xb48] sm:$0xff]
    %v509 = vld [vmem:[#allocation5 + $0xb50] sm:$0xff]
    %v510 = vld [vmem:[#allocation5 + $0xb58] sm:$0xff]
    %v511 = vld [vmem:[#allocation5 + $0xb60] sm:$0xff]
    %v512 = vld [vmem:[#allocation5 + $0xb68] sm:$0xff]
    %v513 = vld [vmem:[#allocation5 + $0xb70] sm:$0xff]
    %v514 = vld [vmem:[#allocation5 + $0xb78] sm:$0xff]
    %v515 = vld [vmem:[#allocation5 + $0xb80] sm:$0xff]
    %v516 = vld [vmem:[#allocation5 + $0xb88] sm:$0xff]
    %v517 = vld [vmem:[#allocation5 + $0xb90] sm:$0xff]
    %v518 = vld [vmem:[#allocation5 + $0xb98] sm:$0xff]
    %v519 = vld [vmem:[#allocation5 + $0xba0] sm:$0xff]
    %v520 = vld [vmem:[#allocation5 + $0xba8] sm:$0xff]
    %v521 = vld [vmem:[#allocation5 + $0xbb0] sm:$0xff]
    %v522 = vld [vmem:[#allocation5 + $0xbb8] sm:$0xff]
    %v523 = vld [vmem:[#allocation5 + $0xbc0] sm:$0xff]
    %v524 = vld [vmem:[#allocation5 + $0xbc8] sm:$0xff]
    %v525 = vld [vmem:[#allocation5 + $0xbd0] sm:$0xff]
    %v526 = vld [vmem:[#allocation5 + $0xbd8] sm:$0xff]
    %v527 = vld [vmem:[#allocation5 + $0xbe0] sm:$0xff]
    %v528 = vld [vmem:[#allocation5 + $0xbe8] sm:$0xff]
    %v529 = vld [vmem:[#allocation5 + $0xbf0] sm:$0xff]
    %v530 = vld [vmem:[#allocation5 + $0xbf8] sm:$0xff]
    %v531 = vld [vmem:[#allocation5 + $0xc00] sm:$0xff]
    %v532 = vld [vmem:[#allocation5 + $0xc08] sm:$0xff]
    %v533 = vld [vmem:[#allocation5 + $0xc10] sm:$0xff]
    %v534 = vld [vmem:[#allocation5 + $0xc18] sm:$0xff]
    %v535 = vld [vmem:[#allocation5 + $0xc20] sm:$0xff]
    %v536 = vld [vmem:[#allocation5 + $0xc28] sm:$0xff]
    %v537 = vld [vmem:[#allocation5 + $0xc30] sm:$0xff]
    %v538 = vld [vmem:[#allocation5 + $0xc38] sm:$0xff]
    %v539 = vld [vmem:[#allocation5 + $0xc40] sm:$0xff]
    %v540 = vld [vmem:[#allocation5 + $0xc48] sm:$0xff]
    %v541 = vld [vmem:[#allocation5 + $0xc50] sm:$0xff]
    %v542 = vld [vmem:[#allocation5 + $0xc58] sm:$0xff]
    %v543 = vld [vmem:[#allocation5 + $0xc60] sm:$0xff]
    %v544 = vld [vmem:[#allocation5 + $0xc68] sm:$0xff]
    %v545 = vld [vmem:[#allocation5 + $0xc70] sm:$0xff]
    %v546 = vld [vmem:[#allocation5 + $0xc78] sm:$0xff]
    %v547 = vld [vmem:[#allocation5 + $0xc80] sm:$0xff]
    %v548 = vld [vmem:[#allocation5 + $0xc88] sm:$0xff]
    %v549 = vld [vmem:[#allocation5 + $0xc90] sm:$0xff]
    %v550 = vld [vmem:[#allocation5 + $0xc98] sm:$0xff]
    %v551 = vld [vmem:[#allocation5 + $0xca0] sm:$0xff]
    %v552 = vld [vmem:[#allocation5 + $0xca8] sm:$0xff]
    %v553 = vld [vmem:[#allocation5 + $0xcb0] sm:$0xff]
    %v554 = vld [vmem:[#allocation5 + $0xcb8] sm:$0xff]
    %v555 = vld [vmem:[#allocation5 + $0xcc0] sm:$0xff]
    %v556 = vld [vmem:[#allocation5 + $0xcc8] sm:$0xff]
    %v557 = vld [vmem:[#allocation5 + $0xcd0] sm:$0xff]
    %v558 = vld [vmem:[#allocation5 + $0xcd8] sm:$0xff]
    %v559 = vld [vmem:[#allocation5 + $0xce0] sm:$0xff]
    %v560 = vld [vmem:[#allocation5 + $0xce8] sm:$0xff]
    %v561 = vld [vmem:[#allocation5 + $0xcf0] sm:$0xff]
    %v562 = vld [vmem:[#allocation5 + $0xcf8] sm:$0xff]
    %v563 = vld [vmem:[#allocation5 + $0xd00] sm:$0xff]
    %v564 = vld [vmem:[#allocation5 + $0xd08] sm:$0xff]
    %v565 = vld [vmem:[#allocation5 + $0xd10] sm:$0xff]
    %v566 = vld [vmem:[#allocation5 + $0xd18] sm:$0xff]
    %v567 = vld [vmem:[#allocation5 + $0xd20] sm:$0xff]
    %v568 = vld [vmem:[#allocation5 + $0xd28] sm:$0xff]
    %v569 = vld [vmem:[#allocation5 + $0xd30] sm:$0xff]
    %v570 = vld [vmem:[#allocation5 + $0xd38] sm:$0xff]
    %v571 = vld [vmem:[#allocation5 + $0xd40] sm:$0xff]
    %v572 = vld [vmem:[#allocation5 + $0xd48] sm:$0xff]
    %v573 = vld [vmem:[#allocation5 + $0xd50] sm:$0xff]
    %v574 = vld [vmem:[#allocation5 + $0xd58] sm:$0xff]
    %v575 = vld [vmem:[#allocation5 + $0xd60] sm:$0xff]
    %v576 = vld [vmem:[#allocation5 + $0xd68] sm:$0xff]
    %v577 = vld [vmem:[#allocation5 + $0xd70] sm:$0xff]
    %v578 = vld [vmem:[#allocation5 + $0xd78] sm:$0xff]
    %v579 = vld [vmem:[#allocation5 + $0xd80] sm:$0xff]
    %v580 = vld [vmem:[#allocation5 + $0xd88] sm:$0xff]
    %v581 = vld [vmem:[#allocation5 + $0xd90] sm:$0xff]
    %v582 = vld [vmem:[#allocation5 + $0xd98] sm:$0xff]
    %v583 = vld [vmem:[#allocation5 + $0xda0] sm:$0xff]
    %v584 = vld [vmem:[#allocation5 + $0xda8] sm:$0xff]
    %v585 = vld [vmem:[#allocation5 + $0xdb0] sm:$0xff]
    %v586 = vld [vmem:[#allocation5 + $0xdb8] sm:$0xff]
    %v587 = vld [vmem:[#allocation5 + $0xdc0] sm:$0xff]
    %v588 = vld [vmem:[#allocation5 + $0xdc8] sm:$0xff]
    %v589 = vld [vmem:[#allocation5 + $0xdd0] sm:$0xff]
    %v590 = vld [vmem:[#allocation5 + $0xdd8] sm:$0xff]
    %v591 = vld [vmem:[#allocation5 + $0xde0] sm:$0xff]
    %v592 = vld [vmem:[#allocation5 + $0xde8] sm:$0xff]
    %v593 = vld [vmem:[#allocation5 + $0xdf0] sm:$0xff]
    %v594 = vld [vmem:[#allocation5 + $0xdf8] sm:$0xff]
    %v595 = vld [vmem:[#allocation5 + $0xe00] sm:$0xff]
    %v596 = vld [vmem:[#allocation5 + $0xe08] sm:$0xff]
    %v597 = vld [vmem:[#allocation5 + $0xe10] sm:$0xff]
    %v598 = vld [vmem:[#allocation5 + $0xe18] sm:$0xff]
    %v599 = vld [vmem:[#allocation5 + $0xe20] sm:$0xff]
    %v600 = vld [vmem:[#allocation5 + $0xe28] sm:$0xff]
    %v601 = vld [vmem:[#allocation5 + $0xe30] sm:$0xff]
    %v602 = vld [vmem:[#allocation5 + $0xe38] sm:$0xff]
    %v603 = vld [vmem:[#allocation5 + $0xe40] sm:$0xff]
    %v604 = vld [vmem:[#allocation5 + $0xe48] sm:$0xff]
    %v605 = vld [vmem:[#allocation5 + $0xe50] sm:$0xff]
    %v606 = vld [vmem:[#allocation5 + $0xe58] sm:$0xff]
    %v607 = vld [vmem:[#allocation5 + $0xe60] sm:$0xff]
    %v608 = vld [vmem:[#allocation5 + $0xe68] sm:$0xff]
    %v609 = vld [vmem:[#allocation5 + $0xe70] sm:$0xff]
    %v610 = vld [vmem:[#allocation5 + $0xe78] sm:$0xff]
    %v611 = vld [vmem:[#allocation5 + $0xe80] sm:$0xff]
    %v612 = vld [vmem:[#allocation5 + $0xe88] sm:$0xff]
    %v613 = vld [vmem:[#allocation5 + $0xe90] sm:$0xff]
    %v614 = vld [vmem:[#allocation5 + $0xe98] sm:$0xff]
    %v615 = vld [vmem:[#allocation5 + $0xea0] sm:$0xff]
    %v616 = vld [vmem:[#allocation5 + $0xea8] sm:$0xff]
    %v617 = vld [vmem:[#allocation5 + $0xeb0] sm:$0xff]
    %v618 = vld [vmem:[#allocation5 + $0xeb8] sm:$0xff]
    %v619 = vld [vmem:[#allocation5 + $0xec0] sm:$0xff]
    %v620 = vld [vmem:[#allocation5 + $0xec8] sm:$0xff]
    %v621 = vld [vmem:[#allocation5 + $0xed0] sm:$0xff]
    %v622 = vld [vmem:[#allocation5 + $0xed8] sm:$0xff]
    %v623 = vld [vmem:[#allocation5 + $0xee0] sm:$0xff]
    %v624 = vld [vmem:[#allocation5 + $0xee8] sm:$0xff]
    %v625 = vld [vmem:[#allocation5 + $0xef0] sm:$0xff]
    %v626 = vld [vmem:[#allocation5 + $0xef8] sm:$0xff]
    %v627 = vld [vmem:[#allocation5 + $0xf00] sm:$0xff]
    %v628 = vld [vmem:[#allocation5 + $0xf08] sm:$0xff]
    %v629 = vld [vmem:[#allocation5 + $0xf10] sm:$0xff]
    %v630 = vld [vmem:[#allocation5 + $0xf18] sm:$0xff]
    %v631 = vld [vmem:[#allocation5 + $0xf20] sm:$0xff]
    %v632 = vld [vmem:[#allocation5 + $0xf28] sm:$0xff]
    %v633 = vld [vmem:[#allocation5 + $0xf30] sm:$0xff]
    %v634 = vld [vmem:[#allocation5 + $0xf38] sm:$0xff]
    %v635 = vld [vmem:[#allocation5 + $0xf40] sm:$0xff]
    %v636 = vld [vmem:[#allocation5 + $0xf48] sm:$0xff]
    %v637 = vld [vmem:[#allocation5 + $0xf50] sm:$0xff]
    %v638 = vld [vmem:[#allocation5 + $0xf58] sm:$0xff]
    %v639 = vld [vmem:[#allocation5 + $0xf60] sm:$0xff]
    %v640 = vld [vmem:[#allocation5 + $0xf68] sm:$0xff]
    %v641 = vld [vmem:[#allocation5 + $0xf70] sm:$0xff]
    %v642 = vld [vmem:[#allocation5 + $0xf78] sm:$0xff]
    %v643 = vld [vmem:[#allocation5 + $0xf80] sm:$0xff]
    %v644 = vld [vmem:[#allocation5 + $0xf88] sm:$0xff]
    %v645 = vld [vmem:[#allocation5 + $0xf90] sm:$0xff]
    %v646 = vld [vmem:[#allocation5 + $0xf98] sm:$0xff]
    %v647 = vld [vmem:[#allocation5 + $0xfa0] sm:$0xff]
    %v648 = vld [vmem:[#allocation5 + $0xfa8] sm:$0xff]
    %v649 = vld [vmem:[#allocation5 + $0xfb0] sm:$0xff]
    %v650 = vld [vmem:[#allocation5 + $0xfb8] sm:$0xff]
    %v651 = vld [vmem:[#allocation5 + $0xfc0] sm:$0xff]
    %v652 = vld [vmem:[#allocation5 + $0xfc8] sm:$0xff]
    %v653 = vld [vmem:[#allocation5 + $0xfd0] sm:$0xff]
    %v654 = vld [vmem:[#allocation5 + $0xfd8] sm:$0xff]
    %v655 = vld [vmem:[#allocation5 + $0xfe0] sm:$0xff]
    %v656 = vld [vmem:[#allocation5 + $0xfe8] sm:$0xff]
    %v657 = vld [vmem:[#allocation5 + $0xff0] sm:$0xff]
    %v658 = vld [vmem:[#allocation5 + $0xff8] sm:$0xff]
    %659 = vmatprep.subr.mxu0 %v148
    %660 = vmatpush1.msra.mxu0 %v147
    %661 = vmatprep.subr.mxu0 %v164
    %662 = vmatpush1.msra.mxu0 %v163
    %663 = vmatprep.subr.mxu0 %v180
    %664 = vmatpush1.msra.mxu0 %v179
    %665 = vmatprep.subr.mxu0 %v196
    %666 = vmatpush1.msra.mxu0 %v195
    %667 = vmatprep.subr.mxu0 %v212
    %668 = vmatpush1.msra.mxu0 %v211
    %669 = vmatprep.subr.mxu0 %v228
    %670 = vmatpush1.msra.mxu0 %v227
    %671 = vmatprep.subr.mxu0 %v244
    %672 = vmatpush1.msra.mxu0 %v243
    %673 = vmatprep.subr.mxu0 %v260
    %674 = vmatpush1.msra.mxu0 %v259
    %675 = vmatprep.subr.mxu0 %v276
    %676 = vmatpush1.msra.mxu0 %v275
    %677 = vmatprep.subr.mxu0 %v292
    %678 = vmatpush1.msra.mxu0 %v291
    %679 = vmatprep.subr.mxu0 %v308
    %680 = vmatpush1.msra.mxu0 %v307
    %681 = vmatprep.subr.mxu0 %v324
    %682 = vmatpush1.msra.mxu0 %v323
    %683 = vmatprep.subr.mxu0 %v340
    %684 = vmatpush1.msra.mxu0 %v339
    %685 = vmatprep.subr.mxu0 %v356
    %686 = vmatpush1.msra.mxu0 %v355
    %687 = vmatprep.subr.mxu0 %v372
    %688 = vmatpush1.msra.mxu0 %v371
    %689 = vmatprep.subr.mxu0 %v388
    %690 = vmatpush1.msra.mxu0 %v387
    %691 = vmatprep.subr.mxu0 %v404
    %692 = vmatpush1.msra.mxu0 %v403
    %693 = vmatprep.subr.mxu0 %v420
    %694 = vmatpush1.msra.mxu0 %v419
    %695 = vmatprep.subr.mxu0 %v436
    %696 = vmatpush1.msra.mxu0 %v435
    %697 = vmatprep.subr.mxu0 %v452
    %698 = vmatpush1.msra.mxu0 %v451
    %699 = vmatprep.subr.mxu0 %v468
    %700 = vmatpush1.msra.mxu0 %v467
    %701 = vmatprep.subr.mxu0 %v484
    %702 = vmatpush1.msra.mxu0 %v483
    %703 = vmatprep.subr.mxu0 %v500
    %704 = vmatpush1.msra.mxu0 %v499
    %705 = vmatprep.subr.mxu0 %v516
    %706 = vmatpush1.msra.mxu0 %v515
    %707 = vmatprep.subr.mxu0 %v532
    %708 = vmatpush1.msra.mxu0 %v531
    %709 = vmatprep.subr.mxu0 %v548
    %710 = vmatpush1.msra.mxu0 %v547
    %711 = vmatprep.subr.mxu0 %v564
    %712 = vmatpush1.msra.mxu0 %v563
    %713 = vmatprep.subr.mxu0 %v580
    %714 = vmatpush1.msra.mxu0 %v579
    %715 = vmatprep.subr.mxu0 %v596
    %716 = vmatpush1.msra.mxu0 %v595
    %717 = vmatprep.subr.mxu0 %v612
    %718 = vmatpush1.msra.mxu0 %v611
    %719 = vmatprep.subr.mxu0 %v628
    %720 = vmatpush1.msra.mxu0 %v627
    %721 = vmatprep.subr.mxu0 %v644
    %722 = vmatpush1.msra.mxu0 %v643
    %723 = vmatprep.mubr.f32.mxu0 %v146
    %724 = vmatmul.mubr.f32.gmra.mrb[0].mxu0 %v145
    %v725 = vpop.f32.mrb[0].mxu0
    %v726 = vadd.f32 0.0, %v725
    %v727 = vpop.f32.mrb[0].mxu0
    %v728 = vadd.f32 0.0, %v727
    %729 = vdwg.mxu0
    %730 = vmatprep.subr.mxu0 %v150
    %731 = vmatpush1.msra.mxu0 %v149
    %732 = vmatprep.subr.mxu0 %v166
    %733 = vmatpush1.msra.mxu0 %v165
    %734 = vmatprep.subr.mxu0 %v182
    %735 = vmatpush1.msra.mxu0 %v181
    %736 = vmatprep.subr.mxu0 %v198
    %737 = vmatpush1.msra.mxu0 %v197
    %738 = vmatprep.subr.mxu0 %v214
    %739 = vmatpush1.msra.mxu0 %v213
    %740 = vmatprep.subr.mxu0 %v230
    %741 = vmatpush1.msra.mxu0 %v229
    %742 = vmatprep.subr.mxu0 %v246
    %743 = vmatpush1.msra.mxu0 %v245
    %744 = vmatprep.subr.mxu0 %v262
    %745 = vmatpush1.msra.mxu0 %v261
    %746 = vmatprep.subr.mxu0 %v278
    %747 = vmatpush1.msra.mxu0 %v277
    %748 = vmatprep.subr.mxu0 %v294
    %749 = vmatpush1.msra.mxu0 %v293
    %750 = vmatprep.subr.mxu0 %v310
    %751 = vmatpush1.msra.mxu0 %v309
    %752 = vmatprep.subr.mxu0 %v326
    %753 = vmatpush1.msra.mxu0 %v325
    %754 = vmatprep.subr.mxu0 %v342
    %755 = vmatpush1.msra.mxu0 %v341
    %756 = vmatprep.subr.mxu0 %v358
    %757 = vmatpush1.msra.mxu0 %v357
    %758 = vmatprep.subr.mxu0 %v374
    %759 = vmatpush1.msra.mxu0 %v373
    %760 = vmatprep.subr.mxu0 %v390
    %761 = vmatpush1.msra.mxu0 %v389
    %762 = vmatprep.subr.mxu0 %v406
    %763 = vmatpush1.msra.mxu0 %v405
    %764 = vmatprep.subr.mxu0 %v422
    %765 = vmatpush1.msra.mxu0 %v421
    %766 = vmatprep.subr.mxu0 %v438
    %767 = vmatpush1.msra.mxu0 %v437
    %768 = vmatprep.subr.mxu0 %v454
    %769 = vmatpush1.msra.mxu0 %v453
    %770 = vmatprep.subr.mxu0 %v470
    %771 = vmatpush1.msra.mxu0 %v469
    %772 = vmatprep.subr.mxu0 %v486
    %773 = vmatpush1.msra.mxu0 %v485
    %774 = vmatprep.subr.mxu0 %v502
    %775 = vmatpush1.msra.mxu0 %v501
    %776 = vmatprep.subr.mxu0 %v518
    %777 = vmatpush1.msra.mxu0 %v517
    %778 = vmatprep.subr.mxu0 %v534
    %779 = vmatpush1.msra.mxu0 %v533
    %780 = vmatprep.subr.mxu0 %v550
    %781 = vmatpush1.msra.mxu0 %v549
    %782 = vmatprep.subr.mxu0 %v566
    %783 = vmatpush1.msra.mxu0 %v565
    %784 = vmatprep.subr.mxu0 %v582
    %785 = vmatpush1.msra.mxu0 %v581
    %786 = vmatprep.subr.mxu0 %v598
    %787 = vmatpush1.msra.mxu0 %v597
    %788 = vmatprep.subr.mxu0 %v614
    %789 = vmatpush1.msra.mxu0 %v613
    %790 = vmatprep.subr.mxu0 %v630
    %791 = vmatpush1.msra.mxu0 %v629
    %792 = vmatprep.subr.mxu0 %v646
    %793 = vmatpush1.msra.mxu0 %v645
    %794 = vmatprep.mubr.f32.mxu0 %v146
    %795 = vmatmul.mubr.f32.gmra.mrb[0].mxu0 %v145
    %v796 = vpop.f32.mrb[0].mxu0
    %v797 = vadd.f32 0.0, %v796
    %v798 = vpop.f32.mrb[0].mxu0
    %v799 = vadd.f32 0.0, %v798
    %800 = vdwg.mxu0
    %801 = vmatprep.subr.mxu0 %v152
    %802 = vmatpush1.msra.mxu0 %v151
    %803 = vmatprep.subr.mxu0 %v168
    %804 = vmatpush1.msra.mxu0 %v167
    %805 = vmatprep.subr.mxu0 %v184
    %806 = vmatpush1.msra.mxu0 %v183
    %807 = vmatprep.subr.mxu0 %v200
    %808 = vmatpush1.msra.mxu0 %v199
    %809 = vmatprep.subr.mxu0 %v216
    %810 = vmatpush1.msra.mxu0 %v215
    %811 = vmatprep.subr.mxu0 %v232
    %812 = vmatpush1.msra.mxu0 %v231
    %813 = vmatprep.subr.mxu0 %v248
    %814 = vmatpush1.msra.mxu0 %v247
    %815 = vmatprep.subr.mxu0 %v264
    %816 = vmatpush1.msra.mxu0 %v263
    %817 = vmatprep.subr.mxu0 %v280
    %818 = vmatpush1.msra.mxu0 %v279
    %819 = vmatprep.subr.mxu0 %v296
    %820 = vmatpush1.msra.mxu0 %v295
    %821 = vmatprep.subr.mxu0 %v312
    %822 = vmatpush1.msra.mxu0 %v311
    %823 = vmatprep.subr.mxu0 %v328
    %824 = vmatpush1.msra.mxu0 %v327
    %825 = vmatprep.subr.mxu0 %v344
    %826 = vmatpush1.msra.mxu0 %v343
    %827 = vmatprep.subr.mxu0 %v360
    %828 = vmatpush1.msra.mxu0 %v359
    %829 = vmatprep.subr.mxu0 %v376
    %830 = vmatpush1.msra.mxu0 %v375
    %831 = vmatprep.subr.mxu0 %v392
    %832 = vmatpush1.msra.mxu0 %v391
    %833 = vmatprep.subr.mxu0 %v408
    %834 = vmatpush1.msra.mxu0 %v407
    %835 = vmatprep.subr.mxu0 %v424
    %836 = vmatpush1.msra.mxu0 %v423
    %837 = vmatprep.subr.mxu0 %v440
    %838 = vmatpush1.msra.mxu0 %v439
    %839 = vmatprep.subr.mxu0 %v456
    %840 = vmatpush1.msra.mxu0 %v455
    %841 = vmatprep.subr.mxu0 %v472
    %842 = vmatpush1.msra.mxu0 %v471
    %843 = vmatprep.subr.mxu0 %v488
    %844 = vmatpush1.msra.mxu0 %v487
    %845 = vmatprep.subr.mxu0 %v504
    %846 = vmatpush1.msra.mxu0 %v503
    %847 = vmatprep.subr.mxu0 %v520
    %848 = vmatpush1.msra.mxu0 %v519
    %849 = vmatprep.subr.mxu0 %v536
    %850 = vmatpush1.msra.mxu0 %v535
    %851 = vmatprep.subr.mxu0 %v552
    %852 = vmatpush1.msra.mxu0 %v551
    %853 = vmatprep.subr.mxu0 %v568
    %854 = vmatpush1.msra.mxu0 %v567
    %855 = vmatprep.subr.mxu0 %v584
    %856 = vmatpush1.msra.mxu0 %v583
    %857 = vmatprep.subr.mxu0 %v600
    %858 = vmatpush1.msra.mxu0 %v599
    %859 = vmatprep.subr.mxu0 %v616
    %860 = vmatpush1.msra.mxu0 %v615
    %861 = vmatprep.subr.mxu0 %v632
    %862 = vmatpush1.msra.mxu0 %v631
    %863 = vmatprep.subr.mxu0 %v648
    %864 = vmatpush1.msra.mxu0 %v647
    %865 = vmatprep.mubr.f32.mxu0 %v146
    %866 = vmatmul.mubr.f32.gmra.mrb[0].mxu0 %v145
    %v867 = vpop.f32.mrb[0].mxu0
    %v868 = vadd.f32 0.0, %v867
    %v869 = vpop.f32.mrb[0].mxu0
    %v870 = vadd.f32 0.0, %v869
    %871 = vdwg.mxu0
    %872 = vmatprep.subr.mxu0 %v154
    %873 = vmatpush1.msra.mxu0 %v153
    %874 = vmatprep.subr.mxu0 %v170
    %875 = vmatpush1.msra.mxu0 %v169
    %876 = vmatprep.subr.mxu0 %v186
    %877 = vmatpush1.msra.mxu0 %v185
    %878 = vmatprep.subr.mxu0 %v202
    %879 = vmatpush1.msra.mxu0 %v201
    %880 = vmatprep.subr.mxu0 %v218
    %881 = vmatpush1.msra.mxu0 %v217
    %882 = vmatprep.subr.mxu0 %v234
    %883 = vmatpush1.msra.mxu0 %v233
    %884 = vmatprep.subr.mxu0 %v250
    %885 = vmatpush1.msra.mxu0 %v249
    %886 = vmatprep.subr.mxu0 %v266
    %887 = vmatpush1.msra.mxu0 %v265
    %888 = vmatprep.subr.mxu0 %v282
    %889 = vmatpush1.msra.mxu0 %v281
    %890 = vmatprep.subr.mxu0 %v298
    %891 = vmatpush1.msra.mxu0 %v297
    %892 = vmatprep.subr.mxu0 %v314
    %893 = vmatpush1.msra.mxu0 %v313
    %894 = vmatprep.subr.mxu0 %v330
    %895 = vmatpush1.msra.mxu0 %v329
    %896 = vmatprep.subr.mxu0 %v346
    %897 = vmatpush1.msra.mxu0 %v345
    %898 = vmatprep.subr.mxu0 %v362
    %899 = vmatpush1.msra.mxu0 %v361
    %900 = vmatprep.subr.mxu0 %v378
    %901 = vmatpush1.msra.mxu0 %v377
    %902 = vmatprep.subr.mxu0 %v394
    %903 = vmatpush1.msra.mxu0 %v393
    %904 = vmatprep.subr.mxu0 %v410
    %905 = vmatpush1.msra.mxu0 %v409
    %906 = vmatprep.subr.mxu0 %v426
    %907 = vmatpush1.msra.mxu0 %v425
    %908 = vmatprep.subr.mxu0 %v442
    %909 = vmatpush1.msra.mxu0 %v441
    %910 = vmatprep.subr.mxu0 %v458
    %911 = vmatpush1.msra.mxu0 %v457
    %912 = vmatprep.subr.mxu0 %v474
    %913 = vmatpush1.msra.mxu0 %v473
    %914 = vmatprep.subr.mxu0 %v490
    %915 = vmatpush1.msra.mxu0 %v489
    %916 = vmatprep.subr.mxu0 %v506
    %917 = vmatpush1.msra.mxu0 %v505
    %918 = vmatprep.subr.mxu0 %v522
    %919 = vmatpush1.msra.mxu0 %v521
    %920 = vmatprep.subr.mxu0 %v538
    %921 = vmatpush1.msra.mxu0 %v537
    %922 = vmatprep.subr.mxu0 %v554
    %923 = vmatpush1.msra.mxu0 %v553
    %924 = vmatprep.subr.mxu0 %v570
    %925 = vmatpush1.msra.mxu0 %v569
    %926 = vmatprep.subr.mxu0 %v586
    %927 = vmatpush1.msra.mxu0 %v585
    %928 = vmatprep.subr.mxu0 %v602
    %929 = vmatpush1.msra.mxu0 %v601
    %930 = vmatprep.subr.mxu0 %v618
    %931 = vmatpush1.msra.mxu0 %v617
    %932 = vmatprep.subr.mxu0 %v634
    %933 = vmatpush1.msra.mxu0 %v633
    %934 = vmatprep.subr.mxu0 %v650
    %935 = vmatpush1.msra.mxu0 %v649
    %936 = vmatprep.mubr.f32.mxu0 %v146
    %937 = vmatmul.mubr.f32.gmra.mrb[0].mxu0 %v145
    %v938 = vpop.f32.mrb[0].mxu0
    %v939 = vadd.f32 0.0, %v938
    %v940 = vpop.f32.mrb[0].mxu0
    %v941 = vadd.f32 0.0, %v940
    %942 = vdwg.mxu0
    %943 = vmatprep.subr.mxu0 %v156
    %944 = vmatpush1.msra.mxu0 %v155
    %945 = vmatprep.subr.mxu0 %v172
    %946 = vmatpush1.msra.mxu0 %v171
    %947 = vmatprep.subr.mxu0 %v188
    %948 = vmatpush1.msra.mxu0 %v187
    %949 = vmatprep.subr.mxu0 %v204
    %950 = vmatpush1.msra.mxu0 %v203
    %951 = vmatprep.subr.mxu0 %v220
    %952 = vmatpush1.msra.mxu0 %v219
    %953 = vmatprep.subr.mxu0 %v236
    %954 = vmatpush1.msra.mxu0 %v235
    %955 = vmatprep.subr.mxu0 %v252
    %956 = vmatpush1.msra.mxu0 %v251
    %957 = vmatprep.subr.mxu0 %v268
    %958 = vmatpush1.msra.mxu0 %v267
    %959 = vmatprep.subr.mxu0 %v284
    %960 = vmatpush1.msra.mxu0 %v283
    %961 = vmatprep.subr.mxu0 %v300
    %962 = vmatpush1.msra.mxu0 %v299
    %963 = vmatprep.subr.mxu0 %v316
    %964 = vmatpush1.msra.mxu0 %v315
    %965 = vmatprep.subr.mxu0 %v332
    %966 = vmatpush1.msra.mxu0 %v331
    %967 = vmatprep.subr.mxu0 %v348
    %968 = vmatpush1.msra.mxu0 %v347
    %969 = vmatprep.subr.mxu0 %v364
    %970 = vmatpush1.msra.mxu0 %v363
    %971 = vmatprep.subr.mxu0 %v380
    %972 = vmatpush1.msra.mxu0 %v379
    %973 = vmatprep.subr.mxu0 %v396
    %974 = vmatpush1.msra.mxu0 %v395
    %975 = vmatprep.subr.mxu0 %v412
    %976 = vmatpush1.msra.mxu0 %v411
    %977 = vmatprep.subr.mxu0 %v428
    %978 = vmatpush1.msra.mxu0 %v427
    %979 = vmatprep.subr.mxu0 %v444
    %980 = vmatpush1.msra.mxu0 %v443
    %981 = vmatprep.subr.mxu0 %v460
    %982 = vmatpush1.msra.mxu0 %v459
    %983 = vmatprep.subr.mxu0 %v476
    %984 = vmatpush1.msra.mxu0 %v475
    %985 = vmatprep.subr.mxu0 %v492
    %986 = vmatpush1.msra.mxu0 %v491
    %987 = vmatprep.subr.mxu0 %v508
    %988 = vmatpush1.msra.mxu0 %v507
    %989 = vmatprep.subr.mxu0 %v524
    %990 = vmatpush1.msra.mxu0 %v523
    %991 = vmatprep.subr.mxu0 %v540
    %992 = vmatpush1.msra.mxu0 %v539
    %993 = vmatprep.subr.mxu0 %v556
    %994 = vmatpush1.msra.mxu0 %v555
    %995 = vmatprep.subr.mxu0 %v572
    %996 = vmatpush1.msra.mxu0 %v571
    %997 = vmatprep.subr.mxu0 %v588
    %998 = vmatpush1.msra.mxu0 %v587
    %999 = vmatprep.subr.mxu0 %v604
    %1000 = vmatpush1.msra.mxu0 %v603
    %1001 = vmatprep.subr.mxu0 %v620
    %1002 = vmatpush1.msra.mxu0 %v619
    %1003 = vmatprep.subr.mxu0 %v636
    %1004 = vmatpush1.msra.mxu0 %v635
    %1005 = vmatprep.subr.mxu0 %v652
    %1006 = vmatpush1.msra.mxu0 %v651
    %1007 = vmatprep.mubr.f32.mxu0 %v146
    %1008 = vmatmul.mubr.f32.gmra.mrb[0].mxu0 %v145
    %v1009 = vpop.f32.mrb[0].mxu0
    %v1010 = vadd.f32 0.0, %v1009
    %v1011 = vpop.f32.mrb[0].mxu0
    %v1012 = vadd.f32 0.0, %v1011
    %1013 = vdwg.mxu0
    %1014 = vmatprep.subr.mxu0 %v158
    %1015 = vmatpush1.msra.mxu0 %v157
    %1016 = vmatprep.subr.mxu0 %v174
    %1017 = vmatpush1.msra.mxu0 %v173
    %1018 = vmatprep.subr.mxu0 %v190
    %1019 = vmatpush1.msra.mxu0 %v189
    %1020 = vmatprep.subr.mxu0 %v206
    %1021 = vmatpush1.msra.mxu0 %v205
    %1022 = vmatprep.subr.mxu0 %v222
    %1023 = vmatpush1.msra.mxu0 %v221
    %1024 = vmatprep.subr.mxu0 %v238
    %1025 = vmatpush1.msra.mxu0 %v237
    %1026 = vmatprep.subr.mxu0 %v254
    %1027 = vmatpush1.msra.mxu0 %v253
    %1028 = vmatprep.subr.mxu0 %v270
    %1029 = vmatpush1.msra.mxu0 %v269
    %1030 = vmatprep.subr.mxu0 %v286
    %1031 = vmatpush1.msra.mxu0 %v285
    %1032 = vmatprep.subr.mxu0 %v302
    %1033 = vmatpush1.msra.mxu0 %v301
    %1034 = vmatprep.subr.mxu0 %v318
    %1035 = vmatpush1.msra.mxu0 %v317
    %1036 = vmatprep.subr.mxu0 %v334
    %1037 = vmatpush1.msra.mxu0 %v333
    %1038 = vmatprep.subr.mxu0 %v350
    %1039 = vmatpush1.msra.mxu0 %v349
    %1040 = vmatprep.subr.mxu0 %v366
    %1041 = vmatpush1.msra.mxu0 %v365
    %1042 = vmatprep.subr.mxu0 %v382
    %1043 = vmatpush1.msra.mxu0 %v381
    %1044 = vmatprep.subr.mxu0 %v398
    %1045 = vmatpush1.msra.mxu0 %v397
    %1046 = vmatprep.subr.mxu0 %v414
    %1047 = vmatpush1.msra.mxu0 %v413
    %1048 = vmatprep.subr.mxu0 %v430
    %1049 = vmatpush1.msra.mxu0 %v429
    %1050 = vmatprep.subr.mxu0 %v446
    %1051 = vmatpush1.msra.mxu0 %v445
    %1052 = vmatprep.subr.mxu0 %v462
    %1053 = vmatpush1.msra.mxu0 %v461
    %1054 = vmatprep.subr.mxu0 %v478
    %1055 = vmatpush1.msra.mxu0 %v477
    %1056 = vmatprep.subr.mxu0 %v494
    %1057 = vmatpush1.msra.mxu0 %v493
    %1058 = vmatprep.subr.mxu0 %v510
    %1059 = vmatpush1.msra.mxu0 %v509
    %1060 = vmatprep.subr.mxu0 %v526
    %1061 = vmatpush1.msra.mxu0 %v525
    %1062 = vmatprep.subr.mxu0 %v542
    %1063 = vmatpush1.msra.mxu0 %v541
    %1064 = vmatprep.subr.mxu0 %v558
    %1065 = vmatpush1.msra.mxu0 %v557
    %1066 = vmatprep.subr.mxu0 %v574
    %1067 = vmatpush1.msra.mxu0 %v573
    %1068 = vmatprep.subr.mxu0 %v590
    %1069 = vmatpush1.msra.mxu0 %v589
    %1070 = vmatprep.subr.mxu0 %v606
    %1071 = vmatpush1.msra.mxu0 %v605
    %1072 = vmatprep.subr.mxu0 %v622
    %1073 = vmatpush1.msra.mxu0 %v621
    %1074 = vmatprep.subr.mxu0 %v638
    %1075 = vmatpush1.msra.mxu0 %v637
    %1076 = vmatprep.subr.mxu0 %v654
    %1077 = vmatpush1.msra.mxu0 %v653
    %1078 = vmatprep.mubr.f32.mxu0 %v146
    %1079 = vmatmul.mubr.f32.gmra.mrb[0].mxu0 %v145
    %v1080 = vpop.f32.mrb[0].mxu0
    %v1081 = vadd.f32 0.0, %v1080
    %v1082 = vpop.f32.mrb[0].mxu0
    %v1083 = vadd.f32 0.0, %v1082
    %1084 = vdwg.mxu0
    %1085 = vmatprep.subr.mxu0 %v160
    %1086 = vmatpush1.msra.mxu0 %v159
    %1087 = vmatprep.subr.mxu0 %v176
    %1088 = vmatpush1.msra.mxu0 %v175
    %1089 = vmatprep.subr.mxu0 %v192
    %1090 = vmatpush1.msra.mxu0 %v191
    %1091 = vmatprep.subr.mxu0 %v208
    %1092 = vmatpush1.msra.mxu0 %v207
    %1093 = vmatprep.subr.mxu0 %v224
    %1094 = vmatpush1.msra.mxu0 %v223
    %1095 = vmatprep.subr.mxu0 %v240
    %1096 = vmatpush1.msra.mxu0 %v239
    %1097 = vmatprep.subr.mxu0 %v256
    %1098 = vmatpush1.msra.mxu0 %v255
    %1099 = vmatprep.subr.mxu0 %v272
    %1100 = vmatpush1.msra.mxu0 %v271
    %1101 = vmatprep.subr.mxu0 %v288
    %1102 = vmatpush1.msra.mxu0 %v287
    %1103 = vmatprep.subr.mxu0 %v304
    %1104 = vmatpush1.msra.mxu0 %v303
    %1105 = vmatprep.subr.mxu0 %v320
    %1106 = vmatpush1.msra.mxu0 %v319
    %1107 = vmatprep.subr.mxu0 %v336
    %1108 = vmatpush1.msra.mxu0 %v335
    %1109 = vmatprep.subr.mxu0 %v352
    %1110 = vmatpush1.msra.mxu0 %v351
    %1111 = vmatprep.subr.mxu0 %v368
    %1112 = vmatpush1.msra.mxu0 %v367
    %1113 = vmatprep.subr.mxu0 %v384
    %1114 = vmatpush1.msra.mxu0 %v383
    %1115 = vmatprep.subr.mxu0 %v400
    %1116 = vmatpush1.msra.mxu0 %v399
    %1117 = vmatprep.subr.mxu0 %v416
    %1118 = vmatpush1.msra.mxu0 %v415
    %1119 = vmatprep.subr.mxu0 %v432
    %1120 = vmatpush1.msra.mxu0 %v431
    %1121 = vmatprep.subr.mxu0 %v448
    %1122 = vmatpush1.msra.mxu0 %v447
    %1123 = vmatprep.subr.mxu0 %v464
    %1124 = vmatpush1.msra.mxu0 %v463
    %1125 = vmatprep.subr.mxu0 %v480
    %1126 = vmatpush1.msra.mxu0 %v479
    %1127 = vmatprep.subr.mxu0 %v496
    %1128 = vmatpush1.msra.mxu0 %v495
    %1129 = vmatprep.subr.mxu0 %v512
    %1130 = vmatpush1.msra.mxu0 %v511
    %1131 = vmatprep.subr.mxu0 %v528
    %1132 = vmatpush1.msra.mxu0 %v527
    %1133 = vmatprep.subr.mxu0 %v544
    %1134 = vmatpush1.msra.mxu0 %v543
    %1135 = vmatprep.subr.mxu0 %v560
    %1136 = vmatpush1.msra.mxu0 %v559
    %1137 = vmatprep.subr.mxu0 %v576
    %1138 = vmatpush1.msra.mxu0 %v575
    %1139 = vmatprep.subr.mxu0 %v592
    %1140 = vmatpush1.msra.mxu0 %v591
    %1141 = vmatprep.subr.mxu0 %v608
    %1142 = vmatpush1.msra.mxu0 %v607
    %1143 = vmatprep.subr.mxu0 %v624
    %1144 = vmatpush1.msra.mxu0 %v623
    %1145 = vmatprep.subr.mxu0 %v640
    %1146 = vmatpush1.msra.mxu0 %v639
    %1147 = vmatprep.subr.mxu0 %v656
    %1148 = vmatpush1.msra.mxu0 %v655
    %1149 = vmatprep.mubr.f32.mxu0 %v146
    %1150 = vmatmul.mubr.f32.gmra.mrb[0].mxu0 %v145
    %v1151 = vpop.f32.mrb[0].mxu0
    %v1152 = vadd.f32 0.0, %v1151
    %v1153 = vpop.f32.mrb[0].mxu0
    %v1154 = vadd.f32 0.0, %v1153
    %1155 = vdwg.mxu0
    %1156 = vmatprep.subr.mxu0 %v162
    %1157 = vmatpush1.msra.mxu0 %v161
    %1158 = vmatprep.subr.mxu0 %v178
    %1159 = vmatpush1.msra.mxu0 %v177
    %1160 = vmatprep.subr.mxu0 %v194
    %1161 = vmatpush1.msra.mxu0 %v193
    %1162 = vmatprep.subr.mxu0 %v210
    %1163 = vmatpush1.msra.mxu0 %v209
    %1164 = vmatprep.subr.mxu0 %v226
    %1165 = vmatpush1.msra.mxu0 %v225
    %1166 = vmatprep.subr.mxu0 %v242
    %1167 = vmatpush1.msra.mxu0 %v241
    %1168 = vmatprep.subr.mxu0 %v258
    %1169 = vmatpush1.msra.mxu0 %v257
    %1170 = vmatprep.subr.mxu0 %v274
    %1171 = vmatpush1.msra.mxu0 %v273
    %1172 = vmatprep.subr.mxu0 %v290
    %1173 = vmatpush1.msra.mxu0 %v289
    %1174 = vmatprep.subr.mxu0 %v306
    %1175 = vmatpush1.msra.mxu0 %v305
    %1176 = vmatprep.subr.mxu0 %v322
    %1177 = vmatpush1.msra.mxu0 %v321
    %1178 = vmatprep.subr.mxu0 %v338
    %1179 = vmatpush1.msra.mxu0 %v337
    %1180 = vmatprep.subr.mxu0 %v354
    %1181 = vmatpush1.msra.mxu0 %v353
    %1182 = vmatprep.subr.mxu0 %v370
    %1183 = vmatpush1.msra.mxu0 %v369
    %1184 = vmatprep.subr.mxu0 %v386
    %1185 = vmatpush1.msra.mxu0 %v385
    %1186 = vmatprep.subr.mxu0 %v402
    %1187 = vmatpush1.msra.mxu0 %v401
    %1188 = vmatprep.subr.mxu0 %v418
    %1189 = vmatpush1.msra.mxu0 %v417
    %1190 = vmatprep.subr.mxu0 %v434
    %1191 = vmatpush1.msra.mxu0 %v433
    %1192 = vmatprep.subr.mxu0 %v450
    %1193 = vmatpush1.msra.mxu0 %v449
    %1194 = vmatprep.subr.mxu0 %v466
    %1195 = vmatpush1.msra.mxu0 %v465
    %1196 = vmatprep.subr.mxu0 %v482
    %1197 = vmatpush1.msra.mxu0 %v481
    %1198 = vmatprep.subr.mxu0 %v498
    %1199 = vmatpush1.msra.mxu0 %v497
    %1200 = vmatprep.subr.mxu0 %v514
    %1201 = vmatpush1.msra.mxu0 %v513
    %1202 = vmatprep.subr.mxu0 %v530
    %1203 = vmatpush1.msra.mxu0 %v529
    %1204 = vmatprep.subr.mxu0 %v546
    %1205 = vmatpush1.msra.mxu0 %v545
    %1206 = vmatprep.subr.mxu0 %v562
    %1207 = vmatpush1.msra.mxu0 %v561
    %1208 = vmatprep.subr.mxu0 %v578
    %1209 = vmatpush1.msra.mxu0 %v577
    %1210 = vmatprep.subr.mxu0 %v594
    %1211 = vmatpush1.msra.mxu0 %v593
    %1212 = vmatprep.subr.mxu0 %v610
    %1213 = vmatpush1.msra.mxu0 %v609
    %1214 = vmatprep.subr.mxu0 %v626
    %1215 = vmatpush1.msra.mxu0 %v625
    %1216 = vmatprep.subr.mxu0 %v642
    %1217 = vmatpush1.msra.mxu0 %v641
    %1218 = vmatprep.subr.mxu0 %v658
    %1219 = vmatpush1.msra.mxu0 %v657
    %1220 = vmatprep.mubr.f32.mxu0 %v146
    %1221 = vmatmul.mubr.f32.gmra.mrb[0].mxu0 %v145
    %v1222 = vpop.f32.mrb[0].mxu0
    %v1223 = vadd.f32 0.0, %v1222
    %v1224 = vpop.f32.mrb[0].mxu0
    %v1225 = vadd.f32 0.0, %v1224
    %1226 = vdwg.mxu0
    %v1227 = vmax.f32 %v726, %v1010
    %v1228 = vmax.f32 %v728, %v1012
    %v1229 = vmax.f32 %v797, %v1081
    %v1230 = vmax.f32 %v799, %v1083
    %v1231 = vmax.f32 %v868, %v1152
    %v1232 = vmax.f32 %v870, %v1154
    %v1233 = vmax.f32 %v939, %v1223
    %v1234 = vmax.f32 %v941, %v1225
    %v1235 = vld [vmem:[#allocation7] sm:$0xff]
    %v1237 = vlaneseq
    %v1238 = vshrl.u32 %v1237, 7
    %v1239 = vsub.s32 0, %v1238
    %v1240 = vrot.slane %v1235, %v1239
    %v1241 = vlaneseq
    %v1242 = vshrl.u32 %v1241, 7
    %v1243 = vsub.s32 1, %v1242
    %v1244 = vrot.slane %v1235, %v1243
    %v1245 = vlaneseq
    %v1246 = vshrl.u32 %v1245, 7
    %v1247 = vsub.s32 2, %v1246
    %v1248 = vrot.slane %v1235, %v1247
    %v1249 = vlaneseq
    %v1250 = vshrl.u32 %v1249, 7
    %v1251 = vsub.s32 3, %v1250
    %v1252 = vrot.slane %v1235, %v1251
    %v1253 = vlaneseq
    %v1254 = vshrl.u32 %v1253, 7
    %v1255 = vsub.s32 4, %v1254
    %v1256 = vrot.slane %v1235, %v1255
    %v1257 = vlaneseq
    %v1258 = vshrl.u32 %v1257, 7
    %v1259 = vsub.s32 5, %v1258
    %v1260 = vrot.slane %v1235, %v1259
    %v1261 = vlaneseq
    %v1262 = vshrl.u32 %v1261, 7
    %v1263 = vsub.s32 6, %v1262
    %v1264 = vrot.slane %v1235, %v1263
    %v1265 = vlaneseq
    %v1266 = vshrl.u32 %v1265, 7
    %v1267 = vsub.s32 7, %v1266
    %v1268 = vrot.slane %v1235, %v1267
    %v1277 = vadd.f32 %v1227, %v1240
    %v1278 = vadd.f32 %v1228, %v1244
    %v1279 = vadd.f32 %v1229, %v1248
    %v1280 = vadd.f32 %v1230, %v1252
    %v1281 = vadd.f32 %v1231, %v1256
    %v1282 = vadd.f32 %v1232, %v1260
    %v1283 = vadd.f32 %v1233, %v1264
    %v1284 = vadd.f32 %v1234, %v1268
    %v1285 = vmax.f32 %v1277, 0.0
    %v1286 = vmax.f32 %v1278, 0.0
    %v1287 = vmax.f32 %v1279, 0.0
    %v1288 = vmax.f32 %v1280, 0.0
    %v1289 = vmax.f32 %v1281, 0.0
    %v1290 = vmax.f32 %v1282, 0.0
    %v1291 = vmax.f32 %v1283, 0.0
    %v1292 = vmax.f32 %v1284, 0.0
    %v1293 = vld [vmem:[#allocation8] sm:$0xff]
    %v1294 = vld [vmem:[#allocation8 + $0x8] sm:$0xff]
    %v1295 = vld [vmem:[#allocation8 + $0x10] sm:$0xff]
    %v1296 = vld [vmem:[#allocation8 + $0x18] sm:$0xff]
    %v1297 = vld [vmem:[#allocation8 + $0x20] sm:$0xff]
    %v1298 = vld [vmem:[#allocation8 + $0x28] sm:$0xff]
    %v1299 = vld [vmem:[#allocation8 + $0x30] sm:$0xff]
    %v1300 = vld [vmem:[#allocation8 + $0x38] sm:$0xff]
    %v1301 = vld [vmem:[#allocation8 + $0x40] sm:$0xff]
    %v1302 = vld [vmem:[#allocation8 + $0x48] sm:$0xff]
    %v1303 = vld [vmem:[#allocation8 + $0x50] sm:$0xff]
    %v1304 = vld [vmem:[#allocation8 + $0x58] sm:$0xff]
    %v1305 = vld [vmem:[#allocation8 + $0x60] sm:$0xff]
    %v1306 = vld [vmem:[#allocation8 + $0x68] sm:$0xff]
    %v1307 = vld [vmem:[#allocation8 + $0x70] sm:$0xff]
    %v1308 = vld [vmem:[#allocation8 + $0x78] sm:$0xff]
    %v1309 = vld [vmem:[#allocation8 + $0x80] sm:$0xff]
    %v1310 = vld [vmem:[#allocation8 + $0x88] sm:$0xff]
    %v1311 = vld [vmem:[#allocation8 + $0x90] sm:$0xff]
    %v1312 = vld [vmem:[#allocation8 + $0x98] sm:$0xff]
    %v1313 = vld [vmem:[#allocation8 + $0xa0] sm:$0xff]
    %v1314 = vld [vmem:[#allocation8 + $0xa8] sm:$0xff]
    %v1315 = vld [vmem:[#allocation8 + $0xb0] sm:$0xff]
    %v1316 = vld [vmem:[#allocation8 + $0xb8] sm:$0xff]
    %v1317 = vld [vmem:[#allocation8 + $0xc0] sm:$0xff]
    %v1318 = vld [vmem:[#allocation8 + $0xc8] sm:$0xff]
    %v1319 = vld [vmem:[#allocation8 + $0xd0] sm:$0xff]
    %v1320 = vld [vmem:[#allocation8 + $0xd8] sm:$0xff]
    %v1321 = vld [vmem:[#allocation8 + $0xe0] sm:$0xff]
    %v1322 = vld [vmem:[#allocation8 + $0xe8] sm:$0xff]
    %v1323 = vld [vmem:[#allocation8 + $0xf0] sm:$0xff]
    %v1324 = vld [vmem:[#allocation8 + $0xf8] sm:$0xff]
    %v1325 = vld [vmem:[#allocation8 + $0x100] sm:$0xff]
    %v1326 = vld [vmem:[#allocation8 + $0x108] sm:$0xff]
    %v1327 = vld [vmem:[#allocation8 + $0x110] sm:$0xff]
    %v1328 = vld [vmem:[#allocation8 + $0x118] sm:$0xff]
    %v1329 = vld [vmem:[#allocation8 + $0x120] sm:$0xff]
    %v1330 = vld [vmem:[#allocation8 + $0x128] sm:$0xff]
    %v1331 = vld [vmem:[#allocation8 + $0x130] sm:$0xff]
    %v1332 = vld [vmem:[#allocation8 + $0x138] sm:$0xff]
    %v1333 = vld [vmem:[#allocation8 + $0x140] sm:$0xff]
    %v1334 = vld [vmem:[#allocation8 + $0x148] sm:$0xff]
    %v1335 = vld [vmem:[#allocation8 + $0x150] sm:$0xff]
    %v1336 = vld [vmem:[#allocation8 + $0x158] sm:$0xff]
    %v1337 = vld [vmem:[#allocation8 + $0x160] sm:$0xff]
    %v1338 = vld [vmem:[#allocation8 + $0x168] sm:$0xff]
    %v1339 = vld [vmem:[#allocation8 + $0x170] sm:$0xff]
    %v1340 = vld [vmem:[#allocation8 + $0x178] sm:$0xff]
    %v1341 = vld [vmem:[#allocation8 + $0x180] sm:$0xff]
    %v1342 = vld [vmem:[#allocation8 + $0x188] sm:$0xff]
    %v1343 = vld [vmem:[#allocation8 + $0x190] sm:$0xff]
    %v1344 = vld [vmem:[#allocation8 + $0x198] sm:$0xff]
    %v1345 = vld [vmem:[#allocation8 + $0x1a0] sm:$0xff]
    %v1346 = vld [vmem:[#allocation8 + $0x1a8] sm:$0xff]
    %v1347 = vld [vmem:[#allocation8 + $0x1b0] sm:$0xff]
    %v1348 = vld [vmem:[#allocation8 + $0x1b8] sm:$0xff]
    %v1349 = vld [vmem:[#allocation8 + $0x1c0] sm:$0xff]
    %v1350 = vld [vmem:[#allocation8 + $0x1c8] sm:$0xff]
    %v1351 = vld [vmem:[#allocation8 + $0x1d0] sm:$0xff]
    %v1352 = vld [vmem:[#allocation8 + $0x1d8] sm:$0xff]
    %v1353 = vld [vmem:[#allocation8 + $0x1e0] sm:$0xff]
    %v1354 = vld [vmem:[#allocation8 + $0x1e8] sm:$0xff]
    %v1355 = vld [vmem:[#allocation8 + $0x1f0] sm:$0xff]
    %v1356 = vld [vmem:[#allocation8 + $0x1f8] sm:$0xff]
    %v1357 = vld [vmem:[#allocation8 + $0x200] sm:$0xff]
    %v1358 = vld [vmem:[#allocation8 + $0x208] sm:$0xff]
    %v1359 = vld [vmem:[#allocation8 + $0x210] sm:$0xff]
    %v1360 = vld [vmem:[#allocation8 + $0x218] sm:$0xff]
    %v1361 = vld [vmem:[#allocation8 + $0x220] sm:$0xff]
    %v1362 = vld [vmem:[#allocation8 + $0x228] sm:$0xff]
    %v1363 = vld [vmem:[#allocation8 + $0x230] sm:$0xff]
    %v1364 = vld [vmem:[#allocation8 + $0x238] sm:$0xff]
    %v1365 = vld [vmem:[#allocation8 + $0x240] sm:$0xff]
    %v1366 = vld [vmem:[#allocation8 + $0x248] sm:$0xff]
    %v1367 = vld [vmem:[#allocation8 + $0x250] sm:$0xff]
    %v1368 = vld [vmem:[#allocation8 + $0x258] sm:$0xff]
    %v1369 = vld [vmem:[#allocation8 + $0x260] sm:$0xff]
    %v1370 = vld [vmem:[#allocation8 + $0x268] sm:$0xff]
    %v1371 = vld [vmem:[#allocation8 + $0x270] sm:$0xff]
    %v1372 = vld [vmem:[#allocation8 + $0x278] sm:$0xff]
    %v1373 = vld [vmem:[#allocation8 + $0x280] sm:$0xff]
    %v1374 = vld [vmem:[#allocation8 + $0x288] sm:$0xff]
    %v1375 = vld [vmem:[#allocation8 + $0x290] sm:$0xff]
    %v1376 = vld [vmem:[#allocation8 + $0x298] sm:$0xff]
    %v1377 = vld [vmem:[#allocation8 + $0x2a0] sm:$0xff]
    %v1378 = vld [vmem:[#allocation8 + $0x2a8] sm:$0xff]
    %v1379 = vld [vmem:[#allocation8 + $0x2b0] sm:$0xff]
    %v1380 = vld [vmem:[#allocation8 + $0x2b8] sm:$0xff]
    %v1381 = vld [vmem:[#allocation8 + $0x2c0] sm:$0xff]
    %v1382 = vld [vmem:[#allocation8 + $0x2c8] sm:$0xff]
    %v1383 = vld [vmem:[#allocation8 + $0x2d0] sm:$0xff]
    %v1384 = vld [vmem:[#allocation8 + $0x2d8] sm:$0xff]
    %v1385 = vld [vmem:[#allocation8 + $0x2e0] sm:$0xff]
    %v1386 = vld [vmem:[#allocation8 + $0x2e8] sm:$0xff]
    %v1387 = vld [vmem:[#allocation8 + $0x2f0] sm:$0xff]
    %v1388 = vld [vmem:[#allocation8 + $0x2f8] sm:$0xff]
    %v1389 = vld [vmem:[#allocation8 + $0x300] sm:$0xff]
    %v1390 = vld [vmem:[#allocation8 + $0x308] sm:$0xff]
    %v1391 = vld [vmem:[#allocation8 + $0x310] sm:$0xff]
    %v1392 = vld [vmem:[#allocation8 + $0x318] sm:$0xff]
    %v1393 = vld [vmem:[#allocation8 + $0x320] sm:$0xff]
    %v1394 = vld [vmem:[#allocation8 + $0x328] sm:$0xff]
    %v1395 = vld [vmem:[#allocation8 + $0x330] sm:$0xff]
    %v1396 = vld [vmem:[#allocation8 + $0x338] sm:$0xff]
    %v1397 = vld [vmem:[#allocation8 + $0x340] sm:$0xff]
    %v1398 = vld [vmem:[#allocation8 + $0x348] sm:$0xff]
    %v1399 = vld [vmem:[#allocation8 + $0x350] sm:$0xff]
    %v1400 = vld [vmem:[#allocation8 + $0x358] sm:$0xff]
    %v1401 = vld [vmem:[#allocation8 + $0x360] sm:$0xff]
    %v1402 = vld [vmem:[#allocation8 + $0x368] sm:$0xff]
    %v1403 = vld [vmem:[#allocation8 + $0x370] sm:$0xff]
    %v1404 = vld [vmem:[#allocation8 + $0x378] sm:$0xff]
    %v1405 = vld [vmem:[#allocation8 + $0x380] sm:$0xff]
    %v1406 = vld [vmem:[#allocation8 + $0x388] sm:$0xff]
    %v1407 = vld [vmem:[#allocation8 + $0x390] sm:$0xff]
    %v1408 = vld [vmem:[#allocation8 + $0x398] sm:$0xff]
    %v1409 = vld [vmem:[#allocation8 + $0x3a0] sm:$0xff]
    %v1410 = vld [vmem:[#allocation8 + $0x3a8] sm:$0xff]
    %v1411 = vld [vmem:[#allocation8 + $0x3b0] sm:$0xff]
    %v1412 = vld [vmem:[#allocation8 + $0x3b8] sm:$0xff]
    %v1413 = vld [vmem:[#allocation8 + $0x3c0] sm:$0xff]
    %v1414 = vld [vmem:[#allocation8 + $0x3c8] sm:$0xff]
    %v1415 = vld [vmem:[#allocation8 + $0x3d0] sm:$0xff]
    %v1416 = vld [vmem:[#allocation8 + $0x3d8] sm:$0xff]
    %v1417 = vld [vmem:[#allocation8 + $0x3e0] sm:$0xff]
    %v1418 = vld [vmem:[#allocation8 + $0x3e8] sm:$0xff]
    %v1419 = vld [vmem:[#allocation8 + $0x3f0] sm:$0xff]
    %v1420 = vld [vmem:[#allocation8 + $0x3f8] sm:$0xff]
    %v1421 = vld [vmem:[#allocation8 + $0x400] sm:$0xff]
    %v1422 = vld [vmem:[#allocation8 + $0x408] sm:$0xff]
    %v1423 = vld [vmem:[#allocation8 + $0x410] sm:$0xff]
    %v1424 = vld [vmem:[#allocation8 + $0x418] sm:$0xff]
    %v1425 = vld [vmem:[#allocation8 + $0x420] sm:$0xff]
    %v1426 = vld [vmem:[#allocation8 + $0x428] sm:$0xff]
    %v1427 = vld [vmem:[#allocation8 + $0x430] sm:$0xff]
    %v1428 = vld [vmem:[#allocation8 + $0x438] sm:$0xff]
    %v1429 = vld [vmem:[#allocation8 + $0x440] sm:$0xff]
    %v1430 = vld [vmem:[#allocation8 + $0x448] sm:$0xff]
    %v1431 = vld [vmem:[#allocation8 + $0x450] sm:$0xff]
    %v1432 = vld [vmem:[#allocation8 + $0x458] sm:$0xff]
    %v1433 = vld [vmem:[#allocation8 + $0x460] sm:$0xff]
    %v1434 = vld [vmem:[#allocation8 + $0x468] sm:$0xff]
    %v1435 = vld [vmem:[#allocation8 + $0x470] sm:$0xff]
    %v1436 = vld [vmem:[#allocation8 + $0x478] sm:$0xff]
    %v1437 = vld [vmem:[#allocation8 + $0x480] sm:$0xff]
    %v1438 = vld [vmem:[#allocation8 + $0x488] sm:$0xff]
    %v1439 = vld [vmem:[#allocation8 + $0x490] sm:$0xff]
    %v1440 = vld [vmem:[#allocation8 + $0x498] sm:$0xff]
    %v1441 = vld [vmem:[#allocation8 + $0x4a0] sm:$0xff]
    %v1442 = vld [vmem:[#allocation8 + $0x4a8] sm:$0xff]
    %v1443 = vld [vmem:[#allocation8 + $0x4b0] sm:$0xff]
    %v1444 = vld [vmem:[#allocation8 + $0x4b8] sm:$0xff]
    %v1445 = vld [vmem:[#allocation8 + $0x4c0] sm:$0xff]
    %v1446 = vld [vmem:[#allocation8 + $0x4c8] sm:$0xff]
    %v1447 = vld [vmem:[#allocation8 + $0x4d0] sm:$0xff]
    %v1448 = vld [vmem:[#allocation8 + $0x4d8] sm:$0xff]
    %v1449 = vld [vmem:[#allocation8 + $0x4e0] sm:$0xff]
    %v1450 = vld [vmem:[#allocation8 + $0x4e8] sm:$0xff]
    %v1451 = vld [vmem:[#allocation8 + $0x4f0] sm:$0xff]
    %v1452 = vld [vmem:[#allocation8 + $0x4f8] sm:$0xff]
    %v1453 = vld [vmem:[#allocation8 + $0x500] sm:$0xff]
    %v1454 = vld [vmem:[#allocation8 + $0x508] sm:$0xff]
    %v1455 = vld [vmem:[#allocation8 + $0x510] sm:$0xff]
    %v1456 = vld [vmem:[#allocation8 + $0x518] sm:$0xff]
    %v1457 = vld [vmem:[#allocation8 + $0x520] sm:$0xff]
    %v1458 = vld [vmem:[#allocation8 + $0x528] sm:$0xff]
    %v1459 = vld [vmem:[#allocation8 + $0x530] sm:$0xff]
    %v1460 = vld [vmem:[#allocation8 + $0x538] sm:$0xff]
    %v1461 = vld [vmem:[#allocation8 + $0x540] sm:$0xff]
    %v1462 = vld [vmem:[#allocation8 + $0x548] sm:$0xff]
    %v1463 = vld [vmem:[#allocation8 + $0x550] sm:$0xff]
    %v1464 = vld [vmem:[#allocation8 + $0x558] sm:$0xff]
    %v1465 = vld [vmem:[#allocation8 + $0x560] sm:$0xff]
    %v1466 = vld [vmem:[#allocation8 + $0x568] sm:$0xff]
    %v1467 = vld [vmem:[#allocation8 + $0x570] sm:$0xff]
    %v1468 = vld [vmem:[#allocation8 + $0x578] sm:$0xff]
    %v1469 = vld [vmem:[#allocation8 + $0x580] sm:$0xff]
    %v1470 = vld [vmem:[#allocation8 + $0x588] sm:$0xff]
    %v1471 = vld [vmem:[#allocation8 + $0x590] sm:$0xff]
    %v1472 = vld [vmem:[#allocation8 + $0x598] sm:$0xff]
    %v1473 = vld [vmem:[#allocation8 + $0x5a0] sm:$0xff]
    %v1474 = vld [vmem:[#allocation8 + $0x5a8] sm:$0xff]
    %v1475 = vld [vmem:[#allocation8 + $0x5b0] sm:$0xff]
    %v1476 = vld [vmem:[#allocation8 + $0x5b8] sm:$0xff]
    %v1477 = vld [vmem:[#allocation8 + $0x5c0] sm:$0xff]
    %v1478 = vld [vmem:[#allocation8 + $0x5c8] sm:$0xff]
    %v1479 = vld [vmem:[#allocation8 + $0x5d0] sm:$0xff]
    %v1480 = vld [vmem:[#allocation8 + $0x5d8] sm:$0xff]
    %v1481 = vld [vmem:[#allocation8 + $0x5e0] sm:$0xff]
    %v1482 = vld [vmem:[#allocation8 + $0x5e8] sm:$0xff]
    %v1483 = vld [vmem:[#allocation8 + $0x5f0] sm:$0xff]
    %v1484 = vld [vmem:[#allocation8 + $0x5f8] sm:$0xff]
    %v1485 = vld [vmem:[#allocation8 + $0x600] sm:$0xff]
    %v1486 = vld [vmem:[#allocation8 + $0x608] sm:$0xff]
    %v1487 = vld [vmem:[#allocation8 + $0x610] sm:$0xff]
    %v1488 = vld [vmem:[#allocation8 + $0x618] sm:$0xff]
    %v1489 = vld [vmem:[#allocation8 + $0x620] sm:$0xff]
    %v1490 = vld [vmem:[#allocation8 + $0x628] sm:$0xff]
    %v1491 = vld [vmem:[#allocation8 + $0x630] sm:$0xff]
    %v1492 = vld [vmem:[#allocation8 + $0x638] sm:$0xff]
    %v1493 = vld [vmem:[#allocation8 + $0x640] sm:$0xff]
    %v1494 = vld [vmem:[#allocation8 + $0x648] sm:$0xff]
    %v1495 = vld [vmem:[#allocation8 + $0x650] sm:$0xff]
    %v1496 = vld [vmem:[#allocation8 + $0x658] sm:$0xff]
    %v1497 = vld [vmem:[#allocation8 + $0x660] sm:$0xff]
    %v1498 = vld [vmem:[#allocation8 + $0x668] sm:$0xff]
    %v1499 = vld [vmem:[#allocation8 + $0x670] sm:$0xff]
    %v1500 = vld [vmem:[#allocation8 + $0x678] sm:$0xff]
    %v1501 = vld [vmem:[#allocation8 + $0x680] sm:$0xff]
    %v1502 = vld [vmem:[#allocation8 + $0x688] sm:$0xff]
    %v1503 = vld [vmem:[#allocation8 + $0x690] sm:$0xff]
    %v1504 = vld [vmem:[#allocation8 + $0x698] sm:$0xff]
    %v1505 = vld [vmem:[#allocation8 + $0x6a0] sm:$0xff]
    %v1506 = vld [vmem:[#allocation8 + $0x6a8] sm:$0xff]
    %v1507 = vld [vmem:[#allocation8 + $0x6b0] sm:$0xff]
    %v1508 = vld [vmem:[#allocation8 + $0x6b8] sm:$0xff]
    %v1509 = vld [vmem:[#allocation8 + $0x6c0] sm:$0xff]
    %v1510 = vld [vmem:[#allocation8 + $0x6c8] sm:$0xff]
    %v1511 = vld [vmem:[#allocation8 + $0x6d0] sm:$0xff]
    %v1512 = vld [vmem:[#allocation8 + $0x6d8] sm:$0xff]
    %v1513 = vld [vmem:[#allocation8 + $0x6e0] sm:$0xff]
    %v1514 = vld [vmem:[#allocation8 + $0x6e8] sm:$0xff]
    %v1515 = vld [vmem:[#allocation8 + $0x6f0] sm:$0xff]
    %v1516 = vld [vmem:[#allocation8 + $0x6f8] sm:$0xff]
    %v1517 = vld [vmem:[#allocation8 + $0x700] sm:$0xff]
    %v1518 = vld [vmem:[#allocation8 + $0x708] sm:$0xff]
    %v1519 = vld [vmem:[#allocation8 + $0x710] sm:$0xff]
    %v1520 = vld [vmem:[#allocation8 + $0x718] sm:$0xff]
    %v1521 = vld [vmem:[#allocation8 + $0x720] sm:$0xff]
    %v1522 = vld [vmem:[#allocation8 + $0x728] sm:$0xff]
    %v1523 = vld [vmem:[#allocation8 + $0x730] sm:$0xff]
    %v1524 = vld [vmem:[#allocation8 + $0x738] sm:$0xff]
    %v1525 = vld [vmem:[#allocation8 + $0x740] sm:$0xff]
    %v1526 = vld [vmem:[#allocation8 + $0x748] sm:$0xff]
    %v1527 = vld [vmem:[#allocation8 + $0x750] sm:$0xff]
    %v1528 = vld [vmem:[#allocation8 + $0x758] sm:$0xff]
    %v1529 = vld [vmem:[#allocation8 + $0x760] sm:$0xff]
    %v1530 = vld [vmem:[#allocation8 + $0x768] sm:$0xff]
    %v1531 = vld [vmem:[#allocation8 + $0x770] sm:$0xff]
    %v1532 = vld [vmem:[#allocation8 + $0x778] sm:$0xff]
    %v1533 = vld [vmem:[#allocation8 + $0x780] sm:$0xff]
    %v1534 = vld [vmem:[#allocation8 + $0x788] sm:$0xff]
    %v1535 = vld [vmem:[#allocation8 + $0x790] sm:$0xff]
    %v1536 = vld [vmem:[#allocation8 + $0x798] sm:$0xff]
    %v1537 = vld [vmem:[#allocation8 + $0x7a0] sm:$0xff]
    %v1538 = vld [vmem:[#allocation8 + $0x7a8] sm:$0xff]
    %v1539 = vld [vmem:[#allocation8 + $0x7b0] sm:$0xff]
    %v1540 = vld [vmem:[#allocation8 + $0x7b8] sm:$0xff]
    %v1541 = vld [vmem:[#allocation8 + $0x7c0] sm:$0xff]
    %v1542 = vld [vmem:[#allocation8 + $0x7c8] sm:$0xff]
    %v1543 = vld [vmem:[#allocation8 + $0x7d0] sm:$0xff]
    %v1544 = vld [vmem:[#allocation8 + $0x7d8] sm:$0xff]
    %v1545 = vld [vmem:[#allocation8 + $0x7e0] sm:$0xff]
    %v1546 = vld [vmem:[#allocation8 + $0x7e8] sm:$0xff]
    %v1547 = vld [vmem:[#allocation8 + $0x7f0] sm:$0xff]
    %v1548 = vld [vmem:[#allocation8 + $0x7f8] sm:$0xff]
    %v1549 = vld [vmem:[#allocation8 + $0x800] sm:$0xff]
    %v1550 = vld [vmem:[#allocation8 + $0x808] sm:$0xff]
    %v1551 = vld [vmem:[#allocation8 + $0x810] sm:$0xff]
    %v1552 = vld [vmem:[#allocation8 + $0x818] sm:$0xff]
    %v1553 = vld [vmem:[#allocation8 + $0x820] sm:$0xff]
    %v1554 = vld [vmem:[#allocation8 + $0x828] sm:$0xff]
    %v1555 = vld [vmem:[#allocation8 + $0x830] sm:$0xff]
    %v1556 = vld [vmem:[#allocation8 + $0x838] sm:$0xff]
    %v1557 = vld [vmem:[#allocation8 + $0x840] sm:$0xff]
    %v1558 = vld [vmem:[#allocation8 + $0x848] sm:$0xff]
    %v1559 = vld [vmem:[#allocation8 + $0x850] sm:$0xff]
    %v1560 = vld [vmem:[#allocation8 + $0x858] sm:$0xff]
    %v1561 = vld [vmem:[#allocation8 + $0x860] sm:$0xff]
    %v1562 = vld [vmem:[#allocation8 + $0x868] sm:$0xff]
    %v1563 = vld [vmem:[#allocation8 + $0x870] sm:$0xff]
    %v1564 = vld [vmem:[#allocation8 + $0x878] sm:$0xff]
    %v1565 = vld [vmem:[#allocation8 + $0x880] sm:$0xff]
    %v1566 = vld [vmem:[#allocation8 + $0x888] sm:$0xff]
    %v1567 = vld [vmem:[#allocation8 + $0x890] sm:$0xff]
    %v1568 = vld [vmem:[#allocation8 + $0x898] sm:$0xff]
    %v1569 = vld [vmem:[#allocation8 + $0x8a0] sm:$0xff]
    %v1570 = vld [vmem:[#allocation8 + $0x8a8] sm:$0xff]
    %v1571 = vld [vmem:[#allocation8 + $0x8b0] sm:$0xff]
    %v1572 = vld [vmem:[#allocation8 + $0x8b8] sm:$0xff]
    %v1573 = vld [vmem:[#allocation8 + $0x8c0] sm:$0xff]
    %v1574 = vld [vmem:[#allocation8 + $0x8c8] sm:$0xff]
    %v1575 = vld [vmem:[#allocation8 + $0x8d0] sm:$0xff]
    %v1576 = vld [vmem:[#allocation8 + $0x8d8] sm:$0xff]
    %v1577 = vld [vmem:[#allocation8 + $0x8e0] sm:$0xff]
    %v1578 = vld [vmem:[#allocation8 + $0x8e8] sm:$0xff]
    %v1579 = vld [vmem:[#allocation8 + $0x8f0] sm:$0xff]
    %v1580 = vld [vmem:[#allocation8 + $0x8f8] sm:$0xff]
    %v1581 = vld [vmem:[#allocation8 + $0x900] sm:$0xff]
    %v1582 = vld [vmem:[#allocation8 + $0x908] sm:$0xff]
    %v1583 = vld [vmem:[#allocation8 + $0x910] sm:$0xff]
    %v1584 = vld [vmem:[#allocation8 + $0x918] sm:$0xff]
    %v1585 = vld [vmem:[#allocation8 + $0x920] sm:$0xff]
    %v1586 = vld [vmem:[#allocation8 + $0x928] sm:$0xff]
    %v1587 = vld [vmem:[#allocation8 + $0x930] sm:$0xff]
    %v1588 = vld [vmem:[#allocation8 + $0x938] sm:$0xff]
    %v1589 = vld [vmem:[#allocation8 + $0x940] sm:$0xff]
    %v1590 = vld [vmem:[#allocation8 + $0x948] sm:$0xff]
    %v1591 = vld [vmem:[#allocation8 + $0x950] sm:$0xff]
    %v1592 = vld [vmem:[#allocation8 + $0x958] sm:$0xff]
    %v1593 = vld [vmem:[#allocation8 + $0x960] sm:$0xff]
    %v1594 = vld [vmem:[#allocation8 + $0x968] sm:$0xff]
    %v1595 = vld [vmem:[#allocation8 + $0x970] sm:$0xff]
    %v1596 = vld [vmem:[#allocation8 + $0x978] sm:$0xff]
    %v1597 = vld [vmem:[#allocation8 + $0x980] sm:$0xff]
    %v1598 = vld [vmem:[#allocation8 + $0x988] sm:$0xff]
    %v1599 = vld [vmem:[#allocation8 + $0x990] sm:$0xff]
    %v1600 = vld [vmem:[#allocation8 + $0x998] sm:$0xff]
    %v1601 = vld [vmem:[#allocation8 + $0x9a0] sm:$0xff]
    %v1602 = vld [vmem:[#allocation8 + $0x9a8] sm:$0xff]
    %v1603 = vld [vmem:[#allocation8 + $0x9b0] sm:$0xff]
    %v1604 = vld [vmem:[#allocation8 + $0x9b8] sm:$0xff]
    %v1605 = vld [vmem:[#allocation8 + $0x9c0] sm:$0xff]
    %v1606 = vld [vmem:[#allocation8 + $0x9c8] sm:$0xff]
    %v1607 = vld [vmem:[#allocation8 + $0x9d0] sm:$0xff]
    %v1608 = vld [vmem:[#allocation8 + $0x9d8] sm:$0xff]
    %v1609 = vld [vmem:[#allocation8 + $0x9e0] sm:$0xff]
    %v1610 = vld [vmem:[#allocation8 + $0x9e8] sm:$0xff]
    %v1611 = vld [vmem:[#allocation8 + $0x9f0] sm:$0xff]
    %v1612 = vld [vmem:[#allocation8 + $0x9f8] sm:$0xff]
    %v1613 = vld [vmem:[#allocation8 + $0xa00] sm:$0xff]
    %v1614 = vld [vmem:[#allocation8 + $0xa08] sm:$0xff]
    %v1615 = vld [vmem:[#allocation8 + $0xa10] sm:$0xff]
    %v1616 = vld [vmem:[#allocation8 + $0xa18] sm:$0xff]
    %v1617 = vld [vmem:[#allocation8 + $0xa20] sm:$0xff]
    %v1618 = vld [vmem:[#allocation8 + $0xa28] sm:$0xff]
    %v1619 = vld [vmem:[#allocation8 + $0xa30] sm:$0xff]
    %v1620 = vld [vmem:[#allocation8 + $0xa38] sm:$0xff]
    %v1621 = vld [vmem:[#allocation8 + $0xa40] sm:$0xff]
    %v1622 = vld [vmem:[#allocation8 + $0xa48] sm:$0xff]
    %v1623 = vld [vmem:[#allocation8 + $0xa50] sm:$0xff]
    %v1624 = vld [vmem:[#allocation8 + $0xa58] sm:$0xff]
    %v1625 = vld [vmem:[#allocation8 + $0xa60] sm:$0xff]
    %v1626 = vld [vmem:[#allocation8 + $0xa68] sm:$0xff]
    %v1627 = vld [vmem:[#allocation8 + $0xa70] sm:$0xff]
    %v1628 = vld [vmem:[#allocation8 + $0xa78] sm:$0xff]
    %v1629 = vld [vmem:[#allocation8 + $0xa80] sm:$0xff]
    %v1630 = vld [vmem:[#allocation8 + $0xa88] sm:$0xff]
    %v1631 = vld [vmem:[#allocation8 + $0xa90] sm:$0xff]
    %v1632 = vld [vmem:[#allocation8 + $0xa98] sm:$0xff]
    %v1633 = vld [vmem:[#allocation8 + $0xaa0] sm:$0xff]
    %v1634 = vld [vmem:[#allocation8 + $0xaa8] sm:$0xff]
    %v1635 = vld [vmem:[#allocation8 + $0xab0] sm:$0xff]
    %v1636 = vld [vmem:[#allocation8 + $0xab8] sm:$0xff]
    %v1637 = vld [vmem:[#allocation8 + $0xac0] sm:$0xff]
    %v1638 = vld [vmem:[#allocation8 + $0xac8] sm:$0xff]
    %v1639 = vld [vmem:[#allocation8 + $0xad0] sm:$0xff]
    %v1640 = vld [vmem:[#allocation8 + $0xad8] sm:$0xff]
    %v1641 = vld [vmem:[#allocation8 + $0xae0] sm:$0xff]
    %v1642 = vld [vmem:[#allocation8 + $0xae8] sm:$0xff]
    %v1643 = vld [vmem:[#allocation8 + $0xaf0] sm:$0xff]
    %v1644 = vld [vmem:[#allocation8 + $0xaf8] sm:$0xff]
    %v1645 = vld [vmem:[#allocation8 + $0xb00] sm:$0xff]
    %v1646 = vld [vmem:[#allocation8 + $0xb08] sm:$0xff]
    %v1647 = vld [vmem:[#allocation8 + $0xb10] sm:$0xff]
    %v1648 = vld [vmem:[#allocation8 + $0xb18] sm:$0xff]
    %v1649 = vld [vmem:[#allocation8 + $0xb20] sm:$0xff]
    %v1650 = vld [vmem:[#allocation8 + $0xb28] sm:$0xff]
    %v1651 = vld [vmem:[#allocation8 + $0xb30] sm:$0xff]
    %v1652 = vld [vmem:[#allocation8 + $0xb38] sm:$0xff]
    %v1653 = vld [vmem:[#allocation8 + $0xb40] sm:$0xff]
    %v1654 = vld [vmem:[#allocation8 + $0xb48] sm:$0xff]
    %v1655 = vld [vmem:[#allocation8 + $0xb50] sm:$0xff]
    %v1656 = vld [vmem:[#allocation8 + $0xb58] sm:$0xff]
    %v1657 = vld [vmem:[#allocation8 + $0xb60] sm:$0xff]
    %v1658 = vld [vmem:[#allocation8 + $0xb68] sm:$0xff]
    %v1659 = vld [vmem:[#allocation8 + $0xb70] sm:$0xff]
    %v1660 = vld [vmem:[#allocation8 + $0xb78] sm:$0xff]
    %v1661 = vld [vmem:[#allocation8 + $0xb80] sm:$0xff]
    %v1662 = vld [vmem:[#allocation8 + $0xb88] sm:$0xff]
    %v1663 = vld [vmem:[#allocation8 + $0xb90] sm:$0xff]
    %v1664 = vld [vmem:[#allocation8 + $0xb98] sm:$0xff]
    %v1665 = vld [vmem:[#allocation8 + $0xba0] sm:$0xff]
    %v1666 = vld [vmem:[#allocation8 + $0xba8] sm:$0xff]
    %v1667 = vld [vmem:[#allocation8 + $0xbb0] sm:$0xff]
    %v1668 = vld [vmem:[#allocation8 + $0xbb8] sm:$0xff]
    %v1669 = vld [vmem:[#allocation8 + $0xbc0] sm:$0xff]
    %v1670 = vld [vmem:[#allocation8 + $0xbc8] sm:$0xff]
    %v1671 = vld [vmem:[#allocation8 + $0xbd0] sm:$0xff]
    %v1672 = vld [vmem:[#allocation8 + $0xbd8] sm:$0xff]
    %v1673 = vld [vmem:[#allocation8 + $0xbe0] sm:$0xff]
    %v1674 = vld [vmem:[#allocation8 + $0xbe8] sm:$0xff]
    %v1675 = vld [vmem:[#allocation8 + $0xbf0] sm:$0xff]
    %v1676 = vld [vmem:[#allocation8 + $0xbf8] sm:$0xff]
    %v1677 = vld [vmem:[#allocation8 + $0xc00] sm:$0xff]
    %v1678 = vld [vmem:[#allocation8 + $0xc08] sm:$0xff]
    %v1679 = vld [vmem:[#allocation8 + $0xc10] sm:$0xff]
    %v1680 = vld [vmem:[#allocation8 + $0xc18] sm:$0xff]
    %v1681 = vld [vmem:[#allocation8 + $0xc20] sm:$0xff]
    %v1682 = vld [vmem:[#allocation8 + $0xc28] sm:$0xff]
    %v1683 = vld [vmem:[#allocation8 + $0xc30] sm:$0xff]
    %v1684 = vld [vmem:[#allocation8 + $0xc38] sm:$0xff]
    %v1685 = vld [vmem:[#allocation8 + $0xc40] sm:$0xff]
    %v1686 = vld [vmem:[#allocation8 + $0xc48] sm:$0xff]
    %v1687 = vld [vmem:[#allocation8 + $0xc50] sm:$0xff]
    %v1688 = vld [vmem:[#allocation8 + $0xc58] sm:$0xff]
    %v1689 = vld [vmem:[#allocation8 + $0xc60] sm:$0xff]
    %v1690 = vld [vmem:[#allocation8 + $0xc68] sm:$0xff]
    %v1691 = vld [vmem:[#allocation8 + $0xc70] sm:$0xff]
    %v1692 = vld [vmem:[#allocation8 + $0xc78] sm:$0xff]
    %v1693 = vld [vmem:[#allocation8 + $0xc80] sm:$0xff]
    %v1694 = vld [vmem:[#allocation8 + $0xc88] sm:$0xff]
    %v1695 = vld [vmem:[#allocation8 + $0xc90] sm:$0xff]
    %v1696 = vld [vmem:[#allocation8 + $0xc98] sm:$0xff]
    %v1697 = vld [vmem:[#allocation8 + $0xca0] sm:$0xff]
    %v1698 = vld [vmem:[#allocation8 + $0xca8] sm:$0xff]
    %v1699 = vld [vmem:[#allocation8 + $0xcb0] sm:$0xff]
    %v1700 = vld [vmem:[#allocation8 + $0xcb8] sm:$0xff]
    %v1701 = vld [vmem:[#allocation8 + $0xcc0] sm:$0xff]
    %v1702 = vld [vmem:[#allocation8 + $0xcc8] sm:$0xff]
    %v1703 = vld [vmem:[#allocation8 + $0xcd0] sm:$0xff]
    %v1704 = vld [vmem:[#allocation8 + $0xcd8] sm:$0xff]
    %v1705 = vld [vmem:[#allocation8 + $0xce0] sm:$0xff]
    %v1706 = vld [vmem:[#allocation8 + $0xce8] sm:$0xff]
    %v1707 = vld [vmem:[#allocation8 + $0xcf0] sm:$0xff]
    %v1708 = vld [vmem:[#allocation8 + $0xcf8] sm:$0xff]
    %v1709 = vld [vmem:[#allocation8 + $0xd00] sm:$0xff]
    %v1710 = vld [vmem:[#allocation8 + $0xd08] sm:$0xff]
    %v1711 = vld [vmem:[#allocation8 + $0xd10] sm:$0xff]
    %v1712 = vld [vmem:[#allocation8 + $0xd18] sm:$0xff]
    %v1713 = vld [vmem:[#allocation8 + $0xd20] sm:$0xff]
    %v1714 = vld [vmem:[#allocation8 + $0xd28] sm:$0xff]
    %v1715 = vld [vmem:[#allocation8 + $0xd30] sm:$0xff]
    %v1716 = vld [vmem:[#allocation8 + $0xd38] sm:$0xff]
    %v1717 = vld [vmem:[#allocation8 + $0xd40] sm:$0xff]
    %v1718 = vld [vmem:[#allocation8 + $0xd48] sm:$0xff]
    %v1719 = vld [vmem:[#allocation8 + $0xd50] sm:$0xff]
    %v1720 = vld [vmem:[#allocation8 + $0xd58] sm:$0xff]
    %v1721 = vld [vmem:[#allocation8 + $0xd60] sm:$0xff]
    %v1722 = vld [vmem:[#allocation8 + $0xd68] sm:$0xff]
    %v1723 = vld [vmem:[#allocation8 + $0xd70] sm:$0xff]
    %v1724 = vld [vmem:[#allocation8 + $0xd78] sm:$0xff]
    %v1725 = vld [vmem:[#allocation8 + $0xd80] sm:$0xff]
    %v1726 = vld [vmem:[#allocation8 + $0xd88] sm:$0xff]
    %v1727 = vld [vmem:[#allocation8 + $0xd90] sm:$0xff]
    %v1728 = vld [vmem:[#allocation8 + $0xd98] sm:$0xff]
    %v1729 = vld [vmem:[#allocation8 + $0xda0] sm:$0xff]
    %v1730 = vld [vmem:[#allocation8 + $0xda8] sm:$0xff]
    %v1731 = vld [vmem:[#allocation8 + $0xdb0] sm:$0xff]
    %v1732 = vld [vmem:[#allocation8 + $0xdb8] sm:$0xff]
    %v1733 = vld [vmem:[#allocation8 + $0xdc0] sm:$0xff]
    %v1734 = vld [vmem:[#allocation8 + $0xdc8] sm:$0xff]
    %v1735 = vld [vmem:[#allocation8 + $0xdd0] sm:$0xff]
    %v1736 = vld [vmem:[#allocation8 + $0xdd8] sm:$0xff]
    %v1737 = vld [vmem:[#allocation8 + $0xde0] sm:$0xff]
    %v1738 = vld [vmem:[#allocation8 + $0xde8] sm:$0xff]
    %v1739 = vld [vmem:[#allocation8 + $0xdf0] sm:$0xff]
    %v1740 = vld [vmem:[#allocation8 + $0xdf8] sm:$0xff]
    %v1741 = vld [vmem:[#allocation8 + $0xe00] sm:$0xff]
    %v1742 = vld [vmem:[#allocation8 + $0xe08] sm:$0xff]
    %v1743 = vld [vmem:[#allocation8 + $0xe10] sm:$0xff]
    %v1744 = vld [vmem:[#allocation8 + $0xe18] sm:$0xff]
    %v1745 = vld [vmem:[#allocation8 + $0xe20] sm:$0xff]
    %v1746 = vld [vmem:[#allocation8 + $0xe28] sm:$0xff]
    %v1747 = vld [vmem:[#allocation8 + $0xe30] sm:$0xff]
    %v1748 = vld [vmem:[#allocation8 + $0xe38] sm:$0xff]
    %v1749 = vld [vmem:[#allocation8 + $0xe40] sm:$0xff]
    %v1750 = vld [vmem:[#allocation8 + $0xe48] sm:$0xff]
    %v1751 = vld [vmem:[#allocation8 + $0xe50] sm:$0xff]
    %v1752 = vld [vmem:[#allocation8 + $0xe58] sm:$0xff]
    %v1753 = vld [vmem:[#allocation8 + $0xe60] sm:$0xff]
    %v1754 = vld [vmem:[#allocation8 + $0xe68] sm:$0xff]
    %v1755 = vld [vmem:[#allocation8 + $0xe70] sm:$0xff]
    %v1756 = vld [vmem:[#allocation8 + $0xe78] sm:$0xff]
    %v1757 = vld [vmem:[#allocation8 + $0xe80] sm:$0xff]
    %v1758 = vld [vmem:[#allocation8 + $0xe88] sm:$0xff]
    %v1759 = vld [vmem:[#allocation8 + $0xe90] sm:$0xff]
    %v1760 = vld [vmem:[#allocation8 + $0xe98] sm:$0xff]
    %v1761 = vld [vmem:[#allocation8 + $0xea0] sm:$0xff]
    %v1762 = vld [vmem:[#allocation8 + $0xea8] sm:$0xff]
    %v1763 = vld [vmem:[#allocation8 + $0xeb0] sm:$0xff]
    %v1764 = vld [vmem:[#allocation8 + $0xeb8] sm:$0xff]
    %v1765 = vld [vmem:[#allocation8 + $0xec0] sm:$0xff]
    %v1766 = vld [vmem:[#allocation8 + $0xec8] sm:$0xff]
    %v1767 = vld [vmem:[#allocation8 + $0xed0] sm:$0xff]
    %v1768 = vld [vmem:[#allocation8 + $0xed8] sm:$0xff]
    %v1769 = vld [vmem:[#allocation8 + $0xee0] sm:$0xff]
    %v1770 = vld [vmem:[#allocation8 + $0xee8] sm:$0xff]
    %v1771 = vld [vmem:[#allocation8 + $0xef0] sm:$0xff]
    %v1772 = vld [vmem:[#allocation8 + $0xef8] sm:$0xff]
    %v1773 = vld [vmem:[#allocation8 + $0xf00] sm:$0xff]
    %v1774 = vld [vmem:[#allocation8 + $0xf08] sm:$0xff]
    %v1775 = vld [vmem:[#allocation8 + $0xf10] sm:$0xff]
    %v1776 = vld [vmem:[#allocation8 + $0xf18] sm:$0xff]
    %v1777 = vld [vmem:[#allocation8 + $0xf20] sm:$0xff]
    %v1778 = vld [vmem:[#allocation8 + $0xf28] sm:$0xff]
    %v1779 = vld [vmem:[#allocation8 + $0xf30] sm:$0xff]
    %v1780 = vld [vmem:[#allocation8 + $0xf38] sm:$0xff]
    %v1781 = vld [vmem:[#allocation8 + $0xf40] sm:$0xff]
    %v1782 = vld [vmem:[#allocation8 + $0xf48] sm:$0xff]
    %v1783 = vld [vmem:[#allocation8 + $0xf50] sm:$0xff]
    %v1784 = vld [vmem:[#allocation8 + $0xf58] sm:$0xff]
    %v1785 = vld [vmem:[#allocation8 + $0xf60] sm:$0xff]
    %v1786 = vld [vmem:[#allocation8 + $0xf68] sm:$0xff]
    %v1787 = vld [vmem:[#allocation8 + $0xf70] sm:$0xff]
    %v1788 = vld [vmem:[#allocation8 + $0xf78] sm:$0xff]
    %v1789 = vld [vmem:[#allocation8 + $0xf80] sm:$0xff]
    %v1790 = vld [vmem:[#allocation8 + $0xf88] sm:$0xff]
    %v1791 = vld [vmem:[#allocation8 + $0xf90] sm:$0xff]
    %v1792 = vld [vmem:[#allocation8 + $0xf98] sm:$0xff]
    %v1793 = vld [vmem:[#allocation8 + $0xfa0] sm:$0xff]
    %v1794 = vld [vmem:[#allocation8 + $0xfa8] sm:$0xff]
    %v1795 = vld [vmem:[#allocation8 + $0xfb0] sm:$0xff]
    %v1796 = vld [vmem:[#allocation8 + $0xfb8] sm:$0xff]
    %v1797 = vld [vmem:[#allocation8 + $0xfc0] sm:$0xff]
    %v1798 = vld [vmem:[#allocation8 + $0xfc8] sm:$0xff]
    %v1799 = vld [vmem:[#allocation8 + $0xfd0] sm:$0xff]
    %v1800 = vld [vmem:[#allocation8 + $0xfd8] sm:$0xff]
    %v1801 = vld [vmem:[#allocation8 + $0xfe0] sm:$0xff]
    %v1802 = vld [vmem:[#allocation8 + $0xfe8] sm:$0xff]
    %v1803 = vld [vmem:[#allocation8 + $0xff0] sm:$0xff]
    %v1804 = vld [vmem:[#allocation8 + $0xff8] sm:$0xff]
    %v1805 = vld [vmem:[#allocation8 + $0x1000] sm:$0xff]
    %v1806 = vld [vmem:[#allocation8 + $0x1008] sm:$0xff]
    %v1807 = vld [vmem:[#allocation8 + $0x1010] sm:$0xff]
    %v1808 = vld [vmem:[#allocation8 + $0x1018] sm:$0xff]
    %v1809 = vld [vmem:[#allocation8 + $0x1020] sm:$0xff]
    %v1810 = vld [vmem:[#allocation8 + $0x1028] sm:$0xff]
    %v1811 = vld [vmem:[#allocation8 + $0x1030] sm:$0xff]
    %v1812 = vld [vmem:[#allocation8 + $0x1038] sm:$0xff]
    %v1813 = vld [vmem:[#allocation8 + $0x1040] sm:$0xff]
    %v1814 = vld [vmem:[#allocation8 + $0x1048] sm:$0xff]
    %v1815 = vld [vmem:[#allocation8 + $0x1050] sm:$0xff]
    %v1816 = vld [vmem:[#allocation8 + $0x1058] sm:$0xff]
    %v1817 = vld [vmem:[#allocation8 + $0x1060] sm:$0xff]
    %v1818 = vld [vmem:[#allocation8 + $0x1068] sm:$0xff]
    %v1819 = vld [vmem:[#allocation8 + $0x1070] sm:$0xff]
    %v1820 = vld [vmem:[#allocation8 + $0x1078] sm:$0xff]
    %v1821 = vld [vmem:[#allocation8 + $0x1080] sm:$0xff]
    %v1822 = vld [vmem:[#allocation8 + $0x1088] sm:$0xff]
    %v1823 = vld [vmem:[#allocation8 + $0x1090] sm:$0xff]
    %v1824 = vld [vmem:[#allocation8 + $0x1098] sm:$0xff]
    %v1825 = vld [vmem:[#allocation8 + $0x10a0] sm:$0xff]
    %v1826 = vld [vmem:[#allocation8 + $0x10a8] sm:$0xff]
    %v1827 = vld [vmem:[#allocation8 + $0x10b0] sm:$0xff]
    %v1828 = vld [vmem:[#allocation8 + $0x10b8] sm:$0xff]
    %v1829 = vld [vmem:[#allocation8 + $0x10c0] sm:$0xff]
    %v1830 = vld [vmem:[#allocation8 + $0x10c8] sm:$0xff]
    %v1831 = vld [vmem:[#allocation8 + $0x10d0] sm:$0xff]
    %v1832 = vld [vmem:[#allocation8 + $0x10d8] sm:$0xff]
    %v1833 = vld [vmem:[#allocation8 + $0x10e0] sm:$0xff]
    %v1834 = vld [vmem:[#allocation8 + $0x10e8] sm:$0xff]
    %v1835 = vld [vmem:[#allocation8 + $0x10f0] sm:$0xff]
    %v1836 = vld [vmem:[#allocation8 + $0x10f8] sm:$0xff]
    %v1837 = vld [vmem:[#allocation8 + $0x1100] sm:$0xff]
    %v1838 = vld [vmem:[#allocation8 + $0x1108] sm:$0xff]
    %v1839 = vld [vmem:[#allocation8 + $0x1110] sm:$0xff]
    %v1840 = vld [vmem:[#allocation8 + $0x1118] sm:$0xff]
    %v1841 = vld [vmem:[#allocation8 + $0x1120] sm:$0xff]
    %v1842 = vld [vmem:[#allocation8 + $0x1128] sm:$0xff]
    %v1843 = vld [vmem:[#allocation8 + $0x1130] sm:$0xff]
    %v1844 = vld [vmem:[#allocation8 + $0x1138] sm:$0xff]
    %v1845 = vld [vmem:[#allocation8 + $0x1140] sm:$0xff]
    %v1846 = vld [vmem:[#allocation8 + $0x1148] sm:$0xff]
    %v1847 = vld [vmem:[#allocation8 + $0x1150] sm:$0xff]
    %v1848 = vld [vmem:[#allocation8 + $0x1158] sm:$0xff]
    %v1849 = vld [vmem:[#allocation8 + $0x1160] sm:$0xff]
    %v1850 = vld [vmem:[#allocation8 + $0x1168] sm:$0xff]
    %v1851 = vld [vmem:[#allocation8 + $0x1170] sm:$0xff]
    %v1852 = vld [vmem:[#allocation8 + $0x1178] sm:$0xff]
    %v1853 = vld [vmem:[#allocation8 + $0x1180] sm:$0xff]
    %v1854 = vld [vmem:[#allocation8 + $0x1188] sm:$0xff]
    %v1855 = vld [vmem:[#allocation8 + $0x1190] sm:$0xff]
    %v1856 = vld [vmem:[#allocation8 + $0x1198] sm:$0xff]
    %v1857 = vld [vmem:[#allocation8 + $0x11a0] sm:$0xff]
    %v1858 = vld [vmem:[#allocation8 + $0x11a8] sm:$0xff]
    %v1859 = vld [vmem:[#allocation8 + $0x11b0] sm:$0xff]
    %v1860 = vld [vmem:[#allocation8 + $0x11b8] sm:$0xff]
    %v1861 = vld [vmem:[#allocation8 + $0x11c0] sm:$0xff]
    %v1862 = vld [vmem:[#allocation8 + $0x11c8] sm:$0xff]
    %v1863 = vld [vmem:[#allocation8 + $0x11d0] sm:$0xff]
    %v1864 = vld [vmem:[#allocation8 + $0x11d8] sm:$0xff]
    %v1865 = vld [vmem:[#allocation8 + $0x11e0] sm:$0xff]
    %v1866 = vld [vmem:[#allocation8 + $0x11e8] sm:$0xff]
    %v1867 = vld [vmem:[#allocation8 + $0x11f0] sm:$0xff]
    %v1868 = vld [vmem:[#allocation8 + $0x11f8] sm:$0xff]
    %v1869 = vld [vmem:[#allocation8 + $0x1200] sm:$0xff]
    %v1870 = vld [vmem:[#allocation8 + $0x1208] sm:$0xff]
    %v1871 = vld [vmem:[#allocation8 + $0x1210] sm:$0xff]
    %v1872 = vld [vmem:[#allocation8 + $0x1218] sm:$0xff]
    %v1873 = vld [vmem:[#allocation8 + $0x1220] sm:$0xff]
    %v1874 = vld [vmem:[#allocation8 + $0x1228] sm:$0xff]
    %v1875 = vld [vmem:[#allocation8 + $0x1230] sm:$0xff]
    %v1876 = vld [vmem:[#allocation8 + $0x1238] sm:$0xff]
    %v1877 = vld [vmem:[#allocation8 + $0x1240] sm:$0xff]
    %v1878 = vld [vmem:[#allocation8 + $0x1248] sm:$0xff]
    %v1879 = vld [vmem:[#allocation8 + $0x1250] sm:$0xff]
    %v1880 = vld [vmem:[#allocation8 + $0x1258] sm:$0xff]
    %v1881 = vld [vmem:[#allocation8 + $0x1260] sm:$0xff]
    %v1882 = vld [vmem:[#allocation8 + $0x1268] sm:$0xff]
    %v1883 = vld [vmem:[#allocation8 + $0x1270] sm:$0xff]
    %v1884 = vld [vmem:[#allocation8 + $0x1278] sm:$0xff]
    %v1885 = vld [vmem:[#allocation8 + $0x1280] sm:$0xff]
    %v1886 = vld [vmem:[#allocation8 + $0x1288] sm:$0xff]
    %v1887 = vld [vmem:[#allocation8 + $0x1290] sm:$0xff]
    %v1888 = vld [vmem:[#allocation8 + $0x1298] sm:$0xff]
    %v1889 = vld [vmem:[#allocation8 + $0x12a0] sm:$0xff]
    %v1890 = vld [vmem:[#allocation8 + $0x12a8] sm:$0xff]
    %v1891 = vld [vmem:[#allocation8 + $0x12b0] sm:$0xff]
    %v1892 = vld [vmem:[#allocation8 + $0x12b8] sm:$0xff]
    %v1893 = vld [vmem:[#allocation8 + $0x12c0] sm:$0xff]
    %v1894 = vld [vmem:[#allocation8 + $0x12c8] sm:$0xff]
    %v1895 = vld [vmem:[#allocation8 + $0x12d0] sm:$0xff]
    %v1896 = vld [vmem:[#allocation8 + $0x12d8] sm:$0xff]
    %v1897 = vld [vmem:[#allocation8 + $0x12e0] sm:$0xff]
    %v1898 = vld [vmem:[#allocation8 + $0x12e8] sm:$0xff]
    %v1899 = vld [vmem:[#allocation8 + $0x12f0] sm:$0xff]
    %v1900 = vld [vmem:[#allocation8 + $0x12f8] sm:$0xff]
    %v1901 = vld [vmem:[#allocation8 + $0x1300] sm:$0xff]
    %v1902 = vld [vmem:[#allocation8 + $0x1308] sm:$0xff]
    %v1903 = vld [vmem:[#allocation8 + $0x1310] sm:$0xff]
    %v1904 = vld [vmem:[#allocation8 + $0x1318] sm:$0xff]
    %v1905 = vld [vmem:[#allocation8 + $0x1320] sm:$0xff]
    %v1906 = vld [vmem:[#allocation8 + $0x1328] sm:$0xff]
    %v1907 = vld [vmem:[#allocation8 + $0x1330] sm:$0xff]
    %v1908 = vld [vmem:[#allocation8 + $0x1338] sm:$0xff]
    %v1909 = vld [vmem:[#allocation8 + $0x1340] sm:$0xff]
    %v1910 = vld [vmem:[#allocation8 + $0x1348] sm:$0xff]
    %v1911 = vld [vmem:[#allocation8 + $0x1350] sm:$0xff]
    %v1912 = vld [vmem:[#allocation8 + $0x1358] sm:$0xff]
    %v1913 = vld [vmem:[#allocation8 + $0x1360] sm:$0xff]
    %v1914 = vld [vmem:[#allocation8 + $0x1368] sm:$0xff]
    %v1915 = vld [vmem:[#allocation8 + $0x1370] sm:$0xff]
    %v1916 = vld [vmem:[#allocation8 + $0x1378] sm:$0xff]
    %v1917 = vld [vmem:[#allocation8 + $0x1380] sm:$0xff]
    %v1918 = vld [vmem:[#allocation8 + $0x1388] sm:$0xff]
    %v1919 = vld [vmem:[#allocation8 + $0x1390] sm:$0xff]
    %v1920 = vld [vmem:[#allocation8 + $0x1398] sm:$0xff]
    %v1921 = vld [vmem:[#allocation8 + $0x13a0] sm:$0xff]
    %v1922 = vld [vmem:[#allocation8 + $0x13a8] sm:$0xff]
    %v1923 = vld [vmem:[#allocation8 + $0x13b0] sm:$0xff]
    %v1924 = vld [vmem:[#allocation8 + $0x13b8] sm:$0xff]
    %v1925 = vld [vmem:[#allocation8 + $0x13c0] sm:$0xff]
    %v1926 = vld [vmem:[#allocation8 + $0x13c8] sm:$0xff]
    %v1927 = vld [vmem:[#allocation8 + $0x13d0] sm:$0xff]
    %v1928 = vld [vmem:[#allocation8 + $0x13d8] sm:$0xff]
    %v1929 = vld [vmem:[#allocation8 + $0x13e0] sm:$0xff]
    %v1930 = vld [vmem:[#allocation8 + $0x13e8] sm:$0xff]
    %v1931 = vld [vmem:[#allocation8 + $0x13f0] sm:$0xff]
    %v1932 = vld [vmem:[#allocation8 + $0x13f8] sm:$0xff]
    %v1933 = vld [vmem:[#allocation8 + $0x1400] sm:$0xff]
    %v1934 = vld [vmem:[#allocation8 + $0x1408] sm:$0xff]
    %v1935 = vld [vmem:[#allocation8 + $0x1410] sm:$0xff]
    %v1936 = vld [vmem:[#allocation8 + $0x1418] sm:$0xff]
    %v1937 = vld [vmem:[#allocation8 + $0x1420] sm:$0xff]
    %v1938 = vld [vmem:[#allocation8 + $0x1428] sm:$0xff]
    %v1939 = vld [vmem:[#allocation8 + $0x1430] sm:$0xff]
    %v1940 = vld [vmem:[#allocation8 + $0x1438] sm:$0xff]
    %v1941 = vld [vmem:[#allocation8 + $0x1440] sm:$0xff]
    %v1942 = vld [vmem:[#allocation8 + $0x1448] sm:$0xff]
    %v1943 = vld [vmem:[#allocation8 + $0x1450] sm:$0xff]
    %v1944 = vld [vmem:[#allocation8 + $0x1458] sm:$0xff]
    %v1945 = vld [vmem:[#allocation8 + $0x1460] sm:$0xff]
    %v1946 = vld [vmem:[#allocation8 + $0x1468] sm:$0xff]
    %v1947 = vld [vmem:[#allocation8 + $0x1470] sm:$0xff]
    %v1948 = vld [vmem:[#allocation8 + $0x1478] sm:$0xff]
    %v1949 = vld [vmem:[#allocation8 + $0x1480] sm:$0xff]
    %v1950 = vld [vmem:[#allocation8 + $0x1488] sm:$0xff]
    %v1951 = vld [vmem:[#allocation8 + $0x1490] sm:$0xff]
    %v1952 = vld [vmem:[#allocation8 + $0x1498] sm:$0xff]
    %v1953 = vld [vmem:[#allocation8 + $0x14a0] sm:$0xff]
    %v1954 = vld [vmem:[#allocation8 + $0x14a8] sm:$0xff]
    %v1955 = vld [vmem:[#allocation8 + $0x14b0] sm:$0xff]
    %v1956 = vld [vmem:[#allocation8 + $0x14b8] sm:$0xff]
    %v1957 = vld [vmem:[#allocation8 + $0x14c0] sm:$0xff]
    %v1958 = vld [vmem:[#allocation8 + $0x14c8] sm:$0xff]
    %v1959 = vld [vmem:[#allocation8 + $0x14d0] sm:$0xff]
    %v1960 = vld [vmem:[#allocation8 + $0x14d8] sm:$0xff]
    %v1961 = vld [vmem:[#allocation8 + $0x14e0] sm:$0xff]
    %v1962 = vld [vmem:[#allocation8 + $0x14e8] sm:$0xff]
    %v1963 = vld [vmem:[#allocation8 + $0x14f0] sm:$0xff]
    %v1964 = vld [vmem:[#allocation8 + $0x14f8] sm:$0xff]
    %v1965 = vld [vmem:[#allocation8 + $0x1500] sm:$0xff]
    %v1966 = vld [vmem:[#allocation8 + $0x1508] sm:$0xff]
    %v1967 = vld [vmem:[#allocation8 + $0x1510] sm:$0xff]
    %v1968 = vld [vmem:[#allocation8 + $0x1518] sm:$0xff]
    %v1969 = vld [vmem:[#allocation8 + $0x1520] sm:$0xff]
    %v1970 = vld [vmem:[#allocation8 + $0x1528] sm:$0xff]
    %v1971 = vld [vmem:[#allocation8 + $0x1530] sm:$0xff]
    %v1972 = vld [vmem:[#allocation8 + $0x1538] sm:$0xff]
    %v1973 = vld [vmem:[#allocation8 + $0x1540] sm:$0xff]
    %v1974 = vld [vmem:[#allocation8 + $0x1548] sm:$0xff]
    %v1975 = vld [vmem:[#allocation8 + $0x1550] sm:$0xff]
    %v1976 = vld [vmem:[#allocation8 + $0x1558] sm:$0xff]
    %v1977 = vld [vmem:[#allocation8 + $0x1560] sm:$0xff]
    %v1978 = vld [vmem:[#allocation8 + $0x1568] sm:$0xff]
    %v1979 = vld [vmem:[#allocation8 + $0x1570] sm:$0xff]
    %v1980 = vld [vmem:[#allocation8 + $0x1578] sm:$0xff]
    %v1981 = vld [vmem:[#allocation8 + $0x1580] sm:$0xff]
    %v1982 = vld [vmem:[#allocation8 + $0x1588] sm:$0xff]
    %v1983 = vld [vmem:[#allocation8 + $0x1590] sm:$0xff]
    %v1984 = vld [vmem:[#allocation8 + $0x1598] sm:$0xff]
    %v1985 = vld [vmem:[#allocation8 + $0x15a0] sm:$0xff]
    %v1986 = vld [vmem:[#allocation8 + $0x15a8] sm:$0xff]
    %v1987 = vld [vmem:[#allocation8 + $0x15b0] sm:$0xff]
    %v1988 = vld [vmem:[#allocation8 + $0x15b8] sm:$0xff]
    %v1989 = vld [vmem:[#allocation8 + $0x15c0] sm:$0xff]
    %v1990 = vld [vmem:[#allocation8 + $0x15c8] sm:$0xff]
    %v1991 = vld [vmem:[#allocation8 + $0x15d0] sm:$0xff]
    %v1992 = vld [vmem:[#allocation8 + $0x15d8] sm:$0xff]
    %v1993 = vld [vmem:[#allocation8 + $0x15e0] sm:$0xff]
    %v1994 = vld [vmem:[#allocation8 + $0x15e8] sm:$0xff]
    %v1995 = vld [vmem:[#allocation8 + $0x15f0] sm:$0xff]
    %v1996 = vld [vmem:[#allocation8 + $0x15f8] sm:$0xff]
    %v1997 = vld [vmem:[#allocation8 + $0x1600] sm:$0xff]
    %v1998 = vld [vmem:[#allocation8 + $0x1608] sm:$0xff]
    %v1999 = vld [vmem:[#allocation8 + $0x1610] sm:$0xff]
    %v2000 = vld [vmem:[#allocation8 + $0x1618] sm:$0xff]
    %v2001 = vld [vmem:[#allocation8 + $0x1620] sm:$0xff]
    %v2002 = vld [vmem:[#allocation8 + $0x1628] sm:$0xff]
    %v2003 = vld [vmem:[#allocation8 + $0x1630] sm:$0xff]
    %v2004 = vld [vmem:[#allocation8 + $0x1638] sm:$0xff]
    %v2005 = vld [vmem:[#allocation8 + $0x1640] sm:$0xff]
    %v2006 = vld [vmem:[#allocation8 + $0x1648] sm:$0xff]
    %v2007 = vld [vmem:[#allocation8 + $0x1650] sm:$0xff]
    %v2008 = vld [vmem:[#allocation8 + $0x1658] sm:$0xff]
    %v2009 = vld [vmem:[#allocation8 + $0x1660] sm:$0xff]
    %v2010 = vld [vmem:[#allocation8 + $0x1668] sm:$0xff]
    %v2011 = vld [vmem:[#allocation8 + $0x1670] sm:$0xff]
    %v2012 = vld [vmem:[#allocation8 + $0x1678] sm:$0xff]
    %v2013 = vld [vmem:[#allocation8 + $0x1680] sm:$0xff]
    %v2014 = vld [vmem:[#allocation8 + $0x1688] sm:$0xff]
    %v2015 = vld [vmem:[#allocation8 + $0x1690] sm:$0xff]
    %v2016 = vld [vmem:[#allocation8 + $0x1698] sm:$0xff]
    %v2017 = vld [vmem:[#allocation8 + $0x16a0] sm:$0xff]
    %v2018 = vld [vmem:[#allocation8 + $0x16a8] sm:$0xff]
    %v2019 = vld [vmem:[#allocation8 + $0x16b0] sm:$0xff]
    %v2020 = vld [vmem:[#allocation8 + $0x16b8] sm:$0xff]
    %v2021 = vld [vmem:[#allocation8 + $0x16c0] sm:$0xff]
    %v2022 = vld [vmem:[#allocation8 + $0x16c8] sm:$0xff]
    %v2023 = vld [vmem:[#allocation8 + $0x16d0] sm:$0xff]
    %v2024 = vld [vmem:[#allocation8 + $0x16d8] sm:$0xff]
    %v2025 = vld [vmem:[#allocation8 + $0x16e0] sm:$0xff]
    %v2026 = vld [vmem:[#allocation8 + $0x16e8] sm:$0xff]
    %v2027 = vld [vmem:[#allocation8 + $0x16f0] sm:$0xff]
    %v2028 = vld [vmem:[#allocation8 + $0x16f8] sm:$0xff]
    %v2029 = vld [vmem:[#allocation8 + $0x1700] sm:$0xff]
    %v2030 = vld [vmem:[#allocation8 + $0x1708] sm:$0xff]
    %v2031 = vld [vmem:[#allocation8 + $0x1710] sm:$0xff]
    %v2032 = vld [vmem:[#allocation8 + $0x1718] sm:$0xff]
    %v2033 = vld [vmem:[#allocation8 + $0x1720] sm:$0xff]
    %v2034 = vld [vmem:[#allocation8 + $0x1728] sm:$0xff]
    %v2035 = vld [vmem:[#allocation8 + $0x1730] sm:$0xff]
    %v2036 = vld [vmem:[#allocation8 + $0x1738] sm:$0xff]
    %v2037 = vld [vmem:[#allocation8 + $0x1740] sm:$0xff]
    %v2038 = vld [vmem:[#allocation8 + $0x1748] sm:$0xff]
    %v2039 = vld [vmem:[#allocation8 + $0x1750] sm:$0xff]
    %v2040 = vld [vmem:[#allocation8 + $0x1758] sm:$0xff]
    %v2041 = vld [vmem:[#allocation8 + $0x1760] sm:$0xff]
    %v2042 = vld [vmem:[#allocation8 + $0x1768] sm:$0xff]
    %v2043 = vld [vmem:[#allocation8 + $0x1770] sm:$0xff]
    %v2044 = vld [vmem:[#allocation8 + $0x1778] sm:$0xff]
    %v2045 = vld [vmem:[#allocation8 + $0x1780] sm:$0xff]
    %v2046 = vld [vmem:[#allocation8 + $0x1788] sm:$0xff]
    %v2047 = vld [vmem:[#allocation8 + $0x1790] sm:$0xff]
    %v2048 = vld [vmem:[#allocation8 + $0x1798] sm:$0xff]
    %v2049 = vld [vmem:[#allocation8 + $0x17a0] sm:$0xff]
    %v2050 = vld [vmem:[#allocation8 + $0x17a8] sm:$0xff]
    %v2051 = vld [vmem:[#allocation8 + $0x17b0] sm:$0xff]
    %v2052 = vld [vmem:[#allocation8 + $0x17b8] sm:$0xff]
    %v2053 = vld [vmem:[#allocation8 + $0x17c0] sm:$0xff]
    %v2054 = vld [vmem:[#allocation8 + $0x17c8] sm:$0xff]
    %v2055 = vld [vmem:[#allocation8 + $0x17d0] sm:$0xff]
    %v2056 = vld [vmem:[#allocation8 + $0x17d8] sm:$0xff]
    %v2057 = vld [vmem:[#allocation8 + $0x17e0] sm:$0xff]
    %v2058 = vld [vmem:[#allocation8 + $0x17e8] sm:$0xff]
    %v2059 = vld [vmem:[#allocation8 + $0x17f0] sm:$0xff]
    %v2060 = vld [vmem:[#allocation8 + $0x17f8] sm:$0xff]
    %v2061 = vld [vmem:[#allocation8 + $0x1800] sm:$0xff]
    %v2062 = vld [vmem:[#allocation8 + $0x1808] sm:$0xff]
    %v2063 = vld [vmem:[#allocation8 + $0x1810] sm:$0xff]
    %v2064 = vld [vmem:[#allocation8 + $0x1818] sm:$0xff]
    %v2065 = vld [vmem:[#allocation8 + $0x1820] sm:$0xff]
    %v2066 = vld [vmem:[#allocation8 + $0x1828] sm:$0xff]
    %v2067 = vld [vmem:[#allocation8 + $0x1830] sm:$0xff]
    %v2068 = vld [vmem:[#allocation8 + $0x1838] sm:$0xff]
    %v2069 = vld [vmem:[#allocation8 + $0x1840] sm:$0xff]
    %v2070 = vld [vmem:[#allocation8 + $0x1848] sm:$0xff]
    %v2071 = vld [vmem:[#allocation8 + $0x1850] sm:$0xff]
    %v2072 = vld [vmem:[#allocation8 + $0x1858] sm:$0xff]
    %v2073 = vld [vmem:[#allocation8 + $0x1860] sm:$0xff]
    %v2074 = vld [vmem:[#allocation8 + $0x1868] sm:$0xff]
    %v2075 = vld [vmem:[#allocation8 + $0x1870] sm:$0xff]
    %v2076 = vld [vmem:[#allocation8 + $0x1878] sm:$0xff]
    %v2077 = vld [vmem:[#allocation8 + $0x1880] sm:$0xff]
    %v2078 = vld [vmem:[#allocation8 + $0x1888] sm:$0xff]
    %v2079 = vld [vmem:[#allocation8 + $0x1890] sm:$0xff]
    %v2080 = vld [vmem:[#allocation8 + $0x1898] sm:$0xff]
    %v2081 = vld [vmem:[#allocation8 + $0x18a0] sm:$0xff]
    %v2082 = vld [vmem:[#allocation8 + $0x18a8] sm:$0xff]
    %v2083 = vld [vmem:[#allocation8 + $0x18b0] sm:$0xff]
    %v2084 = vld [vmem:[#allocation8 + $0x18b8] sm:$0xff]
    %v2085 = vld [vmem:[#allocation8 + $0x18c0] sm:$0xff]
    %v2086 = vld [vmem:[#allocation8 + $0x18c8] sm:$0xff]
    %v2087 = vld [vmem:[#allocation8 + $0x18d0] sm:$0xff]
    %v2088 = vld [vmem:[#allocation8 + $0x18d8] sm:$0xff]
    %v2089 = vld [vmem:[#allocation8 + $0x18e0] sm:$0xff]
    %v2090 = vld [vmem:[#allocation8 + $0x18e8] sm:$0xff]
    %v2091 = vld [vmem:[#allocation8 + $0x18f0] sm:$0xff]
    %v2092 = vld [vmem:[#allocation8 + $0x18f8] sm:$0xff]
    %v2093 = vld [vmem:[#allocation8 + $0x1900] sm:$0xff]
    %v2094 = vld [vmem:[#allocation8 + $0x1908] sm:$0xff]
    %v2095 = vld [vmem:[#allocation8 + $0x1910] sm:$0xff]
    %v2096 = vld [vmem:[#allocation8 + $0x1918] sm:$0xff]
    %v2097 = vld [vmem:[#allocation8 + $0x1920] sm:$0xff]
    %v2098 = vld [vmem:[#allocation8 + $0x1928] sm:$0xff]
    %v2099 = vld [vmem:[#allocation8 + $0x1930] sm:$0xff]
    %v2100 = vld [vmem:[#allocation8 + $0x1938] sm:$0xff]
    %v2101 = vld [vmem:[#allocation8 + $0x1940] sm:$0xff]
    %v2102 = vld [vmem:[#allocation8 + $0x1948] sm:$0xff]
    %v2103 = vld [vmem:[#allocation8 + $0x1950] sm:$0xff]
    %v2104 = vld [vmem:[#allocation8 + $0x1958] sm:$0xff]
    %v2105 = vld [vmem:[#allocation8 + $0x1960] sm:$0xff]
    %v2106 = vld [vmem:[#allocation8 + $0x1968] sm:$0xff]
    %v2107 = vld [vmem:[#allocation8 + $0x1970] sm:$0xff]
    %v2108 = vld [vmem:[#allocation8 + $0x1978] sm:$0xff]
    %v2109 = vld [vmem:[#allocation8 + $0x1980] sm:$0xff]
    %v2110 = vld [vmem:[#allocation8 + $0x1988] sm:$0xff]
    %v2111 = vld [vmem:[#allocation8 + $0x1990] sm:$0xff]
    %v2112 = vld [vmem:[#allocation8 + $0x1998] sm:$0xff]
    %v2113 = vld [vmem:[#allocation8 + $0x19a0] sm:$0xff]
    %v2114 = vld [vmem:[#allocation8 + $0x19a8] sm:$0xff]
    %v2115 = vld [vmem:[#allocation8 + $0x19b0] sm:$0xff]
    %v2116 = vld [vmem:[#allocation8 + $0x19b8] sm:$0xff]
    %v2117 = vld [vmem:[#allocation8 + $0x19c0] sm:$0xff]
    %v2118 = vld [vmem:[#allocation8 + $0x19c8] sm:$0xff]
    %v2119 = vld [vmem:[#allocation8 + $0x19d0] sm:$0xff]
    %v2120 = vld [vmem:[#allocation8 + $0x19d8] sm:$0xff]
    %v2121 = vld [vmem:[#allocation8 + $0x19e0] sm:$0xff]
    %v2122 = vld [vmem:[#allocation8 + $0x19e8] sm:$0xff]
    %v2123 = vld [vmem:[#allocation8 + $0x19f0] sm:$0xff]
    %v2124 = vld [vmem:[#allocation8 + $0x19f8] sm:$0xff]
    %v2125 = vld [vmem:[#allocation8 + $0x1a00] sm:$0xff]
    %v2126 = vld [vmem:[#allocation8 + $0x1a08] sm:$0xff]
    %v2127 = vld [vmem:[#allocation8 + $0x1a10] sm:$0xff]
    %v2128 = vld [vmem:[#allocation8 + $0x1a18] sm:$0xff]
    %v2129 = vld [vmem:[#allocation8 + $0x1a20] sm:$0xff]
    %v2130 = vld [vmem:[#allocation8 + $0x1a28] sm:$0xff]
    %v2131 = vld [vmem:[#allocation8 + $0x1a30] sm:$0xff]
    %v2132 = vld [vmem:[#allocation8 + $0x1a38] sm:$0xff]
    %v2133 = vld [vmem:[#allocation8 + $0x1a40] sm:$0xff]
    %v2134 = vld [vmem:[#allocation8 + $0x1a48] sm:$0xff]
    %v2135 = vld [vmem:[#allocation8 + $0x1a50] sm:$0xff]
    %v2136 = vld [vmem:[#allocation8 + $0x1a58] sm:$0xff]
    %v2137 = vld [vmem:[#allocation8 + $0x1a60] sm:$0xff]
    %v2138 = vld [vmem:[#allocation8 + $0x1a68] sm:$0xff]
    %v2139 = vld [vmem:[#allocation8 + $0x1a70] sm:$0xff]
    %v2140 = vld [vmem:[#allocation8 + $0x1a78] sm:$0xff]
    %v2141 = vld [vmem:[#allocation8 + $0x1a80] sm:$0xff]
    %v2142 = vld [vmem:[#allocation8 + $0x1a88] sm:$0xff]
    %v2143 = vld [vmem:[#allocation8 + $0x1a90] sm:$0xff]
    %v2144 = vld [vmem:[#allocation8 + $0x1a98] sm:$0xff]
    %v2145 = vld [vmem:[#allocation8 + $0x1aa0] sm:$0xff]
    %v2146 = vld [vmem:[#allocation8 + $0x1aa8] sm:$0xff]
    %v2147 = vld [vmem:[#allocation8 + $0x1ab0] sm:$0xff]
    %v2148 = vld [vmem:[#allocation8 + $0x1ab8] sm:$0xff]
    %v2149 = vld [vmem:[#allocation8 + $0x1ac0] sm:$0xff]
    %v2150 = vld [vmem:[#allocation8 + $0x1ac8] sm:$0xff]
    %v2151 = vld [vmem:[#allocation8 + $0x1ad0] sm:$0xff]
    %v2152 = vld [vmem:[#allocation8 + $0x1ad8] sm:$0xff]
    %v2153 = vld [vmem:[#allocation8 + $0x1ae0] sm:$0xff]
    %v2154 = vld [vmem:[#allocation8 + $0x1ae8] sm:$0xff]
    %v2155 = vld [vmem:[#allocation8 + $0x1af0] sm:$0xff]
    %v2156 = vld [vmem:[#allocation8 + $0x1af8] sm:$0xff]
    %v2157 = vld [vmem:[#allocation8 + $0x1b00] sm:$0xff]
    %v2158 = vld [vmem:[#allocation8 + $0x1b08] sm:$0xff]
    %v2159 = vld [vmem:[#allocation8 + $0x1b10] sm:$0xff]
    %v2160 = vld [vmem:[#allocation8 + $0x1b18] sm:$0xff]
    %v2161 = vld [vmem:[#allocation8 + $0x1b20] sm:$0xff]
    %v2162 = vld [vmem:[#allocation8 + $0x1b28] sm:$0xff]
    %v2163 = vld [vmem:[#allocation8 + $0x1b30] sm:$0xff]
    %v2164 = vld [vmem:[#allocation8 + $0x1b38] sm:$0xff]
    %v2165 = vld [vmem:[#allocation8 + $0x1b40] sm:$0xff]
    %v2166 = vld [vmem:[#allocation8 + $0x1b48] sm:$0xff]
    %v2167 = vld [vmem:[#allocation8 + $0x1b50] sm:$0xff]
    %v2168 = vld [vmem:[#allocation8 + $0x1b58] sm:$0xff]
    %v2169 = vld [vmem:[#allocation8 + $0x1b60] sm:$0xff]
    %v2170 = vld [vmem:[#allocation8 + $0x1b68] sm:$0xff]
    %v2171 = vld [vmem:[#allocation8 + $0x1b70] sm:$0xff]
    %v2172 = vld [vmem:[#allocation8 + $0x1b78] sm:$0xff]
    %v2173 = vld [vmem:[#allocation8 + $0x1b80] sm:$0xff]
    %v2174 = vld [vmem:[#allocation8 + $0x1b88] sm:$0xff]
    %v2175 = vld [vmem:[#allocation8 + $0x1b90] sm:$0xff]
    %v2176 = vld [vmem:[#allocation8 + $0x1b98] sm:$0xff]
    %v2177 = vld [vmem:[#allocation8 + $0x1ba0] sm:$0xff]
    %v2178 = vld [vmem:[#allocation8 + $0x1ba8] sm:$0xff]
    %v2179 = vld [vmem:[#allocation8 + $0x1bb0] sm:$0xff]
    %v2180 = vld [vmem:[#allocation8 + $0x1bb8] sm:$0xff]
    %v2181 = vld [vmem:[#allocation8 + $0x1bc0] sm:$0xff]
    %v2182 = vld [vmem:[#allocation8 + $0x1bc8] sm:$0xff]
    %v2183 = vld [vmem:[#allocation8 + $0x1bd0] sm:$0xff]
    %v2184 = vld [vmem:[#allocation8 + $0x1bd8] sm:$0xff]
    %v2185 = vld [vmem:[#allocation8 + $0x1be0] sm:$0xff]
    %v2186 = vld [vmem:[#allocation8 + $0x1be8] sm:$0xff]
    %v2187 = vld [vmem:[#allocation8 + $0x1bf0] sm:$0xff]
    %v2188 = vld [vmem:[#allocation8 + $0x1bf8] sm:$0xff]
    %v2189 = vld [vmem:[#allocation8 + $0x1c00] sm:$0xff]
    %v2190 = vld [vmem:[#allocation8 + $0x1c08] sm:$0xff]
    %v2191 = vld [vmem:[#allocation8 + $0x1c10] sm:$0xff]
    %v2192 = vld [vmem:[#allocation8 + $0x1c18] sm:$0xff]
    %v2193 = vld [vmem:[#allocation8 + $0x1c20] sm:$0xff]
    %v2194 = vld [vmem:[#allocation8 + $0x1c28] sm:$0xff]
    %v2195 = vld [vmem:[#allocation8 + $0x1c30] sm:$0xff]
    %v2196 = vld [vmem:[#allocation8 + $0x1c38] sm:$0xff]
    %v2197 = vld [vmem:[#allocation8 + $0x1c40] sm:$0xff]
    %v2198 = vld [vmem:[#allocation8 + $0x1c48] sm:$0xff]
    %v2199 = vld [vmem:[#allocation8 + $0x1c50] sm:$0xff]
    %v2200 = vld [vmem:[#allocation8 + $0x1c58] sm:$0xff]
    %v2201 = vld [vmem:[#allocation8 + $0x1c60] sm:$0xff]
    %v2202 = vld [vmem:[#allocation8 + $0x1c68] sm:$0xff]
    %v2203 = vld [vmem:[#allocation8 + $0x1c70] sm:$0xff]
    %v2204 = vld [vmem:[#allocation8 + $0x1c78] sm:$0xff]
    %v2205 = vld [vmem:[#allocation8 + $0x1c80] sm:$0xff]
    %v2206 = vld [vmem:[#allocation8 + $0x1c88] sm:$0xff]
    %v2207 = vld [vmem:[#allocation8 + $0x1c90] sm:$0xff]
    %v2208 = vld [vmem:[#allocation8 + $0x1c98] sm:$0xff]
    %v2209 = vld [vmem:[#allocation8 + $0x1ca0] sm:$0xff]
    %v2210 = vld [vmem:[#allocation8 + $0x1ca8] sm:$0xff]
    %v2211 = vld [vmem:[#allocation8 + $0x1cb0] sm:$0xff]
    %v2212 = vld [vmem:[#allocation8 + $0x1cb8] sm:$0xff]
    %v2213 = vld [vmem:[#allocation8 + $0x1cc0] sm:$0xff]
    %v2214 = vld [vmem:[#allocation8 + $0x1cc8] sm:$0xff]
    %v2215 = vld [vmem:[#allocation8 + $0x1cd0] sm:$0xff]
    %v2216 = vld [vmem:[#allocation8 + $0x1cd8] sm:$0xff]
    %v2217 = vld [vmem:[#allocation8 + $0x1ce0] sm:$0xff]
    %v2218 = vld [vmem:[#allocation8 + $0x1ce8] sm:$0xff]
    %v2219 = vld [vmem:[#allocation8 + $0x1cf0] sm:$0xff]
    %v2220 = vld [vmem:[#allocation8 + $0x1cf8] sm:$0xff]
    %v2221 = vld [vmem:[#allocation8 + $0x1d00] sm:$0xff]
    %v2222 = vld [vmem:[#allocation8 + $0x1d08] sm:$0xff]
    %v2223 = vld [vmem:[#allocation8 + $0x1d10] sm:$0xff]
    %v2224 = vld [vmem:[#allocation8 + $0x1d18] sm:$0xff]
    %v2225 = vld [vmem:[#allocation8 + $0x1d20] sm:$0xff]
    %v2226 = vld [vmem:[#allocation8 + $0x1d28] sm:$0xff]
    %v2227 = vld [vmem:[#allocation8 + $0x1d30] sm:$0xff]
    %v2228 = vld [vmem:[#allocation8 + $0x1d38] sm:$0xff]
    %v2229 = vld [vmem:[#allocation8 + $0x1d40] sm:$0xff]
    %v2230 = vld [vmem:[#allocation8 + $0x1d48] sm:$0xff]
    %v2231 = vld [vmem:[#allocation8 + $0x1d50] sm:$0xff]
    %v2232 = vld [vmem:[#allocation8 + $0x1d58] sm:$0xff]
    %v2233 = vld [vmem:[#allocation8 + $0x1d60] sm:$0xff]
    %v2234 = vld [vmem:[#allocation8 + $0x1d68] sm:$0xff]
    %v2235 = vld [vmem:[#allocation8 + $0x1d70] sm:$0xff]
    %v2236 = vld [vmem:[#allocation8 + $0x1d78] sm:$0xff]
    %v2237 = vld [vmem:[#allocation8 + $0x1d80] sm:$0xff]
    %v2238 = vld [vmem:[#allocation8 + $0x1d88] sm:$0xff]
    %v2239 = vld [vmem:[#allocation8 + $0x1d90] sm:$0xff]
    %v2240 = vld [vmem:[#allocation8 + $0x1d98] sm:$0xff]
    %v2241 = vld [vmem:[#allocation8 + $0x1da0] sm:$0xff]
    %v2242 = vld [vmem:[#allocation8 + $0x1da8] sm:$0xff]
    %v2243 = vld [vmem:[#allocation8 + $0x1db0] sm:$0xff]
    %v2244 = vld [vmem:[#allocation8 + $0x1db8] sm:$0xff]
    %v2245 = vld [vmem:[#allocation8 + $0x1dc0] sm:$0xff]
    %v2246 = vld [vmem:[#allocation8 + $0x1dc8] sm:$0xff]
    %v2247 = vld [vmem:[#allocation8 + $0x1dd0] sm:$0xff]
    %v2248 = vld [vmem:[#allocation8 + $0x1dd8] sm:$0xff]
    %v2249 = vld [vmem:[#allocation8 + $0x1de0] sm:$0xff]
    %v2250 = vld [vmem:[#allocation8 + $0x1de8] sm:$0xff]
    %v2251 = vld [vmem:[#allocation8 + $0x1df0] sm:$0xff]
    %v2252 = vld [vmem:[#allocation8 + $0x1df8] sm:$0xff]
    %v2253 = vld [vmem:[#allocation8 + $0x1e00] sm:$0xff]
    %v2254 = vld [vmem:[#allocation8 + $0x1e08] sm:$0xff]
    %v2255 = vld [vmem:[#allocation8 + $0x1e10] sm:$0xff]
    %v2256 = vld [vmem:[#allocation8 + $0x1e18] sm:$0xff]
    %v2257 = vld [vmem:[#allocation8 + $0x1e20] sm:$0xff]
    %v2258 = vld [vmem:[#allocation8 + $0x1e28] sm:$0xff]
    %v2259 = vld [vmem:[#allocation8 + $0x1e30] sm:$0xff]
    %v2260 = vld [vmem:[#allocation8 + $0x1e38] sm:$0xff]
    %v2261 = vld [vmem:[#allocation8 + $0x1e40] sm:$0xff]
    %v2262 = vld [vmem:[#allocation8 + $0x1e48] sm:$0xff]
    %v2263 = vld [vmem:[#allocation8 + $0x1e50] sm:$0xff]
    %v2264 = vld [vmem:[#allocation8 + $0x1e58] sm:$0xff]
    %v2265 = vld [vmem:[#allocation8 + $0x1e60] sm:$0xff]
    %v2266 = vld [vmem:[#allocation8 + $0x1e68] sm:$0xff]
    %v2267 = vld [vmem:[#allocation8 + $0x1e70] sm:$0xff]
    %v2268 = vld [vmem:[#allocation8 + $0x1e78] sm:$0xff]
    %v2269 = vld [vmem:[#allocation8 + $0x1e80] sm:$0xff]
    %v2270 = vld [vmem:[#allocation8 + $0x1e88] sm:$0xff]
    %v2271 = vld [vmem:[#allocation8 + $0x1e90] sm:$0xff]
    %v2272 = vld [vmem:[#allocation8 + $0x1e98] sm:$0xff]
    %v2273 = vld [vmem:[#allocation8 + $0x1ea0] sm:$0xff]
    %v2274 = vld [vmem:[#allocation8 + $0x1ea8] sm:$0xff]
    %v2275 = vld [vmem:[#allocation8 + $0x1eb0] sm:$0xff]
    %v2276 = vld [vmem:[#allocation8 + $0x1eb8] sm:$0xff]
    %v2277 = vld [vmem:[#allocation8 + $0x1ec0] sm:$0xff]
    %v2278 = vld [vmem:[#allocation8 + $0x1ec8] sm:$0xff]
    %v2279 = vld [vmem:[#allocation8 + $0x1ed0] sm:$0xff]
    %v2280 = vld [vmem:[#allocation8 + $0x1ed8] sm:$0xff]
    %v2281 = vld [vmem:[#allocation8 + $0x1ee0] sm:$0xff]
    %v2282 = vld [vmem:[#allocation8 + $0x1ee8] sm:$0xff]
    %v2283 = vld [vmem:[#allocation8 + $0x1ef0] sm:$0xff]
    %v2284 = vld [vmem:[#allocation8 + $0x1ef8] sm:$0xff]
    %v2285 = vld [vmem:[#allocation8 + $0x1f00] sm:$0xff]
    %v2286 = vld [vmem:[#allocation8 + $0x1f08] sm:$0xff]
    %v2287 = vld [vmem:[#allocation8 + $0x1f10] sm:$0xff]
    %v2288 = vld [vmem:[#allocation8 + $0x1f18] sm:$0xff]
    %v2289 = vld [vmem:[#allocation8 + $0x1f20] sm:$0xff]
    %v2290 = vld [vmem:[#allocation8 + $0x1f28] sm:$0xff]
    %v2291 = vld [vmem:[#allocation8 + $0x1f30] sm:$0xff]
    %v2292 = vld [vmem:[#allocation8 + $0x1f38] sm:$0xff]
    %v2293 = vld [vmem:[#allocation8 + $0x1f40] sm:$0xff]
    %v2294 = vld [vmem:[#allocation8 + $0x1f48] sm:$0xff]
    %v2295 = vld [vmem:[#allocation8 + $0x1f50] sm:$0xff]
    %v2296 = vld [vmem:[#allocation8 + $0x1f58] sm:$0xff]
    %v2297 = vld [vmem:[#allocation8 + $0x1f60] sm:$0xff]
    %v2298 = vld [vmem:[#allocation8 + $0x1f68] sm:$0xff]
    %v2299 = vld [vmem:[#allocation8 + $0x1f70] sm:$0xff]
    %v2300 = vld [vmem:[#allocation8 + $0x1f78] sm:$0xff]
    %v2301 = vld [vmem:[#allocation8 + $0x1f80] sm:$0xff]
    %v2302 = vld [vmem:[#allocation8 + $0x1f88] sm:$0xff]
    %v2303 = vld [vmem:[#allocation8 + $0x1f90] sm:$0xff]
    %v2304 = vld [vmem:[#allocation8 + $0x1f98] sm:$0xff]
    %v2305 = vld [vmem:[#allocation8 + $0x1fa0] sm:$0xff]
    %v2306 = vld [vmem:[#allocation8 + $0x1fa8] sm:$0xff]
    %v2307 = vld [vmem:[#allocation8 + $0x1fb0] sm:$0xff]
    %v2308 = vld [vmem:[#allocation8 + $0x1fb8] sm:$0xff]
    %v2309 = vld [vmem:[#allocation8 + $0x1fc0] sm:$0xff]
    %v2310 = vld [vmem:[#allocation8 + $0x1fc8] sm:$0xff]
    %v2311 = vld [vmem:[#allocation8 + $0x1fd0] sm:$0xff]
    %v2312 = vld [vmem:[#allocation8 + $0x1fd8] sm:$0xff]
    %v2313 = vld [vmem:[#allocation8 + $0x1fe0] sm:$0xff]
    %v2314 = vld [vmem:[#allocation8 + $0x1fe8] sm:$0xff]
    %v2315 = vld [vmem:[#allocation8 + $0x1ff0] sm:$0xff]
    %v2316 = vld [vmem:[#allocation8 + $0x1ff8] sm:$0xff]
    %v2317 = vld [vmem:[#allocation8 + $0x2000] sm:$0xff]
    %v2318 = vld [vmem:[#allocation8 + $0x2008] sm:$0xff]
    %v2319 = vld [vmem:[#allocation8 + $0x2010] sm:$0xff]
    %v2320 = vld [vmem:[#allocation8 + $0x2018] sm:$0xff]
    %v2321 = vld [vmem:[#allocation8 + $0x2020] sm:$0xff]
    %v2322 = vld [vmem:[#allocation8 + $0x2028] sm:$0xff]
    %v2323 = vld [vmem:[#allocation8 + $0x2030] sm:$0xff]
    %v2324 = vld [vmem:[#allocation8 + $0x2038] sm:$0xff]
    %v2325 = vld [vmem:[#allocation8 + $0x2040] sm:$0xff]
    %v2326 = vld [vmem:[#allocation8 + $0x2048] sm:$0xff]
    %v2327 = vld [vmem:[#allocation8 + $0x2050] sm:$0xff]
    %v2328 = vld [vmem:[#allocation8 + $0x2058] sm:$0xff]
    %v2329 = vld [vmem:[#allocation8 + $0x2060] sm:$0xff]
    %v2330 = vld [vmem:[#allocation8 + $0x2068] sm:$0xff]
    %v2331 = vld [vmem:[#allocation8 + $0x2070] sm:$0xff]
    %v2332 = vld [vmem:[#allocation8 + $0x2078] sm:$0xff]
    %v2333 = vld [vmem:[#allocation8 + $0x2080] sm:$0xff]
    %v2334 = vld [vmem:[#allocation8 + $0x2088] sm:$0xff]
    %v2335 = vld [vmem:[#allocation8 + $0x2090] sm:$0xff]
    %v2336 = vld [vmem:[#allocation8 + $0x2098] sm:$0xff]
    %v2337 = vld [vmem:[#allocation8 + $0x20a0] sm:$0xff]
    %v2338 = vld [vmem:[#allocation8 + $0x20a8] sm:$0xff]
    %v2339 = vld [vmem:[#allocation8 + $0x20b0] sm:$0xff]
    %v2340 = vld [vmem:[#allocation8 + $0x20b8] sm:$0xff]
    %v2341 = vld [vmem:[#allocation8 + $0x20c0] sm:$0xff]
    %v2342 = vld [vmem:[#allocation8 + $0x20c8] sm:$0xff]
    %v2343 = vld [vmem:[#allocation8 + $0x20d0] sm:$0xff]
    %v2344 = vld [vmem:[#allocation8 + $0x20d8] sm:$0xff]
    %v2345 = vld [vmem:[#allocation8 + $0x20e0] sm:$0xff]
    %v2346 = vld [vmem:[#allocation8 + $0x20e8] sm:$0xff]
    %v2347 = vld [vmem:[#allocation8 + $0x20f0] sm:$0xff]
    %v2348 = vld [vmem:[#allocation8 + $0x20f8] sm:$0xff]
    %v2349 = vld [vmem:[#allocation8 + $0x2100] sm:$0xff]
    %v2350 = vld [vmem:[#allocation8 + $0x2108] sm:$0xff]
    %v2351 = vld [vmem:[#allocation8 + $0x2110] sm:$0xff]
    %v2352 = vld [vmem:[#allocation8 + $0x2118] sm:$0xff]
    %v2353 = vld [vmem:[#allocation8 + $0x2120] sm:$0xff]
    %v2354 = vld [vmem:[#allocation8 + $0x2128] sm:$0xff]
    %v2355 = vld [vmem:[#allocation8 + $0x2130] sm:$0xff]
    %v2356 = vld [vmem:[#allocation8 + $0x2138] sm:$0xff]
    %v2357 = vld [vmem:[#allocation8 + $0x2140] sm:$0xff]
    %v2358 = vld [vmem:[#allocation8 + $0x2148] sm:$0xff]
    %v2359 = vld [vmem:[#allocation8 + $0x2150] sm:$0xff]
    %v2360 = vld [vmem:[#allocation8 + $0x2158] sm:$0xff]
    %v2361 = vld [vmem:[#allocation8 + $0x2160] sm:$0xff]
    %v2362 = vld [vmem:[#allocation8 + $0x2168] sm:$0xff]
    %v2363 = vld [vmem:[#allocation8 + $0x2170] sm:$0xff]
    %v2364 = vld [vmem:[#allocation8 + $0x2178] sm:$0xff]
    %v2365 = vld [vmem:[#allocation8 + $0x2180] sm:$0xff]
    %v2366 = vld [vmem:[#allocation8 + $0x2188] sm:$0xff]
    %v2367 = vld [vmem:[#allocation8 + $0x2190] sm:$0xff]
    %v2368 = vld [vmem:[#allocation8 + $0x2198] sm:$0xff]
    %v2369 = vld [vmem:[#allocation8 + $0x21a0] sm:$0xff]
    %v2370 = vld [vmem:[#allocation8 + $0x21a8] sm:$0xff]
    %v2371 = vld [vmem:[#allocation8 + $0x21b0] sm:$0xff]
    %v2372 = vld [vmem:[#allocation8 + $0x21b8] sm:$0xff]
    %v2373 = vld [vmem:[#allocation8 + $0x21c0] sm:$0xff]
    %v2374 = vld [vmem:[#allocation8 + $0x21c8] sm:$0xff]
    %v2375 = vld [vmem:[#allocation8 + $0x21d0] sm:$0xff]
    %v2376 = vld [vmem:[#allocation8 + $0x21d8] sm:$0xff]
    %v2377 = vld [vmem:[#allocation8 + $0x21e0] sm:$0xff]
    %v2378 = vld [vmem:[#allocation8 + $0x21e8] sm:$0xff]
    %v2379 = vld [vmem:[#allocation8 + $0x21f0] sm:$0xff]
    %v2380 = vld [vmem:[#allocation8 + $0x21f8] sm:$0xff]
    %v2381 = vld [vmem:[#allocation8 + $0x2200] sm:$0xff]
    %v2382 = vld [vmem:[#allocation8 + $0x2208] sm:$0xff]
    %v2383 = vld [vmem:[#allocation8 + $0x2210] sm:$0xff]
    %v2384 = vld [vmem:[#allocation8 + $0x2218] sm:$0xff]
    %v2385 = vld [vmem:[#allocation8 + $0x2220] sm:$0xff]
    %v2386 = vld [vmem:[#allocation8 + $0x2228] sm:$0xff]
    %v2387 = vld [vmem:[#allocation8 + $0x2230] sm:$0xff]
    %v2388 = vld [vmem:[#allocation8 + $0x2238] sm:$0xff]
    %v2389 = vld [vmem:[#allocation8 + $0x2240] sm:$0xff]
    %v2390 = vld [vmem:[#allocation8 + $0x2248] sm:$0xff]
    %v2391 = vld [vmem:[#allocation8 + $0x2250] sm:$0xff]
    %v2392 = vld [vmem:[#allocation8 + $0x2258] sm:$0xff]
    %v2393 = vld [vmem:[#allocation8 + $0x2260] sm:$0xff]
    %v2394 = vld [vmem:[#allocation8 + $0x2268] sm:$0xff]
    %v2395 = vld [vmem:[#allocation8 + $0x2270] sm:$0xff]
    %v2396 = vld [vmem:[#allocation8 + $0x2278] sm:$0xff]
    %v2397 = vld [vmem:[#allocation8 + $0x2280] sm:$0xff]
    %v2398 = vld [vmem:[#allocation8 + $0x2288] sm:$0xff]
    %v2399 = vld [vmem:[#allocation8 + $0x2290] sm:$0xff]
    %v2400 = vld [vmem:[#allocation8 + $0x2298] sm:$0xff]
    %v2401 = vld [vmem:[#allocation8 + $0x22a0] sm:$0xff]
    %v2402 = vld [vmem:[#allocation8 + $0x22a8] sm:$0xff]
    %v2403 = vld [vmem:[#allocation8 + $0x22b0] sm:$0xff]
    %v2404 = vld [vmem:[#allocation8 + $0x22b8] sm:$0xff]
    %v2405 = vld [vmem:[#allocation8 + $0x22c0] sm:$0xff]
    %v2406 = vld [vmem:[#allocation8 + $0x22c8] sm:$0xff]
    %v2407 = vld [vmem:[#allocation8 + $0x22d0] sm:$0xff]
    %v2408 = vld [vmem:[#allocation8 + $0x22d8] sm:$0xff]
    %v2409 = vld [vmem:[#allocation8 + $0x22e0] sm:$0xff]
    %v2410 = vld [vmem:[#allocation8 + $0x22e8] sm:$0xff]
    %v2411 = vld [vmem:[#allocation8 + $0x22f0] sm:$0xff]
    %v2412 = vld [vmem:[#allocation8 + $0x22f8] sm:$0xff]
    %v2413 = vld [vmem:[#allocation8 + $0x2300] sm:$0xff]
    %v2414 = vld [vmem:[#allocation8 + $0x2308] sm:$0xff]
    %v2415 = vld [vmem:[#allocation8 + $0x2310] sm:$0xff]
    %v2416 = vld [vmem:[#allocation8 + $0x2318] sm:$0xff]
    %v2417 = vld [vmem:[#allocation8 + $0x2320] sm:$0xff]
    %v2418 = vld [vmem:[#allocation8 + $0x2328] sm:$0xff]
    %v2419 = vld [vmem:[#allocation8 + $0x2330] sm:$0xff]
    %v2420 = vld [vmem:[#allocation8 + $0x2338] sm:$0xff]
    %v2421 = vld [vmem:[#allocation8 + $0x2340] sm:$0xff]
    %v2422 = vld [vmem:[#allocation8 + $0x2348] sm:$0xff]
    %v2423 = vld [vmem:[#allocation8 + $0x2350] sm:$0xff]
    %v2424 = vld [vmem:[#allocation8 + $0x2358] sm:$0xff]
    %v2425 = vld [vmem:[#allocation8 + $0x2360] sm:$0xff]
    %v2426 = vld [vmem:[#allocation8 + $0x2368] sm:$0xff]
    %v2427 = vld [vmem:[#allocation8 + $0x2370] sm:$0xff]
    %v2428 = vld [vmem:[#allocation8 + $0x2378] sm:$0xff]
    %v2429 = vld [vmem:[#allocation8 + $0x2380] sm:$0xff]
    %v2430 = vld [vmem:[#allocation8 + $0x2388] sm:$0xff]
    %v2431 = vld [vmem:[#allocation8 + $0x2390] sm:$0xff]
    %v2432 = vld [vmem:[#allocation8 + $0x2398] sm:$0xff]
    %v2433 = vld [vmem:[#allocation8 + $0x23a0] sm:$0xff]
    %v2434 = vld [vmem:[#allocation8 + $0x23a8] sm:$0xff]
    %v2435 = vld [vmem:[#allocation8 + $0x23b0] sm:$0xff]
    %v2436 = vld [vmem:[#allocation8 + $0x23b8] sm:$0xff]
    %v2437 = vld [vmem:[#allocation8 + $0x23c0] sm:$0xff]
    %v2438 = vld [vmem:[#allocation8 + $0x23c8] sm:$0xff]
    %v2439 = vld [vmem:[#allocation8 + $0x23d0] sm:$0xff]
    %v2440 = vld [vmem:[#allocation8 + $0x23d8] sm:$0xff]
    %v2441 = vld [vmem:[#allocation8 + $0x23e0] sm:$0xff]
    %v2442 = vld [vmem:[#allocation8 + $0x23e8] sm:$0xff]
    %v2443 = vld [vmem:[#allocation8 + $0x23f0] sm:$0xff]
    %v2444 = vld [vmem:[#allocation8 + $0x23f8] sm:$0xff]
    %v2445 = vld [vmem:[#allocation8 + $0x2400] sm:$0xff]
    %v2446 = vld [vmem:[#allocation8 + $0x2408] sm:$0xff]
    %v2447 = vld [vmem:[#allocation8 + $0x2410] sm:$0xff]
    %v2448 = vld [vmem:[#allocation8 + $0x2418] sm:$0xff]
    %v2449 = vld [vmem:[#allocation8 + $0x2420] sm:$0xff]
    %v2450 = vld [vmem:[#allocation8 + $0x2428] sm:$0xff]
    %v2451 = vld [vmem:[#allocation8 + $0x2430] sm:$0xff]
    %v2452 = vld [vmem:[#allocation8 + $0x2438] sm:$0xff]
    %v2453 = vld [vmem:[#allocation8 + $0x2440] sm:$0xff]
    %v2454 = vld [vmem:[#allocation8 + $0x2448] sm:$0xff]
    %v2455 = vld [vmem:[#allocation8 + $0x2450] sm:$0xff]
    %v2456 = vld [vmem:[#allocation8 + $0x2458] sm:$0xff]
    %v2457 = vld [vmem:[#allocation8 + $0x2460] sm:$0xff]
    %v2458 = vld [vmem:[#allocation8 + $0x2468] sm:$0xff]
    %v2459 = vld [vmem:[#allocation8 + $0x2470] sm:$0xff]
    %v2460 = vld [vmem:[#allocation8 + $0x2478] sm:$0xff]
    %v2461 = vld [vmem:[#allocation8 + $0x2480] sm:$0xff]
    %v2462 = vld [vmem:[#allocation8 + $0x2488] sm:$0xff]
    %v2463 = vld [vmem:[#allocation8 + $0x2490] sm:$0xff]
    %v2464 = vld [vmem:[#allocation8 + $0x2498] sm:$0xff]
    %v2465 = vld [vmem:[#allocation8 + $0x24a0] sm:$0xff]
    %v2466 = vld [vmem:[#allocation8 + $0x24a8] sm:$0xff]
    %v2467 = vld [vmem:[#allocation8 + $0x24b0] sm:$0xff]
    %v2468 = vld [vmem:[#allocation8 + $0x24b8] sm:$0xff]
    %v2469 = vld [vmem:[#allocation8 + $0x24c0] sm:$0xff]
    %v2470 = vld [vmem:[#allocation8 + $0x24c8] sm:$0xff]
    %v2471 = vld [vmem:[#allocation8 + $0x24d0] sm:$0xff]
    %v2472 = vld [vmem:[#allocation8 + $0x24d8] sm:$0xff]
    %v2473 = vld [vmem:[#allocation8 + $0x24e0] sm:$0xff]
    %v2474 = vld [vmem:[#allocation8 + $0x24e8] sm:$0xff]
    %v2475 = vld [vmem:[#allocation8 + $0x24f0] sm:$0xff]
    %v2476 = vld [vmem:[#allocation8 + $0x24f8] sm:$0xff]
    %v2477 = vld [vmem:[#allocation8 + $0x2500] sm:$0xff]
    %v2478 = vld [vmem:[#allocation8 + $0x2508] sm:$0xff]
    %v2479 = vld [vmem:[#allocation8 + $0x2510] sm:$0xff]
    %v2480 = vld [vmem:[#allocation8 + $0x2518] sm:$0xff]
    %v2481 = vld [vmem:[#allocation8 + $0x2520] sm:$0xff]
    %v2482 = vld [vmem:[#allocation8 + $0x2528] sm:$0xff]
    %v2483 = vld [vmem:[#allocation8 + $0x2530] sm:$0xff]
    %v2484 = vld [vmem:[#allocation8 + $0x2538] sm:$0xff]
    %v2485 = vld [vmem:[#allocation8 + $0x2540] sm:$0xff]
    %v2486 = vld [vmem:[#allocation8 + $0x2548] sm:$0xff]
    %v2487 = vld [vmem:[#allocation8 + $0x2550] sm:$0xff]
    %v2488 = vld [vmem:[#allocation8 + $0x2558] sm:$0xff]
    %v2489 = vld [vmem:[#allocation8 + $0x2560] sm:$0xff]
    %v2490 = vld [vmem:[#allocation8 + $0x2568] sm:$0xff]
    %v2491 = vld [vmem:[#allocation8 + $0x2570] sm:$0xff]
    %v2492 = vld [vmem:[#allocation8 + $0x2578] sm:$0xff]
    %v2493 = vld [vmem:[#allocation8 + $0x2580] sm:$0xff]
    %v2494 = vld [vmem:[#allocation8 + $0x2588] sm:$0xff]
    %v2495 = vld [vmem:[#allocation8 + $0x2590] sm:$0xff]
    %v2496 = vld [vmem:[#allocation8 + $0x2598] sm:$0xff]
    %v2497 = vld [vmem:[#allocation8 + $0x25a0] sm:$0xff]
    %v2498 = vld [vmem:[#allocation8 + $0x25a8] sm:$0xff]
    %v2499 = vld [vmem:[#allocation8 + $0x25b0] sm:$0xff]
    %v2500 = vld [vmem:[#allocation8 + $0x25b8] sm:$0xff]
    %v2501 = vld [vmem:[#allocation8 + $0x25c0] sm:$0xff]
    %v2502 = vld [vmem:[#allocation8 + $0x25c8] sm:$0xff]
    %v2503 = vld [vmem:[#allocation8 + $0x25d0] sm:$0xff]
    %v2504 = vld [vmem:[#allocation8 + $0x25d8] sm:$0xff]
    %v2505 = vld [vmem:[#allocation8 + $0x25e0] sm:$0xff]
    %v2506 = vld [vmem:[#allocation8 + $0x25e8] sm:$0xff]
    %v2507 = vld [vmem:[#allocation8 + $0x25f0] sm:$0xff]
    %v2508 = vld [vmem:[#allocation8 + $0x25f8] sm:$0xff]
    %v2509 = vld [vmem:[#allocation8 + $0x2600] sm:$0xff]
    %v2510 = vld [vmem:[#allocation8 + $0x2608] sm:$0xff]
    %v2511 = vld [vmem:[#allocation8 + $0x2610] sm:$0xff]
    %v2512 = vld [vmem:[#allocation8 + $0x2618] sm:$0xff]
    %v2513 = vld [vmem:[#allocation8 + $0x2620] sm:$0xff]
    %v2514 = vld [vmem:[#allocation8 + $0x2628] sm:$0xff]
    %v2515 = vld [vmem:[#allocation8 + $0x2630] sm:$0xff]
    %v2516 = vld [vmem:[#allocation8 + $0x2638] sm:$0xff]
    %v2517 = vld [vmem:[#allocation8 + $0x2640] sm:$0xff]
    %v2518 = vld [vmem:[#allocation8 + $0x2648] sm:$0xff]
    %v2519 = vld [vmem:[#allocation8 + $0x2650] sm:$0xff]
    %v2520 = vld [vmem:[#allocation8 + $0x2658] sm:$0xff]
    %v2521 = vld [vmem:[#allocation8 + $0x2660] sm:$0xff]
    %v2522 = vld [vmem:[#allocation8 + $0x2668] sm:$0xff]
    %v2523 = vld [vmem:[#allocation8 + $0x2670] sm:$0xff]
    %v2524 = vld [vmem:[#allocation8 + $0x2678] sm:$0xff]
    %v2525 = vld [vmem:[#allocation8 + $0x2680] sm:$0xff]
    %v2526 = vld [vmem:[#allocation8 + $0x2688] sm:$0xff]
    %v2527 = vld [vmem:[#allocation8 + $0x2690] sm:$0xff]
    %v2528 = vld [vmem:[#allocation8 + $0x2698] sm:$0xff]
    %v2529 = vld [vmem:[#allocation8 + $0x26a0] sm:$0xff]
    %v2530 = vld [vmem:[#allocation8 + $0x26a8] sm:$0xff]
    %v2531 = vld [vmem:[#allocation8 + $0x26b0] sm:$0xff]
    %v2532 = vld [vmem:[#allocation8 + $0x26b8] sm:$0xff]
    %v2533 = vld [vmem:[#allocation8 + $0x26c0] sm:$0xff]
    %v2534 = vld [vmem:[#allocation8 + $0x26c8] sm:$0xff]
    %v2535 = vld [vmem:[#allocation8 + $0x26d0] sm:$0xff]
    %v2536 = vld [vmem:[#allocation8 + $0x26d8] sm:$0xff]
    %v2537 = vld [vmem:[#allocation8 + $0x26e0] sm:$0xff]
    %v2538 = vld [vmem:[#allocation8 + $0x26e8] sm:$0xff]
    %v2539 = vld [vmem:[#allocation8 + $0x26f0] sm:$0xff]
    %v2540 = vld [vmem:[#allocation8 + $0x26f8] sm:$0xff]
    %v2541 = vld [vmem:[#allocation8 + $0x2700] sm:$0xff]
    %v2542 = vld [vmem:[#allocation8 + $0x2708] sm:$0xff]
    %v2543 = vld [vmem:[#allocation8 + $0x2710] sm:$0xff]
    %v2544 = vld [vmem:[#allocation8 + $0x2718] sm:$0xff]
    %v2545 = vld [vmem:[#allocation8 + $0x2720] sm:$0xff]
    %v2546 = vld [vmem:[#allocation8 + $0x2728] sm:$0xff]
    %v2547 = vld [vmem:[#allocation8 + $0x2730] sm:$0xff]
    %v2548 = vld [vmem:[#allocation8 + $0x2738] sm:$0xff]
    %v2549 = vld [vmem:[#allocation8 + $0x2740] sm:$0xff]
    %v2550 = vld [vmem:[#allocation8 + $0x2748] sm:$0xff]
    %v2551 = vld [vmem:[#allocation8 + $0x2750] sm:$0xff]
    %v2552 = vld [vmem:[#allocation8 + $0x2758] sm:$0xff]
    %v2553 = vld [vmem:[#allocation8 + $0x2760] sm:$0xff]
    %v2554 = vld [vmem:[#allocation8 + $0x2768] sm:$0xff]
    %v2555 = vld [vmem:[#allocation8 + $0x2770] sm:$0xff]
    %v2556 = vld [vmem:[#allocation8 + $0x2778] sm:$0xff]
    %v2557 = vld [vmem:[#allocation8 + $0x2780] sm:$0xff]
    %v2558 = vld [vmem:[#allocation8 + $0x2788] sm:$0xff]
    %v2559 = vld [vmem:[#allocation8 + $0x2790] sm:$0xff]
    %v2560 = vld [vmem:[#allocation8 + $0x2798] sm:$0xff]
    %v2561 = vld [vmem:[#allocation8 + $0x27a0] sm:$0xff]
    %v2562 = vld [vmem:[#allocation8 + $0x27a8] sm:$0xff]
    %v2563 = vld [vmem:[#allocation8 + $0x27b0] sm:$0xff]
    %v2564 = vld [vmem:[#allocation8 + $0x27b8] sm:$0xff]
    %v2565 = vld [vmem:[#allocation8 + $0x27c0] sm:$0xff]
    %v2566 = vld [vmem:[#allocation8 + $0x27c8] sm:$0xff]
    %v2567 = vld [vmem:[#allocation8 + $0x27d0] sm:$0xff]
    %v2568 = vld [vmem:[#allocation8 + $0x27d8] sm:$0xff]
    %v2569 = vld [vmem:[#allocation8 + $0x27e0] sm:$0xff]
    %v2570 = vld [vmem:[#allocation8 + $0x27e8] sm:$0xff]
    %v2571 = vld [vmem:[#allocation8 + $0x27f0] sm:$0xff]
    %v2572 = vld [vmem:[#allocation8 + $0x27f8] sm:$0xff]
    %v2573 = vld [vmem:[#allocation8 + $0x2800] sm:$0xff]
    %v2574 = vld [vmem:[#allocation8 + $0x2808] sm:$0xff]
    %v2575 = vld [vmem:[#allocation8 + $0x2810] sm:$0xff]
    %v2576 = vld [vmem:[#allocation8 + $0x2818] sm:$0xff]
    %v2577 = vld [vmem:[#allocation8 + $0x2820] sm:$0xff]
    %v2578 = vld [vmem:[#allocation8 + $0x2828] sm:$0xff]
    %v2579 = vld [vmem:[#allocation8 + $0x2830] sm:$0xff]
    %v2580 = vld [vmem:[#allocation8 + $0x2838] sm:$0xff]
    %v2581 = vld [vmem:[#allocation8 + $0x2840] sm:$0xff]
    %v2582 = vld [vmem:[#allocation8 + $0x2848] sm:$0xff]
    %v2583 = vld [vmem:[#allocation8 + $0x2850] sm:$0xff]
    %v2584 = vld [vmem:[#allocation8 + $0x2858] sm:$0xff]
    %v2585 = vld [vmem:[#allocation8 + $0x2860] sm:$0xff]
    %v2586 = vld [vmem:[#allocation8 + $0x2868] sm:$0xff]
    %v2587 = vld [vmem:[#allocation8 + $0x2870] sm:$0xff]
    %v2588 = vld [vmem:[#allocation8 + $0x2878] sm:$0xff]
    %v2589 = vld [vmem:[#allocation8 + $0x2880] sm:$0xff]
    %v2590 = vld [vmem:[#allocation8 + $0x2888] sm:$0xff]
    %v2591 = vld [vmem:[#allocation8 + $0x2890] sm:$0xff]
    %v2592 = vld [vmem:[#allocation8 + $0x2898] sm:$0xff]
    %v2593 = vld [vmem:[#allocation8 + $0x28a0] sm:$0xff]
    %v2594 = vld [vmem:[#allocation8 + $0x28a8] sm:$0xff]
    %v2595 = vld [vmem:[#allocation8 + $0x28b0] sm:$0xff]
    %v2596 = vld [vmem:[#allocation8 + $0x28b8] sm:$0xff]
    %v2597 = vld [vmem:[#allocation8 + $0x28c0] sm:$0xff]
    %v2598 = vld [vmem:[#allocation8 + $0x28c8] sm:$0xff]
    %v2599 = vld [vmem:[#allocation8 + $0x28d0] sm:$0xff]
    %v2600 = vld [vmem:[#allocation8 + $0x28d8] sm:$0xff]
    %v2601 = vld [vmem:[#allocation8 + $0x28e0] sm:$0xff]
    %v2602 = vld [vmem:[#allocation8 + $0x28e8] sm:$0xff]
    %v2603 = vld [vmem:[#allocation8 + $0x28f0] sm:$0xff]
    %v2604 = vld [vmem:[#allocation8 + $0x28f8] sm:$0xff]
    %v2605 = vld [vmem:[#allocation8 + $0x2900] sm:$0xff]
    %v2606 = vld [vmem:[#allocation8 + $0x2908] sm:$0xff]
    %v2607 = vld [vmem:[#allocation8 + $0x2910] sm:$0xff]
    %v2608 = vld [vmem:[#allocation8 + $0x2918] sm:$0xff]
    %v2609 = vld [vmem:[#allocation8 + $0x2920] sm:$0xff]
    %v2610 = vld [vmem:[#allocation8 + $0x2928] sm:$0xff]
    %v2611 = vld [vmem:[#allocation8 + $0x2930] sm:$0xff]
    %v2612 = vld [vmem:[#allocation8 + $0x2938] sm:$0xff]
    %v2613 = vld [vmem:[#allocation8 + $0x2940] sm:$0xff]
    %v2614 = vld [vmem:[#allocation8 + $0x2948] sm:$0xff]
    %v2615 = vld [vmem:[#allocation8 + $0x2950] sm:$0xff]
    %v2616 = vld [vmem:[#allocation8 + $0x2958] sm:$0xff]
    %v2617 = vld [vmem:[#allocation8 + $0x2960] sm:$0xff]
    %v2618 = vld [vmem:[#allocation8 + $0x2968] sm:$0xff]
    %v2619 = vld [vmem:[#allocation8 + $0x2970] sm:$0xff]
    %v2620 = vld [vmem:[#allocation8 + $0x2978] sm:$0xff]
    %v2621 = vld [vmem:[#allocation8 + $0x2980] sm:$0xff]
    %v2622 = vld [vmem:[#allocation8 + $0x2988] sm:$0xff]
    %v2623 = vld [vmem:[#allocation8 + $0x2990] sm:$0xff]
    %v2624 = vld [vmem:[#allocation8 + $0x2998] sm:$0xff]
    %v2625 = vld [vmem:[#allocation8 + $0x29a0] sm:$0xff]
    %v2626 = vld [vmem:[#allocation8 + $0x29a8] sm:$0xff]
    %v2627 = vld [vmem:[#allocation8 + $0x29b0] sm:$0xff]
    %v2628 = vld [vmem:[#allocation8 + $0x29b8] sm:$0xff]
    %v2629 = vld [vmem:[#allocation8 + $0x29c0] sm:$0xff]
    %v2630 = vld [vmem:[#allocation8 + $0x29c8] sm:$0xff]
    %v2631 = vld [vmem:[#allocation8 + $0x29d0] sm:$0xff]
    %v2632 = vld [vmem:[#allocation8 + $0x29d8] sm:$0xff]
    %v2633 = vld [vmem:[#allocation8 + $0x29e0] sm:$0xff]
    %v2634 = vld [vmem:[#allocation8 + $0x29e8] sm:$0xff]
    %v2635 = vld [vmem:[#allocation8 + $0x29f0] sm:$0xff]
    %v2636 = vld [vmem:[#allocation8 + $0x29f8] sm:$0xff]
    %v2637 = vld [vmem:[#allocation8 + $0x2a00] sm:$0xff]
    %v2638 = vld [vmem:[#allocation8 + $0x2a08] sm:$0xff]
    %v2639 = vld [vmem:[#allocation8 + $0x2a10] sm:$0xff]
    %v2640 = vld [vmem:[#allocation8 + $0x2a18] sm:$0xff]
    %v2641 = vld [vmem:[#allocation8 + $0x2a20] sm:$0xff]
    %v2642 = vld [vmem:[#allocation8 + $0x2a28] sm:$0xff]
    %v2643 = vld [vmem:[#allocation8 + $0x2a30] sm:$0xff]
    %v2644 = vld [vmem:[#allocation8 + $0x2a38] sm:$0xff]
    %v2645 = vld [vmem:[#allocation8 + $0x2a40] sm:$0xff]
    %v2646 = vld [vmem:[#allocation8 + $0x2a48] sm:$0xff]
    %v2647 = vld [vmem:[#allocation8 + $0x2a50] sm:$0xff]
    %v2648 = vld [vmem:[#allocation8 + $0x2a58] sm:$0xff]
    %v2649 = vld [vmem:[#allocation8 + $0x2a60] sm:$0xff]
    %v2650 = vld [vmem:[#allocation8 + $0x2a68] sm:$0xff]
    %v2651 = vld [vmem:[#allocation8 + $0x2a70] sm:$0xff]
    %v2652 = vld [vmem:[#allocation8 + $0x2a78] sm:$0xff]
    %v2653 = vld [vmem:[#allocation8 + $0x2a80] sm:$0xff]
    %v2654 = vld [vmem:[#allocation8 + $0x2a88] sm:$0xff]
    %v2655 = vld [vmem:[#allocation8 + $0x2a90] sm:$0xff]
    %v2656 = vld [vmem:[#allocation8 + $0x2a98] sm:$0xff]
    %v2657 = vld [vmem:[#allocation8 + $0x2aa0] sm:$0xff]
    %v2658 = vld [vmem:[#allocation8 + $0x2aa8] sm:$0xff]
    %v2659 = vld [vmem:[#allocation8 + $0x2ab0] sm:$0xff]
    %v2660 = vld [vmem:[#allocation8 + $0x2ab8] sm:$0xff]
    %v2661 = vld [vmem:[#allocation8 + $0x2ac0] sm:$0xff]
    %v2662 = vld [vmem:[#allocation8 + $0x2ac8] sm:$0xff]
    %v2663 = vld [vmem:[#allocation8 + $0x2ad0] sm:$0xff]
    %v2664 = vld [vmem:[#allocation8 + $0x2ad8] sm:$0xff]
    %v2665 = vld [vmem:[#allocation8 + $0x2ae0] sm:$0xff]
    %v2666 = vld [vmem:[#allocation8 + $0x2ae8] sm:$0xff]
    %v2667 = vld [vmem:[#allocation8 + $0x2af0] sm:$0xff]
    %v2668 = vld [vmem:[#allocation8 + $0x2af8] sm:$0xff]
    %v2669 = vld [vmem:[#allocation8 + $0x2b00] sm:$0xff]
    %v2670 = vld [vmem:[#allocation8 + $0x2b08] sm:$0xff]
    %v2671 = vld [vmem:[#allocation8 + $0x2b10] sm:$0xff]
    %v2672 = vld [vmem:[#allocation8 + $0x2b18] sm:$0xff]
    %v2673 = vld [vmem:[#allocation8 + $0x2b20] sm:$0xff]
    %v2674 = vld [vmem:[#allocation8 + $0x2b28] sm:$0xff]
    %v2675 = vld [vmem:[#allocation8 + $0x2b30] sm:$0xff]
    %v2676 = vld [vmem:[#allocation8 + $0x2b38] sm:$0xff]
    %v2677 = vld [vmem:[#allocation8 + $0x2b40] sm:$0xff]
    %v2678 = vld [vmem:[#allocation8 + $0x2b48] sm:$0xff]
    %v2679 = vld [vmem:[#allocation8 + $0x2b50] sm:$0xff]
    %v2680 = vld [vmem:[#allocation8 + $0x2b58] sm:$0xff]
    %v2681 = vld [vmem:[#allocation8 + $0x2b60] sm:$0xff]
    %v2682 = vld [vmem:[#allocation8 + $0x2b68] sm:$0xff]
    %v2683 = vld [vmem:[#allocation8 + $0x2b70] sm:$0xff]
    %v2684 = vld [vmem:[#allocation8 + $0x2b78] sm:$0xff]
    %v2685 = vld [vmem:[#allocation8 + $0x2b80] sm:$0xff]
    %v2686 = vld [vmem:[#allocation8 + $0x2b88] sm:$0xff]
    %v2687 = vld [vmem:[#allocation8 + $0x2b90] sm:$0xff]
    %v2688 = vld [vmem:[#allocation8 + $0x2b98] sm:$0xff]
    %v2689 = vld [vmem:[#allocation8 + $0x2ba0] sm:$0xff]
    %v2690 = vld [vmem:[#allocation8 + $0x2ba8] sm:$0xff]
    %v2691 = vld [vmem:[#allocation8 + $0x2bb0] sm:$0xff]
    %v2692 = vld [vmem:[#allocation8 + $0x2bb8] sm:$0xff]
    %v2693 = vld [vmem:[#allocation8 + $0x2bc0] sm:$0xff]
    %v2694 = vld [vmem:[#allocation8 + $0x2bc8] sm:$0xff]
    %v2695 = vld [vmem:[#allocation8 + $0x2bd0] sm:$0xff]
    %v2696 = vld [vmem:[#allocation8 + $0x2bd8] sm:$0xff]
    %v2697 = vld [vmem:[#allocation8 + $0x2be0] sm:$0xff]
    %v2698 = vld [vmem:[#allocation8 + $0x2be8] sm:$0xff]
    %v2699 = vld [vmem:[#allocation8 + $0x2bf0] sm:$0xff]
    %v2700 = vld [vmem:[#allocation8 + $0x2bf8] sm:$0xff]
    %v2701 = vld [vmem:[#allocation8 + $0x2c00] sm:$0xff]
    %v2702 = vld [vmem:[#allocation8 + $0x2c08] sm:$0xff]
    %v2703 = vld [vmem:[#allocation8 + $0x2c10] sm:$0xff]
    %v2704 = vld [vmem:[#allocation8 + $0x2c18] sm:$0xff]
    %v2705 = vld [vmem:[#allocation8 + $0x2c20] sm:$0xff]
    %v2706 = vld [vmem:[#allocation8 + $0x2c28] sm:$0xff]
    %v2707 = vld [vmem:[#allocation8 + $0x2c30] sm:$0xff]
    %v2708 = vld [vmem:[#allocation8 + $0x2c38] sm:$0xff]
    %v2709 = vld [vmem:[#allocation8 + $0x2c40] sm:$0xff]
    %v2710 = vld [vmem:[#allocation8 + $0x2c48] sm:$0xff]
    %v2711 = vld [vmem:[#allocation8 + $0x2c50] sm:$0xff]
    %v2712 = vld [vmem:[#allocation8 + $0x2c58] sm:$0xff]
    %v2713 = vld [vmem:[#allocation8 + $0x2c60] sm:$0xff]
    %v2714 = vld [vmem:[#allocation8 + $0x2c68] sm:$0xff]
    %v2715 = vld [vmem:[#allocation8 + $0x2c70] sm:$0xff]
    %v2716 = vld [vmem:[#allocation8 + $0x2c78] sm:$0xff]
    %v2717 = vld [vmem:[#allocation8 + $0x2c80] sm:$0xff]
    %v2718 = vld [vmem:[#allocation8 + $0x2c88] sm:$0xff]
    %v2719 = vld [vmem:[#allocation8 + $0x2c90] sm:$0xff]
    %v2720 = vld [vmem:[#allocation8 + $0x2c98] sm:$0xff]
    %v2721 = vld [vmem:[#allocation8 + $0x2ca0] sm:$0xff]
    %v2722 = vld [vmem:[#allocation8 + $0x2ca8] sm:$0xff]
    %v2723 = vld [vmem:[#allocation8 + $0x2cb0] sm:$0xff]
    %v2724 = vld [vmem:[#allocation8 + $0x2cb8] sm:$0xff]
    %v2725 = vld [vmem:[#allocation8 + $0x2cc0] sm:$0xff]
    %v2726 = vld [vmem:[#allocation8 + $0x2cc8] sm:$0xff]
    %v2727 = vld [vmem:[#allocation8 + $0x2cd0] sm:$0xff]
    %v2728 = vld [vmem:[#allocation8 + $0x2cd8] sm:$0xff]
    %v2729 = vld [vmem:[#allocation8 + $0x2ce0] sm:$0xff]
    %v2730 = vld [vmem:[#allocation8 + $0x2ce8] sm:$0xff]
    %v2731 = vld [vmem:[#allocation8 + $0x2cf0] sm:$0xff]
    %v2732 = vld [vmem:[#allocation8 + $0x2cf8] sm:$0xff]
    %v2733 = vld [vmem:[#allocation8 + $0x2d00] sm:$0xff]
    %v2734 = vld [vmem:[#allocation8 + $0x2d08] sm:$0xff]
    %v2735 = vld [vmem:[#allocation8 + $0x2d10] sm:$0xff]
    %v2736 = vld [vmem:[#allocation8 + $0x2d18] sm:$0xff]
    %v2737 = vld [vmem:[#allocation8 + $0x2d20] sm:$0xff]
    %v2738 = vld [vmem:[#allocation8 + $0x2d28] sm:$0xff]
    %v2739 = vld [vmem:[#allocation8 + $0x2d30] sm:$0xff]
    %v2740 = vld [vmem:[#allocation8 + $0x2d38] sm:$0xff]
    %v2741 = vld [vmem:[#allocation8 + $0x2d40] sm:$0xff]
    %v2742 = vld [vmem:[#allocation8 + $0x2d48] sm:$0xff]
    %v2743 = vld [vmem:[#allocation8 + $0x2d50] sm:$0xff]
    %v2744 = vld [vmem:[#allocation8 + $0x2d58] sm:$0xff]
    %v2745 = vld [vmem:[#allocation8 + $0x2d60] sm:$0xff]
    %v2746 = vld [vmem:[#allocation8 + $0x2d68] sm:$0xff]
    %v2747 = vld [vmem:[#allocation8 + $0x2d70] sm:$0xff]
    %v2748 = vld [vmem:[#allocation8 + $0x2d78] sm:$0xff]
    %v2749 = vld [vmem:[#allocation8 + $0x2d80] sm:$0xff]
    %v2750 = vld [vmem:[#allocation8 + $0x2d88] sm:$0xff]
    %v2751 = vld [vmem:[#allocation8 + $0x2d90] sm:$0xff]
    %v2752 = vld [vmem:[#allocation8 + $0x2d98] sm:$0xff]
    %v2753 = vld [vmem:[#allocation8 + $0x2da0] sm:$0xff]
    %v2754 = vld [vmem:[#allocation8 + $0x2da8] sm:$0xff]
    %v2755 = vld [vmem:[#allocation8 + $0x2db0] sm:$0xff]
    %v2756 = vld [vmem:[#allocation8 + $0x2db8] sm:$0xff]
    %v2757 = vld [vmem:[#allocation8 + $0x2dc0] sm:$0xff]
    %v2758 = vld [vmem:[#allocation8 + $0x2dc8] sm:$0xff]
    %v2759 = vld [vmem:[#allocation8 + $0x2dd0] sm:$0xff]
    %v2760 = vld [vmem:[#allocation8 + $0x2dd8] sm:$0xff]
    %v2761 = vld [vmem:[#allocation8 + $0x2de0] sm:$0xff]
    %v2762 = vld [vmem:[#allocation8 + $0x2de8] sm:$0xff]
    %v2763 = vld [vmem:[#allocation8 + $0x2df0] sm:$0xff]
    %v2764 = vld [vmem:[#allocation8 + $0x2df8] sm:$0xff]
    %v2765 = vld [vmem:[#allocation8 + $0x2e00] sm:$0xff]
    %v2766 = vld [vmem:[#allocation8 + $0x2e08] sm:$0xff]
    %v2767 = vld [vmem:[#allocation8 + $0x2e10] sm:$0xff]
    %v2768 = vld [vmem:[#allocation8 + $0x2e18] sm:$0xff]
    %v2769 = vld [vmem:[#allocation8 + $0x2e20] sm:$0xff]
    %v2770 = vld [vmem:[#allocation8 + $0x2e28] sm:$0xff]
    %v2771 = vld [vmem:[#allocation8 + $0x2e30] sm:$0xff]
    %v2772 = vld [vmem:[#allocation8 + $0x2e38] sm:$0xff]
    %v2773 = vld [vmem:[#allocation8 + $0x2e40] sm:$0xff]
    %v2774 = vld [vmem:[#allocation8 + $0x2e48] sm:$0xff]
    %v2775 = vld [vmem:[#allocation8 + $0x2e50] sm:$0xff]
    %v2776 = vld [vmem:[#allocation8 + $0x2e58] sm:$0xff]
    %v2777 = vld [vmem:[#allocation8 + $0x2e60] sm:$0xff]
    %v2778 = vld [vmem:[#allocation8 + $0x2e68] sm:$0xff]
    %v2779 = vld [vmem:[#allocation8 + $0x2e70] sm:$0xff]
    %v2780 = vld [vmem:[#allocation8 + $0x2e78] sm:$0xff]
    %v2781 = vld [vmem:[#allocation8 + $0x2e80] sm:$0xff]
    %v2782 = vld [vmem:[#allocation8 + $0x2e88] sm:$0xff]
    %v2783 = vld [vmem:[#allocation8 + $0x2e90] sm:$0xff]
    %v2784 = vld [vmem:[#allocation8 + $0x2e98] sm:$0xff]
    %v2785 = vld [vmem:[#allocation8 + $0x2ea0] sm:$0xff]
    %v2786 = vld [vmem:[#allocation8 + $0x2ea8] sm:$0xff]
    %v2787 = vld [vmem:[#allocation8 + $0x2eb0] sm:$0xff]
    %v2788 = vld [vmem:[#allocation8 + $0x2eb8] sm:$0xff]
    %v2789 = vld [vmem:[#allocation8 + $0x2ec0] sm:$0xff]
    %v2790 = vld [vmem:[#allocation8 + $0x2ec8] sm:$0xff]
    %v2791 = vld [vmem:[#allocation8 + $0x2ed0] sm:$0xff]
    %v2792 = vld [vmem:[#allocation8 + $0x2ed8] sm:$0xff]
    %v2793 = vld [vmem:[#allocation8 + $0x2ee0] sm:$0xff]
    %v2794 = vld [vmem:[#allocation8 + $0x2ee8] sm:$0xff]
    %v2795 = vld [vmem:[#allocation8 + $0x2ef0] sm:$0xff]
    %v2796 = vld [vmem:[#allocation8 + $0x2ef8] sm:$0xff]
    %v2797 = vld [vmem:[#allocation8 + $0x2f00] sm:$0xff]
    %v2798 = vld [vmem:[#allocation8 + $0x2f08] sm:$0xff]
    %v2799 = vld [vmem:[#allocation8 + $0x2f10] sm:$0xff]
    %v2800 = vld [vmem:[#allocation8 + $0x2f18] sm:$0xff]
    %v2801 = vld [vmem:[#allocation8 + $0x2f20] sm:$0xff]
    %v2802 = vld [vmem:[#allocation8 + $0x2f28] sm:$0xff]
    %v2803 = vld [vmem:[#allocation8 + $0x2f30] sm:$0xff]
    %v2804 = vld [vmem:[#allocation8 + $0x2f38] sm:$0xff]
    %v2805 = vld [vmem:[#allocation8 + $0x2f40] sm:$0xff]
    %v2806 = vld [vmem:[#allocation8 + $0x2f48] sm:$0xff]
    %v2807 = vld [vmem:[#allocation8 + $0x2f50] sm:$0xff]
    %v2808 = vld [vmem:[#allocation8 + $0x2f58] sm:$0xff]
    %v2809 = vld [vmem:[#allocation8 + $0x2f60] sm:$0xff]
    %v2810 = vld [vmem:[#allocation8 + $0x2f68] sm:$0xff]
    %v2811 = vld [vmem:[#allocation8 + $0x2f70] sm:$0xff]
    %v2812 = vld [vmem:[#allocation8 + $0x2f78] sm:$0xff]
    %v2813 = vld [vmem:[#allocation8 + $0x2f80] sm:$0xff]
    %v2814 = vld [vmem:[#allocation8 + $0x2f88] sm:$0xff]
    %v2815 = vld [vmem:[#allocation8 + $0x2f90] sm:$0xff]
    %v2816 = vld [vmem:[#allocation8 + $0x2f98] sm:$0xff]
    %v2817 = vld [vmem:[#allocation8 + $0x2fa0] sm:$0xff]
    %v2818 = vld [vmem:[#allocation8 + $0x2fa8] sm:$0xff]
    %v2819 = vld [vmem:[#allocation8 + $0x2fb0] sm:$0xff]
    %v2820 = vld [vmem:[#allocation8 + $0x2fb8] sm:$0xff]
    %v2821 = vld [vmem:[#allocation8 + $0x2fc0] sm:$0xff]
    %v2822 = vld [vmem:[#allocation8 + $0x2fc8] sm:$0xff]
    %v2823 = vld [vmem:[#allocation8 + $0x2fd0] sm:$0xff]
    %v2824 = vld [vmem:[#allocation8 + $0x2fd8] sm:$0xff]
    %v2825 = vld [vmem:[#allocation8 + $0x2fe0] sm:$0xff]
    %v2826 = vld [vmem:[#allocation8 + $0x2fe8] sm:$0xff]
    %v2827 = vld [vmem:[#allocation8 + $0x2ff0] sm:$0xff]
    %v2828 = vld [vmem:[#allocation8 + $0x2ff8] sm:$0xff]
    %v2829 = vld [vmem:[#allocation8 + $0x3000] sm:$0xff]
    %v2830 = vld [vmem:[#allocation8 + $0x3008] sm:$0xff]
    %v2831 = vld [vmem:[#allocation8 + $0x3010] sm:$0xff]
    %v2832 = vld [vmem:[#allocation8 + $0x3018] sm:$0xff]
    %v2833 = vld [vmem:[#allocation8 + $0x3020] sm:$0xff]
    %v2834 = vld [vmem:[#allocation8 + $0x3028] sm:$0xff]
    %v2835 = vld [vmem:[#allocation8 + $0x3030] sm:$0xff]
    %v2836 = vld [vmem:[#allocation8 + $0x3038] sm:$0xff]
    %v2837 = vld [vmem:[#allocation8 + $0x3040] sm:$0xff]
    %v2838 = vld [vmem:[#allocation8 + $0x3048] sm:$0xff]
    %v2839 = vld [vmem:[#allocation8 + $0x3050] sm:$0xff]
    %v2840 = vld [vmem:[#allocation8 + $0x3058] sm:$0xff]
    %v2841 = vld [vmem:[#allocation8 + $0x3060] sm:$0xff]
    %v2842 = vld [vmem:[#allocation8 + $0x3068] sm:$0xff]
    %v2843 = vld [vmem:[#allocation8 + $0x3070] sm:$0xff]
    %v2844 = vld [vmem:[#allocation8 + $0x3078] sm:$0xff]
    %v2845 = vld [vmem:[#allocation8 + $0x3080] sm:$0xff]
    %v2846 = vld [vmem:[#allocation8 + $0x3088] sm:$0xff]
    %v2847 = vld [vmem:[#allocation8 + $0x3090] sm:$0xff]
    %v2848 = vld [vmem:[#allocation8 + $0x3098] sm:$0xff]
    %v2849 = vld [vmem:[#allocation8 + $0x30a0] sm:$0xff]
    %v2850 = vld [vmem:[#allocation8 + $0x30a8] sm:$0xff]
    %v2851 = vld [vmem:[#allocation8 + $0x30b0] sm:$0xff]
    %v2852 = vld [vmem:[#allocation8 + $0x30b8] sm:$0xff]
    %v2853 = vld [vmem:[#allocation8 + $0x30c0] sm:$0xff]
    %v2854 = vld [vmem:[#allocation8 + $0x30c8] sm:$0xff]
    %v2855 = vld [vmem:[#allocation8 + $0x30d0] sm:$0xff]
    %v2856 = vld [vmem:[#allocation8 + $0x30d8] sm:$0xff]
    %v2857 = vld [vmem:[#allocation8 + $0x30e0] sm:$0xff]
    %v2858 = vld [vmem:[#allocation8 + $0x30e8] sm:$0xff]
    %v2859 = vld [vmem:[#allocation8 + $0x30f0] sm:$0xff]
    %v2860 = vld [vmem:[#allocation8 + $0x30f8] sm:$0xff]
    %v2861 = vld [vmem:[#allocation8 + $0x3100] sm:$0xff]
    %v2862 = vld [vmem:[#allocation8 + $0x3108] sm:$0xff]
    %v2863 = vld [vmem:[#allocation8 + $0x3110] sm:$0xff]
    %v2864 = vld [vmem:[#allocation8 + $0x3118] sm:$0xff]
    %v2865 = vld [vmem:[#allocation8 + $0x3120] sm:$0xff]
    %v2866 = vld [vmem:[#allocation8 + $0x3128] sm:$0xff]
    %v2867 = vld [vmem:[#allocation8 + $0x3130] sm:$0xff]
    %v2868 = vld [vmem:[#allocation8 + $0x3138] sm:$0xff]
    %v2869 = vld [vmem:[#allocation8 + $0x3140] sm:$0xff]
    %v2870 = vld [vmem:[#allocation8 + $0x3148] sm:$0xff]
    %v2871 = vld [vmem:[#allocation8 + $0x3150] sm:$0xff]
    %v2872 = vld [vmem:[#allocation8 + $0x3158] sm:$0xff]
    %v2873 = vld [vmem:[#allocation8 + $0x3160] sm:$0xff]
    %v2874 = vld [vmem:[#allocation8 + $0x3168] sm:$0xff]
    %v2875 = vld [vmem:[#allocation8 + $0x3170] sm:$0xff]
    %v2876 = vld [vmem:[#allocation8 + $0x3178] sm:$0xff]
    %v2877 = vld [vmem:[#allocation8 + $0x3180] sm:$0xff]
    %v2878 = vld [vmem:[#allocation8 + $0x3188] sm:$0xff]
    %v2879 = vld [vmem:[#allocation8 + $0x3190] sm:$0xff]
    %v2880 = vld [vmem:[#allocation8 + $0x3198] sm:$0xff]
    %v2881 = vld [vmem:[#allocation8 + $0x31a0] sm:$0xff]
    %v2882 = vld [vmem:[#allocation8 + $0x31a8] sm:$0xff]
    %v2883 = vld [vmem:[#allocation8 + $0x31b0] sm:$0xff]
    %v2884 = vld [vmem:[#allocation8 + $0x31b8] sm:$0xff]
    %v2885 = vld [vmem:[#allocation8 + $0x31c0] sm:$0xff]
    %v2886 = vld [vmem:[#allocation8 + $0x31c8] sm:$0xff]
    %v2887 = vld [vmem:[#allocation8 + $0x31d0] sm:$0xff]
    %v2888 = vld [vmem:[#allocation8 + $0x31d8] sm:$0xff]
    %v2889 = vld [vmem:[#allocation8 + $0x31e0] sm:$0xff]
    %v2890 = vld [vmem:[#allocation8 + $0x31e8] sm:$0xff]
    %v2891 = vld [vmem:[#allocation8 + $0x31f0] sm:$0xff]
    %v2892 = vld [vmem:[#allocation8 + $0x31f8] sm:$0xff]
    %v2893 = vld [vmem:[#allocation8 + $0x3200] sm:$0xff]
    %v2894 = vld [vmem:[#allocation8 + $0x3208] sm:$0xff]
    %v2895 = vld [vmem:[#allocation8 + $0x3210] sm:$0xff]
    %v2896 = vld [vmem:[#allocation8 + $0x3218] sm:$0xff]
    %v2897 = vld [vmem:[#allocation8 + $0x3220] sm:$0xff]
    %v2898 = vld [vmem:[#allocation8 + $0x3228] sm:$0xff]
    %v2899 = vld [vmem:[#allocation8 + $0x3230] sm:$0xff]
    %v2900 = vld [vmem:[#allocation8 + $0x3238] sm:$0xff]
    %v2901 = vld [vmem:[#allocation8 + $0x3240] sm:$0xff]
    %v2902 = vld [vmem:[#allocation8 + $0x3248] sm:$0xff]
    %v2903 = vld [vmem:[#allocation8 + $0x3250] sm:$0xff]
    %v2904 = vld [vmem:[#allocation8 + $0x3258] sm:$0xff]
    %v2905 = vld [vmem:[#allocation8 + $0x3260] sm:$0xff]
    %v2906 = vld [vmem:[#allocation8 + $0x3268] sm:$0xff]
    %v2907 = vld [vmem:[#allocation8 + $0x3270] sm:$0xff]
    %v2908 = vld [vmem:[#allocation8 + $0x3278] sm:$0xff]
    %v2909 = vld [vmem:[#allocation8 + $0x3280] sm:$0xff]
    %v2910 = vld [vmem:[#allocation8 + $0x3288] sm:$0xff]
    %v2911 = vld [vmem:[#allocation8 + $0x3290] sm:$0xff]
    %v2912 = vld [vmem:[#allocation8 + $0x3298] sm:$0xff]
    %v2913 = vld [vmem:[#allocation8 + $0x32a0] sm:$0xff]
    %v2914 = vld [vmem:[#allocation8 + $0x32a8] sm:$0xff]
    %v2915 = vld [vmem:[#allocation8 + $0x32b0] sm:$0xff]
    %v2916 = vld [vmem:[#allocation8 + $0x32b8] sm:$0xff]
    %v2917 = vld [vmem:[#allocation8 + $0x32c0] sm:$0xff]
    %v2918 = vld [vmem:[#allocation8 + $0x32c8] sm:$0xff]
    %v2919 = vld [vmem:[#allocation8 + $0x32d0] sm:$0xff]
    %v2920 = vld [vmem:[#allocation8 + $0x32d8] sm:$0xff]
    %v2921 = vld [vmem:[#allocation8 + $0x32e0] sm:$0xff]
    %v2922 = vld [vmem:[#allocation8 + $0x32e8] sm:$0xff]
    %v2923 = vld [vmem:[#allocation8 + $0x32f0] sm:$0xff]
    %v2924 = vld [vmem:[#allocation8 + $0x32f8] sm:$0xff]
    %v2925 = vld [vmem:[#allocation8 + $0x3300] sm:$0xff]
    %v2926 = vld [vmem:[#allocation8 + $0x3308] sm:$0xff]
    %v2927 = vld [vmem:[#allocation8 + $0x3310] sm:$0xff]
    %v2928 = vld [vmem:[#allocation8 + $0x3318] sm:$0xff]
    %v2929 = vld [vmem:[#allocation8 + $0x3320] sm:$0xff]
    %v2930 = vld [vmem:[#allocation8 + $0x3328] sm:$0xff]
    %v2931 = vld [vmem:[#allocation8 + $0x3330] sm:$0xff]
    %v2932 = vld [vmem:[#allocation8 + $0x3338] sm:$0xff]
    %v2933 = vld [vmem:[#allocation8 + $0x3340] sm:$0xff]
    %v2934 = vld [vmem:[#allocation8 + $0x3348] sm:$0xff]
    %v2935 = vld [vmem:[#allocation8 + $0x3350] sm:$0xff]
    %v2936 = vld [vmem:[#allocation8 + $0x3358] sm:$0xff]
    %v2937 = vld [vmem:[#allocation8 + $0x3360] sm:$0xff]
    %v2938 = vld [vmem:[#allocation8 + $0x3368] sm:$0xff]
    %v2939 = vld [vmem:[#allocation8 + $0x3370] sm:$0xff]
    %v2940 = vld [vmem:[#allocation8 + $0x3378] sm:$0xff]
    %v2941 = vld [vmem:[#allocation8 + $0x3380] sm:$0xff]
    %v2942 = vld [vmem:[#allocation8 + $0x3388] sm:$0xff]
    %v2943 = vld [vmem:[#allocation8 + $0x3390] sm:$0xff]
    %v2944 = vld [vmem:[#allocation8 + $0x3398] sm:$0xff]
    %v2945 = vld [vmem:[#allocation8 + $0x33a0] sm:$0xff]
    %v2946 = vld [vmem:[#allocation8 + $0x33a8] sm:$0xff]
    %v2947 = vld [vmem:[#allocation8 + $0x33b0] sm:$0xff]
    %v2948 = vld [vmem:[#allocation8 + $0x33b8] sm:$0xff]
    %v2949 = vld [vmem:[#allocation8 + $0x33c0] sm:$0xff]
    %v2950 = vld [vmem:[#allocation8 + $0x33c8] sm:$0xff]
    %v2951 = vld [vmem:[#allocation8 + $0x33d0] sm:$0xff]
    %v2952 = vld [vmem:[#allocation8 + $0x33d8] sm:$0xff]
    %v2953 = vld [vmem:[#allocation8 + $0x33e0] sm:$0xff]
    %v2954 = vld [vmem:[#allocation8 + $0x33e8] sm:$0xff]
    %v2955 = vld [vmem:[#allocation8 + $0x33f0] sm:$0xff]
    %v2956 = vld [vmem:[#allocation8 + $0x33f8] sm:$0xff]
    %v2957 = vld [vmem:[#allocation8 + $0x3400] sm:$0xff]
    %v2958 = vld [vmem:[#allocation8 + $0x3408] sm:$0xff]
    %v2959 = vld [vmem:[#allocation8 + $0x3410] sm:$0xff]
    %v2960 = vld [vmem:[#allocation8 + $0x3418] sm:$0xff]
    %v2961 = vld [vmem:[#allocation8 + $0x3420] sm:$0xff]
    %v2962 = vld [vmem:[#allocation8 + $0x3428] sm:$0xff]
    %v2963 = vld [vmem:[#allocation8 + $0x3430] sm:$0xff]
    %v2964 = vld [vmem:[#allocation8 + $0x3438] sm:$0xff]
    %v2965 = vld [vmem:[#allocation8 + $0x3440] sm:$0xff]
    %v2966 = vld [vmem:[#allocation8 + $0x3448] sm:$0xff]
    %v2967 = vld [vmem:[#allocation8 + $0x3450] sm:$0xff]
    %v2968 = vld [vmem:[#allocation8 + $0x3458] sm:$0xff]
    %v2969 = vld [vmem:[#allocation8 + $0x3460] sm:$0xff]
    %v2970 = vld [vmem:[#allocation8 + $0x3468] sm:$0xff]
    %v2971 = vld [vmem:[#allocation8 + $0x3470] sm:$0xff]
    %v2972 = vld [vmem:[#allocation8 + $0x3478] sm:$0xff]
    %v2973 = vld [vmem:[#allocation8 + $0x3480] sm:$0xff]
    %v2974 = vld [vmem:[#allocation8 + $0x3488] sm:$0xff]
    %v2975 = vld [vmem:[#allocation8 + $0x3490] sm:$0xff]
    %v2976 = vld [vmem:[#allocation8 + $0x3498] sm:$0xff]
    %v2977 = vld [vmem:[#allocation8 + $0x34a0] sm:$0xff]
    %v2978 = vld [vmem:[#allocation8 + $0x34a8] sm:$0xff]
    %v2979 = vld [vmem:[#allocation8 + $0x34b0] sm:$0xff]
    %v2980 = vld [vmem:[#allocation8 + $0x34b8] sm:$0xff]
    %v2981 = vld [vmem:[#allocation8 + $0x34c0] sm:$0xff]
    %v2982 = vld [vmem:[#allocation8 + $0x34c8] sm:$0xff]
    %v2983 = vld [vmem:[#allocation8 + $0x34d0] sm:$0xff]
    %v2984 = vld [vmem:[#allocation8 + $0x34d8] sm:$0xff]
    %v2985 = vld [vmem:[#allocation8 + $0x34e0] sm:$0xff]
    %v2986 = vld [vmem:[#allocation8 + $0x34e8] sm:$0xff]
    %v2987 = vld [vmem:[#allocation8 + $0x34f0] sm:$0xff]
    %v2988 = vld [vmem:[#allocation8 + $0x34f8] sm:$0xff]
    %v2989 = vld [vmem:[#allocation8 + $0x3500] sm:$0xff]
    %v2990 = vld [vmem:[#allocation8 + $0x3508] sm:$0xff]
    %v2991 = vld [vmem:[#allocation8 + $0x3510] sm:$0xff]
    %v2992 = vld [vmem:[#allocation8 + $0x3518] sm:$0xff]
    %v2993 = vld [vmem:[#allocation8 + $0x3520] sm:$0xff]
    %v2994 = vld [vmem:[#allocation8 + $0x3528] sm:$0xff]
    %v2995 = vld [vmem:[#allocation8 + $0x3530] sm:$0xff]
    %v2996 = vld [vmem:[#allocation8 + $0x3538] sm:$0xff]
    %v2997 = vld [vmem:[#allocation8 + $0x3540] sm:$0xff]
    %v2998 = vld [vmem:[#allocation8 + $0x3548] sm:$0xff]
    %v2999 = vld [vmem:[#allocation8 + $0x3550] sm:$0xff]
    %v3000 = vld [vmem:[#allocation8 + $0x3558] sm:$0xff]
    %v3001 = vld [vmem:[#allocation8 + $0x3560] sm:$0xff]
    %v3002 = vld [vmem:[#allocation8 + $0x3568] sm:$0xff]
    %v3003 = vld [vmem:[#allocation8 + $0x3570] sm:$0xff]
    %v3004 = vld [vmem:[#allocation8 + $0x3578] sm:$0xff]
    %v3005 = vld [vmem:[#allocation8 + $0x3580] sm:$0xff]
    %v3006 = vld [vmem:[#allocation8 + $0x3588] sm:$0xff]
    %v3007 = vld [vmem:[#allocation8 + $0x3590] sm:$0xff]
    %v3008 = vld [vmem:[#allocation8 + $0x3598] sm:$0xff]
    %v3009 = vld [vmem:[#allocation8 + $0x35a0] sm:$0xff]
    %v3010 = vld [vmem:[#allocation8 + $0x35a8] sm:$0xff]
    %v3011 = vld [vmem:[#allocation8 + $0x35b0] sm:$0xff]
    %v3012 = vld [vmem:[#allocation8 + $0x35b8] sm:$0xff]
    %v3013 = vld [vmem:[#allocation8 + $0x35c0] sm:$0xff]
    %v3014 = vld [vmem:[#allocation8 + $0x35c8] sm:$0xff]
    %v3015 = vld [vmem:[#allocation8 + $0x35d0] sm:$0xff]
    %v3016 = vld [vmem:[#allocation8 + $0x35d8] sm:$0xff]
    %v3017 = vld [vmem:[#allocation8 + $0x35e0] sm:$0xff]
    %v3018 = vld [vmem:[#allocation8 + $0x35e8] sm:$0xff]
    %v3019 = vld [vmem:[#allocation8 + $0x35f0] sm:$0xff]
    %v3020 = vld [vmem:[#allocation8 + $0x35f8] sm:$0xff]
    %v3021 = vld [vmem:[#allocation8 + $0x3600] sm:$0xff]
    %v3022 = vld [vmem:[#allocation8 + $0x3608] sm:$0xff]
    %v3023 = vld [vmem:[#allocation8 + $0x3610] sm:$0xff]
    %v3024 = vld [vmem:[#allocation8 + $0x3618] sm:$0xff]
    %v3025 = vld [vmem:[#allocation8 + $0x3620] sm:$0xff]
    %v3026 = vld [vmem:[#allocation8 + $0x3628] sm:$0xff]
    %v3027 = vld [vmem:[#allocation8 + $0x3630] sm:$0xff]
    %v3028 = vld [vmem:[#allocation8 + $0x3638] sm:$0xff]
    %v3029 = vld [vmem:[#allocation8 + $0x3640] sm:$0xff]
    %v3030 = vld [vmem:[#allocation8 + $0x3648] sm:$0xff]
    %v3031 = vld [vmem:[#allocation8 + $0x3650] sm:$0xff]
    %v3032 = vld [vmem:[#allocation8 + $0x3658] sm:$0xff]
    %v3033 = vld [vmem:[#allocation8 + $0x3660] sm:$0xff]
    %v3034 = vld [vmem:[#allocation8 + $0x3668] sm:$0xff]
    %v3035 = vld [vmem:[#allocation8 + $0x3670] sm:$0xff]
    %v3036 = vld [vmem:[#allocation8 + $0x3678] sm:$0xff]
    %v3037 = vld [vmem:[#allocation8 + $0x3680] sm:$0xff]
    %v3038 = vld [vmem:[#allocation8 + $0x3688] sm:$0xff]
    %v3039 = vld [vmem:[#allocation8 + $0x3690] sm:$0xff]
    %v3040 = vld [vmem:[#allocation8 + $0x3698] sm:$0xff]
    %v3041 = vld [vmem:[#allocation8 + $0x36a0] sm:$0xff]
    %v3042 = vld [vmem:[#allocation8 + $0x36a8] sm:$0xff]
    %v3043 = vld [vmem:[#allocation8 + $0x36b0] sm:$0xff]
    %v3044 = vld [vmem:[#allocation8 + $0x36b8] sm:$0xff]
    %v3045 = vld [vmem:[#allocation8 + $0x36c0] sm:$0xff]
    %v3046 = vld [vmem:[#allocation8 + $0x36c8] sm:$0xff]
    %v3047 = vld [vmem:[#allocation8 + $0x36d0] sm:$0xff]
    %v3048 = vld [vmem:[#allocation8 + $0x36d8] sm:$0xff]
    %v3049 = vld [vmem:[#allocation8 + $0x36e0] sm:$0xff]
    %v3050 = vld [vmem:[#allocation8 + $0x36e8] sm:$0xff]
    %v3051 = vld [vmem:[#allocation8 + $0x36f0] sm:$0xff]
    %v3052 = vld [vmem:[#allocation8 + $0x36f8] sm:$0xff]
    %v3053 = vld [vmem:[#allocation8 + $0x3700] sm:$0xff]
    %v3054 = vld [vmem:[#allocation8 + $0x3708] sm:$0xff]
    %v3055 = vld [vmem:[#allocation8 + $0x3710] sm:$0xff]
    %v3056 = vld [vmem:[#allocation8 + $0x3718] sm:$0xff]
    %v3057 = vld [vmem:[#allocation8 + $0x3720] sm:$0xff]
    %v3058 = vld [vmem:[#allocation8 + $0x3728] sm:$0xff]
    %v3059 = vld [vmem:[#allocation8 + $0x3730] sm:$0xff]
    %v3060 = vld [vmem:[#allocation8 + $0x3738] sm:$0xff]
    %v3061 = vld [vmem:[#allocation8 + $0x3740] sm:$0xff]
    %v3062 = vld [vmem:[#allocation8 + $0x3748] sm:$0xff]
    %v3063 = vld [vmem:[#allocation8 + $0x3750] sm:$0xff]
    %v3064 = vld [vmem:[#allocation8 + $0x3758] sm:$0xff]
    %v3065 = vld [vmem:[#allocation8 + $0x3760] sm:$0xff]
    %v3066 = vld [vmem:[#allocation8 + $0x3768] sm:$0xff]
    %v3067 = vld [vmem:[#allocation8 + $0x3770] sm:$0xff]
    %v3068 = vld [vmem:[#allocation8 + $0x3778] sm:$0xff]
    %v3069 = vld [vmem:[#allocation8 + $0x3780] sm:$0xff]
    %v3070 = vld [vmem:[#allocation8 + $0x3788] sm:$0xff]
    %v3071 = vld [vmem:[#allocation8 + $0x3790] sm:$0xff]
    %v3072 = vld [vmem:[#allocation8 + $0x3798] sm:$0xff]
    %v3073 = vld [vmem:[#allocation8 + $0x37a0] sm:$0xff]
    %v3074 = vld [vmem:[#allocation8 + $0x37a8] sm:$0xff]
    %v3075 = vld [vmem:[#allocation8 + $0x37b0] sm:$0xff]
    %v3076 = vld [vmem:[#allocation8 + $0x37b8] sm:$0xff]
    %v3077 = vld [vmem:[#allocation8 + $0x37c0] sm:$0xff]
    %v3078 = vld [vmem:[#allocation8 + $0x37c8] sm:$0xff]
    %v3079 = vld [vmem:[#allocation8 + $0x37d0] sm:$0xff]
    %v3080 = vld [vmem:[#allocation8 + $0x37d8] sm:$0xff]
    %v3081 = vld [vmem:[#allocation8 + $0x37e0] sm:$0xff]
    %v3082 = vld [vmem:[#allocation8 + $0x37e8] sm:$0xff]
    %v3083 = vld [vmem:[#allocation8 + $0x37f0] sm:$0xff]
    %v3084 = vld [vmem:[#allocation8 + $0x37f8] sm:$0xff]
    %v3085 = vld [vmem:[#allocation8 + $0x3800] sm:$0xff]
    %v3086 = vld [vmem:[#allocation8 + $0x3808] sm:$0xff]
    %v3087 = vld [vmem:[#allocation8 + $0x3810] sm:$0xff]
    %v3088 = vld [vmem:[#allocation8 + $0x3818] sm:$0xff]
    %v3089 = vld [vmem:[#allocation8 + $0x3820] sm:$0xff]
    %v3090 = vld [vmem:[#allocation8 + $0x3828] sm:$0xff]
    %v3091 = vld [vmem:[#allocation8 + $0x3830] sm:$0xff]
    %v3092 = vld [vmem:[#allocation8 + $0x3838] sm:$0xff]
    %v3093 = vld [vmem:[#allocation8 + $0x3840] sm:$0xff]
    %v3094 = vld [vmem:[#allocation8 + $0x3848] sm:$0xff]
    %v3095 = vld [vmem:[#allocation8 + $0x3850] sm:$0xff]
    %v3096 = vld [vmem:[#allocation8 + $0x3858] sm:$0xff]
    %v3097 = vld [vmem:[#allocation8 + $0x3860] sm:$0xff]
    %v3098 = vld [vmem:[#allocation8 + $0x3868] sm:$0xff]
    %v3099 = vld [vmem:[#allocation8 + $0x3870] sm:$0xff]
    %v3100 = vld [vmem:[#allocation8 + $0x3878] sm:$0xff]
    %v3101 = vld [vmem:[#allocation8 + $0x3880] sm:$0xff]
    %v3102 = vld [vmem:[#allocation8 + $0x3888] sm:$0xff]
    %v3103 = vld [vmem:[#allocation8 + $0x3890] sm:$0xff]
    %v3104 = vld [vmem:[#allocation8 + $0x3898] sm:$0xff]
    %v3105 = vld [vmem:[#allocation8 + $0x38a0] sm:$0xff]
    %v3106 = vld [vmem:[#allocation8 + $0x38a8] sm:$0xff]
    %v3107 = vld [vmem:[#allocation8 + $0x38b0] sm:$0xff]
    %v3108 = vld [vmem:[#allocation8 + $0x38b8] sm:$0xff]
    %v3109 = vld [vmem:[#allocation8 + $0x38c0] sm:$0xff]
    %v3110 = vld [vmem:[#allocation8 + $0x38c8] sm:$0xff]
    %v3111 = vld [vmem:[#allocation8 + $0x38d0] sm:$0xff]
    %v3112 = vld [vmem:[#allocation8 + $0x38d8] sm:$0xff]
    %v3113 = vld [vmem:[#allocation8 + $0x38e0] sm:$0xff]
    %v3114 = vld [vmem:[#allocation8 + $0x38e8] sm:$0xff]
    %v3115 = vld [vmem:[#allocation8 + $0x38f0] sm:$0xff]
    %v3116 = vld [vmem:[#allocation8 + $0x38f8] sm:$0xff]
    %v3117 = vld [vmem:[#allocation8 + $0x3900] sm:$0xff]
    %v3118 = vld [vmem:[#allocation8 + $0x3908] sm:$0xff]
    %v3119 = vld [vmem:[#allocation8 + $0x3910] sm:$0xff]
    %v3120 = vld [vmem:[#allocation8 + $0x3918] sm:$0xff]
    %v3121 = vld [vmem:[#allocation8 + $0x3920] sm:$0xff]
    %v3122 = vld [vmem:[#allocation8 + $0x3928] sm:$0xff]
    %v3123 = vld [vmem:[#allocation8 + $0x3930] sm:$0xff]
    %v3124 = vld [vmem:[#allocation8 + $0x3938] sm:$0xff]
    %v3125 = vld [vmem:[#allocation8 + $0x3940] sm:$0xff]
    %v3126 = vld [vmem:[#allocation8 + $0x3948] sm:$0xff]
    %v3127 = vld [vmem:[#allocation8 + $0x3950] sm:$0xff]
    %v3128 = vld [vmem:[#allocation8 + $0x3958] sm:$0xff]
    %v3129 = vld [vmem:[#allocation8 + $0x3960] sm:$0xff]
    %v3130 = vld [vmem:[#allocation8 + $0x3968] sm:$0xff]
    %v3131 = vld [vmem:[#allocation8 + $0x3970] sm:$0xff]
    %v3132 = vld [vmem:[#allocation8 + $0x3978] sm:$0xff]
    %v3133 = vld [vmem:[#allocation8 + $0x3980] sm:$0xff]
    %v3134 = vld [vmem:[#allocation8 + $0x3988] sm:$0xff]
    %v3135 = vld [vmem:[#allocation8 + $0x3990] sm:$0xff]
    %v3136 = vld [vmem:[#allocation8 + $0x3998] sm:$0xff]
    %v3137 = vld [vmem:[#allocation8 + $0x39a0] sm:$0xff]
    %v3138 = vld [vmem:[#allocation8 + $0x39a8] sm:$0xff]
    %v3139 = vld [vmem:[#allocation8 + $0x39b0] sm:$0xff]
    %v3140 = vld [vmem:[#allocation8 + $0x39b8] sm:$0xff]
    %v3141 = vld [vmem:[#allocation8 + $0x39c0] sm:$0xff]
    %v3142 = vld [vmem:[#allocation8 + $0x39c8] sm:$0xff]
    %v3143 = vld [vmem:[#allocation8 + $0x39d0] sm:$0xff]
    %v3144 = vld [vmem:[#allocation8 + $0x39d8] sm:$0xff]
    %v3145 = vld [vmem:[#allocation8 + $0x39e0] sm:$0xff]
    %v3146 = vld [vmem:[#allocation8 + $0x39e8] sm:$0xff]
    %v3147 = vld [vmem:[#allocation8 + $0x39f0] sm:$0xff]
    %v3148 = vld [vmem:[#allocation8 + $0x39f8] sm:$0xff]
    %v3149 = vld [vmem:[#allocation8 + $0x3a00] sm:$0xff]
    %v3150 = vld [vmem:[#allocation8 + $0x3a08] sm:$0xff]
    %v3151 = vld [vmem:[#allocation8 + $0x3a10] sm:$0xff]
    %v3152 = vld [vmem:[#allocation8 + $0x3a18] sm:$0xff]
    %v3153 = vld [vmem:[#allocation8 + $0x3a20] sm:$0xff]
    %v3154 = vld [vmem:[#allocation8 + $0x3a28] sm:$0xff]
    %v3155 = vld [vmem:[#allocation8 + $0x3a30] sm:$0xff]
    %v3156 = vld [vmem:[#allocation8 + $0x3a38] sm:$0xff]
    %v3157 = vld [vmem:[#allocation8 + $0x3a40] sm:$0xff]
    %v3158 = vld [vmem:[#allocation8 + $0x3a48] sm:$0xff]
    %v3159 = vld [vmem:[#allocation8 + $0x3a50] sm:$0xff]
    %v3160 = vld [vmem:[#allocation8 + $0x3a58] sm:$0xff]
    %v3161 = vld [vmem:[#allocation8 + $0x3a60] sm:$0xff]
    %v3162 = vld [vmem:[#allocation8 + $0x3a68] sm:$0xff]
    %v3163 = vld [vmem:[#allocation8 + $0x3a70] sm:$0xff]
    %v3164 = vld [vmem:[#allocation8 + $0x3a78] sm:$0xff]
    %v3165 = vld [vmem:[#allocation8 + $0x3a80] sm:$0xff]
    %v3166 = vld [vmem:[#allocation8 + $0x3a88] sm:$0xff]
    %v3167 = vld [vmem:[#allocation8 + $0x3a90] sm:$0xff]
    %v3168 = vld [vmem:[#allocation8 + $0x3a98] sm:$0xff]
    %v3169 = vld [vmem:[#allocation8 + $0x3aa0] sm:$0xff]
    %v3170 = vld [vmem:[#allocation8 + $0x3aa8] sm:$0xff]
    %v3171 = vld [vmem:[#allocation8 + $0x3ab0] sm:$0xff]
    %v3172 = vld [vmem:[#allocation8 + $0x3ab8] sm:$0xff]
    %v3173 = vld [vmem:[#allocation8 + $0x3ac0] sm:$0xff]
    %v3174 = vld [vmem:[#allocation8 + $0x3ac8] sm:$0xff]
    %v3175 = vld [vmem:[#allocation8 + $0x3ad0] sm:$0xff]
    %v3176 = vld [vmem:[#allocation8 + $0x3ad8] sm:$0xff]
    %v3177 = vld [vmem:[#allocation8 + $0x3ae0] sm:$0xff]
    %v3178 = vld [vmem:[#allocation8 + $0x3ae8] sm:$0xff]
    %v3179 = vld [vmem:[#allocation8 + $0x3af0] sm:$0xff]
    %v3180 = vld [vmem:[#allocation8 + $0x3af8] sm:$0xff]
    %v3181 = vld [vmem:[#allocation8 + $0x3b00] sm:$0xff]
    %v3182 = vld [vmem:[#allocation8 + $0x3b08] sm:$0xff]
    %v3183 = vld [vmem:[#allocation8 + $0x3b10] sm:$0xff]
    %v3184 = vld [vmem:[#allocation8 + $0x3b18] sm:$0xff]
    %v3185 = vld [vmem:[#allocation8 + $0x3b20] sm:$0xff]
    %v3186 = vld [vmem:[#allocation8 + $0x3b28] sm:$0xff]
    %v3187 = vld [vmem:[#allocation8 + $0x3b30] sm:$0xff]
    %v3188 = vld [vmem:[#allocation8 + $0x3b38] sm:$0xff]
    %v3189 = vld [vmem:[#allocation8 + $0x3b40] sm:$0xff]
    %v3190 = vld [vmem:[#allocation8 + $0x3b48] sm:$0xff]
    %v3191 = vld [vmem:[#allocation8 + $0x3b50] sm:$0xff]
    %v3192 = vld [vmem:[#allocation8 + $0x3b58] sm:$0xff]
    %v3193 = vld [vmem:[#allocation8 + $0x3b60] sm:$0xff]
    %v3194 = vld [vmem:[#allocation8 + $0x3b68] sm:$0xff]
    %v3195 = vld [vmem:[#allocation8 + $0x3b70] sm:$0xff]
    %v3196 = vld [vmem:[#allocation8 + $0x3b78] sm:$0xff]
    %v3197 = vld [vmem:[#allocation8 + $0x3b80] sm:$0xff]
    %v3198 = vld [vmem:[#allocation8 + $0x3b88] sm:$0xff]
    %v3199 = vld [vmem:[#allocation8 + $0x3b90] sm:$0xff]
    %v3200 = vld [vmem:[#allocation8 + $0x3b98] sm:$0xff]
    %v3201 = vld [vmem:[#allocation8 + $0x3ba0] sm:$0xff]
    %v3202 = vld [vmem:[#allocation8 + $0x3ba8] sm:$0xff]
    %v3203 = vld [vmem:[#allocation8 + $0x3bb0] sm:$0xff]
    %v3204 = vld [vmem:[#allocation8 + $0x3bb8] sm:$0xff]
    %v3205 = vld [vmem:[#allocation8 + $0x3bc0] sm:$0xff]
    %v3206 = vld [vmem:[#allocation8 + $0x3bc8] sm:$0xff]
    %v3207 = vld [vmem:[#allocation8 + $0x3bd0] sm:$0xff]
    %v3208 = vld [vmem:[#allocation8 + $0x3bd8] sm:$0xff]
    %v3209 = vld [vmem:[#allocation8 + $0x3be0] sm:$0xff]
    %v3210 = vld [vmem:[#allocation8 + $0x3be8] sm:$0xff]
    %v3211 = vld [vmem:[#allocation8 + $0x3bf0] sm:$0xff]
    %v3212 = vld [vmem:[#allocation8 + $0x3bf8] sm:$0xff]
    %v3213 = vld [vmem:[#allocation8 + $0x3c00] sm:$0xff]
    %v3214 = vld [vmem:[#allocation8 + $0x3c08] sm:$0xff]
    %v3215 = vld [vmem:[#allocation8 + $0x3c10] sm:$0xff]
    %v3216 = vld [vmem:[#allocation8 + $0x3c18] sm:$0xff]
    %v3217 = vld [vmem:[#allocation8 + $0x3c20] sm:$0xff]
    %v3218 = vld [vmem:[#allocation8 + $0x3c28] sm:$0xff]
    %v3219 = vld [vmem:[#allocation8 + $0x3c30] sm:$0xff]
    %v3220 = vld [vmem:[#allocation8 + $0x3c38] sm:$0xff]
    %v3221 = vld [vmem:[#allocation8 + $0x3c40] sm:$0xff]
    %v3222 = vld [vmem:[#allocation8 + $0x3c48] sm:$0xff]
    %v3223 = vld [vmem:[#allocation8 + $0x3c50] sm:$0xff]
    %v3224 = vld [vmem:[#allocation8 + $0x3c58] sm:$0xff]
    %v3225 = vld [vmem:[#allocation8 + $0x3c60] sm:$0xff]
    %v3226 = vld [vmem:[#allocation8 + $0x3c68] sm:$0xff]
    %v3227 = vld [vmem:[#allocation8 + $0x3c70] sm:$0xff]
    %v3228 = vld [vmem:[#allocation8 + $0x3c78] sm:$0xff]
    %v3229 = vld [vmem:[#allocation8 + $0x3c80] sm:$0xff]
    %v3230 = vld [vmem:[#allocation8 + $0x3c88] sm:$0xff]
    %v3231 = vld [vmem:[#allocation8 + $0x3c90] sm:$0xff]
    %v3232 = vld [vmem:[#allocation8 + $0x3c98] sm:$0xff]
    %v3233 = vld [vmem:[#allocation8 + $0x3ca0] sm:$0xff]
    %v3234 = vld [vmem:[#allocation8 + $0x3ca8] sm:$0xff]
    %v3235 = vld [vmem:[#allocation8 + $0x3cb0] sm:$0xff]
    %v3236 = vld [vmem:[#allocation8 + $0x3cb8] sm:$0xff]
    %v3237 = vld [vmem:[#allocation8 + $0x3cc0] sm:$0xff]
    %v3238 = vld [vmem:[#allocation8 + $0x3cc8] sm:$0xff]
    %v3239 = vld [vmem:[#allocation8 + $0x3cd0] sm:$0xff]
    %v3240 = vld [vmem:[#allocation8 + $0x3cd8] sm:$0xff]
    %v3241 = vld [vmem:[#allocation8 + $0x3ce0] sm:$0xff]
    %v3242 = vld [vmem:[#allocation8 + $0x3ce8] sm:$0xff]
    %v3243 = vld [vmem:[#allocation8 + $0x3cf0] sm:$0xff]
    %v3244 = vld [vmem:[#allocation8 + $0x3cf8] sm:$0xff]
    %v3245 = vld [vmem:[#allocation8 + $0x3d00] sm:$0xff]
    %v3246 = vld [vmem:[#allocation8 + $0x3d08] sm:$0xff]
    %v3247 = vld [vmem:[#allocation8 + $0x3d10] sm:$0xff]
    %v3248 = vld [vmem:[#allocation8 + $0x3d18] sm:$0xff]
    %v3249 = vld [vmem:[#allocation8 + $0x3d20] sm:$0xff]
    %v3250 = vld [vmem:[#allocation8 + $0x3d28] sm:$0xff]
    %v3251 = vld [vmem:[#allocation8 + $0x3d30] sm:$0xff]
    %v3252 = vld [vmem:[#allocation8 + $0x3d38] sm:$0xff]
    %v3253 = vld [vmem:[#allocation8 + $0x3d40] sm:$0xff]
    %v3254 = vld [vmem:[#allocation8 + $0x3d48] sm:$0xff]
    %v3255 = vld [vmem:[#allocation8 + $0x3d50] sm:$0xff]
    %v3256 = vld [vmem:[#allocation8 + $0x3d58] sm:$0xff]
    %v3257 = vld [vmem:[#allocation8 + $0x3d60] sm:$0xff]
    %v3258 = vld [vmem:[#allocation8 + $0x3d68] sm:$0xff]
    %v3259 = vld [vmem:[#allocation8 + $0x3d70] sm:$0xff]
    %v3260 = vld [vmem:[#allocation8 + $0x3d78] sm:$0xff]
    %v3261 = vld [vmem:[#allocation8 + $0x3d80] sm:$0xff]
    %v3262 = vld [vmem:[#allocation8 + $0x3d88] sm:$0xff]
    %v3263 = vld [vmem:[#allocation8 + $0x3d90] sm:$0xff]
    %v3264 = vld [vmem:[#allocation8 + $0x3d98] sm:$0xff]
    %v3265 = vld [vmem:[#allocation8 + $0x3da0] sm:$0xff]
    %v3266 = vld [vmem:[#allocation8 + $0x3da8] sm:$0xff]
    %v3267 = vld [vmem:[#allocation8 + $0x3db0] sm:$0xff]
    %v3268 = vld [vmem:[#allocation8 + $0x3db8] sm:$0xff]
    %v3269 = vld [vmem:[#allocation8 + $0x3dc0] sm:$0xff]
    %v3270 = vld [vmem:[#allocation8 + $0x3dc8] sm:$0xff]
    %v3271 = vld [vmem:[#allocation8 + $0x3dd0] sm:$0xff]
    %v3272 = vld [vmem:[#allocation8 + $0x3dd8] sm:$0xff]
    %v3273 = vld [vmem:[#allocation8 + $0x3de0] sm:$0xff]
    %v3274 = vld [vmem:[#allocation8 + $0x3de8] sm:$0xff]
    %v3275 = vld [vmem:[#allocation8 + $0x3df0] sm:$0xff]
    %v3276 = vld [vmem:[#allocation8 + $0x3df8] sm:$0xff]
    %v3277 = vld [vmem:[#allocation8 + $0x3e00] sm:$0xff]
    %v3278 = vld [vmem:[#allocation8 + $0x3e08] sm:$0xff]
    %v3279 = vld [vmem:[#allocation8 + $0x3e10] sm:$0xff]
    %v3280 = vld [vmem:[#allocation8 + $0x3e18] sm:$0xff]
    %v3281 = vld [vmem:[#allocation8 + $0x3e20] sm:$0xff]
    %v3282 = vld [vmem:[#allocation8 + $0x3e28] sm:$0xff]
    %v3283 = vld [vmem:[#allocation8 + $0x3e30] sm:$0xff]
    %v3284 = vld [vmem:[#allocation8 + $0x3e38] sm:$0xff]
    %v3285 = vld [vmem:[#allocation8 + $0x3e40] sm:$0xff]
    %v3286 = vld [vmem:[#allocation8 + $0x3e48] sm:$0xff]
    %v3287 = vld [vmem:[#allocation8 + $0x3e50] sm:$0xff]
    %v3288 = vld [vmem:[#allocation8 + $0x3e58] sm:$0xff]
    %v3289 = vld [vmem:[#allocation8 + $0x3e60] sm:$0xff]
    %v3290 = vld [vmem:[#allocation8 + $0x3e68] sm:$0xff]
    %v3291 = vld [vmem:[#allocation8 + $0x3e70] sm:$0xff]
    %v3292 = vld [vmem:[#allocation8 + $0x3e78] sm:$0xff]
    %v3293 = vld [vmem:[#allocation8 + $0x3e80] sm:$0xff]
    %v3294 = vld [vmem:[#allocation8 + $0x3e88] sm:$0xff]
    %v3295 = vld [vmem:[#allocation8 + $0x3e90] sm:$0xff]
    %v3296 = vld [vmem:[#allocation8 + $0x3e98] sm:$0xff]
    %v3297 = vld [vmem:[#allocation8 + $0x3ea0] sm:$0xff]
    %v3298 = vld [vmem:[#allocation8 + $0x3ea8] sm:$0xff]
    %v3299 = vld [vmem:[#allocation8 + $0x3eb0] sm:$0xff]
    %v3300 = vld [vmem:[#allocation8 + $0x3eb8] sm:$0xff]
    %v3301 = vld [vmem:[#allocation8 + $0x3ec0] sm:$0xff]
    %v3302 = vld [vmem:[#allocation8 + $0x3ec8] sm:$0xff]
    %v3303 = vld [vmem:[#allocation8 + $0x3ed0] sm:$0xff]
    %v3304 = vld [vmem:[#allocation8 + $0x3ed8] sm:$0xff]
    %v3305 = vld [vmem:[#allocation8 + $0x3ee0] sm:$0xff]
    %v3306 = vld [vmem:[#allocation8 + $0x3ee8] sm:$0xff]
    %v3307 = vld [vmem:[#allocation8 + $0x3ef0] sm:$0xff]
    %v3308 = vld [vmem:[#allocation8 + $0x3ef8] sm:$0xff]
    %v3309 = vld [vmem:[#allocation8 + $0x3f00] sm:$0xff]
    %v3310 = vld [vmem:[#allocation8 + $0x3f08] sm:$0xff]
    %v3311 = vld [vmem:[#allocation8 + $0x3f10] sm:$0xff]
    %v3312 = vld [vmem:[#allocation8 + $0x3f18] sm:$0xff]
    %v3313 = vld [vmem:[#allocation8 + $0x3f20] sm:$0xff]
    %v3314 = vld [vmem:[#allocation8 + $0x3f28] sm:$0xff]
    %v3315 = vld [vmem:[#allocation8 + $0x3f30] sm:$0xff]
    %v3316 = vld [vmem:[#allocation8 + $0x3f38] sm:$0xff]
    %v3317 = vld [vmem:[#allocation8 + $0x3f40] sm:$0xff]
    %v3318 = vld [vmem:[#allocation8 + $0x3f48] sm:$0xff]
    %v3319 = vld [vmem:[#allocation8 + $0x3f50] sm:$0xff]
    %v3320 = vld [vmem:[#allocation8 + $0x3f58] sm:$0xff]
    %v3321 = vld [vmem:[#allocation8 + $0x3f60] sm:$0xff]
    %v3322 = vld [vmem:[#allocation8 + $0x3f68] sm:$0xff]
    %v3323 = vld [vmem:[#allocation8 + $0x3f70] sm:$0xff]
    %v3324 = vld [vmem:[#allocation8 + $0x3f78] sm:$0xff]
    %v3325 = vld [vmem:[#allocation8 + $0x3f80] sm:$0xff]
    %v3326 = vld [vmem:[#allocation8 + $0x3f88] sm:$0xff]
    %v3327 = vld [vmem:[#allocation8 + $0x3f90] sm:$0xff]
    %v3328 = vld [vmem:[#allocation8 + $0x3f98] sm:$0xff]
    %v3329 = vld [vmem:[#allocation8 + $0x3fa0] sm:$0xff]
    %v3330 = vld [vmem:[#allocation8 + $0x3fa8] sm:$0xff]
    %v3331 = vld [vmem:[#allocation8 + $0x3fb0] sm:$0xff]
    %v3332 = vld [vmem:[#allocation8 + $0x3fb8] sm:$0xff]
    %v3333 = vld [vmem:[#allocation8 + $0x3fc0] sm:$0xff]
    %v3334 = vld [vmem:[#allocation8 + $0x3fc8] sm:$0xff]
    %v3335 = vld [vmem:[#allocation8 + $0x3fd0] sm:$0xff]
    %v3336 = vld [vmem:[#allocation8 + $0x3fd8] sm:$0xff]
    %v3337 = vld [vmem:[#allocation8 + $0x3fe0] sm:$0xff]
    %v3338 = vld [vmem:[#allocation8 + $0x3fe8] sm:$0xff]
    %v3339 = vld [vmem:[#allocation8 + $0x3ff0] sm:$0xff]
    %v3340 = vld [vmem:[#allocation8 + $0x3ff8] sm:$0xff]
    %3341 = vmatprep.subr.mxu0 %v1294
    %3342 = vmatpush1.msra.mxu0 %v1293
    %3343 = vmatprep.subr.mxu0 %v1310
    %3344 = vmatpush1.msra.mxu0 %v1309
    %3345 = vmatprep.subr.mxu0 %v1326
    %3346 = vmatpush1.msra.mxu0 %v1325
    %3347 = vmatprep.subr.mxu0 %v1342
    %3348 = vmatpush1.msra.mxu0 %v1341
    %3349 = vmatprep.subr.mxu0 %v1358
    %3350 = vmatpush1.msra.mxu0 %v1357
    %3351 = vmatprep.subr.mxu0 %v1374
    %3352 = vmatpush1.msra.mxu0 %v1373
    %3353 = vmatprep.subr.mxu0 %v1390
    %3354 = vmatpush1.msra.mxu0 %v1389
    %3355 = vmatprep.subr.mxu0 %v1406
    %3356 = vmatpush1.msra.mxu0 %v1405
    %3357 = vmatprep.subr.mxu0 %v1422
    %3358 = vmatpush1.msra.mxu0 %v1421
    %3359 = vmatprep.subr.mxu0 %v1438
    %3360 = vmatpush1.msra.mxu0 %v1437
    %3361 = vmatprep.subr.mxu0 %v1454
    %3362 = vmatpush1.msra.mxu0 %v1453
    %3363 = vmatprep.subr.mxu0 %v1470
    %3364 = vmatpush1.msra.mxu0 %v1469
    %3365 = vmatprep.subr.mxu0 %v1486
    %3366 = vmatpush1.msra.mxu0 %v1485
    %3367 = vmatprep.subr.mxu0 %v1502
    %3368 = vmatpush1.msra.mxu0 %v1501
    %3369 = vmatprep.subr.mxu0 %v1518
    %3370 = vmatpush1.msra.mxu0 %v1517
    %3371 = vmatprep.subr.mxu0 %v1534
    %3372 = vmatpush1.msra.mxu0 %v1533
    %3373 = vmatprep.subr.mxu0 %v1550
    %3374 = vmatpush1.msra.mxu0 %v1549
    %3375 = vmatprep.subr.mxu0 %v1566
    %3376 = vmatpush1.msra.mxu0 %v1565
    %3377 = vmatprep.subr.mxu0 %v1582
    %3378 = vmatpush1.msra.mxu0 %v1581
    %3379 = vmatprep.subr.mxu0 %v1598
    %3380 = vmatpush1.msra.mxu0 %v1597
    %3381 = vmatprep.subr.mxu0 %v1614
    %3382 = vmatpush1.msra.mxu0 %v1613
    %3383 = vmatprep.subr.mxu0 %v1630
    %3384 = vmatpush1.msra.mxu0 %v1629
    %3385 = vmatprep.subr.mxu0 %v1646
    %3386 = vmatpush1.msra.mxu0 %v1645
    %3387 = vmatprep.subr.mxu0 %v1662
    %3388 = vmatpush1.msra.mxu0 %v1661
    %3389 = vmatprep.subr.mxu0 %v1678
    %3390 = vmatpush1.msra.mxu0 %v1677
    %3391 = vmatprep.subr.mxu0 %v1694
    %3392 = vmatpush1.msra.mxu0 %v1693
    %3393 = vmatprep.subr.mxu0 %v1710
    %3394 = vmatpush1.msra.mxu0 %v1709
    %3395 = vmatprep.subr.mxu0 %v1726
    %3396 = vmatpush1.msra.mxu0 %v1725
    %3397 = vmatprep.subr.mxu0 %v1742
    %3398 = vmatpush1.msra.mxu0 %v1741
    %3399 = vmatprep.subr.mxu0 %v1758
    %3400 = vmatpush1.msra.mxu0 %v1757
    %3401 = vmatprep.subr.mxu0 %v1774
    %3402 = vmatpush1.msra.mxu0 %v1773
    %3403 = vmatprep.subr.mxu0 %v1790
    %3404 = vmatpush1.msra.mxu0 %v1789
    %3405 = vmatprep.mubr.f32.mxu0 %v1286
    %3406 = vmatmul.mubr.f32.gmra.mrb[0].mxu0 %v1285
    %v3407 = vpop.f32.mrb[0].mxu0
    %v3408 = vadd.f32 0.0, %v3407
    %v3409 = vpop.f32.mrb[0].mxu0
    %v3410 = vadd.f32 0.0, %v3409
    %3411 = vdwg.mxu0
    %3412 = vmatprep.subr.mxu0 %v1806
    %3413 = vmatpush1.msra.mxu0 %v1805
    %3414 = vmatprep.subr.mxu0 %v1822
    %3415 = vmatpush1.msra.mxu0 %v1821
    %3416 = vmatprep.subr.mxu0 %v1838
    %3417 = vmatpush1.msra.mxu0 %v1837
    %3418 = vmatprep.subr.mxu0 %v1854
    %3419 = vmatpush1.msra.mxu0 %v1853
    %3420 = vmatprep.subr.mxu0 %v1870
    %3421 = vmatpush1.msra.mxu0 %v1869
    %3422 = vmatprep.subr.mxu0 %v1886
    %3423 = vmatpush1.msra.mxu0 %v1885
    %3424 = vmatprep.subr.mxu0 %v1902
    %3425 = vmatpush1.msra.mxu0 %v1901
    %3426 = vmatprep.subr.mxu0 %v1918
    %3427 = vmatpush1.msra.mxu0 %v1917
    %3428 = vmatprep.subr.mxu0 %v1934
    %3429 = vmatpush1.msra.mxu0 %v1933
    %3430 = vmatprep.subr.mxu0 %v1950
    %3431 = vmatpush1.msra.mxu0 %v1949
    %3432 = vmatprep.subr.mxu0 %v1966
    %3433 = vmatpush1.msra.mxu0 %v1965
    %3434 = vmatprep.subr.mxu0 %v1982
    %3435 = vmatpush1.msra.mxu0 %v1981
    %3436 = vmatprep.subr.mxu0 %v1998
    %3437 = vmatpush1.msra.mxu0 %v1997
    %3438 = vmatprep.subr.mxu0 %v2014
    %3439 = vmatpush1.msra.mxu0 %v2013
    %3440 = vmatprep.subr.mxu0 %v2030
    %3441 = vmatpush1.msra.mxu0 %v2029
    %3442 = vmatprep.subr.mxu0 %v2046
    %3443 = vmatpush1.msra.mxu0 %v2045
    %3444 = vmatprep.subr.mxu0 %v2062
    %3445 = vmatpush1.msra.mxu0 %v2061
    %3446 = vmatprep.subr.mxu0 %v2078
    %3447 = vmatpush1.msra.mxu0 %v2077
    %3448 = vmatprep.subr.mxu0 %v2094
    %3449 = vmatpush1.msra.mxu0 %v2093
    %3450 = vmatprep.subr.mxu0 %v2110
    %3451 = vmatpush1.msra.mxu0 %v2109
    %3452 = vmatprep.subr.mxu0 %v2126
    %3453 = vmatpush1.msra.mxu0 %v2125
    %3454 = vmatprep.subr.mxu0 %v2142
    %3455 = vmatpush1.msra.mxu0 %v2141
    %3456 = vmatprep.subr.mxu0 %v2158
    %3457 = vmatpush1.msra.mxu0 %v2157
    %3458 = vmatprep.subr.mxu0 %v2174
    %3459 = vmatpush1.msra.mxu0 %v2173
    %3460 = vmatprep.subr.mxu0 %v2190
    %3461 = vmatpush1.msra.mxu0 %v2189
    %3462 = vmatprep.subr.mxu0 %v2206
    %3463 = vmatpush1.msra.mxu0 %v2205
    %3464 = vmatprep.subr.mxu0 %v2222
    %3465 = vmatpush1.msra.mxu0 %v2221
    %3466 = vmatprep.subr.mxu0 %v2238
    %3467 = vmatpush1.msra.mxu0 %v2237
    %3468 = vmatprep.subr.mxu0 %v2254
    %3469 = vmatpush1.msra.mxu0 %v2253
    %3470 = vmatprep.subr.mxu0 %v2270
    %3471 = vmatpush1.msra.mxu0 %v2269
    %3472 = vmatprep.subr.mxu0 %v2286
    %3473 = vmatpush1.msra.mxu0 %v2285
    %3474 = vmatprep.subr.mxu0 %v2302
    %3475 = vmatpush1.msra.mxu0 %v2301
    %3476 = vmatprep.mubr.f32.mxu0 %v1288
    %3477 = vmatmul.mubr.f32.gmra.mrb[0].mxu0 %v1287
    %v3478 = vpop.f32.mrb[0].mxu0
    %v3479 = vadd.f32 %v3408, %v3478
    %v3480 = vpop.f32.mrb[0].mxu0
    %v3481 = vadd.f32 %v3410, %v3480
    %3482 = vdwg.mxu0
    %3483 = vmatprep.subr.mxu0 %v2318
    %3484 = vmatpush1.msra.mxu0 %v2317
    %3485 = vmatprep.subr.mxu0 %v2334
    %3486 = vmatpush1.msra.mxu0 %v2333
    %3487 = vmatprep.subr.mxu0 %v2350
    %3488 = vmatpush1.msra.mxu0 %v2349
    %3489 = vmatprep.subr.mxu0 %v2366
    %3490 = vmatpush1.msra.mxu0 %v2365
    %3491 = vmatprep.subr.mxu0 %v2382
    %3492 = vmatpush1.msra.mxu0 %v2381
    %3493 = vmatprep.subr.mxu0 %v2398
    %3494 = vmatpush1.msra.mxu0 %v2397
    %3495 = vmatprep.subr.mxu0 %v2414
    %3496 = vmatpush1.msra.mxu0 %v2413
    %3497 = vmatprep.subr.mxu0 %v2430
    %3498 = vmatpush1.msra.mxu0 %v2429
    %3499 = vmatprep.subr.mxu0 %v2446
    %3500 = vmatpush1.msra.mxu0 %v2445
    %3501 = vmatprep.subr.mxu0 %v2462
    %3502 = vmatpush1.msra.mxu0 %v2461
    %3503 = vmatprep.subr.mxu0 %v2478
    %3504 = vmatpush1.msra.mxu0 %v2477
    %3505 = vmatprep.subr.mxu0 %v2494
    %3506 = vmatpush1.msra.mxu0 %v2493
    %3507 = vmatprep.subr.mxu0 %v2510
    %3508 = vmatpush1.msra.mxu0 %v2509
    %3509 = vmatprep.subr.mxu0 %v2526
    %3510 = vmatpush1.msra.mxu0 %v2525
    %3511 = vmatprep.subr.mxu0 %v2542
    %3512 = vmatpush1.msra.mxu0 %v2541
    %3513 = vmatprep.subr.mxu0 %v2558
    %3514 = vmatpush1.msra.mxu0 %v2557
    %3515 = vmatprep.subr.mxu0 %v2574
    %3516 = vmatpush1.msra.mxu0 %v2573
    %3517 = vmatprep.subr.mxu0 %v2590
    %3518 = vmatpush1.msra.mxu0 %v2589
    %3519 = vmatprep.subr.mxu0 %v2606
    %3520 = vmatpush1.msra.mxu0 %v2605
    %3521 = vmatprep.subr.mxu0 %v2622
    %3522 = vmatpush1.msra.mxu0 %v2621
    %3523 = vmatprep.subr.mxu0 %v2638
    %3524 = vmatpush1.msra.mxu0 %v2637
    %3525 = vmatprep.subr.mxu0 %v2654
    %3526 = vmatpush1.msra.mxu0 %v2653
    %3527 = vmatprep.subr.mxu0 %v2670
    %3528 = vmatpush1.msra.mxu0 %v2669
    %3529 = vmatprep.subr.mxu0 %v2686
    %3530 = vmatpush1.msra.mxu0 %v2685
    %3531 = vmatprep.subr.mxu0 %v2702
    %3532 = vmatpush1.msra.mxu0 %v2701
    %3533 = vmatprep.subr.mxu0 %v2718
    %3534 = vmatpush1.msra.mxu0 %v2717
    %3535 = vmatprep.subr.mxu0 %v2734
    %3536 = vmatpush1.msra.mxu0 %v2733
    %3537 = vmatprep.subr.mxu0 %v2750
    %3538 = vmatpush1.msra.mxu0 %v2749
    %3539 = vmatprep.subr.mxu0 %v2766
    %3540 = vmatpush1.msra.mxu0 %v2765
    %3541 = vmatprep.subr.mxu0 %v2782
    %3542 = vmatpush1.msra.mxu0 %v2781
    %3543 = vmatprep.subr.mxu0 %v2798
    %3544 = vmatpush1.msra.mxu0 %v2797
    %3545 = vmatprep.subr.mxu0 %v2814
    %3546 = vmatpush1.msra.mxu0 %v2813
    %3547 = vmatprep.mubr.f32.mxu0 %v1290
    %3548 = vmatmul.mubr.f32.gmra.mrb[0].mxu0 %v1289
    %v3549 = vpop.f32.mrb[0].mxu0
    %v3550 = vadd.f32 %v3479, %v3549
    %v3551 = vpop.f32.mrb[0].mxu0
    %v3552 = vadd.f32 %v3481, %v3551
    %3553 = vdwg.mxu0
    %3554 = vmatprep.subr.mxu0 %v2830
    %3555 = vmatpush1.msra.mxu0 %v2829
    %3556 = vmatprep.subr.mxu0 %v2846
    %3557 = vmatpush1.msra.mxu0 %v2845
    %3558 = vmatprep.subr.mxu0 %v2862
    %3559 = vmatpush1.msra.mxu0 %v2861
    %3560 = vmatprep.subr.mxu0 %v2878
    %3561 = vmatpush1.msra.mxu0 %v2877
    %3562 = vmatprep.subr.mxu0 %v2894
    %3563 = vmatpush1.msra.mxu0 %v2893
    %3564 = vmatprep.subr.mxu0 %v2910
    %3565 = vmatpush1.msra.mxu0 %v2909
    %3566 = vmatprep.subr.mxu0 %v2926
    %3567 = vmatpush1.msra.mxu0 %v2925
    %3568 = vmatprep.subr.mxu0 %v2942
    %3569 = vmatpush1.msra.mxu0 %v2941
    %3570 = vmatprep.subr.mxu0 %v2958
    %3571 = vmatpush1.msra.mxu0 %v2957
    %3572 = vmatprep.subr.mxu0 %v2974
    %3573 = vmatpush1.msra.mxu0 %v2973
    %3574 = vmatprep.subr.mxu0 %v2990
    %3575 = vmatpush1.msra.mxu0 %v2989
    %3576 = vmatprep.subr.mxu0 %v3006
    %3577 = vmatpush1.msra.mxu0 %v3005
    %3578 = vmatprep.subr.mxu0 %v3022
    %3579 = vmatpush1.msra.mxu0 %v3021
    %3580 = vmatprep.subr.mxu0 %v3038
    %3581 = vmatpush1.msra.mxu0 %v3037
    %3582 = vmatprep.subr.mxu0 %v3054
    %3583 = vmatpush1.msra.mxu0 %v3053
    %3584 = vmatprep.subr.mxu0 %v3070
    %3585 = vmatpush1.msra.mxu0 %v3069
    %3586 = vmatprep.subr.mxu0 %v3086
    %3587 = vmatpush1.msra.mxu0 %v3085
    %3588 = vmatprep.subr.mxu0 %v3102
    %3589 = vmatpush1.msra.mxu0 %v3101
    %3590 = vmatprep.subr.mxu0 %v3118
    %3591 = vmatpush1.msra.mxu0 %v3117
    %3592 = vmatprep.subr.mxu0 %v3134
    %3593 = vmatpush1.msra.mxu0 %v3133
    %3594 = vmatprep.subr.mxu0 %v3150
    %3595 = vmatpush1.msra.mxu0 %v3149
    %3596 = vmatprep.subr.mxu0 %v3166
    %3597 = vmatpush1.msra.mxu0 %v3165
    %3598 = vmatprep.subr.mxu0 %v3182
    %3599 = vmatpush1.msra.mxu0 %v3181
    %3600 = vmatprep.subr.mxu0 %v3198
    %3601 = vmatpush1.msra.mxu0 %v3197
    %3602 = vmatprep.subr.mxu0 %v3214
    %3603 = vmatpush1.msra.mxu0 %v3213
    %3604 = vmatprep.subr.mxu0 %v3230
    %3605 = vmatpush1.msra.mxu0 %v3229
    %3606 = vmatprep.subr.mxu0 %v3246
    %3607 = vmatpush1.msra.mxu0 %v3245
    %3608 = vmatprep.subr.mxu0 %v3262
    %3609 = vmatpush1.msra.mxu0 %v3261
    %3610 = vmatprep.subr.mxu0 %v3278
    %3611 = vmatpush1.msra.mxu0 %v3277
    %3612 = vmatprep.subr.mxu0 %v3294
    %3613 = vmatpush1.msra.mxu0 %v3293
    %3614 = vmatprep.subr.mxu0 %v3310
    %3615 = vmatpush1.msra.mxu0 %v3309
    %3616 = vmatprep.subr.mxu0 %v3326
    %3617 = vmatpush1.msra.mxu0 %v3325
    %3618 = vmatprep.mubr.f32.mxu0 %v1292
    %3619 = vmatmul.mubr.f32.gmra.mrb[0].mxu0 %v1291
    %v3620 = vpop.f32.mrb[0].mxu0
    %v3621 = vadd.f32 %v3550, %v3620
    %v3622 = vpop.f32.mrb[0].mxu0
    %v3623 = vadd.f32 %v3552, %v3622
    %3624 = vdwg.mxu0
    %3625 = vmatprep.subr.mxu0 %v1296
    %3626 = vmatpush1.msra.mxu0 %v1295
    %3627 = vmatprep.subr.mxu0 %v1312
    %3628 = vmatpush1.msra.mxu0 %v1311
    %3629 = vmatprep.subr.mxu0 %v1328
    %3630 = vmatpush1.msra.mxu0 %v1327
    %3631 = vmatprep.subr.mxu0 %v1344
    %3632 = vmatpush1.msra.mxu0 %v1343
    %3633 = vmatprep.subr.mxu0 %v1360
    %3634 = vmatpush1.msra.mxu0 %v1359
    %3635 = vmatprep.subr.mxu0 %v1376
    %3636 = vmatpush1.msra.mxu0 %v1375
    %3637 = vmatprep.subr.mxu0 %v1392
    %3638 = vmatpush1.msra.mxu0 %v1391
    %3639 = vmatprep.subr.mxu0 %v1408
    %3640 = vmatpush1.msra.mxu0 %v1407
    %3641 = vmatprep.subr.mxu0 %v1424
    %3642 = vmatpush1.msra.mxu0 %v1423
    %3643 = vmatprep.subr.mxu0 %v1440
    %3644 = vmatpush1.msra.mxu0 %v1439
    %3645 = vmatprep.subr.mxu0 %v1456
    %3646 = vmatpush1.msra.mxu0 %v1455
    %3647 = vmatprep.subr.mxu0 %v1472
    %3648 = vmatpush1.msra.mxu0 %v1471
    %3649 = vmatprep.subr.mxu0 %v1488
    %3650 = vmatpush1.msra.mxu0 %v1487
    %3651 = vmatprep.subr.mxu0 %v1504
    %3652 = vmatpush1.msra.mxu0 %v1503
    %3653 = vmatprep.subr.mxu0 %v1520
    %3654 = vmatpush1.msra.mxu0 %v1519
    %3655 = vmatprep.subr.mxu0 %v1536
    %3656 = vmatpush1.msra.mxu0 %v1535
    %3657 = vmatprep.subr.mxu0 %v1552
    %3658 = vmatpush1.msra.mxu0 %v1551
    %3659 = vmatprep.subr.mxu0 %v1568
    %3660 = vmatpush1.msra.mxu0 %v1567
    %3661 = vmatprep.subr.mxu0 %v1584
    %3662 = vmatpush1.msra.mxu0 %v1583
    %3663 = vmatprep.subr.mxu0 %v1600
    %3664 = vmatpush1.msra.mxu0 %v1599
    %3665 = vmatprep.subr.mxu0 %v1616
    %3666 = vmatpush1.msra.mxu0 %v1615
    %3667 = vmatprep.subr.mxu0 %v1632
    %3668 = vmatpush1.msra.mxu0 %v1631
    %3669 = vmatprep.subr.mxu0 %v1648
    %3670 = vmatpush1.msra.mxu0 %v1647
    %3671 = vmatprep.subr.mxu0 %v1664
    %3672 = vmatpush1.msra.mxu0 %v1663
    %3673 = vmatprep.subr.mxu0 %v1680
    %3674 = vmatpush1.msra.mxu0 %v1679
    %3675 = vmatprep.subr.mxu0 %v1696
    %3676 = vmatpush1.msra.mxu0 %v1695
    %3677 = vmatprep.subr.mxu0 %v1712
    %3678 = vmatpush1.msra.mxu0 %v1711
    %3679 = vmatprep.subr.mxu0 %v1728
    %3680 = vmatpush1.msra.mxu0 %v1727
    %3681 = vmatprep.subr.mxu0 %v1744
    %3682 = vmatpush1.msra.mxu0 %v1743
    %3683 = vmatprep.subr.mxu0 %v1760
    %3684 = vmatpush1.msra.mxu0 %v1759
    %3685 = vmatprep.subr.mxu0 %v1776
    %3686 = vmatpush1.msra.mxu0 %v1775
    %3687 = vmatprep.subr.mxu0 %v1792
    %3688 = vmatpush1.msra.mxu0 %v1791
    %3689 = vmatprep.mubr.f32.mxu0 %v1286
    %3690 = vmatmul.mubr.f32.gmra.mrb[0].mxu0 %v1285
    %v3691 = vpop.f32.mrb[0].mxu0
    %v3692 = vadd.f32 0.0, %v3691
    %v3693 = vpop.f32.mrb[0].mxu0
    %v3694 = vadd.f32 0.0, %v3693
    %3695 = vdwg.mxu0
    %3696 = vmatprep.subr.mxu0 %v1808
    %3697 = vmatpush1.msra.mxu0 %v1807
    %3698 = vmatprep.subr.mxu0 %v1824
    %3699 = vmatpush1.msra.mxu0 %v1823
    %3700 = vmatprep.subr.mxu0 %v1840
    %3701 = vmatpush1.msra.mxu0 %v1839
    %3702 = vmatprep.subr.mxu0 %v1856
    %3703 = vmatpush1.msra.mxu0 %v1855
    %3704 = vmatprep.subr.mxu0 %v1872
    %3705 = vmatpush1.msra.mxu0 %v1871
    %3706 = vmatprep.subr.mxu0 %v1888
    %3707 = vmatpush1.msra.mxu0 %v1887
    %3708 = vmatprep.subr.mxu0 %v1904
    %3709 = vmatpush1.msra.mxu0 %v1903
    %3710 = vmatprep.subr.mxu0 %v1920
    %3711 = vmatpush1.msra.mxu0 %v1919
    %3712 = vmatprep.subr.mxu0 %v1936
    %3713 = vmatpush1.msra.mxu0 %v1935
    %3714 = vmatprep.subr.mxu0 %v1952
    %3715 = vmatpush1.msra.mxu0 %v1951
    %3716 = vmatprep.subr.mxu0 %v1968
    %3717 = vmatpush1.msra.mxu0 %v1967
    %3718 = vmatprep.subr.mxu0 %v1984
    %3719 = vmatpush1.msra.mxu0 %v1983
    %3720 = vmatprep.subr.mxu0 %v2000
    %3721 = vmatpush1.msra.mxu0 %v1999
    %3722 = vmatprep.subr.mxu0 %v2016
    %3723 = vmatpush1.msra.mxu0 %v2015
    %3724 = vmatprep.subr.mxu0 %v2032
    %3725 = vmatpush1.msra.mxu0 %v2031
    %3726 = vmatprep.subr.mxu0 %v2048
    %3727 = vmatpush1.msra.mxu0 %v2047
    %3728 = vmatprep.subr.mxu0 %v2064
    %3729 = vmatpush1.msra.mxu0 %v2063
    %3730 = vmatprep.subr.mxu0 %v2080
    %3731 = vmatpush1.msra.mxu0 %v2079
    %3732 = vmatprep.subr.mxu0 %v2096
    %3733 = vmatpush1.msra.mxu0 %v2095
    %3734 = vmatprep.subr.mxu0 %v2112
    %3735 = vmatpush1.msra.mxu0 %v2111
    %3736 = vmatprep.subr.mxu0 %v2128
    %3737 = vmatpush1.msra.mxu0 %v2127
    %3738 = vmatprep.subr.mxu0 %v2144
    %3739 = vmatpush1.msra.mxu0 %v2143
    %3740 = vmatprep.subr.mxu0 %v2160
    %3741 = vmatpush1.msra.mxu0 %v2159
    %3742 = vmatprep.subr.mxu0 %v2176
    %3743 = vmatpush1.msra.mxu0 %v2175
    %3744 = vmatprep.subr.mxu0 %v2192
    %3745 = vmatpush1.msra.mxu0 %v2191
    %3746 = vmatprep.subr.mxu0 %v2208
    %3747 = vmatpush1.msra.mxu0 %v2207
    %3748 = vmatprep.subr.mxu0 %v2224
    %3749 = vmatpush1.msra.mxu0 %v2223
    %3750 = vmatprep.subr.mxu0 %v2240
    %3751 = vmatpush1.msra.mxu0 %v2239
    %3752 = vmatprep.subr.mxu0 %v2256
    %3753 = vmatpush1.msra.mxu0 %v2255
    %3754 = vmatprep.subr.mxu0 %v2272
    %3755 = vmatpush1.msra.mxu0 %v2271
    %3756 = vmatprep.subr.mxu0 %v2288
    %3757 = vmatpush1.msra.mxu0 %v2287
    %3758 = vmatprep.subr.mxu0 %v2304
    %3759 = vmatpush1.msra.mxu0 %v2303
    %3760 = vmatprep.mubr.f32.mxu0 %v1288
    %3761 = vmatmul.mubr.f32.gmra.mrb[0].mxu0 %v1287
    %v3762 = vpop.f32.mrb[0].mxu0
    %v3763 = vadd.f32 %v3692, %v3762
    %v3764 = vpop.f32.mrb[0].mxu0
    %v3765 = vadd.f32 %v3694, %v3764
    %3766 = vdwg.mxu0
    %3767 = vmatprep.subr.mxu0 %v2320
    %3768 = vmatpush1.msra.mxu0 %v2319
    %3769 = vmatprep.subr.mxu0 %v2336
    %3770 = vmatpush1.msra.mxu0 %v2335
    %3771 = vmatprep.subr.mxu0 %v2352
    %3772 = vmatpush1.msra.mxu0 %v2351
    %3773 = vmatprep.subr.mxu0 %v2368
    %3774 = vmatpush1.msra.mxu0 %v2367
    %3775 = vmatprep.subr.mxu0 %v2384
    %3776 = vmatpush1.msra.mxu0 %v2383
    %3777 = vmatprep.subr.mxu0 %v2400
    %3778 = vmatpush1.msra.mxu0 %v2399
    %3779 = vmatprep.subr.mxu0 %v2416
    %3780 = vmatpush1.msra.mxu0 %v2415
    %3781 = vmatprep.subr.mxu0 %v2432
    %3782 = vmatpush1.msra.mxu0 %v2431
    %3783 = vmatprep.subr.mxu0 %v2448
    %3784 = vmatpush1.msra.mxu0 %v2447
    %3785 = vmatprep.subr.mxu0 %v2464
    %3786 = vmatpush1.msra.mxu0 %v2463
    %3787 = vmatprep.subr.mxu0 %v2480
    %3788 = vmatpush1.msra.mxu0 %v2479
    %3789 = vmatprep.subr.mxu0 %v2496
    %3790 = vmatpush1.msra.mxu0 %v2495
    %3791 = vmatprep.subr.mxu0 %v2512
    %3792 = vmatpush1.msra.mxu0 %v2511
    %3793 = vmatprep.subr.mxu0 %v2528
    %3794 = vmatpush1.msra.mxu0 %v2527
    %3795 = vmatprep.subr.mxu0 %v2544
    %3796 = vmatpush1.msra.mxu0 %v2543
    %3797 = vmatprep.subr.mxu0 %v2560
    %3798 = vmatpush1.msra.mxu0 %v2559
    %3799 = vmatprep.subr.mxu0 %v2576
    %3800 = vmatpush1.msra.mxu0 %v2575
    %3801 = vmatprep.subr.mxu0 %v2592
    %3802 = vmatpush1.msra.mxu0 %v2591
    %3803 = vmatprep.subr.mxu0 %v2608
    %3804 = vmatpush1.msra.mxu0 %v2607
    %3805 = vmatprep.subr.mxu0 %v2624
    %3806 = vmatpush1.msra.mxu0 %v2623
    %3807 = vmatprep.subr.mxu0 %v2640
    %3808 = vmatpush1.msra.mxu0 %v2639
    %3809 = vmatprep.subr.mxu0 %v2656
    %3810 = vmatpush1.msra.mxu0 %v2655
    %3811 = vmatprep.subr.mxu0 %v2672
    %3812 = vmatpush1.msra.mxu0 %v2671
    %3813 = vmatprep.subr.mxu0 %v2688
    %3814 = vmatpush1.msra.mxu0 %v2687
    %3815 = vmatprep.subr.mxu0 %v2704
    %3816 = vmatpush1.msra.mxu0 %v2703
    %3817 = vmatprep.subr.mxu0 %v2720
    %3818 = vmatpush1.msra.mxu0 %v2719
    %3819 = vmatprep.subr.mxu0 %v2736
    %3820 = vmatpush1.msra.mxu0 %v2735
    %3821 = vmatprep.subr.mxu0 %v2752
    %3822 = vmatpush1.msra.mxu0 %v2751
    %3823 = vmatprep.subr.mxu0 %v2768
    %3824 = vmatpush1.msra.mxu0 %v2767
    %3825 = vmatprep.subr.mxu0 %v2784
    %3826 = vmatpush1.msra.mxu0 %v2783
    %3827 = vmatprep.subr.mxu0 %v2800
    %3828 = vmatpush1.msra.mxu0 %v2799
    %3829 = vmatprep.subr.mxu0 %v2816
    %3830 = vmatpush1.msra.mxu0 %v2815
    %3831 = vmatprep.mubr.f32.mxu0 %v1290
    %3832 = vmatmul.mubr.f32.gmra.mrb[0].mxu0 %v1289
    %v3833 = vpop.f32.mrb[0].mxu0
    %v3834 = vadd.f32 %v3763, %v3833
    %v3835 = vpop.f32.mrb[0].mxu0
    %v3836 = vadd.f32 %v3765, %v3835
    %3837 = vdwg.mxu0
    %3838 = vmatprep.subr.mxu0 %v2832
    %3839 = vmatpush1.msra.mxu0 %v2831
    %3840 = vmatprep.subr.mxu0 %v2848
    %3841 = vmatpush1.msra.mxu0 %v2847
    %3842 = vmatprep.subr.mxu0 %v2864
    %3843 = vmatpush1.msra.mxu0 %v2863
    %3844 = vmatprep.subr.mxu0 %v2880
    %3845 = vmatpush1.msra.mxu0 %v2879
    %3846 = vmatprep.subr.mxu0 %v2896
    %3847 = vmatpush1.msra.mxu0 %v2895
    %3848 = vmatprep.subr.mxu0 %v2912
    %3849 = vmatpush1.msra.mxu0 %v2911
    %3850 = vmatprep.subr.mxu0 %v2928
    %3851 = vmatpush1.msra.mxu0 %v2927
    %3852 = vmatprep.subr.mxu0 %v2944
    %3853 = vmatpush1.msra.mxu0 %v2943
    %3854 = vmatprep.subr.mxu0 %v2960
    %3855 = vmatpush1.msra.mxu0 %v2959
    %3856 = vmatprep.subr.mxu0 %v2976
    %3857 = vmatpush1.msra.mxu0 %v2975
    %3858 = vmatprep.subr.mxu0 %v2992
    %3859 = vmatpush1.msra.mxu0 %v2991
    %3860 = vmatprep.subr.mxu0 %v3008
    %3861 = vmatpush1.msra.mxu0 %v3007
    %3862 = vmatprep.subr.mxu0 %v3024
    %3863 = vmatpush1.msra.mxu0 %v3023
    %3864 = vmatprep.subr.mxu0 %v3040
    %3865 = vmatpush1.msra.mxu0 %v3039
    %3866 = vmatprep.subr.mxu0 %v3056
    %3867 = vmatpush1.msra.mxu0 %v3055
    %3868 = vmatprep.subr.mxu0 %v3072
    %3869 = vmatpush1.msra.mxu0 %v3071
    %3870 = vmatprep.subr.mxu0 %v3088
    %3871 = vmatpush1.msra.mxu0 %v3087
    %3872 = vmatprep.subr.mxu0 %v3104
    %3873 = vmatpush1.msra.mxu0 %v3103
    %3874 = vmatprep.subr.mxu0 %v3120
    %3875 = vmatpush1.msra.mxu0 %v3119
    %3876 = vmatprep.subr.mxu0 %v3136
    %3877 = vmatpush1.msra.mxu0 %v3135
    %3878 = vmatprep.subr.mxu0 %v3152
    %3879 = vmatpush1.msra.mxu0 %v3151
    %3880 = vmatprep.subr.mxu0 %v3168
    %3881 = vmatpush1.msra.mxu0 %v3167
    %3882 = vmatprep.subr.mxu0 %v3184
    %3883 = vmatpush1.msra.mxu0 %v3183
    %3884 = vmatprep.subr.mxu0 %v3200
    %3885 = vmatpush1.msra.mxu0 %v3199
    %3886 = vmatprep.subr.mxu0 %v3216
    %3887 = vmatpush1.msra.mxu0 %v3215
    %3888 = vmatprep.subr.mxu0 %v3232
    %3889 = vmatpush1.msra.mxu0 %v3231
    %3890 = vmatprep.subr.mxu0 %v3248
    %3891 = vmatpush1.msra.mxu0 %v3247
    %3892 = vmatprep.subr.mxu0 %v3264
    %3893 = vmatpush1.msra.mxu0 %v3263
    %3894 = vmatprep.subr.mxu0 %v3280
    %3895 = vmatpush1.msra.mxu0 %v3279
    %3896 = vmatprep.subr.mxu0 %v3296
    %3897 = vmatpush1.msra.mxu0 %v3295
    %3898 = vmatprep.subr.mxu0 %v3312
    %3899 = vmatpush1.msra.mxu0 %v3311
    %3900 = vmatprep.subr.mxu0 %v3328
    %3901 = vmatpush1.msra.mxu0 %v3327
    %3902 = vmatprep.mubr.f32.mxu0 %v1292
    %3903 = vmatmul.mubr.f32.gmra.mrb[0].mxu0 %v1291
    %v3904 = vpop.f32.mrb[0].mxu0
    %v3905 = vadd.f32 %v3834, %v3904
    %v3906 = vpop.f32.mrb[0].mxu0
    %v3907 = vadd.f32 %v3836, %v3906
    %3908 = vdwg.mxu0
    %3909 = vmatprep.subr.mxu0 %v1298
    %3910 = vmatpush1.msra.mxu0 %v1297
    %3911 = vmatprep.subr.mxu0 %v1314
    %3912 = vmatpush1.msra.mxu0 %v1313
    %3913 = vmatprep.subr.mxu0 %v1330
    %3914 = vmatpush1.msra.mxu0 %v1329
    %3915 = vmatprep.subr.mxu0 %v1346
    %3916 = vmatpush1.msra.mxu0 %v1345
    %3917 = vmatprep.subr.mxu0 %v1362
    %3918 = vmatpush1.msra.mxu0 %v1361
    %3919 = vmatprep.subr.mxu0 %v1378
    %3920 = vmatpush1.msra.mxu0 %v1377
    %3921 = vmatprep.subr.mxu0 %v1394
    %3922 = vmatpush1.msra.mxu0 %v1393
    %3923 = vmatprep.subr.mxu0 %v1410
    %3924 = vmatpush1.msra.mxu0 %v1409
    %3925 = vmatprep.subr.mxu0 %v1426
    %3926 = vmatpush1.msra.mxu0 %v1425
    %3927 = vmatprep.subr.mxu0 %v1442
    %3928 = vmatpush1.msra.mxu0 %v1441
    %3929 = vmatprep.subr.mxu0 %v1458
    %3930 = vmatpush1.msra.mxu0 %v1457
    %3931 = vmatprep.subr.mxu0 %v1474
    %3932 = vmatpush1.msra.mxu0 %v1473
    %3933 = vmatprep.subr.mxu0 %v1490
    %3934 = vmatpush1.msra.mxu0 %v1489
    %3935 = vmatprep.subr.mxu0 %v1506
    %3936 = vmatpush1.msra.mxu0 %v1505
    %3937 = vmatprep.subr.mxu0 %v1522
    %3938 = vmatpush1.msra.mxu0 %v1521
    %3939 = vmatprep.subr.mxu0 %v1538
    %3940 = vmatpush1.msra.mxu0 %v1537
    %3941 = vmatprep.subr.mxu0 %v1554
    %3942 = vmatpush1.msra.mxu0 %v1553
    %3943 = vmatprep.subr.mxu0 %v1570
    %3944 = vmatpush1.msra.mxu0 %v1569
    %3945 = vmatprep.subr.mxu0 %v1586
    %3946 = vmatpush1.msra.mxu0 %v1585
    %3947 = vmatprep.subr.mxu0 %v1602
    %3948 = vmatpush1.msra.mxu0 %v1601
    %3949 = vmatprep.subr.mxu0 %v1618
    %3950 = vmatpush1.msra.mxu0 %v1617
    %3951 = vmatprep.subr.mxu0 %v1634
    %3952 = vmatpush1.msra.mxu0 %v1633
    %3953 = vmatprep.subr.mxu0 %v1650
    %3954 = vmatpush1.msra.mxu0 %v1649
    %3955 = vmatprep.subr.mxu0 %v1666
    %3956 = vmatpush1.msra.mxu0 %v1665
    %3957 = vmatprep.subr.mxu0 %v1682
    %3958 = vmatpush1.msra.mxu0 %v1681
    %3959 = vmatprep.subr.mxu0 %v1698
    %3960 = vmatpush1.msra.mxu0 %v1697
    %3961 = vmatprep.subr.mxu0 %v1714
    %3962 = vmatpush1.msra.mxu0 %v1713
    %3963 = vmatprep.subr.mxu0 %v1730
    %3964 = vmatpush1.msra.mxu0 %v1729
    %3965 = vmatprep.subr.mxu0 %v1746
    %3966 = vmatpush1.msra.mxu0 %v1745
    %3967 = vmatprep.subr.mxu0 %v1762
    %3968 = vmatpush1.msra.mxu0 %v1761
    %3969 = vmatprep.subr.mxu0 %v1778
    %3970 = vmatpush1.msra.mxu0 %v1777
    %3971 = vmatprep.subr.mxu0 %v1794
    %3972 = vmatpush1.msra.mxu0 %v1793
    %3973 = vmatprep.mubr.f32.mxu0 %v1286
    %3974 = vmatmul.mubr.f32.gmra.mrb[0].mxu0 %v1285
    %v3975 = vpop.f32.mrb[0].mxu0
    %v3976 = vadd.f32 0.0, %v3975
    %v3977 = vpop.f32.mrb[0].mxu0
    %v3978 = vadd.f32 0.0, %v3977
    %3979 = vdwg.mxu0
    %3980 = vmatprep.subr.mxu0 %v1810
    %3981 = vmatpush1.msra.mxu0 %v1809
    %3982 = vmatprep.subr.mxu0 %v1826
    %3983 = vmatpush1.msra.mxu0 %v1825
    %3984 = vmatprep.subr.mxu0 %v1842
    %3985 = vmatpush1.msra.mxu0 %v1841
    %3986 = vmatprep.subr.mxu0 %v1858
    %3987 = vmatpush1.msra.mxu0 %v1857
    %3988 = vmatprep.subr.mxu0 %v1874
    %3989 = vmatpush1.msra.mxu0 %v1873
    %3990 = vmatprep.subr.mxu0 %v1890
    %3991 = vmatpush1.msra.mxu0 %v1889
    %3992 = vmatprep.subr.mxu0 %v1906
    %3993 = vmatpush1.msra.mxu0 %v1905
    %3994 = vmatprep.subr.mxu0 %v1922
    %3995 = vmatpush1.msra.mxu0 %v1921
    %3996 = vmatprep.subr.mxu0 %v1938
    %3997 = vmatpush1.msra.mxu0 %v1937
    %3998 = vmatprep.subr.mxu0 %v1954
    %3999 = vmatpush1.msra.mxu0 %v1953
    %4000 = vmatprep.subr.mxu0 %v1970
    %4001 = vmatpush1.msra.mxu0 %v1969
    %4002 = vmatprep.subr.mxu0 %v1986
    %4003 = vmatpush1.msra.mxu0 %v1985
    %4004 = vmatprep.subr.mxu0 %v2002
    %4005 = vmatpush1.msra.mxu0 %v2001
    %4006 = vmatprep.subr.mxu0 %v2018
    %4007 = vmatpush1.msra.mxu0 %v2017
    %4008 = vmatprep.subr.mxu0 %v2034
    %4009 = vmatpush1.msra.mxu0 %v2033
    %4010 = vmatprep.subr.mxu0 %v2050
    %4011 = vmatpush1.msra.mxu0 %v2049
    %4012 = vmatprep.subr.mxu0 %v2066
    %4013 = vmatpush1.msra.mxu0 %v2065
    %4014 = vmatprep.subr.mxu0 %v2082
    %4015 = vmatpush1.msra.mxu0 %v2081
    %4016 = vmatprep.subr.mxu0 %v2098
    %4017 = vmatpush1.msra.mxu0 %v2097
    %4018 = vmatprep.subr.mxu0 %v2114
    %4019 = vmatpush1.msra.mxu0 %v2113
    %4020 = vmatprep.subr.mxu0 %v2130
    %4021 = vmatpush1.msra.mxu0 %v2129
    %4022 = vmatprep.subr.mxu0 %v2146
    %4023 = vmatpush1.msra.mxu0 %v2145
    %4024 = vmatprep.subr.mxu0 %v2162
    %4025 = vmatpush1.msra.mxu0 %v2161
    %4026 = vmatprep.subr.mxu0 %v2178
    %4027 = vmatpush1.msra.mxu0 %v2177
    %4028 = vmatprep.subr.mxu0 %v2194
    %4029 = vmatpush1.msra.mxu0 %v2193
    %4030 = vmatprep.subr.mxu0 %v2210
    %4031 = vmatpush1.msra.mxu0 %v2209
    %4032 = vmatprep.subr.mxu0 %v2226
    %4033 = vmatpush1.msra.mxu0 %v2225
    %4034 = vmatprep.subr.mxu0 %v2242
    %4035 = vmatpush1.msra.mxu0 %v2241
    %4036 = vmatprep.subr.mxu0 %v2258
    %4037 = vmatpush1.msra.mxu0 %v2257
    %4038 = vmatprep.subr.mxu0 %v2274
    %4039 = vmatpush1.msra.mxu0 %v2273
    %4040 = vmatprep.subr.mxu0 %v2290
    %4041 = vmatpush1.msra.mxu0 %v2289
    %4042 = vmatprep.subr.mxu0 %v2306
    %4043 = vmatpush1.msra.mxu0 %v2305
    %4044 = vmatprep.mubr.f32.mxu0 %v1288
    %4045 = vmatmul.mubr.f32.gmra.mrb[0].mxu0 %v1287
    %v4046 = vpop.f32.mrb[0].mxu0
    %v4047 = vadd.f32 %v3976, %v4046
    %v4048 = vpop.f32.mrb[0].mxu0
    %v4049 = vadd.f32 %v3978, %v4048
    %4050 = vdwg.mxu0
    %4051 = vmatprep.subr.mxu0 %v2322
    %4052 = vmatpush1.msra.mxu0 %v2321
    %4053 = vmatprep.subr.mxu0 %v2338
    %4054 = vmatpush1.msra.mxu0 %v2337
    %4055 = vmatprep.subr.mxu0 %v2354
    %4056 = vmatpush1.msra.mxu0 %v2353
    %4057 = vmatprep.subr.mxu0 %v2370
    %4058 = vmatpush1.msra.mxu0 %v2369
    %4059 = vmatprep.subr.mxu0 %v2386
    %4060 = vmatpush1.msra.mxu0 %v2385
    %4061 = vmatprep.subr.mxu0 %v2402
    %4062 = vmatpush1.msra.mxu0 %v2401
    %4063 = vmatprep.subr.mxu0 %v2418
    %4064 = vmatpush1.msra.mxu0 %v2417
    %4065 = vmatprep.subr.mxu0 %v2434
    %4066 = vmatpush1.msra.mxu0 %v2433
    %4067 = vmatprep.subr.mxu0 %v2450
    %4068 = vmatpush1.msra.mxu0 %v2449
    %4069 = vmatprep.subr.mxu0 %v2466
    %4070 = vmatpush1.msra.mxu0 %v2465
    %4071 = vmatprep.subr.mxu0 %v2482
    %4072 = vmatpush1.msra.mxu0 %v2481
    %4073 = vmatprep.subr.mxu0 %v2498
    %4074 = vmatpush1.msra.mxu0 %v2497
    %4075 = vmatprep.subr.mxu0 %v2514
    %4076 = vmatpush1.msra.mxu0 %v2513
    %4077 = vmatprep.subr.mxu0 %v2530
    %4078 = vmatpush1.msra.mxu0 %v2529
    %4079 = vmatprep.subr.mxu0 %v2546
    %4080 = vmatpush1.msra.mxu0 %v2545
    %4081 = vmatprep.subr.mxu0 %v2562
    %4082 = vmatpush1.msra.mxu0 %v2561
    %4083 = vmatprep.subr.mxu0 %v2578
    %4084 = vmatpush1.msra.mxu0 %v2577
    %4085 = vmatprep.subr.mxu0 %v2594
    %4086 = vmatpush1.msra.mxu0 %v2593
    %4087 = vmatprep.subr.mxu0 %v2610
    %4088 = vmatpush1.msra.mxu0 %v2609
    %4089 = vmatprep.subr.mxu0 %v2626
    %4090 = vmatpush1.msra.mxu0 %v2625
    %4091 = vmatprep.subr.mxu0 %v2642
    %4092 = vmatpush1.msra.mxu0 %v2641
    %4093 = vmatprep.subr.mxu0 %v2658
    %4094 = vmatpush1.msra.mxu0 %v2657
    %4095 = vmatprep.subr.mxu0 %v2674
    %4096 = vmatpush1.msra.mxu0 %v2673
    %4097 = vmatprep.subr.mxu0 %v2690
    %4098 = vmatpush1.msra.mxu0 %v2689
    %4099 = vmatprep.subr.mxu0 %v2706
    %4100 = vmatpush1.msra.mxu0 %v2705
    %4101 = vmatprep.subr.mxu0 %v2722
    %4102 = vmatpush1.msra.mxu0 %v2721
    %4103 = vmatprep.subr.mxu0 %v2738
    %4104 = vmatpush1.msra.mxu0 %v2737
    %4105 = vmatprep.subr.mxu0 %v2754
    %4106 = vmatpush1.msra.mxu0 %v2753
    %4107 = vmatprep.subr.mxu0 %v2770
    %4108 = vmatpush1.msra.mxu0 %v2769
    %4109 = vmatprep.subr.mxu0 %v2786
    %4110 = vmatpush1.msra.mxu0 %v2785
    %4111 = vmatprep.subr.mxu0 %v2802
    %4112 = vmatpush1.msra.mxu0 %v2801
    %4113 = vmatprep.subr.mxu0 %v2818
    %4114 = vmatpush1.msra.mxu0 %v2817
    %4115 = vmatprep.mubr.f32.mxu0 %v1290
    %4116 = vmatmul.mubr.f32.gmra.mrb[0].mxu0 %v1289
    %v4117 = vpop.f32.mrb[0].mxu0
    %v4118 = vadd.f32 %v4047, %v4117
    %v4119 = vpop.f32.mrb[0].mxu0
    %v4120 = vadd.f32 %v4049, %v4119
    %4121 = vdwg.mxu0
    %4122 = vmatprep.subr.mxu0 %v2834
    %4123 = vmatpush1.msra.mxu0 %v2833
    %4124 = vmatprep.subr.mxu0 %v2850
    %4125 = vmatpush1.msra.mxu0 %v2849
    %4126 = vmatprep.subr.mxu0 %v2866
    %4127 = vmatpush1.msra.mxu0 %v2865
    %4128 = vmatprep.subr.mxu0 %v2882
    %4129 = vmatpush1.msra.mxu0 %v2881
    %4130 = vmatprep.subr.mxu0 %v2898
    %4131 = vmatpush1.msra.mxu0 %v2897
    %4132 = vmatprep.subr.mxu0 %v2914
    %4133 = vmatpush1.msra.mxu0 %v2913
    %4134 = vmatprep.subr.mxu0 %v2930
    %4135 = vmatpush1.msra.mxu0 %v2929
    %4136 = vmatprep.subr.mxu0 %v2946
    %4137 = vmatpush1.msra.mxu0 %v2945
    %4138 = vmatprep.subr.mxu0 %v2962
    %4139 = vmatpush1.msra.mxu0 %v2961
    %4140 = vmatprep.subr.mxu0 %v2978
    %4141 = vmatpush1.msra.mxu0 %v2977
    %4142 = vmatprep.subr.mxu0 %v2994
    %4143 = vmatpush1.msra.mxu0 %v2993
    %4144 = vmatprep.subr.mxu0 %v3010
    %4145 = vmatpush1.msra.mxu0 %v3009
    %4146 = vmatprep.subr.mxu0 %v3026
    %4147 = vmatpush1.msra.mxu0 %v3025
    %4148 = vmatprep.subr.mxu0 %v3042
    %4149 = vmatpush1.msra.mxu0 %v3041
    %4150 = vmatprep.subr.mxu0 %v3058
    %4151 = vmatpush1.msra.mxu0 %v3057
    %4152 = vmatprep.subr.mxu0 %v3074
    %4153 = vmatpush1.msra.mxu0 %v3073
    %4154 = vmatprep.subr.mxu0 %v3090
    %4155 = vmatpush1.msra.mxu0 %v3089
    %4156 = vmatprep.subr.mxu0 %v3106
    %4157 = vmatpush1.msra.mxu0 %v3105
    %4158 = vmatprep.subr.mxu0 %v3122
    %4159 = vmatpush1.msra.mxu0 %v3121
    %4160 = vmatprep.subr.mxu0 %v3138
    %4161 = vmatpush1.msra.mxu0 %v3137
    %4162 = vmatprep.subr.mxu0 %v3154
    %4163 = vmatpush1.msra.mxu0 %v3153
    %4164 = vmatprep.subr.mxu0 %v3170
    %4165 = vmatpush1.msra.mxu0 %v3169
    %4166 = vmatprep.subr.mxu0 %v3186
    %4167 = vmatpush1.msra.mxu0 %v3185
    %4168 = vmatprep.subr.mxu0 %v3202
    %4169 = vmatpush1.msra.mxu0 %v3201
    %4170 = vmatprep.subr.mxu0 %v3218
    %4171 = vmatpush1.msra.mxu0 %v3217
    %4172 = vmatprep.subr.mxu0 %v3234
    %4173 = vmatpush1.msra.mxu0 %v3233
    %4174 = vmatprep.subr.mxu0 %v3250
    %4175 = vmatpush1.msra.mxu0 %v3249
    %4176 = vmatprep.subr.mxu0 %v3266
    %4177 = vmatpush1.msra.mxu0 %v3265
    %4178 = vmatprep.subr.mxu0 %v3282
    %4179 = vmatpush1.msra.mxu0 %v3281
    %4180 = vmatprep.subr.mxu0 %v3298
    %4181 = vmatpush1.msra.mxu0 %v3297
    %4182 = vmatprep.subr.mxu0 %v3314
    %4183 = vmatpush1.msra.mxu0 %v3313
    %4184 = vmatprep.subr.mxu0 %v3330
    %4185 = vmatpush1.msra.mxu0 %v3329
    %4186 = vmatprep.mubr.f32.mxu0 %v1292
    %4187 = vmatmul.mubr.f32.gmra.mrb[0].mxu0 %v1291
    %v4188 = vpop.f32.mrb[0].mxu0
    %v4189 = vadd.f32 %v4118, %v4188
    %v4190 = vpop.f32.mrb[0].mxu0
    %v4191 = vadd.f32 %v4120, %v4190
    %4192 = vdwg.mxu0
    %4193 = vmatprep.subr.mxu0 %v1300
    %4194 = vmatpush1.msra.mxu0 %v1299
    %4195 = vmatprep.subr.mxu0 %v1316
    %4196 = vmatpush1.msra.mxu0 %v1315
    %4197 = vmatprep.subr.mxu0 %v1332
    %4198 = vmatpush1.msra.mxu0 %v1331
    %4199 = vmatprep.subr.mxu0 %v1348
    %4200 = vmatpush1.msra.mxu0 %v1347
    %4201 = vmatprep.subr.mxu0 %v1364
    %4202 = vmatpush1.msra.mxu0 %v1363
    %4203 = vmatprep.subr.mxu0 %v1380
    %4204 = vmatpush1.msra.mxu0 %v1379
    %4205 = vmatprep.subr.mxu0 %v1396
    %4206 = vmatpush1.msra.mxu0 %v1395
    %4207 = vmatprep.subr.mxu0 %v1412
    %4208 = vmatpush1.msra.mxu0 %v1411
    %4209 = vmatprep.subr.mxu0 %v1428
    %4210 = vmatpush1.msra.mxu0 %v1427
    %4211 = vmatprep.subr.mxu0 %v1444
    %4212 = vmatpush1.msra.mxu0 %v1443
    %4213 = vmatprep.subr.mxu0 %v1460
    %4214 = vmatpush1.msra.mxu0 %v1459
    %4215 = vmatprep.subr.mxu0 %v1476
    %4216 = vmatpush1.msra.mxu0 %v1475
    %4217 = vmatprep.subr.mxu0 %v1492
    %4218 = vmatpush1.msra.mxu0 %v1491
    %4219 = vmatprep.subr.mxu0 %v1508
    %4220 = vmatpush1.msra.mxu0 %v1507
    %4221 = vmatprep.subr.mxu0 %v1524
    %4222 = vmatpush1.msra.mxu0 %v1523
    %4223 = vmatprep.subr.mxu0 %v1540
    %4224 = vmatpush1.msra.mxu0 %v1539
    %4225 = vmatprep.subr.mxu0 %v1556
    %4226 = vmatpush1.msra.mxu0 %v1555
    %4227 = vmatprep.subr.mxu0 %v1572
    %4228 = vmatpush1.msra.mxu0 %v1571
    %4229 = vmatprep.subr.mxu0 %v1588
    %4230 = vmatpush1.msra.mxu0 %v1587
    %4231 = vmatprep.subr.mxu0 %v1604
    %4232 = vmatpush1.msra.mxu0 %v1603
    %4233 = vmatprep.subr.mxu0 %v1620
    %4234 = vmatpush1.msra.mxu0 %v1619
    %4235 = vmatprep.subr.mxu0 %v1636
    %4236 = vmatpush1.msra.mxu0 %v1635
    %4237 = vmatprep.subr.mxu0 %v1652
    %4238 = vmatpush1.msra.mxu0 %v1651
    %4239 = vmatprep.subr.mxu0 %v1668
    %4240 = vmatpush1.msra.mxu0 %v1667
    %4241 = vmatprep.subr.mxu0 %v1684
    %4242 = vmatpush1.msra.mxu0 %v1683
    %4243 = vmatprep.subr.mxu0 %v1700
    %4244 = vmatpush1.msra.mxu0 %v1699
    %4245 = vmatprep.subr.mxu0 %v1716
    %4246 = vmatpush1.msra.mxu0 %v1715
    %4247 = vmatprep.subr.mxu0 %v1732
    %4248 = vmatpush1.msra.mxu0 %v1731
    %4249 = vmatprep.subr.mxu0 %v1748
    %4250 = vmatpush1.msra.mxu0 %v1747
    %4251 = vmatprep.subr.mxu0 %v1764
    %4252 = vmatpush1.msra.mxu0 %v1763
    %4253 = vmatprep.subr.mxu0 %v1780
    %4254 = vmatpush1.msra.mxu0 %v1779
    %4255 = vmatprep.subr.mxu0 %v1796
    %4256 = vmatpush1.msra.mxu0 %v1795
    %4257 = vmatprep.mubr.f32.mxu0 %v1286
    %4258 = vmatmul.mubr.f32.gmra.mrb[0].mxu0 %v1285
    %v4259 = vpop.f32.mrb[0].mxu0
    %v4260 = vadd.f32 0.0, %v4259
    %v4261 = vpop.f32.mrb[0].mxu0
    %v4262 = vadd.f32 0.0, %v4261
    %4263 = vdwg.mxu0
    %4264 = vmatprep.subr.mxu0 %v1812
    %4265 = vmatpush1.msra.mxu0 %v1811
    %4266 = vmatprep.subr.mxu0 %v1828
    %4267 = vmatpush1.msra.mxu0 %v1827
    %4268 = vmatprep.subr.mxu0 %v1844
    %4269 = vmatpush1.msra.mxu0 %v1843
    %4270 = vmatprep.subr.mxu0 %v1860
    %4271 = vmatpush1.msra.mxu0 %v1859
    %4272 = vmatprep.subr.mxu0 %v1876
    %4273 = vmatpush1.msra.mxu0 %v1875
    %4274 = vmatprep.subr.mxu0 %v1892
    %4275 = vmatpush1.msra.mxu0 %v1891
    %4276 = vmatprep.subr.mxu0 %v1908
    %4277 = vmatpush1.msra.mxu0 %v1907
    %4278 = vmatprep.subr.mxu0 %v1924
    %4279 = vmatpush1.msra.mxu0 %v1923
    %4280 = vmatprep.subr.mxu0 %v1940
    %4281 = vmatpush1.msra.mxu0 %v1939
    %4282 = vmatprep.subr.mxu0 %v1956
    %4283 = vmatpush1.msra.mxu0 %v1955
    %4284 = vmatprep.subr.mxu0 %v1972
    %4285 = vmatpush1.msra.mxu0 %v1971
    %4286 = vmatprep.subr.mxu0 %v1988
    %4287 = vmatpush1.msra.mxu0 %v1987
    %4288 = vmatprep.subr.mxu0 %v2004
    %4289 = vmatpush1.msra.mxu0 %v2003
    %4290 = vmatprep.subr.mxu0 %v2020
    %4291 = vmatpush1.msra.mxu0 %v2019
    %4292 = vmatprep.subr.mxu0 %v2036
    %4293 = vmatpush1.msra.mxu0 %v2035
    %4294 = vmatprep.subr.mxu0 %v2052
    %4295 = vmatpush1.msra.mxu0 %v2051
    %4296 = vmatprep.subr.mxu0 %v2068
    %4297 = vmatpush1.msra.mxu0 %v2067
    %4298 = vmatprep.subr.mxu0 %v2084
    %4299 = vmatpush1.msra.mxu0 %v2083
    %4300 = vmatprep.subr.mxu0 %v2100
    %4301 = vmatpush1.msra.mxu0 %v2099
    %4302 = vmatprep.subr.mxu0 %v2116
    %4303 = vmatpush1.msra.mxu0 %v2115
    %4304 = vmatprep.subr.mxu0 %v2132
    %4305 = vmatpush1.msra.mxu0 %v2131
    %4306 = vmatprep.subr.mxu0 %v2148
    %4307 = vmatpush1.msra.mxu0 %v2147
    %4308 = vmatprep.subr.mxu0 %v2164
    %4309 = vmatpush1.msra.mxu0 %v2163
    %4310 = vmatprep.subr.mxu0 %v2180
    %4311 = vmatpush1.msra.mxu0 %v2179
    %4312 = vmatprep.subr.mxu0 %v2196
    %4313 = vmatpush1.msra.mxu0 %v2195
    %4314 = vmatprep.subr.mxu0 %v2212
    %4315 = vmatpush1.msra.mxu0 %v2211
    %4316 = vmatprep.subr.mxu0 %v2228
    %4317 = vmatpush1.msra.mxu0 %v2227
    %4318 = vmatprep.subr.mxu0 %v2244
    %4319 = vmatpush1.msra.mxu0 %v2243
    %4320 = vmatprep.subr.mxu0 %v2260
    %4321 = vmatpush1.msra.mxu0 %v2259
    %4322 = vmatprep.subr.mxu0 %v2276
    %4323 = vmatpush1.msra.mxu0 %v2275
    %4324 = vmatprep.subr.mxu0 %v2292
    %4325 = vmatpush1.msra.mxu0 %v2291
    %4326 = vmatprep.subr.mxu0 %v2308
    %4327 = vmatpush1.msra.mxu0 %v2307
    %4328 = vmatprep.mubr.f32.mxu0 %v1288
    %4329 = vmatmul.mubr.f32.gmra.mrb[0].mxu0 %v1287
    %v4330 = vpop.f32.mrb[0].mxu0
    %v4331 = vadd.f32 %v4260, %v4330
    %v4332 = vpop.f32.mrb[0].mxu0
    %v4333 = vadd.f32 %v4262, %v4332
    %4334 = vdwg.mxu0
    %4335 = vmatprep.subr.mxu0 %v2324
    %4336 = vmatpush1.msra.mxu0 %v2323
    %4337 = vmatprep.subr.mxu0 %v2340
    %4338 = vmatpush1.msra.mxu0 %v2339
    %4339 = vmatprep.subr.mxu0 %v2356
    %4340 = vmatpush1.msra.mxu0 %v2355
    %4341 = vmatprep.subr.mxu0 %v2372
    %4342 = vmatpush1.msra.mxu0 %v2371
    %4343 = vmatprep.subr.mxu0 %v2388
    %4344 = vmatpush1.msra.mxu0 %v2387
    %4345 = vmatprep.subr.mxu0 %v2404
    %4346 = vmatpush1.msra.mxu0 %v2403
    %4347 = vmatprep.subr.mxu0 %v2420
    %4348 = vmatpush1.msra.mxu0 %v2419
    %4349 = vmatprep.subr.mxu0 %v2436
    %4350 = vmatpush1.msra.mxu0 %v2435
    %4351 = vmatprep.subr.mxu0 %v2452
    %4352 = vmatpush1.msra.mxu0 %v2451
    %4353 = vmatprep.subr.mxu0 %v2468
    %4354 = vmatpush1.msra.mxu0 %v2467
    %4355 = vmatprep.subr.mxu0 %v2484
    %4356 = vmatpush1.msra.mxu0 %v2483
    %4357 = vmatprep.subr.mxu0 %v2500
    %4358 = vmatpush1.msra.mxu0 %v2499
    %4359 = vmatprep.subr.mxu0 %v2516
    %4360 = vmatpush1.msra.mxu0 %v2515
    %4361 = vmatprep.subr.mxu0 %v2532
    %4362 = vmatpush1.msra.mxu0 %v2531
    %4363 = vmatprep.subr.mxu0 %v2548
    %4364 = vmatpush1.msra.mxu0 %v2547
    %4365 = vmatprep.subr.mxu0 %v2564
    %4366 = vmatpush1.msra.mxu0 %v2563
    %4367 = vmatprep.subr.mxu0 %v2580
    %4368 = vmatpush1.msra.mxu0 %v2579
    %4369 = vmatprep.subr.mxu0 %v2596
    %4370 = vmatpush1.msra.mxu0 %v2595
    %4371 = vmatprep.subr.mxu0 %v2612
    %4372 = vmatpush1.msra.mxu0 %v2611
    %4373 = vmatprep.subr.mxu0 %v2628
    %4374 = vmatpush1.msra.mxu0 %v2627
    %4375 = vmatprep.subr.mxu0 %v2644
    %4376 = vmatpush1.msra.mxu0 %v2643
    %4377 = vmatprep.subr.mxu0 %v2660
    %4378 = vmatpush1.msra.mxu0 %v2659
    %4379 = vmatprep.subr.mxu0 %v2676
    %4380 = vmatpush1.msra.mxu0 %v2675
    %4381 = vmatprep.subr.mxu0 %v2692
    %4382 = vmatpush1.msra.mxu0 %v2691
    %4383 = vmatprep.subr.mxu0 %v2708
    %4384 = vmatpush1.msra.mxu0 %v2707
    %4385 = vmatprep.subr.mxu0 %v2724
    %4386 = vmatpush1.msra.mxu0 %v2723
    %4387 = vmatprep.subr.mxu0 %v2740
    %4388 = vmatpush1.msra.mxu0 %v2739
    %4389 = vmatprep.subr.mxu0 %v2756
    %4390 = vmatpush1.msra.mxu0 %v2755
    %4391 = vmatprep.subr.mxu0 %v2772
    %4392 = vmatpush1.msra.mxu0 %v2771
    %4393 = vmatprep.subr.mxu0 %v2788
    %4394 = vmatpush1.msra.mxu0 %v2787
    %4395 = vmatprep.subr.mxu0 %v2804
    %4396 = vmatpush1.msra.mxu0 %v2803
    %4397 = vmatprep.subr.mxu0 %v2820
    %4398 = vmatpush1.msra.mxu0 %v2819
    %4399 = vmatprep.mubr.f32.mxu0 %v1290
    %4400 = vmatmul.mubr.f32.gmra.mrb[0].mxu0 %v1289
    %v4401 = vpop.f32.mrb[0].mxu0
    %v4402 = vadd.f32 %v4331, %v4401
    %v4403 = vpop.f32.mrb[0].mxu0
    %v4404 = vadd.f32 %v4333, %v4403
    %4405 = vdwg.mxu0
    %4406 = vmatprep.subr.mxu0 %v2836
    %4407 = vmatpush1.msra.mxu0 %v2835
    %4408 = vmatprep.subr.mxu0 %v2852
    %4409 = vmatpush1.msra.mxu0 %v2851
    %4410 = vmatprep.subr.mxu0 %v2868
    %4411 = vmatpush1.msra.mxu0 %v2867
    %4412 = vmatprep.subr.mxu0 %v2884
    %4413 = vmatpush1.msra.mxu0 %v2883
    %4414 = vmatprep.subr.mxu0 %v2900
    %4415 = vmatpush1.msra.mxu0 %v2899
    %4416 = vmatprep.subr.mxu0 %v2916
    %4417 = vmatpush1.msra.mxu0 %v2915
    %4418 = vmatprep.subr.mxu0 %v2932
    %4419 = vmatpush1.msra.mxu0 %v2931
    %4420 = vmatprep.subr.mxu0 %v2948
    %4421 = vmatpush1.msra.mxu0 %v2947
    %4422 = vmatprep.subr.mxu0 %v2964
    %4423 = vmatpush1.msra.mxu0 %v2963
    %4424 = vmatprep.subr.mxu0 %v2980
    %4425 = vmatpush1.msra.mxu0 %v2979
    %4426 = vmatprep.subr.mxu0 %v2996
    %4427 = vmatpush1.msra.mxu0 %v2995
    %4428 = vmatprep.subr.mxu0 %v3012
    %4429 = vmatpush1.msra.mxu0 %v3011
    %4430 = vmatprep.subr.mxu0 %v3028
    %4431 = vmatpush1.msra.mxu0 %v3027
    %4432 = vmatprep.subr.mxu0 %v3044
    %4433 = vmatpush1.msra.mxu0 %v3043
    %4434 = vmatprep.subr.mxu0 %v3060
    %4435 = vmatpush1.msra.mxu0 %v3059
    %4436 = vmatprep.subr.mxu0 %v3076
    %4437 = vmatpush1.msra.mxu0 %v3075
    %4438 = vmatprep.subr.mxu0 %v3092
    %4439 = vmatpush1.msra.mxu0 %v3091
    %4440 = vmatprep.subr.mxu0 %v3108
    %4441 = vmatpush1.msra.mxu0 %v3107
    %4442 = vmatprep.subr.mxu0 %v3124
    %4443 = vmatpush1.msra.mxu0 %v3123
    %4444 = vmatprep.subr.mxu0 %v3140
    %4445 = vmatpush1.msra.mxu0 %v3139
    %4446 = vmatprep.subr.mxu0 %v3156
    %4447 = vmatpush1.msra.mxu0 %v3155
    %4448 = vmatprep.subr.mxu0 %v3172
    %4449 = vmatpush1.msra.mxu0 %v3171
    %4450 = vmatprep.subr.mxu0 %v3188
    %4451 = vmatpush1.msra.mxu0 %v3187
    %4452 = vmatprep.subr.mxu0 %v3204
    %4453 = vmatpush1.msra.mxu0 %v3203
    %4454 = vmatprep.subr.mxu0 %v3220
    %4455 = vmatpush1.msra.mxu0 %v3219
    %4456 = vmatprep.subr.mxu0 %v3236
    %4457 = vmatpush1.msra.mxu0 %v3235
    %4458 = vmatprep.subr.mxu0 %v3252
    %4459 = vmatpush1.msra.mxu0 %v3251
    %4460 = vmatprep.subr.mxu0 %v3268
    %4461 = vmatpush1.msra.mxu0 %v3267
    %4462 = vmatprep.subr.mxu0 %v3284
    %4463 = vmatpush1.msra.mxu0 %v3283
    %4464 = vmatprep.subr.mxu0 %v3300
    %4465 = vmatpush1.msra.mxu0 %v3299
    %4466 = vmatprep.subr.mxu0 %v3316
    %4467 = vmatpush1.msra.mxu0 %v3315
    %4468 = vmatprep.subr.mxu0 %v3332
    %4469 = vmatpush1.msra.mxu0 %v3331
    %4470 = vmatprep.mubr.f32.mxu0 %v1292
    %4471 = vmatmul.mubr.f32.gmra.mrb[0].mxu0 %v1291
    %v4472 = vpop.f32.mrb[0].mxu0
    %v4473 = vadd.f32 %v4402, %v4472
    %v4474 = vpop.f32.mrb[0].mxu0
    %v4475 = vadd.f32 %v4404, %v4474
    %4476 = vdwg.mxu0
    %4477 = vmatprep.subr.mxu0 %v1302
    %4478 = vmatpush1.msra.mxu0 %v1301
    %4479 = vmatprep.subr.mxu0 %v1318
    %4480 = vmatpush1.msra.mxu0 %v1317
    %4481 = vmatprep.subr.mxu0 %v1334
    %4482 = vmatpush1.msra.mxu0 %v1333
    %4483 = vmatprep.subr.mxu0 %v1350
    %4484 = vmatpush1.msra.mxu0 %v1349
    %4485 = vmatprep.subr.mxu0 %v1366
    %4486 = vmatpush1.msra.mxu0 %v1365
    %4487 = vmatprep.subr.mxu0 %v1382
    %4488 = vmatpush1.msra.mxu0 %v1381
    %4489 = vmatprep.subr.mxu0 %v1398
    %4490 = vmatpush1.msra.mxu0 %v1397
    %4491 = vmatprep.subr.mxu0 %v1414
    %4492 = vmatpush1.msra.mxu0 %v1413
    %4493 = vmatprep.subr.mxu0 %v1430
    %4494 = vmatpush1.msra.mxu0 %v1429
    %4495 = vmatprep.subr.mxu0 %v1446
    %4496 = vmatpush1.msra.mxu0 %v1445
    %4497 = vmatprep.subr.mxu0 %v1462
    %4498 = vmatpush1.msra.mxu0 %v1461
    %4499 = vmatprep.subr.mxu0 %v1478
    %4500 = vmatpush1.msra.mxu0 %v1477
    %4501 = vmatprep.subr.mxu0 %v1494
    %4502 = vmatpush1.msra.mxu0 %v1493
    %4503 = vmatprep.subr.mxu0 %v1510
    %4504 = vmatpush1.msra.mxu0 %v1509
    %4505 = vmatprep.subr.mxu0 %v1526
    %4506 = vmatpush1.msra.mxu0 %v1525
    %4507 = vmatprep.subr.mxu0 %v1542
    %4508 = vmatpush1.msra.mxu0 %v1541
    %4509 = vmatprep.subr.mxu0 %v1558
    %4510 = vmatpush1.msra.mxu0 %v1557
    %4511 = vmatprep.subr.mxu0 %v1574
    %4512 = vmatpush1.msra.mxu0 %v1573
    %4513 = vmatprep.subr.mxu0 %v1590
    %4514 = vmatpush1.msra.mxu0 %v1589
    %4515 = vmatprep.subr.mxu0 %v1606
    %4516 = vmatpush1.msra.mxu0 %v1605
    %4517 = vmatprep.subr.mxu0 %v1622
    %4518 = vmatpush1.msra.mxu0 %v1621
    %4519 = vmatprep.subr.mxu0 %v1638
    %4520 = vmatpush1.msra.mxu0 %v1637
    %4521 = vmatprep.subr.mxu0 %v1654
    %4522 = vmatpush1.msra.mxu0 %v1653
    %4523 = vmatprep.subr.mxu0 %v1670
    %4524 = vmatpush1.msra.mxu0 %v1669
    %4525 = vmatprep.subr.mxu0 %v1686
    %4526 = vmatpush1.msra.mxu0 %v1685
    %4527 = vmatprep.subr.mxu0 %v1702
    %4528 = vmatpush1.msra.mxu0 %v1701
    %4529 = vmatprep.subr.mxu0 %v1718
    %4530 = vmatpush1.msra.mxu0 %v1717
    %4531 = vmatprep.subr.mxu0 %v1734
    %4532 = vmatpush1.msra.mxu0 %v1733
    %4533 = vmatprep.subr.mxu0 %v1750
    %4534 = vmatpush1.msra.mxu0 %v1749
    %4535 = vmatprep.subr.mxu0 %v1766
    %4536 = vmatpush1.msra.mxu0 %v1765
    %4537 = vmatprep.subr.mxu0 %v1782
    %4538 = vmatpush1.msra.mxu0 %v1781
    %4539 = vmatprep.subr.mxu0 %v1798
    %4540 = vmatpush1.msra.mxu0 %v1797
    %4541 = vmatprep.mubr.f32.mxu0 %v1286
    %4542 = vmatmul.mubr.f32.gmra.mrb[0].mxu0 %v1285
    %v4543 = vpop.f32.mrb[0].mxu0
    %v4544 = vadd.f32 0.0, %v4543
    %v4545 = vpop.f32.mrb[0].mxu0
    %v4546 = vadd.f32 0.0, %v4545
    %4547 = vdwg.mxu0
    %4548 = vmatprep.subr.mxu0 %v1814
    %4549 = vmatpush1.msra.mxu0 %v1813
    %4550 = vmatprep.subr.mxu0 %v1830
    %4551 = vmatpush1.msra.mxu0 %v1829
    %4552 = vmatprep.subr.mxu0 %v1846
    %4553 = vmatpush1.msra.mxu0 %v1845
    %4554 = vmatprep.subr.mxu0 %v1862
    %4555 = vmatpush1.msra.mxu0 %v1861
    %4556 = vmatprep.subr.mxu0 %v1878
    %4557 = vmatpush1.msra.mxu0 %v1877
    %4558 = vmatprep.subr.mxu0 %v1894
    %4559 = vmatpush1.msra.mxu0 %v1893
    %4560 = vmatprep.subr.mxu0 %v1910
    %4561 = vmatpush1.msra.mxu0 %v1909
    %4562 = vmatprep.subr.mxu0 %v1926
    %4563 = vmatpush1.msra.mxu0 %v1925
    %4564 = vmatprep.subr.mxu0 %v1942
    %4565 = vmatpush1.msra.mxu0 %v1941
    %4566 = vmatprep.subr.mxu0 %v1958
    %4567 = vmatpush1.msra.mxu0 %v1957
    %4568 = vmatprep.subr.mxu0 %v1974
    %4569 = vmatpush1.msra.mxu0 %v1973
    %4570 = vmatprep.subr.mxu0 %v1990
    %4571 = vmatpush1.msra.mxu0 %v1989
    %4572 = vmatprep.subr.mxu0 %v2006
    %4573 = vmatpush1.msra.mxu0 %v2005
    %4574 = vmatprep.subr.mxu0 %v2022
    %4575 = vmatpush1.msra.mxu0 %v2021
    %4576 = vmatprep.subr.mxu0 %v2038
    %4577 = vmatpush1.msra.mxu0 %v2037
    %4578 = vmatprep.subr.mxu0 %v2054
    %4579 = vmatpush1.msra.mxu0 %v2053
    %4580 = vmatprep.subr.mxu0 %v2070
    %4581 = vmatpush1.msra.mxu0 %v2069
    %4582 = vmatprep.subr.mxu0 %v2086
    %4583 = vmatpush1.msra.mxu0 %v2085
    %4584 = vmatprep.subr.mxu0 %v2102
    %4585 = vmatpush1.msra.mxu0 %v2101
    %4586 = vmatprep.subr.mxu0 %v2118
    %4587 = vmatpush1.msra.mxu0 %v2117
    %4588 = vmatprep.subr.mxu0 %v2134
    %4589 = vmatpush1.msra.mxu0 %v2133
    %4590 = vmatprep.subr.mxu0 %v2150
    %4591 = vmatpush1.msra.mxu0 %v2149
    %4592 = vmatprep.subr.mxu0 %v2166
    %4593 = vmatpush1.msra.mxu0 %v2165
    %4594 = vmatprep.subr.mxu0 %v2182
    %4595 = vmatpush1.msra.mxu0 %v2181
    %4596 = vmatprep.subr.mxu0 %v2198
    %4597 = vmatpush1.msra.mxu0 %v2197
    %4598 = vmatprep.subr.mxu0 %v2214
    %4599 = vmatpush1.msra.mxu0 %v2213
    %4600 = vmatprep.subr.mxu0 %v2230
    %4601 = vmatpush1.msra.mxu0 %v2229
    %4602 = vmatprep.subr.mxu0 %v2246
    %4603 = vmatpush1.msra.mxu0 %v2245
    %4604 = vmatprep.subr.mxu0 %v2262
    %4605 = vmatpush1.msra.mxu0 %v2261
    %4606 = vmatprep.subr.mxu0 %v2278
    %4607 = vmatpush1.msra.mxu0 %v2277
    %4608 = vmatprep.subr.mxu0 %v2294
    %4609 = vmatpush1.msra.mxu0 %v2293
    %4610 = vmatprep.subr.mxu0 %v2310
    %4611 = vmatpush1.msra.mxu0 %v2309
    %4612 = vmatprep.mubr.f32.mxu0 %v1288
    %4613 = vmatmul.mubr.f32.gmra.mrb[0].mxu0 %v1287
    %v4614 = vpop.f32.mrb[0].mxu0
    %v4615 = vadd.f32 %v4544, %v4614
    %v4616 = vpop.f32.mrb[0].mxu0
    %v4617 = vadd.f32 %v4546, %v4616
    %4618 = vdwg.mxu0
    %4619 = vmatprep.subr.mxu0 %v2326
    %4620 = vmatpush1.msra.mxu0 %v2325
    %4621 = vmatprep.subr.mxu0 %v2342
    %4622 = vmatpush1.msra.mxu0 %v2341
    %4623 = vmatprep.subr.mxu0 %v2358
    %4624 = vmatpush1.msra.mxu0 %v2357
    %4625 = vmatprep.subr.mxu0 %v2374
    %4626 = vmatpush1.msra.mxu0 %v2373
    %4627 = vmatprep.subr.mxu0 %v2390
    %4628 = vmatpush1.msra.mxu0 %v2389
    %4629 = vmatprep.subr.mxu0 %v2406
    %4630 = vmatpush1.msra.mxu0 %v2405
    %4631 = vmatprep.subr.mxu0 %v2422
    %4632 = vmatpush1.msra.mxu0 %v2421
    %4633 = vmatprep.subr.mxu0 %v2438
    %4634 = vmatpush1.msra.mxu0 %v2437
    %4635 = vmatprep.subr.mxu0 %v2454
    %4636 = vmatpush1.msra.mxu0 %v2453
    %4637 = vmatprep.subr.mxu0 %v2470
    %4638 = vmatpush1.msra.mxu0 %v2469
    %4639 = vmatprep.subr.mxu0 %v2486
    %4640 = vmatpush1.msra.mxu0 %v2485
    %4641 = vmatprep.subr.mxu0 %v2502
    %4642 = vmatpush1.msra.mxu0 %v2501
    %4643 = vmatprep.subr.mxu0 %v2518
    %4644 = vmatpush1.msra.mxu0 %v2517
    %4645 = vmatprep.subr.mxu0 %v2534
    %4646 = vmatpush1.msra.mxu0 %v2533
    %4647 = vmatprep.subr.mxu0 %v2550
    %4648 = vmatpush1.msra.mxu0 %v2549
    %4649 = vmatprep.subr.mxu0 %v2566
    %4650 = vmatpush1.msra.mxu0 %v2565
    %4651 = vmatprep.subr.mxu0 %v2582
    %4652 = vmatpush1.msra.mxu0 %v2581
    %4653 = vmatprep.subr.mxu0 %v2598
    %4654 = vmatpush1.msra.mxu0 %v2597
    %4655 = vmatprep.subr.mxu0 %v2614
    %4656 = vmatpush1.msra.mxu0 %v2613
    %4657 = vmatprep.subr.mxu0 %v2630
    %4658 = vmatpush1.msra.mxu0 %v2629
    %4659 = vmatprep.subr.mxu0 %v2646
    %4660 = vmatpush1.msra.mxu0 %v2645
    %4661 = vmatprep.subr.mxu0 %v2662
    %4662 = vmatpush1.msra.mxu0 %v2661
    %4663 = vmatprep.subr.mxu0 %v2678
    %4664 = vmatpush1.msra.mxu0 %v2677
    %4665 = vmatprep.subr.mxu0 %v2694
    %4666 = vmatpush1.msra.mxu0 %v2693
    %4667 = vmatprep.subr.mxu0 %v2710
    %4668 = vmatpush1.msra.mxu0 %v2709
    %4669 = vmatprep.subr.mxu0 %v2726
    %4670 = vmatpush1.msra.mxu0 %v2725
    %4671 = vmatprep.subr.mxu0 %v2742
    %4672 = vmatpush1.msra.mxu0 %v2741
    %4673 = vmatprep.subr.mxu0 %v2758
    %4674 = vmatpush1.msra.mxu0 %v2757
    %4675 = vmatprep.subr.mxu0 %v2774
    %4676 = vmatpush1.msra.mxu0 %v2773
    %4677 = vmatprep.subr.mxu0 %v2790
    %4678 = vmatpush1.msra.mxu0 %v2789
    %4679 = vmatprep.subr.mxu0 %v2806
    %4680 = vmatpush1.msra.mxu0 %v2805
    %4681 = vmatprep.subr.mxu0 %v2822
    %4682 = vmatpush1.msra.mxu0 %v2821
    %4683 = vmatprep.mubr.f32.mxu0 %v1290
    %4684 = vmatmul.mubr.f32.gmra.mrb[0].mxu0 %v1289
    %v4685 = vpop.f32.mrb[0].mxu0
    %v4686 = vadd.f32 %v4615, %v4685
    %v4687 = vpop.f32.mrb[0].mxu0
    %v4688 = vadd.f32 %v4617, %v4687
    %4689 = vdwg.mxu0
    %4690 = vmatprep.subr.mxu0 %v2838
    %4691 = vmatpush1.msra.mxu0 %v2837
    %4692 = vmatprep.subr.mxu0 %v2854
    %4693 = vmatpush1.msra.mxu0 %v2853
    %4694 = vmatprep.subr.mxu0 %v2870
    %4695 = vmatpush1.msra.mxu0 %v2869
    %4696 = vmatprep.subr.mxu0 %v2886
    %4697 = vmatpush1.msra.mxu0 %v2885
    %4698 = vmatprep.subr.mxu0 %v2902
    %4699 = vmatpush1.msra.mxu0 %v2901
    %4700 = vmatprep.subr.mxu0 %v2918
    %4701 = vmatpush1.msra.mxu0 %v2917
    %4702 = vmatprep.subr.mxu0 %v2934
    %4703 = vmatpush1.msra.mxu0 %v2933
    %4704 = vmatprep.subr.mxu0 %v2950
    %4705 = vmatpush1.msra.mxu0 %v2949
    %4706 = vmatprep.subr.mxu0 %v2966
    %4707 = vmatpush1.msra.mxu0 %v2965
    %4708 = vmatprep.subr.mxu0 %v2982
    %4709 = vmatpush1.msra.mxu0 %v2981
    %4710 = vmatprep.subr.mxu0 %v2998
    %4711 = vmatpush1.msra.mxu0 %v2997
    %4712 = vmatprep.subr.mxu0 %v3014
    %4713 = vmatpush1.msra.mxu0 %v3013
    %4714 = vmatprep.subr.mxu0 %v3030
    %4715 = vmatpush1.msra.mxu0 %v3029
    %4716 = vmatprep.subr.mxu0 %v3046
    %4717 = vmatpush1.msra.mxu0 %v3045
    %4718 = vmatprep.subr.mxu0 %v3062
    %4719 = vmatpush1.msra.mxu0 %v3061
    %4720 = vmatprep.subr.mxu0 %v3078
    %4721 = vmatpush1.msra.mxu0 %v3077
    %4722 = vmatprep.subr.mxu0 %v3094
    %4723 = vmatpush1.msra.mxu0 %v3093
    %4724 = vmatprep.subr.mxu0 %v3110
    %4725 = vmatpush1.msra.mxu0 %v3109
    %4726 = vmatprep.subr.mxu0 %v3126
    %4727 = vmatpush1.msra.mxu0 %v3125
    %4728 = vmatprep.subr.mxu0 %v3142
    %4729 = vmatpush1.msra.mxu0 %v3141
    %4730 = vmatprep.subr.mxu0 %v3158
    %4731 = vmatpush1.msra.mxu0 %v3157
    %4732 = vmatprep.subr.mxu0 %v3174
    %4733 = vmatpush1.msra.mxu0 %v3173
    %4734 = vmatprep.subr.mxu0 %v3190
    %4735 = vmatpush1.msra.mxu0 %v3189
    %4736 = vmatprep.subr.mxu0 %v3206
    %4737 = vmatpush1.msra.mxu0 %v3205
    %4738 = vmatprep.subr.mxu0 %v3222
    %4739 = vmatpush1.msra.mxu0 %v3221
    %4740 = vmatprep.subr.mxu0 %v3238
    %4741 = vmatpush1.msra.mxu0 %v3237
    %4742 = vmatprep.subr.mxu0 %v3254
    %4743 = vmatpush1.msra.mxu0 %v3253
    %4744 = vmatprep.subr.mxu0 %v3270
    %4745 = vmatpush1.msra.mxu0 %v3269
    %4746 = vmatprep.subr.mxu0 %v3286
    %4747 = vmatpush1.msra.mxu0 %v3285
    %4748 = vmatprep.subr.mxu0 %v3302
    %4749 = vmatpush1.msra.mxu0 %v3301
    %4750 = vmatprep.subr.mxu0 %v3318
    %4751 = vmatpush1.msra.mxu0 %v3317
    %4752 = vmatprep.subr.mxu0 %v3334
    %4753 = vmatpush1.msra.mxu0 %v3333
    %4754 = vmatprep.mubr.f32.mxu0 %v1292
    %4755 = vmatmul.mubr.f32.gmra.mrb[0].mxu0 %v1291
    %v4756 = vpop.f32.mrb[0].mxu0
    %v4757 = vadd.f32 %v4686, %v4756
    %v4758 = vpop.f32.mrb[0].mxu0
    %v4759 = vadd.f32 %v4688, %v4758
    %4760 = vdwg.mxu0
    %4761 = vmatprep.subr.mxu0 %v1304
    %4762 = vmatpush1.msra.mxu0 %v1303
    %4763 = vmatprep.subr.mxu0 %v1320
    %4764 = vmatpush1.msra.mxu0 %v1319
    %4765 = vmatprep.subr.mxu0 %v1336
    %4766 = vmatpush1.msra.mxu0 %v1335
    %4767 = vmatprep.subr.mxu0 %v1352
    %4768 = vmatpush1.msra.mxu0 %v1351
    %4769 = vmatprep.subr.mxu0 %v1368
    %4770 = vmatpush1.msra.mxu0 %v1367
    %4771 = vmatprep.subr.mxu0 %v1384
    %4772 = vmatpush1.msra.mxu0 %v1383
    %4773 = vmatprep.subr.mxu0 %v1400
    %4774 = vmatpush1.msra.mxu0 %v1399
    %4775 = vmatprep.subr.mxu0 %v1416
    %4776 = vmatpush1.msra.mxu0 %v1415
    %4777 = vmatprep.subr.mxu0 %v1432
    %4778 = vmatpush1.msra.mxu0 %v1431
    %4779 = vmatprep.subr.mxu0 %v1448
    %4780 = vmatpush1.msra.mxu0 %v1447
    %4781 = vmatprep.subr.mxu0 %v1464
    %4782 = vmatpush1.msra.mxu0 %v1463
    %4783 = vmatprep.subr.mxu0 %v1480
    %4784 = vmatpush1.msra.mxu0 %v1479
    %4785 = vmatprep.subr.mxu0 %v1496
    %4786 = vmatpush1.msra.mxu0 %v1495
    %4787 = vmatprep.subr.mxu0 %v1512
    %4788 = vmatpush1.msra.mxu0 %v1511
    %4789 = vmatprep.subr.mxu0 %v1528
    %4790 = vmatpush1.msra.mxu0 %v1527
    %4791 = vmatprep.subr.mxu0 %v1544
    %4792 = vmatpush1.msra.mxu0 %v1543
    %4793 = vmatprep.subr.mxu0 %v1560
    %4794 = vmatpush1.msra.mxu0 %v1559
    %4795 = vmatprep.subr.mxu0 %v1576
    %4796 = vmatpush1.msra.mxu0 %v1575
    %4797 = vmatprep.subr.mxu0 %v1592
    %4798 = vmatpush1.msra.mxu0 %v1591
    %4799 = vmatprep.subr.mxu0 %v1608
    %4800 = vmatpush1.msra.mxu0 %v1607
    %4801 = vmatprep.subr.mxu0 %v1624
    %4802 = vmatpush1.msra.mxu0 %v1623
    %4803 = vmatprep.subr.mxu0 %v1640
    %4804 = vmatpush1.msra.mxu0 %v1639
    %4805 = vmatprep.subr.mxu0 %v1656
    %4806 = vmatpush1.msra.mxu0 %v1655
    %4807 = vmatprep.subr.mxu0 %v1672
    %4808 = vmatpush1.msra.mxu0 %v1671
    %4809 = vmatprep.subr.mxu0 %v1688
    %4810 = vmatpush1.msra.mxu0 %v1687
    %4811 = vmatprep.subr.mxu0 %v1704
    %4812 = vmatpush1.msra.mxu0 %v1703
    %4813 = vmatprep.subr.mxu0 %v1720
    %4814 = vmatpush1.msra.mxu0 %v1719
    %4815 = vmatprep.subr.mxu0 %v1736
    %4816 = vmatpush1.msra.mxu0 %v1735
    %4817 = vmatprep.subr.mxu0 %v1752
    %4818 = vmatpush1.msra.mxu0 %v1751
    %4819 = vmatprep.subr.mxu0 %v1768
    %4820 = vmatpush1.msra.mxu0 %v1767
    %4821 = vmatprep.subr.mxu0 %v1784
    %4822 = vmatpush1.msra.mxu0 %v1783
    %4823 = vmatprep.subr.mxu0 %v1800
    %4824 = vmatpush1.msra.mxu0 %v1799
    %4825 = vmatprep.mubr.f32.mxu0 %v1286
    %4826 = vmatmul.mubr.f32.gmra.mrb[0].mxu0 %v1285
    %v4827 = vpop.f32.mrb[0].mxu0
    %v4828 = vadd.f32 0.0, %v4827
    %v4829 = vpop.f32.mrb[0].mxu0
    %v4830 = vadd.f32 0.0, %v4829
    %4831 = vdwg.mxu0
    %4832 = vmatprep.subr.mxu0 %v1816
    %4833 = vmatpush1.msra.mxu0 %v1815
    %4834 = vmatprep.subr.mxu0 %v1832
    %4835 = vmatpush1.msra.mxu0 %v1831
    %4836 = vmatprep.subr.mxu0 %v1848
    %4837 = vmatpush1.msra.mxu0 %v1847
    %4838 = vmatprep.subr.mxu0 %v1864
    %4839 = vmatpush1.msra.mxu0 %v1863
    %4840 = vmatprep.subr.mxu0 %v1880
    %4841 = vmatpush1.msra.mxu0 %v1879
    %4842 = vmatprep.subr.mxu0 %v1896
    %4843 = vmatpush1.msra.mxu0 %v1895
    %4844 = vmatprep.subr.mxu0 %v1912
    %4845 = vmatpush1.msra.mxu0 %v1911
    %4846 = vmatprep.subr.mxu0 %v1928
    %4847 = vmatpush1.msra.mxu0 %v1927
    %4848 = vmatprep.subr.mxu0 %v1944
    %4849 = vmatpush1.msra.mxu0 %v1943
    %4850 = vmatprep.subr.mxu0 %v1960
    %4851 = vmatpush1.msra.mxu0 %v1959
    %4852 = vmatprep.subr.mxu0 %v1976
    %4853 = vmatpush1.msra.mxu0 %v1975
    %4854 = vmatprep.subr.mxu0 %v1992
    %4855 = vmatpush1.msra.mxu0 %v1991
    %4856 = vmatprep.subr.mxu0 %v2008
    %4857 = vmatpush1.msra.mxu0 %v2007
    %4858 = vmatprep.subr.mxu0 %v2024
    %4859 = vmatpush1.msra.mxu0 %v2023
    %4860 = vmatprep.subr.mxu0 %v2040
    %4861 = vmatpush1.msra.mxu0 %v2039
    %4862 = vmatprep.subr.mxu0 %v2056
    %4863 = vmatpush1.msra.mxu0 %v2055
    %4864 = vmatprep.subr.mxu0 %v2072
    %4865 = vmatpush1.msra.mxu0 %v2071
    %4866 = vmatprep.subr.mxu0 %v2088
    %4867 = vmatpush1.msra.mxu0 %v2087
    %4868 = vmatprep.subr.mxu0 %v2104
    %4869 = vmatpush1.msra.mxu0 %v2103
    %4870 = vmatprep.subr.mxu0 %v2120
    %4871 = vmatpush1.msra.mxu0 %v2119
    %4872 = vmatprep.subr.mxu0 %v2136
    %4873 = vmatpush1.msra.mxu0 %v2135
    %4874 = vmatprep.subr.mxu0 %v2152
    %4875 = vmatpush1.msra.mxu0 %v2151
    %4876 = vmatprep.subr.mxu0 %v2168
    %4877 = vmatpush1.msra.mxu0 %v2167
    %4878 = vmatprep.subr.mxu0 %v2184
    %4879 = vmatpush1.msra.mxu0 %v2183
    %4880 = vmatprep.subr.mxu0 %v2200
    %4881 = vmatpush1.msra.mxu0 %v2199
    %4882 = vmatprep.subr.mxu0 %v2216
    %4883 = vmatpush1.msra.mxu0 %v2215
    %4884 = vmatprep.subr.mxu0 %v2232
    %4885 = vmatpush1.msra.mxu0 %v2231
    %4886 = vmatprep.subr.mxu0 %v2248
    %4887 = vmatpush1.msra.mxu0 %v2247
    %4888 = vmatprep.subr.mxu0 %v2264
    %4889 = vmatpush1.msra.mxu0 %v2263
    %4890 = vmatprep.subr.mxu0 %v2280
    %4891 = vmatpush1.msra.mxu0 %v2279
    %4892 = vmatprep.subr.mxu0 %v2296
    %4893 = vmatpush1.msra.mxu0 %v2295
    %4894 = vmatprep.subr.mxu0 %v2312
    %4895 = vmatpush1.msra.mxu0 %v2311
    %4896 = vmatprep.mubr.f32.mxu0 %v1288
    %4897 = vmatmul.mubr.f32.gmra.mrb[0].mxu0 %v1287
    %v4898 = vpop.f32.mrb[0].mxu0
    %v4899 = vadd.f32 %v4828, %v4898
    %v4900 = vpop.f32.mrb[0].mxu0
    %v4901 = vadd.f32 %v4830, %v4900
    %4902 = vdwg.mxu0
    %4903 = vmatprep.subr.mxu0 %v2328
    %4904 = vmatpush1.msra.mxu0 %v2327
    %4905 = vmatprep.subr.mxu0 %v2344
    %4906 = vmatpush1.msra.mxu0 %v2343
    %4907 = vmatprep.subr.mxu0 %v2360
    %4908 = vmatpush1.msra.mxu0 %v2359
    %4909 = vmatprep.subr.mxu0 %v2376
    %4910 = vmatpush1.msra.mxu0 %v2375
    %4911 = vmatprep.subr.mxu0 %v2392
    %4912 = vmatpush1.msra.mxu0 %v2391
    %4913 = vmatprep.subr.mxu0 %v2408
    %4914 = vmatpush1.msra.mxu0 %v2407
    %4915 = vmatprep.subr.mxu0 %v2424
    %4916 = vmatpush1.msra.mxu0 %v2423
    %4917 = vmatprep.subr.mxu0 %v2440
    %4918 = vmatpush1.msra.mxu0 %v2439
    %4919 = vmatprep.subr.mxu0 %v2456
    %4920 = vmatpush1.msra.mxu0 %v2455
    %4921 = vmatprep.subr.mxu0 %v2472
    %4922 = vmatpush1.msra.mxu0 %v2471
    %4923 = vmatprep.subr.mxu0 %v2488
    %4924 = vmatpush1.msra.mxu0 %v2487
    %4925 = vmatprep.subr.mxu0 %v2504
    %4926 = vmatpush1.msra.mxu0 %v2503
    %4927 = vmatprep.subr.mxu0 %v2520
    %4928 = vmatpush1.msra.mxu0 %v2519
    %4929 = vmatprep.subr.mxu0 %v2536
    %4930 = vmatpush1.msra.mxu0 %v2535
    %4931 = vmatprep.subr.mxu0 %v2552
    %4932 = vmatpush1.msra.mxu0 %v2551
    %4933 = vmatprep.subr.mxu0 %v2568
    %4934 = vmatpush1.msra.mxu0 %v2567
    %4935 = vmatprep.subr.mxu0 %v2584
    %4936 = vmatpush1.msra.mxu0 %v2583
    %4937 = vmatprep.subr.mxu0 %v2600
    %4938 = vmatpush1.msra.mxu0 %v2599
    %4939 = vmatprep.subr.mxu0 %v2616
    %4940 = vmatpush1.msra.mxu0 %v2615
    %4941 = vmatprep.subr.mxu0 %v2632
    %4942 = vmatpush1.msra.mxu0 %v2631
    %4943 = vmatprep.subr.mxu0 %v2648
    %4944 = vmatpush1.msra.mxu0 %v2647
    %4945 = vmatprep.subr.mxu0 %v2664
    %4946 = vmatpush1.msra.mxu0 %v2663
    %4947 = vmatprep.subr.mxu0 %v2680
    %4948 = vmatpush1.msra.mxu0 %v2679
    %4949 = vmatprep.subr.mxu0 %v2696
    %4950 = vmatpush1.msra.mxu0 %v2695
    %4951 = vmatprep.subr.mxu0 %v2712
    %4952 = vmatpush1.msra.mxu0 %v2711
    %4953 = vmatprep.subr.mxu0 %v2728
    %4954 = vmatpush1.msra.mxu0 %v2727
    %4955 = vmatprep.subr.mxu0 %v2744
    %4956 = vmatpush1.msra.mxu0 %v2743
    %4957 = vmatprep.subr.mxu0 %v2760
    %4958 = vmatpush1.msra.mxu0 %v2759
    %4959 = vmatprep.subr.mxu0 %v2776
    %4960 = vmatpush1.msra.mxu0 %v2775
    %4961 = vmatprep.subr.mxu0 %v2792
    %4962 = vmatpush1.msra.mxu0 %v2791
    %4963 = vmatprep.subr.mxu0 %v2808
    %4964 = vmatpush1.msra.mxu0 %v2807
    %4965 = vmatprep.subr.mxu0 %v2824
    %4966 = vmatpush1.msra.mxu0 %v2823
    %4967 = vmatprep.mubr.f32.mxu0 %v1290
    %4968 = vmatmul.mubr.f32.gmra.mrb[0].mxu0 %v1289
    %v4969 = vpop.f32.mrb[0].mxu0
    %v4970 = vadd.f32 %v4899, %v4969
    %v4971 = vpop.f32.mrb[0].mxu0
    %v4972 = vadd.f32 %v4901, %v4971
    %4973 = vdwg.mxu0
    %4974 = vmatprep.subr.mxu0 %v2840
    %4975 = vmatpush1.msra.mxu0 %v2839
    %4976 = vmatprep.subr.mxu0 %v2856
    %4977 = vmatpush1.msra.mxu0 %v2855
    %4978 = vmatprep.subr.mxu0 %v2872
    %4979 = vmatpush1.msra.mxu0 %v2871
    %4980 = vmatprep.subr.mxu0 %v2888
    %4981 = vmatpush1.msra.mxu0 %v2887
    %4982 = vmatprep.subr.mxu0 %v2904
    %4983 = vmatpush1.msra.mxu0 %v2903
    %4984 = vmatprep.subr.mxu0 %v2920
    %4985 = vmatpush1.msra.mxu0 %v2919
    %4986 = vmatprep.subr.mxu0 %v2936
    %4987 = vmatpush1.msra.mxu0 %v2935
    %4988 = vmatprep.subr.mxu0 %v2952
    %4989 = vmatpush1.msra.mxu0 %v2951
    %4990 = vmatprep.subr.mxu0 %v2968
    %4991 = vmatpush1.msra.mxu0 %v2967
    %4992 = vmatprep.subr.mxu0 %v2984
    %4993 = vmatpush1.msra.mxu0 %v2983
    %4994 = vmatprep.subr.mxu0 %v3000
    %4995 = vmatpush1.msra.mxu0 %v2999
    %4996 = vmatprep.subr.mxu0 %v3016
    %4997 = vmatpush1.msra.mxu0 %v3015
    %4998 = vmatprep.subr.mxu0 %v3032
    %4999 = vmatpush1.msra.mxu0 %v3031
    %5000 = vmatprep.subr.mxu0 %v3048
    %5001 = vmatpush1.msra.mxu0 %v3047
    %5002 = vmatprep.subr.mxu0 %v3064
    %5003 = vmatpush1.msra.mxu0 %v3063
    %5004 = vmatprep.subr.mxu0 %v3080
    %5005 = vmatpush1.msra.mxu0 %v3079
    %5006 = vmatprep.subr.mxu0 %v3096
    %5007 = vmatpush1.msra.mxu0 %v3095
    %5008 = vmatprep.subr.mxu0 %v3112
    %5009 = vmatpush1.msra.mxu0 %v3111
    %5010 = vmatprep.subr.mxu0 %v3128
    %5011 = vmatpush1.msra.mxu0 %v3127
    %5012 = vmatprep.subr.mxu0 %v3144
    %5013 = vmatpush1.msra.mxu0 %v3143
    %5014 = vmatprep.subr.mxu0 %v3160
    %5015 = vmatpush1.msra.mxu0 %v3159
    %5016 = vmatprep.subr.mxu0 %v3176
    %5017 = vmatpush1.msra.mxu0 %v3175
    %5018 = vmatprep.subr.mxu0 %v3192
    %5019 = vmatpush1.msra.mxu0 %v3191
    %5020 = vmatprep.subr.mxu0 %v3208
    %5021 = vmatpush1.msra.mxu0 %v3207
    %5022 = vmatprep.subr.mxu0 %v3224
    %5023 = vmatpush1.msra.mxu0 %v3223
    %5024 = vmatprep.subr.mxu0 %v3240
    %5025 = vmatpush1.msra.mxu0 %v3239
    %5026 = vmatprep.subr.mxu0 %v3256
    %5027 = vmatpush1.msra.mxu0 %v3255
    %5028 = vmatprep.subr.mxu0 %v3272
    %5029 = vmatpush1.msra.mxu0 %v3271
    %5030 = vmatprep.subr.mxu0 %v3288
    %5031 = vmatpush1.msra.mxu0 %v3287
    %5032 = vmatprep.subr.mxu0 %v3304
    %5033 = vmatpush1.msra.mxu0 %v3303
    %5034 = vmatprep.subr.mxu0 %v3320
    %5035 = vmatpush1.msra.mxu0 %v3319
    %5036 = vmatprep.subr.mxu0 %v3336
    %5037 = vmatpush1.msra.mxu0 %v3335
    %5038 = vmatprep.mubr.f32.mxu0 %v1292
    %5039 = vmatmul.mubr.f32.gmra.mrb[0].mxu0 %v1291
    %v5040 = vpop.f32.mrb[0].mxu0
    %v5041 = vadd.f32 %v4970, %v5040
    %v5042 = vpop.f32.mrb[0].mxu0
    %v5043 = vadd.f32 %v4972, %v5042
    %5044 = vdwg.mxu0
    %5045 = vmatprep.subr.mxu0 %v1306
    %5046 = vmatpush1.msra.mxu0 %v1305
    %5047 = vmatprep.subr.mxu0 %v1322
    %5048 = vmatpush1.msra.mxu0 %v1321
    %5049 = vmatprep.subr.mxu0 %v1338
    %5050 = vmatpush1.msra.mxu0 %v1337
    %5051 = vmatprep.subr.mxu0 %v1354
    %5052 = vmatpush1.msra.mxu0 %v1353
    %5053 = vmatprep.subr.mxu0 %v1370
    %5054 = vmatpush1.msra.mxu0 %v1369
    %5055 = vmatprep.subr.mxu0 %v1386
    %5056 = vmatpush1.msra.mxu0 %v1385
    %5057 = vmatprep.subr.mxu0 %v1402
    %5058 = vmatpush1.msra.mxu0 %v1401
    %5059 = vmatprep.subr.mxu0 %v1418
    %5060 = vmatpush1.msra.mxu0 %v1417
    %5061 = vmatprep.subr.mxu0 %v1434
    %5062 = vmatpush1.msra.mxu0 %v1433
    %5063 = vmatprep.subr.mxu0 %v1450
    %5064 = vmatpush1.msra.mxu0 %v1449
    %5065 = vmatprep.subr.mxu0 %v1466
    %5066 = vmatpush1.msra.mxu0 %v1465
    %5067 = vmatprep.subr.mxu0 %v1482
    %5068 = vmatpush1.msra.mxu0 %v1481
    %5069 = vmatprep.subr.mxu0 %v1498
    %5070 = vmatpush1.msra.mxu0 %v1497
    %5071 = vmatprep.subr.mxu0 %v1514
    %5072 = vmatpush1.msra.mxu0 %v1513
    %5073 = vmatprep.subr.mxu0 %v1530
    %5074 = vmatpush1.msra.mxu0 %v1529
    %5075 = vmatprep.subr.mxu0 %v1546
    %5076 = vmatpush1.msra.mxu0 %v1545
    %5077 = vmatprep.subr.mxu0 %v1562
    %5078 = vmatpush1.msra.mxu0 %v1561
    %5079 = vmatprep.subr.mxu0 %v1578
    %5080 = vmatpush1.msra.mxu0 %v1577
    %5081 = vmatprep.subr.mxu0 %v1594
    %5082 = vmatpush1.msra.mxu0 %v1593
    %5083 = vmatprep.subr.mxu0 %v1610
    %5084 = vmatpush1.msra.mxu0 %v1609
    %5085 = vmatprep.subr.mxu0 %v1626
    %5086 = vmatpush1.msra.mxu0 %v1625
    %5087 = vmatprep.subr.mxu0 %v1642
    %5088 = vmatpush1.msra.mxu0 %v1641
    %5089 = vmatprep.subr.mxu0 %v1658
    %5090 = vmatpush1.msra.mxu0 %v1657
    %5091 = vmatprep.subr.mxu0 %v1674
    %5092 = vmatpush1.msra.mxu0 %v1673
    %5093 = vmatprep.subr.mxu0 %v1690
    %5094 = vmatpush1.msra.mxu0 %v1689
    %5095 = vmatprep.subr.mxu0 %v1706
    %5096 = vmatpush1.msra.mxu0 %v1705
    %5097 = vmatprep.subr.mxu0 %v1722
    %5098 = vmatpush1.msra.mxu0 %v1721
    %5099 = vmatprep.subr.mxu0 %v1738
    %5100 = vmatpush1.msra.mxu0 %v1737
    %5101 = vmatprep.subr.mxu0 %v1754
    %5102 = vmatpush1.msra.mxu0 %v1753
    %5103 = vmatprep.subr.mxu0 %v1770
    %5104 = vmatpush1.msra.mxu0 %v1769
    %5105 = vmatprep.subr.mxu0 %v1786
    %5106 = vmatpush1.msra.mxu0 %v1785
    %5107 = vmatprep.subr.mxu0 %v1802
    %5108 = vmatpush1.msra.mxu0 %v1801
    %5109 = vmatprep.mubr.f32.mxu0 %v1286
    %5110 = vmatmul.mubr.f32.gmra.mrb[0].mxu0 %v1285
    %v5111 = vpop.f32.mrb[0].mxu0
    %v5112 = vadd.f32 0.0, %v5111
    %v5113 = vpop.f32.mrb[0].mxu0
    %v5114 = vadd.f32 0.0, %v5113
    %5115 = vdwg.mxu0
    %5116 = vmatprep.subr.mxu0 %v1818
    %5117 = vmatpush1.msra.mxu0 %v1817
    %5118 = vmatprep.subr.mxu0 %v1834
    %5119 = vmatpush1.msra.mxu0 %v1833
    %5120 = vmatprep.subr.mxu0 %v1850
    %5121 = vmatpush1.msra.mxu0 %v1849
    %5122 = vmatprep.subr.mxu0 %v1866
    %5123 = vmatpush1.msra.mxu0 %v1865
    %5124 = vmatprep.subr.mxu0 %v1882
    %5125 = vmatpush1.msra.mxu0 %v1881
    %5126 = vmatprep.subr.mxu0 %v1898
    %5127 = vmatpush1.msra.mxu0 %v1897
    %5128 = vmatprep.subr.mxu0 %v1914
    %5129 = vmatpush1.msra.mxu0 %v1913
    %5130 = vmatprep.subr.mxu0 %v1930
    %5131 = vmatpush1.msra.mxu0 %v1929
    %5132 = vmatprep.subr.mxu0 %v1946
    %5133 = vmatpush1.msra.mxu0 %v1945
    %5134 = vmatprep.subr.mxu0 %v1962
    %5135 = vmatpush1.msra.mxu0 %v1961
    %5136 = vmatprep.subr.mxu0 %v1978
    %5137 = vmatpush1.msra.mxu0 %v1977
    %5138 = vmatprep.subr.mxu0 %v1994
    %5139 = vmatpush1.msra.mxu0 %v1993
    %5140 = vmatprep.subr.mxu0 %v2010
    %5141 = vmatpush1.msra.mxu0 %v2009
    %5142 = vmatprep.subr.mxu0 %v2026
    %5143 = vmatpush1.msra.mxu0 %v2025
    %5144 = vmatprep.subr.mxu0 %v2042
    %5145 = vmatpush1.msra.mxu0 %v2041
    %5146 = vmatprep.subr.mxu0 %v2058
    %5147 = vmatpush1.msra.mxu0 %v2057
    %5148 = vmatprep.subr.mxu0 %v2074
    %5149 = vmatpush1.msra.mxu0 %v2073
    %5150 = vmatprep.subr.mxu0 %v2090
    %5151 = vmatpush1.msra.mxu0 %v2089
    %5152 = vmatprep.subr.mxu0 %v2106
    %5153 = vmatpush1.msra.mxu0 %v2105
    %5154 = vmatprep.subr.mxu0 %v2122
    %5155 = vmatpush1.msra.mxu0 %v2121
    %5156 = vmatprep.subr.mxu0 %v2138
    %5157 = vmatpush1.msra.mxu0 %v2137
    %5158 = vmatprep.subr.mxu0 %v2154
    %5159 = vmatpush1.msra.mxu0 %v2153
    %5160 = vmatprep.subr.mxu0 %v2170
    %5161 = vmatpush1.msra.mxu0 %v2169
    %5162 = vmatprep.subr.mxu0 %v2186
    %5163 = vmatpush1.msra.mxu0 %v2185
    %5164 = vmatprep.subr.mxu0 %v2202
    %5165 = vmatpush1.msra.mxu0 %v2201
    %5166 = vmatprep.subr.mxu0 %v2218
    %5167 = vmatpush1.msra.mxu0 %v2217
    %5168 = vmatprep.subr.mxu0 %v2234
    %5169 = vmatpush1.msra.mxu0 %v2233
    %5170 = vmatprep.subr.mxu0 %v2250
    %5171 = vmatpush1.msra.mxu0 %v2249
    %5172 = vmatprep.subr.mxu0 %v2266
    %5173 = vmatpush1.msra.mxu0 %v2265
    %5174 = vmatprep.subr.mxu0 %v2282
    %5175 = vmatpush1.msra.mxu0 %v2281
    %5176 = vmatprep.subr.mxu0 %v2298
    %5177 = vmatpush1.msra.mxu0 %v2297
    %5178 = vmatprep.subr.mxu0 %v2314
    %5179 = vmatpush1.msra.mxu0 %v2313
    %5180 = vmatprep.mubr.f32.mxu0 %v1288
    %5181 = vmatmul.mubr.f32.gmra.mrb[0].mxu0 %v1287
    %v5182 = vpop.f32.mrb[0].mxu0
    %v5183 = vadd.f32 %v5112, %v5182
    %v5184 = vpop.f32.mrb[0].mxu0
    %v5185 = vadd.f32 %v5114, %v5184
    %5186 = vdwg.mxu0
    %5187 = vmatprep.subr.mxu0 %v2330
    %5188 = vmatpush1.msra.mxu0 %v2329
    %5189 = vmatprep.subr.mxu0 %v2346
    %5190 = vmatpush1.msra.mxu0 %v2345
    %5191 = vmatprep.subr.mxu0 %v2362
    %5192 = vmatpush1.msra.mxu0 %v2361
    %5193 = vmatprep.subr.mxu0 %v2378
    %5194 = vmatpush1.msra.mxu0 %v2377
    %5195 = vmatprep.subr.mxu0 %v2394
    %5196 = vmatpush1.msra.mxu0 %v2393
    %5197 = vmatprep.subr.mxu0 %v2410
    %5198 = vmatpush1.msra.mxu0 %v2409
    %5199 = vmatprep.subr.mxu0 %v2426
    %5200 = vmatpush1.msra.mxu0 %v2425
    %5201 = vmatprep.subr.mxu0 %v2442
    %5202 = vmatpush1.msra.mxu0 %v2441
    %5203 = vmatprep.subr.mxu0 %v2458
    %5204 = vmatpush1.msra.mxu0 %v2457
    %5205 = vmatprep.subr.mxu0 %v2474
    %5206 = vmatpush1.msra.mxu0 %v2473
    %5207 = vmatprep.subr.mxu0 %v2490
    %5208 = vmatpush1.msra.mxu0 %v2489
    %5209 = vmatprep.subr.mxu0 %v2506
    %5210 = vmatpush1.msra.mxu0 %v2505
    %5211 = vmatprep.subr.mxu0 %v2522
    %5212 = vmatpush1.msra.mxu0 %v2521
    %5213 = vmatprep.subr.mxu0 %v2538
    %5214 = vmatpush1.msra.mxu0 %v2537
    %5215 = vmatprep.subr.mxu0 %v2554
    %5216 = vmatpush1.msra.mxu0 %v2553
    %5217 = vmatprep.subr.mxu0 %v2570
    %5218 = vmatpush1.msra.mxu0 %v2569
    %5219 = vmatprep.subr.mxu0 %v2586
    %5220 = vmatpush1.msra.mxu0 %v2585
    %5221 = vmatprep.subr.mxu0 %v2602
    %5222 = vmatpush1.msra.mxu0 %v2601
    %5223 = vmatprep.subr.mxu0 %v2618
    %5224 = vmatpush1.msra.mxu0 %v2617
    %5225 = vmatprep.subr.mxu0 %v2634
    %5226 = vmatpush1.msra.mxu0 %v2633
    %5227 = vmatprep.subr.mxu0 %v2650
    %5228 = vmatpush1.msra.mxu0 %v2649
    %5229 = vmatprep.subr.mxu0 %v2666
    %5230 = vmatpush1.msra.mxu0 %v2665
    %5231 = vmatprep.subr.mxu0 %v2682
    %5232 = vmatpush1.msra.mxu0 %v2681
    %5233 = vmatprep.subr.mxu0 %v2698
    %5234 = vmatpush1.msra.mxu0 %v2697
    %5235 = vmatprep.subr.mxu0 %v2714
    %5236 = vmatpush1.msra.mxu0 %v2713
    %5237 = vmatprep.subr.mxu0 %v2730
    %5238 = vmatpush1.msra.mxu0 %v2729
    %5239 = vmatprep.subr.mxu0 %v2746
    %5240 = vmatpush1.msra.mxu0 %v2745
    %5241 = vmatprep.subr.mxu0 %v2762
    %5242 = vmatpush1.msra.mxu0 %v2761
    %5243 = vmatprep.subr.mxu0 %v2778
    %5244 = vmatpush1.msra.mxu0 %v2777
    %5245 = vmatprep.subr.mxu0 %v2794
    %5246 = vmatpush1.msra.mxu0 %v2793
    %5247 = vmatprep.subr.mxu0 %v2810
    %5248 = vmatpush1.msra.mxu0 %v2809
    %5249 = vmatprep.subr.mxu0 %v2826
    %5250 = vmatpush1.msra.mxu0 %v2825
    %5251 = vmatprep.mubr.f32.mxu0 %v1290
    %5252 = vmatmul.mubr.f32.gmra.mrb[0].mxu0 %v1289
    %v5253 = vpop.f32.mrb[0].mxu0
    %v5254 = vadd.f32 %v5183, %v5253
    %v5255 = vpop.f32.mrb[0].mxu0
    %v5256 = vadd.f32 %v5185, %v5255
    %5257 = vdwg.mxu0
    %5258 = vmatprep.subr.mxu0 %v2842
    %5259 = vmatpush1.msra.mxu0 %v2841
    %5260 = vmatprep.subr.mxu0 %v2858
    %5261 = vmatpush1.msra.mxu0 %v2857
    %5262 = vmatprep.subr.mxu0 %v2874
    %5263 = vmatpush1.msra.mxu0 %v2873
    %5264 = vmatprep.subr.mxu0 %v2890
    %5265 = vmatpush1.msra.mxu0 %v2889
    %5266 = vmatprep.subr.mxu0 %v2906
    %5267 = vmatpush1.msra.mxu0 %v2905
    %5268 = vmatprep.subr.mxu0 %v2922
    %5269 = vmatpush1.msra.mxu0 %v2921
    %5270 = vmatprep.subr.mxu0 %v2938
    %5271 = vmatpush1.msra.mxu0 %v2937
    %5272 = vmatprep.subr.mxu0 %v2954
    %5273 = vmatpush1.msra.mxu0 %v2953
    %5274 = vmatprep.subr.mxu0 %v2970
    %5275 = vmatpush1.msra.mxu0 %v2969
    %5276 = vmatprep.subr.mxu0 %v2986
    %5277 = vmatpush1.msra.mxu0 %v2985
    %5278 = vmatprep.subr.mxu0 %v3002
    %5279 = vmatpush1.msra.mxu0 %v3001
    %5280 = vmatprep.subr.mxu0 %v3018
    %5281 = vmatpush1.msra.mxu0 %v3017
    %5282 = vmatprep.subr.mxu0 %v3034
    %5283 = vmatpush1.msra.mxu0 %v3033
    %5284 = vmatprep.subr.mxu0 %v3050
    %5285 = vmatpush1.msra.mxu0 %v3049
    %5286 = vmatprep.subr.mxu0 %v3066
    %5287 = vmatpush1.msra.mxu0 %v3065
    %5288 = vmatprep.subr.mxu0 %v3082
    %5289 = vmatpush1.msra.mxu0 %v3081
    %5290 = vmatprep.subr.mxu0 %v3098
    %5291 = vmatpush1.msra.mxu0 %v3097
    %5292 = vmatprep.subr.mxu0 %v3114
    %5293 = vmatpush1.msra.mxu0 %v3113
    %5294 = vmatprep.subr.mxu0 %v3130
    %5295 = vmatpush1.msra.mxu0 %v3129
    %5296 = vmatprep.subr.mxu0 %v3146
    %5297 = vmatpush1.msra.mxu0 %v3145
    %5298 = vmatprep.subr.mxu0 %v3162
    %5299 = vmatpush1.msra.mxu0 %v3161
    %5300 = vmatprep.subr.mxu0 %v3178
    %5301 = vmatpush1.msra.mxu0 %v3177
    %5302 = vmatprep.subr.mxu0 %v3194
    %5303 = vmatpush1.msra.mxu0 %v3193
    %5304 = vmatprep.subr.mxu0 %v3210
    %5305 = vmatpush1.msra.mxu0 %v3209
    %5306 = vmatprep.subr.mxu0 %v3226
    %5307 = vmatpush1.msra.mxu0 %v3225
    %5308 = vmatprep.subr.mxu0 %v3242
    %5309 = vmatpush1.msra.mxu0 %v3241
    %5310 = vmatprep.subr.mxu0 %v3258
    %5311 = vmatpush1.msra.mxu0 %v3257
    %5312 = vmatprep.subr.mxu0 %v3274
    %5313 = vmatpush1.msra.mxu0 %v3273
    %5314 = vmatprep.subr.mxu0 %v3290
    %5315 = vmatpush1.msra.mxu0 %v3289
    %5316 = vmatprep.subr.mxu0 %v3306
    %5317 = vmatpush1.msra.mxu0 %v3305
    %5318 = vmatprep.subr.mxu0 %v3322
    %5319 = vmatpush1.msra.mxu0 %v3321
    %5320 = vmatprep.subr.mxu0 %v3338
    %5321 = vmatpush1.msra.mxu0 %v3337
    %5322 = vmatprep.mubr.f32.mxu0 %v1292
    %5323 = vmatmul.mubr.f32.gmra.mrb[0].mxu0 %v1291
    %v5324 = vpop.f32.mrb[0].mxu0
    %v5325 = vadd.f32 %v5254, %v5324
    %v5326 = vpop.f32.mrb[0].mxu0
    %v5327 = vadd.f32 %v5256, %v5326
    %5328 = vdwg.mxu0
    %5329 = vmatprep.subr.mxu0 %v1308
    %5330 = vmatpush1.msra.mxu0 %v1307
    %5331 = vmatprep.subr.mxu0 %v1324
    %5332 = vmatpush1.msra.mxu0 %v1323
    %5333 = vmatprep.subr.mxu0 %v1340
    %5334 = vmatpush1.msra.mxu0 %v1339
    %5335 = vmatprep.subr.mxu0 %v1356
    %5336 = vmatpush1.msra.mxu0 %v1355
    %5337 = vmatprep.subr.mxu0 %v1372
    %5338 = vmatpush1.msra.mxu0 %v1371
    %5339 = vmatprep.subr.mxu0 %v1388
    %5340 = vmatpush1.msra.mxu0 %v1387
    %5341 = vmatprep.subr.mxu0 %v1404
    %5342 = vmatpush1.msra.mxu0 %v1403
    %5343 = vmatprep.subr.mxu0 %v1420
    %5344 = vmatpush1.msra.mxu0 %v1419
    %5345 = vmatprep.subr.mxu0 %v1436
    %5346 = vmatpush1.msra.mxu0 %v1435
    %5347 = vmatprep.subr.mxu0 %v1452
    %5348 = vmatpush1.msra.mxu0 %v1451
    %5349 = vmatprep.subr.mxu0 %v1468
    %5350 = vmatpush1.msra.mxu0 %v1467
    %5351 = vmatprep.subr.mxu0 %v1484
    %5352 = vmatpush1.msra.mxu0 %v1483
    %5353 = vmatprep.subr.mxu0 %v1500
    %5354 = vmatpush1.msra.mxu0 %v1499
    %5355 = vmatprep.subr.mxu0 %v1516
    %5356 = vmatpush1.msra.mxu0 %v1515
    %5357 = vmatprep.subr.mxu0 %v1532
    %5358 = vmatpush1.msra.mxu0 %v1531
    %5359 = vmatprep.subr.mxu0 %v1548
    %5360 = vmatpush1.msra.mxu0 %v1547
    %5361 = vmatprep.subr.mxu0 %v1564
    %5362 = vmatpush1.msra.mxu0 %v1563
    %5363 = vmatprep.subr.mxu0 %v1580
    %5364 = vmatpush1.msra.mxu0 %v1579
    %5365 = vmatprep.subr.mxu0 %v1596
    %5366 = vmatpush1.msra.mxu0 %v1595
    %5367 = vmatprep.subr.mxu0 %v1612
    %5368 = vmatpush1.msra.mxu0 %v1611
    %5369 = vmatprep.subr.mxu0 %v1628
    %5370 = vmatpush1.msra.mxu0 %v1627
    %5371 = vmatprep.subr.mxu0 %v1644
    %5372 = vmatpush1.msra.mxu0 %v1643
    %5373 = vmatprep.subr.mxu0 %v1660
    %5374 = vmatpush1.msra.mxu0 %v1659
    %5375 = vmatprep.subr.mxu0 %v1676
    %5376 = vmatpush1.msra.mxu0 %v1675
    %5377 = vmatprep.subr.mxu0 %v1692
    %5378 = vmatpush1.msra.mxu0 %v1691
    %5379 = vmatprep.subr.mxu0 %v1708
    %5380 = vmatpush1.msra.mxu0 %v1707
    %5381 = vmatprep.subr.mxu0 %v1724
    %5382 = vmatpush1.msra.mxu0 %v1723
    %5383 = vmatprep.subr.mxu0 %v1740
    %5384 = vmatpush1.msra.mxu0 %v1739
    %5385 = vmatprep.subr.mxu0 %v1756
    %5386 = vmatpush1.msra.mxu0 %v1755
    %5387 = vmatprep.subr.mxu0 %v1772
    %5388 = vmatpush1.msra.mxu0 %v1771
    %5389 = vmatprep.subr.mxu0 %v1788
    %5390 = vmatpush1.msra.mxu0 %v1787
    %5391 = vmatprep.subr.mxu0 %v1804
    %5392 = vmatpush1.msra.mxu0 %v1803
    %5393 = vmatprep.mubr.f32.mxu0 %v1286
    %5394 = vmatmul.mubr.f32.gmra.mrb[0].mxu0 %v1285
    %v5395 = vpop.f32.mrb[0].mxu0
    %v5396 = vadd.f32 0.0, %v5395
    %v5397 = vpop.f32.mrb[0].mxu0
    %v5398 = vadd.f32 0.0, %v5397
    %5399 = vdwg.mxu0
    %5400 = vmatprep.subr.mxu0 %v1820
    %5401 = vmatpush1.msra.mxu0 %v1819
    %5402 = vmatprep.subr.mxu0 %v1836
    %5403 = vmatpush1.msra.mxu0 %v1835
    %5404 = vmatprep.subr.mxu0 %v1852
    %5405 = vmatpush1.msra.mxu0 %v1851
    %5406 = vmatprep.subr.mxu0 %v1868
    %5407 = vmatpush1.msra.mxu0 %v1867
    %5408 = vmatprep.subr.mxu0 %v1884
    %5409 = vmatpush1.msra.mxu0 %v1883
    %5410 = vmatprep.subr.mxu0 %v1900
    %5411 = vmatpush1.msra.mxu0 %v1899
    %5412 = vmatprep.subr.mxu0 %v1916
    %5413 = vmatpush1.msra.mxu0 %v1915
    %5414 = vmatprep.subr.mxu0 %v1932
    %5415 = vmatpush1.msra.mxu0 %v1931
    %5416 = vmatprep.subr.mxu0 %v1948
    %5417 = vmatpush1.msra.mxu0 %v1947
    %5418 = vmatprep.subr.mxu0 %v1964
    %5419 = vmatpush1.msra.mxu0 %v1963
    %5420 = vmatprep.subr.mxu0 %v1980
    %5421 = vmatpush1.msra.mxu0 %v1979
    %5422 = vmatprep.subr.mxu0 %v1996
    %5423 = vmatpush1.msra.mxu0 %v1995
    %5424 = vmatprep.subr.mxu0 %v2012
    %5425 = vmatpush1.msra.mxu0 %v2011
    %5426 = vmatprep.subr.mxu0 %v2028
    %5427 = vmatpush1.msra.mxu0 %v2027
    %5428 = vmatprep.subr.mxu0 %v2044
    %5429 = vmatpush1.msra.mxu0 %v2043
    %5430 = vmatprep.subr.mxu0 %v2060
    %5431 = vmatpush1.msra.mxu0 %v2059
    %5432 = vmatprep.subr.mxu0 %v2076
    %5433 = vmatpush1.msra.mxu0 %v2075
    %5434 = vmatprep.subr.mxu0 %v2092
    %5435 = vmatpush1.msra.mxu0 %v2091
    %5436 = vmatprep.subr.mxu0 %v2108
    %5437 = vmatpush1.msra.mxu0 %v2107
    %5438 = vmatprep.subr.mxu0 %v2124
    %5439 = vmatpush1.msra.mxu0 %v2123
    %5440 = vmatprep.subr.mxu0 %v2140
    %5441 = vmatpush1.msra.mxu0 %v2139
    %5442 = vmatprep.subr.mxu0 %v2156
    %5443 = vmatpush1.msra.mxu0 %v2155
    %5444 = vmatprep.subr.mxu0 %v2172
    %5445 = vmatpush1.msra.mxu0 %v2171
    %5446 = vmatprep.subr.mxu0 %v2188
    %5447 = vmatpush1.msra.mxu0 %v2187
    %5448 = vmatprep.subr.mxu0 %v2204
    %5449 = vmatpush1.msra.mxu0 %v2203
    %5450 = vmatprep.subr.mxu0 %v2220
    %5451 = vmatpush1.msra.mxu0 %v2219
    %5452 = vmatprep.subr.mxu0 %v2236
    %5453 = vmatpush1.msra.mxu0 %v2235
    %5454 = vmatprep.subr.mxu0 %v2252
    %5455 = vmatpush1.msra.mxu0 %v2251
    %5456 = vmatprep.subr.mxu0 %v2268
    %5457 = vmatpush1.msra.mxu0 %v2267
    %5458 = vmatprep.subr.mxu0 %v2284
    %5459 = vmatpush1.msra.mxu0 %v2283
    %5460 = vmatprep.subr.mxu0 %v2300
    %5461 = vmatpush1.msra.mxu0 %v2299
    %5462 = vmatprep.subr.mxu0 %v2316
    %5463 = vmatpush1.msra.mxu0 %v2315
    %5464 = vmatprep.mubr.f32.mxu0 %v1288
    %5465 = vmatmul.mubr.f32.gmra.mrb[0].mxu0 %v1287
    %v5466 = vpop.f32.mrb[0].mxu0
    %v5467 = vadd.f32 %v5396, %v5466
    %v5468 = vpop.f32.mrb[0].mxu0
    %v5469 = vadd.f32 %v5398, %v5468
    %5470 = vdwg.mxu0
    %5471 = vmatprep.subr.mxu0 %v2332
    %5472 = vmatpush1.msra.mxu0 %v2331
    %5473 = vmatprep.subr.mxu0 %v2348
    %5474 = vmatpush1.msra.mxu0 %v2347
    %5475 = vmatprep.subr.mxu0 %v2364
    %5476 = vmatpush1.msra.mxu0 %v2363
    %5477 = vmatprep.subr.mxu0 %v2380
    %5478 = vmatpush1.msra.mxu0 %v2379
    %5479 = vmatprep.subr.mxu0 %v2396
    %5480 = vmatpush1.msra.mxu0 %v2395
    %5481 = vmatprep.subr.mxu0 %v2412
    %5482 = vmatpush1.msra.mxu0 %v2411
    %5483 = vmatprep.subr.mxu0 %v2428
    %5484 = vmatpush1.msra.mxu0 %v2427
    %5485 = vmatprep.subr.mxu0 %v2444
    %5486 = vmatpush1.msra.mxu0 %v2443
    %5487 = vmatprep.subr.mxu0 %v2460
    %5488 = vmatpush1.msra.mxu0 %v2459
    %5489 = vmatprep.subr.mxu0 %v2476
    %5490 = vmatpush1.msra.mxu0 %v2475
    %5491 = vmatprep.subr.mxu0 %v2492
    %5492 = vmatpush1.msra.mxu0 %v2491
    %5493 = vmatprep.subr.mxu0 %v2508
    %5494 = vmatpush1.msra.mxu0 %v2507
    %5495 = vmatprep.subr.mxu0 %v2524
    %5496 = vmatpush1.msra.mxu0 %v2523
    %5497 = vmatprep.subr.mxu0 %v2540
    %5498 = vmatpush1.msra.mxu0 %v2539
    %5499 = vmatprep.subr.mxu0 %v2556
    %5500 = vmatpush1.msra.mxu0 %v2555
    %5501 = vmatprep.subr.mxu0 %v2572
    %5502 = vmatpush1.msra.mxu0 %v2571
    %5503 = vmatprep.subr.mxu0 %v2588
    %5504 = vmatpush1.msra.mxu0 %v2587
    %5505 = vmatprep.subr.mxu0 %v2604
    %5506 = vmatpush1.msra.mxu0 %v2603
    %5507 = vmatprep.subr.mxu0 %v2620
    %5508 = vmatpush1.msra.mxu0 %v2619
    %5509 = vmatprep.subr.mxu0 %v2636
    %5510 = vmatpush1.msra.mxu0 %v2635
    %5511 = vmatprep.subr.mxu0 %v2652
    %5512 = vmatpush1.msra.mxu0 %v2651
    %5513 = vmatprep.subr.mxu0 %v2668
    %5514 = vmatpush1.msra.mxu0 %v2667
    %5515 = vmatprep.subr.mxu0 %v2684
    %5516 = vmatpush1.msra.mxu0 %v2683
    %5517 = vmatprep.subr.mxu0 %v2700
    %5518 = vmatpush1.msra.mxu0 %v2699
    %5519 = vmatprep.subr.mxu0 %v2716
    %5520 = vmatpush1.msra.mxu0 %v2715
    %5521 = vmatprep.subr.mxu0 %v2732
    %5522 = vmatpush1.msra.mxu0 %v2731
    %5523 = vmatprep.subr.mxu0 %v2748
    %5524 = vmatpush1.msra.mxu0 %v2747
    %5525 = vmatprep.subr.mxu0 %v2764
    %5526 = vmatpush1.msra.mxu0 %v2763
    %5527 = vmatprep.subr.mxu0 %v2780
    %5528 = vmatpush1.msra.mxu0 %v2779
    %5529 = vmatprep.subr.mxu0 %v2796
    %5530 = vmatpush1.msra.mxu0 %v2795
    %5531 = vmatprep.subr.mxu0 %v2812
    %5532 = vmatpush1.msra.mxu0 %v2811
    %5533 = vmatprep.subr.mxu0 %v2828
    %5534 = vmatpush1.msra.mxu0 %v2827
    %5535 = vmatprep.mubr.f32.mxu0 %v1290
    %5536 = vmatmul.mubr.f32.gmra.mrb[0].mxu0 %v1289
    %v5537 = vpop.f32.mrb[0].mxu0
    %v5538 = vadd.f32 %v5467, %v5537
    %v5539 = vpop.f32.mrb[0].mxu0
    %v5540 = vadd.f32 %v5469, %v5539
    %5541 = vdwg.mxu0
    %5542 = vmatprep.subr.mxu0 %v2844
    %5543 = vmatpush1.msra.mxu0 %v2843
    %5544 = vmatprep.subr.mxu0 %v2860
    %5545 = vmatpush1.msra.mxu0 %v2859
    %5546 = vmatprep.subr.mxu0 %v2876
    %5547 = vmatpush1.msra.mxu0 %v2875
    %5548 = vmatprep.subr.mxu0 %v2892
    %5549 = vmatpush1.msra.mxu0 %v2891
    %5550 = vmatprep.subr.mxu0 %v2908
    %5551 = vmatpush1.msra.mxu0 %v2907
    %5552 = vmatprep.subr.mxu0 %v2924
    %5553 = vmatpush1.msra.mxu0 %v2923
    %5554 = vmatprep.subr.mxu0 %v2940
    %5555 = vmatpush1.msra.mxu0 %v2939
    %5556 = vmatprep.subr.mxu0 %v2956
    %5557 = vmatpush1.msra.mxu0 %v2955
    %5558 = vmatprep.subr.mxu0 %v2972
    %5559 = vmatpush1.msra.mxu0 %v2971
    %5560 = vmatprep.subr.mxu0 %v2988
    %5561 = vmatpush1.msra.mxu0 %v2987
    %5562 = vmatprep.subr.mxu0 %v3004
    %5563 = vmatpush1.msra.mxu0 %v3003
    %5564 = vmatprep.subr.mxu0 %v3020
    %5565 = vmatpush1.msra.mxu0 %v3019
    %5566 = vmatprep.subr.mxu0 %v3036
    %5567 = vmatpush1.msra.mxu0 %v3035
    %5568 = vmatprep.subr.mxu0 %v3052
    %5569 = vmatpush1.msra.mxu0 %v3051
    %5570 = vmatprep.subr.mxu0 %v3068
    %5571 = vmatpush1.msra.mxu0 %v3067
    %5572 = vmatprep.subr.mxu0 %v3084
    %5573 = vmatpush1.msra.mxu0 %v3083
    %5574 = vmatprep.subr.mxu0 %v3100
    %5575 = vmatpush1.msra.mxu0 %v3099
    %5576 = vmatprep.subr.mxu0 %v3116
    %5577 = vmatpush1.msra.mxu0 %v3115
    %5578 = vmatprep.subr.mxu0 %v3132
    %5579 = vmatpush1.msra.mxu0 %v3131
    %5580 = vmatprep.subr.mxu0 %v3148
    %5581 = vmatpush1.msra.mxu0 %v3147
    %5582 = vmatprep.subr.mxu0 %v3164
    %5583 = vmatpush1.msra.mxu0 %v3163
    %5584 = vmatprep.subr.mxu0 %v3180
    %5585 = vmatpush1.msra.mxu0 %v3179
    %5586 = vmatprep.subr.mxu0 %v3196
    %5587 = vmatpush1.msra.mxu0 %v3195
    %5588 = vmatprep.subr.mxu0 %v3212
    %5589 = vmatpush1.msra.mxu0 %v3211
    %5590 = vmatprep.subr.mxu0 %v3228
    %5591 = vmatpush1.msra.mxu0 %v3227
    %5592 = vmatprep.subr.mxu0 %v3244
    %5593 = vmatpush1.msra.mxu0 %v3243
    %5594 = vmatprep.subr.mxu0 %v3260
    %5595 = vmatpush1.msra.mxu0 %v3259
    %5596 = vmatprep.subr.mxu0 %v3276
    %5597 = vmatpush1.msra.mxu0 %v3275
    %5598 = vmatprep.subr.mxu0 %v3292
    %5599 = vmatpush1.msra.mxu0 %v3291
    %5600 = vmatprep.subr.mxu0 %v3308
    %5601 = vmatpush1.msra.mxu0 %v3307
    %5602 = vmatprep.subr.mxu0 %v3324
    %5603 = vmatpush1.msra.mxu0 %v3323
    %5604 = vmatprep.subr.mxu0 %v3340
    %5605 = vmatpush1.msra.mxu0 %v3339
    %5606 = vmatprep.mubr.f32.mxu0 %v1292
    %5607 = vmatmul.mubr.f32.gmra.mrb[0].mxu0 %v1291
    %v5608 = vpop.f32.mrb[0].mxu0
    %v5609 = vadd.f32 %v5538, %v5608
    %v5610 = vpop.f32.mrb[0].mxu0
    %v5611 = vadd.f32 %v5540, %v5610
    %5612 = vdwg.mxu0
    %v5613 = vmax.f32 %v3621, %v4757
    %v5614 = vmax.f32 %v3623, %v4759
    %v5615 = vmax.f32 %v3905, %v5041
    %v5616 = vmax.f32 %v3907, %v5043
    %v5617 = vmax.f32 %v4189, %v5325
    %v5618 = vmax.f32 %v4191, %v5327
    %v5619 = vmax.f32 %v4473, %v5609
    %v5620 = vmax.f32 %v4475, %v5611
    %v5621 = vld [vmem:[#allocation10] sm:$0xff]
    %v5623 = vlaneseq
    %v5624 = vshrl.u32 %v5623, 7
    %v5625 = vsub.s32 0, %v5624
    %v5626 = vrot.slane %v5621, %v5625
    %v5627 = vlaneseq
    %v5628 = vshrl.u32 %v5627, 7
    %v5629 = vsub.s32 1, %v5628
    %v5630 = vrot.slane %v5621, %v5629
    %v5631 = vlaneseq
    %v5632 = vshrl.u32 %v5631, 7
    %v5633 = vsub.s32 2, %v5632
    %v5634 = vrot.slane %v5621, %v5633
    %v5635 = vlaneseq
    %v5636 = vshrl.u32 %v5635, 7
    %v5637 = vsub.s32 3, %v5636
    %v5638 = vrot.slane %v5621, %v5637
    %v5639 = vlaneseq
    %v5640 = vshrl.u32 %v5639, 7
    %v5641 = vsub.s32 4, %v5640
    %v5642 = vrot.slane %v5621, %v5641
    %v5643 = vlaneseq
    %v5644 = vshrl.u32 %v5643, 7
    %v5645 = vsub.s32 5, %v5644
    %v5646 = vrot.slane %v5621, %v5645
    %v5647 = vlaneseq
    %v5648 = vshrl.u32 %v5647, 7
    %v5649 = vsub.s32 6, %v5648
    %v5650 = vrot.slane %v5621, %v5649
    %v5651 = vlaneseq
    %v5652 = vshrl.u32 %v5651, 7
    %v5653 = vsub.s32 7, %v5652
    %v5654 = vrot.slane %v5621, %v5653
    %v5663 = vadd.f32 %v5613, %v5626
    %v5664 = vadd.f32 %v5614, %v5630
    %v5665 = vadd.f32 %v5615, %v5634
    %v5666 = vadd.f32 %v5616, %v5638
    %v5667 = vadd.f32 %v5617, %v5642
    %v5668 = vadd.f32 %v5618, %v5646
    %v5669 = vadd.f32 %v5619, %v5650
    %v5670 = vadd.f32 %v5620, %v5654
    %v5671 = vmax.f32 %v5663, 0.0
    %v5672 = vmax.f32 %v5664, 0.0
    %v5673 = vmax.f32 %v5665, 0.0
    %v5674 = vmax.f32 %v5666, 0.0
    %v5675 = vmax.f32 %v5667, 0.0
    %v5676 = vmax.f32 %v5668, 0.0
    %v5677 = vmax.f32 %v5669, 0.0
    %v5678 = vmax.f32 %v5670, 0.0
    %v5679 = vld [vmem:[#allocation11] sm:$0xff]
    %v5680 = vld [vmem:[#allocation11 + $0x8] sm:$0xff]
    %v5681 = vld [vmem:[#allocation11 + $0x10] sm:$0xff]
    %v5682 = vld [vmem:[#allocation11 + $0x18] sm:$0xff]
    %v5683 = vld [vmem:[#allocation11 + $0x20] sm:$0xff]
    %v5684 = vld [vmem:[#allocation11 + $0x28] sm:$0xff]
    %v5685 = vld [vmem:[#allocation11 + $0x30] sm:$0xff]
    %v5686 = vld [vmem:[#allocation11 + $0x38] sm:$0xff]
    %v5687 = vld [vmem:[#allocation11 + $0x40] sm:$0xff]
    %v5688 = vld [vmem:[#allocation11 + $0x48] sm:$0xff]
    %v5689 = vld [vmem:[#allocation11 + $0x50] sm:$0xff]
    %v5690 = vld [vmem:[#allocation11 + $0x58] sm:$0xff]
    %v5691 = vld [vmem:[#allocation11 + $0x60] sm:$0xff]
    %v5692 = vld [vmem:[#allocation11 + $0x68] sm:$0xff]
    %v5693 = vld [vmem:[#allocation11 + $0x70] sm:$0xff]
    %v5694 = vld [vmem:[#allocation11 + $0x78] sm:$0xff]
    %v5695 = vld [vmem:[#allocation11 + $0x80] sm:$0xff]
    %v5696 = vld [vmem:[#allocation11 + $0x88] sm:$0xff]
    %v5697 = vld [vmem:[#allocation11 + $0x90] sm:$0xff]
    %v5698 = vld [vmem:[#allocation11 + $0x98] sm:$0xff]
    %v5699 = vld [vmem:[#allocation11 + $0xa0] sm:$0xff]
    %v5700 = vld [vmem:[#allocation11 + $0xa8] sm:$0xff]
    %v5701 = vld [vmem:[#allocation11 + $0xb0] sm:$0xff]
    %v5702 = vld [vmem:[#allocation11 + $0xb8] sm:$0xff]
    %v5703 = vld [vmem:[#allocation11 + $0xc0] sm:$0xff]
    %v5704 = vld [vmem:[#allocation11 + $0xc8] sm:$0xff]
    %v5705 = vld [vmem:[#allocation11 + $0xd0] sm:$0xff]
    %v5706 = vld [vmem:[#allocation11 + $0xd8] sm:$0xff]
    %v5707 = vld [vmem:[#allocation11 + $0xe0] sm:$0xff]
    %v5708 = vld [vmem:[#allocation11 + $0xe8] sm:$0xff]
    %v5709 = vld [vmem:[#allocation11 + $0xf0] sm:$0xff]
    %v5710 = vld [vmem:[#allocation11 + $0xf8] sm:$0xff]
    %v5711 = vld [vmem:[#allocation11 + $0x100] sm:$0xff]
    %v5712 = vld [vmem:[#allocation11 + $0x108] sm:$0xff]
    %v5713 = vld [vmem:[#allocation11 + $0x110] sm:$0xff]
    %v5714 = vld [vmem:[#allocation11 + $0x118] sm:$0xff]
    %v5715 = vld [vmem:[#allocation11 + $0x120] sm:$0xff]
    %v5716 = vld [vmem:[#allocation11 + $0x128] sm:$0xff]
    %v5717 = vld [vmem:[#allocation11 + $0x130] sm:$0xff]
    %v5718 = vld [vmem:[#allocation11 + $0x138] sm:$0xff]
    %v5719 = vld [vmem:[#allocation11 + $0x140] sm:$0xff]
    %v5720 = vld [vmem:[#allocation11 + $0x148] sm:$0xff]
    %v5721 = vld [vmem:[#allocation11 + $0x150] sm:$0xff]
    %v5722 = vld [vmem:[#allocation11 + $0x158] sm:$0xff]
    %v5723 = vld [vmem:[#allocation11 + $0x160] sm:$0xff]
    %v5724 = vld [vmem:[#allocation11 + $0x168] sm:$0xff]
    %v5725 = vld [vmem:[#allocation11 + $0x170] sm:$0xff]
    %v5726 = vld [vmem:[#allocation11 + $0x178] sm:$0xff]
    %v5727 = vld [vmem:[#allocation11 + $0x180] sm:$0xff]
    %v5728 = vld [vmem:[#allocation11 + $0x188] sm:$0xff]
    %v5729 = vld [vmem:[#allocation11 + $0x190] sm:$0xff]
    %v5730 = vld [vmem:[#allocation11 + $0x198] sm:$0xff]
    %v5731 = vld [vmem:[#allocation11 + $0x1a0] sm:$0xff]
    %v5732 = vld [vmem:[#allocation11 + $0x1a8] sm:$0xff]
    %v5733 = vld [vmem:[#allocation11 + $0x1b0] sm:$0xff]
    %v5734 = vld [vmem:[#allocation11 + $0x1b8] sm:$0xff]
    %v5735 = vld [vmem:[#allocation11 + $0x1c0] sm:$0xff]
    %v5736 = vld [vmem:[#allocation11 + $0x1c8] sm:$0xff]
    %v5737 = vld [vmem:[#allocation11 + $0x1d0] sm:$0xff]
    %v5738 = vld [vmem:[#allocation11 + $0x1d8] sm:$0xff]
    %v5739 = vld [vmem:[#allocation11 + $0x1e0] sm:$0xff]
    %v5740 = vld [vmem:[#allocation11 + $0x1e8] sm:$0xff]
    %v5741 = vld [vmem:[#allocation11 + $0x1f0] sm:$0xff]
    %v5742 = vld [vmem:[#allocation11 + $0x1f8] sm:$0xff]
    %v5743 = vld [vmem:[#allocation11 + $0x200] sm:$0xff]
    %v5744 = vld [vmem:[#allocation11 + $0x208] sm:$0xff]
    %v5745 = vld [vmem:[#allocation11 + $0x210] sm:$0xff]
    %v5746 = vld [vmem:[#allocation11 + $0x218] sm:$0xff]
    %v5747 = vld [vmem:[#allocation11 + $0x220] sm:$0xff]
    %v5748 = vld [vmem:[#allocation11 + $0x228] sm:$0xff]
    %v5749 = vld [vmem:[#allocation11 + $0x230] sm:$0xff]
    %v5750 = vld [vmem:[#allocation11 + $0x238] sm:$0xff]
    %v5751 = vld [vmem:[#allocation11 + $0x240] sm:$0xff]
    %v5752 = vld [vmem:[#allocation11 + $0x248] sm:$0xff]
    %v5753 = vld [vmem:[#allocation11 + $0x250] sm:$0xff]
    %v5754 = vld [vmem:[#allocation11 + $0x258] sm:$0xff]
    %v5755 = vld [vmem:[#allocation11 + $0x260] sm:$0xff]
    %v5756 = vld [vmem:[#allocation11 + $0x268] sm:$0xff]
    %v5757 = vld [vmem:[#allocation11 + $0x270] sm:$0xff]
    %v5758 = vld [vmem:[#allocation11 + $0x278] sm:$0xff]
    %v5759 = vld [vmem:[#allocation11 + $0x280] sm:$0xff]
    %v5760 = vld [vmem:[#allocation11 + $0x288] sm:$0xff]
    %v5761 = vld [vmem:[#allocation11 + $0x290] sm:$0xff]
    %v5762 = vld [vmem:[#allocation11 + $0x298] sm:$0xff]
    %v5763 = vld [vmem:[#allocation11 + $0x2a0] sm:$0xff]
    %v5764 = vld [vmem:[#allocation11 + $0x2a8] sm:$0xff]
    %v5765 = vld [vmem:[#allocation11 + $0x2b0] sm:$0xff]
    %v5766 = vld [vmem:[#allocation11 + $0x2b8] sm:$0xff]
    %v5767 = vld [vmem:[#allocation11 + $0x2c0] sm:$0xff]
    %v5768 = vld [vmem:[#allocation11 + $0x2c8] sm:$0xff]
    %v5769 = vld [vmem:[#allocation11 + $0x2d0] sm:$0xff]
    %v5770 = vld [vmem:[#allocation11 + $0x2d8] sm:$0xff]
    %v5771 = vld [vmem:[#allocation11 + $0x2e0] sm:$0xff]
    %v5772 = vld [vmem:[#allocation11 + $0x2e8] sm:$0xff]
    %v5773 = vld [vmem:[#allocation11 + $0x2f0] sm:$0xff]
    %v5774 = vld [vmem:[#allocation11 + $0x2f8] sm:$0xff]
    %v5775 = vld [vmem:[#allocation11 + $0x300] sm:$0xff]
    %v5776 = vld [vmem:[#allocation11 + $0x308] sm:$0xff]
    %v5777 = vld [vmem:[#allocation11 + $0x310] sm:$0xff]
    %v5778 = vld [vmem:[#allocation11 + $0x318] sm:$0xff]
    %v5779 = vld [vmem:[#allocation11 + $0x320] sm:$0xff]
    %v5780 = vld [vmem:[#allocation11 + $0x328] sm:$0xff]
    %v5781 = vld [vmem:[#allocation11 + $0x330] sm:$0xff]
    %v5782 = vld [vmem:[#allocation11 + $0x338] sm:$0xff]
    %v5783 = vld [vmem:[#allocation11 + $0x340] sm:$0xff]
    %v5784 = vld [vmem:[#allocation11 + $0x348] sm:$0xff]
    %v5785 = vld [vmem:[#allocation11 + $0x350] sm:$0xff]
    %v5786 = vld [vmem:[#allocation11 + $0x358] sm:$0xff]
    %v5787 = vld [vmem:[#allocation11 + $0x360] sm:$0xff]
    %v5788 = vld [vmem:[#allocation11 + $0x368] sm:$0xff]
    %v5789 = vld [vmem:[#allocation11 + $0x370] sm:$0xff]
    %v5790 = vld [vmem:[#allocation11 + $0x378] sm:$0xff]
    %v5791 = vld [vmem:[#allocation11 + $0x380] sm:$0xff]
    %v5792 = vld [vmem:[#allocation11 + $0x388] sm:$0xff]
    %v5793 = vld [vmem:[#allocation11 + $0x390] sm:$0xff]
    %v5794 = vld [vmem:[#allocation11 + $0x398] sm:$0xff]
    %v5795 = vld [vmem:[#allocation11 + $0x3a0] sm:$0xff]
    %v5796 = vld [vmem:[#allocation11 + $0x3a8] sm:$0xff]
    %v5797 = vld [vmem:[#allocation11 + $0x3b0] sm:$0xff]
    %v5798 = vld [vmem:[#allocation11 + $0x3b8] sm:$0xff]
    %v5799 = vld [vmem:[#allocation11 + $0x3c0] sm:$0xff]
    %v5800 = vld [vmem:[#allocation11 + $0x3c8] sm:$0xff]
    %v5801 = vld [vmem:[#allocation11 + $0x3d0] sm:$0xff]
    %v5802 = vld [vmem:[#allocation11 + $0x3d8] sm:$0xff]
    %v5803 = vld [vmem:[#allocation11 + $0x3e0] sm:$0xff]
    %v5804 = vld [vmem:[#allocation11 + $0x3e8] sm:$0xff]
    %v5805 = vld [vmem:[#allocation11 + $0x3f0] sm:$0xff]
    %v5806 = vld [vmem:[#allocation11 + $0x3f8] sm:$0xff]
    %v5807 = vld [vmem:[#allocation13] sm:$0x1]
    %v5809 = vlaneseq
    %v5810 = vshrl.u32 %v5809, 7
    %v5811 = vsub.s32 0, %v5810
    %v5812 = vrot.slane %v5807, %v5811
    %5814 = vmatprep.subr.mxu0 0.0
    %5815 = vmatpush1.msra.mxu0 %v5679
    %5816 = vmatprep.subr.mxu0 0.0
    %5817 = vmatpush1.msra.mxu0 %v5680
    %5818 = vmatprep.subr.mxu0 0.0
    %5819 = vmatpush1.msra.mxu0 %v5681
    %5820 = vmatprep.subr.mxu0 0.0
    %5821 = vmatpush1.msra.mxu0 %v5682
    %5822 = vmatprep.subr.mxu0 0.0
    %5823 = vmatpush1.msra.mxu0 %v5683
    %5824 = vmatprep.subr.mxu0 0.0
    %5825 = vmatpush1.msra.mxu0 %v5684
    %5826 = vmatprep.subr.mxu0 0.0
    %5827 = vmatpush1.msra.mxu0 %v5685
    %5828 = vmatprep.subr.mxu0 0.0
    %5829 = vmatpush1.msra.mxu0 %v5686
    %5830 = vmatprep.subr.mxu0 0.0
    %5831 = vmatpush1.msra.mxu0 %v5687
    %5832 = vmatprep.subr.mxu0 0.0
    %5833 = vmatpush1.msra.mxu0 %v5688
    %5834 = vmatprep.subr.mxu0 0.0
    %5835 = vmatpush1.msra.mxu0 %v5689
    %5836 = vmatprep.subr.mxu0 0.0
    %5837 = vmatpush1.msra.mxu0 %v5690
    %5838 = vmatprep.subr.mxu0 0.0
    %5839 = vmatpush1.msra.mxu0 %v5691
    %5840 = vmatprep.subr.mxu0 0.0
    %5841 = vmatpush1.msra.mxu0 %v5692
    %5842 = vmatprep.subr.mxu0 0.0
    %5843 = vmatpush1.msra.mxu0 %v5693
    %5844 = vmatprep.subr.mxu0 0.0
    %5845 = vmatpush1.msra.mxu0 %v5694
    %5846 = vmatprep.subr.mxu0 0.0
    %5847 = vmatpush1.msra.mxu0 %v5695
    %5848 = vmatprep.subr.mxu0 0.0
    %5849 = vmatpush1.msra.mxu0 %v5696
    %5850 = vmatprep.subr.mxu0 0.0
    %5851 = vmatpush1.msra.mxu0 %v5697
    %5852 = vmatprep.subr.mxu0 0.0
    %5853 = vmatpush1.msra.mxu0 %v5698
    %5854 = vmatprep.subr.mxu0 0.0
    %5855 = vmatpush1.msra.mxu0 %v5699
    %5856 = vmatprep.subr.mxu0 0.0
    %5857 = vmatpush1.msra.mxu0 %v5700
    %5858 = vmatprep.subr.mxu0 0.0
    %5859 = vmatpush1.msra.mxu0 %v5701
    %5860 = vmatprep.subr.mxu0 0.0
    %5861 = vmatpush1.msra.mxu0 %v5702
    %5862 = vmatprep.subr.mxu0 0.0
    %5863 = vmatpush1.msra.mxu0 %v5703
    %5864 = vmatprep.subr.mxu0 0.0
    %5865 = vmatpush1.msra.mxu0 %v5704
    %5866 = vmatprep.subr.mxu0 0.0
    %5867 = vmatpush1.msra.mxu0 %v5705
    %5868 = vmatprep.subr.mxu0 0.0
    %5869 = vmatpush1.msra.mxu0 %v5706
    %5870 = vmatprep.subr.mxu0 0.0
    %5871 = vmatpush1.msra.mxu0 %v5707
    %5872 = vmatprep.subr.mxu0 0.0
    %5873 = vmatpush1.msra.mxu0 %v5708
    %5874 = vmatprep.subr.mxu0 0.0
    %5875 = vmatpush1.msra.mxu0 %v5709
    %5876 = vmatprep.subr.mxu0 0.0
    %5877 = vmatpush1.msra.mxu0 %v5710
    %5878 = vmatprep.mubr.f32.mxu0 %v5672
    %5879 = vmatmul.mubr.f32.gmra.mrb[0].mxu0 %v5671
    %v5880 = vpop.f32.mrb[0].mxu0
    %v5881 = vadd.f32 %v5812, %v5880
    %v5882 = vpop.f32.mrb[0].mxu0
    %5883 = vdwg.mxu0
    %5884 = vmatprep.subr.mxu0 0.0
    %5885 = vmatpush1.msra.mxu0 %v5711
    %5886 = vmatprep.subr.mxu0 0.0
    %5887 = vmatpush1.msra.mxu0 %v5712
    %5888 = vmatprep.subr.mxu0 0.0
    %5889 = vmatpush1.msra.mxu0 %v5713
    %5890 = vmatprep.subr.mxu0 0.0
    %5891 = vmatpush1.msra.mxu0 %v5714
    %5892 = vmatprep.subr.mxu0 0.0
    %5893 = vmatpush1.msra.mxu0 %v5715
    %5894 = vmatprep.subr.mxu0 0.0
    %5895 = vmatpush1.msra.mxu0 %v5716
    %5896 = vmatprep.subr.mxu0 0.0
    %5897 = vmatpush1.msra.mxu0 %v5717
    %5898 = vmatprep.subr.mxu0 0.0
    %5899 = vmatpush1.msra.mxu0 %v5718
    %5900 = vmatprep.subr.mxu0 0.0
    %5901 = vmatpush1.msra.mxu0 %v5719
    %5902 = vmatprep.subr.mxu0 0.0
    %5903 = vmatpush1.msra.mxu0 %v5720
    %5904 = vmatprep.subr.mxu0 0.0
    %5905 = vmatpush1.msra.mxu0 %v5721
    %5906 = vmatprep.subr.mxu0 0.0
    %5907 = vmatpush1.msra.mxu0 %v5722
    %5908 = vmatprep.subr.mxu0 0.0
    %5909 = vmatpush1.msra.mxu0 %v5723
    %5910 = vmatprep.subr.mxu0 0.0
    %5911 = vmatpush1.msra.mxu0 %v5724
    %5912 = vmatprep.subr.mxu0 0.0
    %5913 = vmatpush1.msra.mxu0 %v5725
    %5914 = vmatprep.subr.mxu0 0.0
    %5915 = vmatpush1.msra.mxu0 %v5726
    %5916 = vmatprep.subr.mxu0 0.0
    %5917 = vmatpush1.msra.mxu0 %v5727
    %5918 = vmatprep.subr.mxu0 0.0
    %5919 = vmatpush1.msra.mxu0 %v5728
    %5920 = vmatprep.subr.mxu0 0.0
    %5921 = vmatpush1.msra.mxu0 %v5729
    %5922 = vmatprep.subr.mxu0 0.0
    %5923 = vmatpush1.msra.mxu0 %v5730
    %5924 = vmatprep.subr.mxu0 0.0
    %5925 = vmatpush1.msra.mxu0 %v5731
    %5926 = vmatprep.subr.mxu0 0.0
    %5927 = vmatpush1.msra.mxu0 %v5732
    %5928 = vmatprep.subr.mxu0 0.0
    %5929 = vmatpush1.msra.mxu0 %v5733
    %5930 = vmatprep.subr.mxu0 0.0
    %5931 = vmatpush1.msra.mxu0 %v5734
    %5932 = vmatprep.subr.mxu0 0.0
    %5933 = vmatpush1.msra.mxu0 %v5735
    %5934 = vmatprep.subr.mxu0 0.0
    %5935 = vmatpush1.msra.mxu0 %v5736
    %5936 = vmatprep.subr.mxu0 0.0
    %5937 = vmatpush1.msra.mxu0 %v5737
    %5938 = vmatprep.subr.mxu0 0.0
    %5939 = vmatpush1.msra.mxu0 %v5738
    %5940 = vmatprep.subr.mxu0 0.0
    %5941 = vmatpush1.msra.mxu0 %v5739
    %5942 = vmatprep.subr.mxu0 0.0
    %5943 = vmatpush1.msra.mxu0 %v5740
    %5944 = vmatprep.subr.mxu0 0.0
    %5945 = vmatpush1.msra.mxu0 %v5741
    %5946 = vmatprep.subr.mxu0 0.0
    %5947 = vmatpush1.msra.mxu0 %v5742
    %5948 = vmatprep.mubr.f32.mxu0 %v5674
    %5949 = vmatmul.mubr.f32.gmra.mrb[0].mxu0 %v5673
    %v5950 = vpop.f32.mrb[0].mxu0
    %v5951 = vadd.f32 %v5881, %v5950
    %v5952 = vpop.f32.mrb[0].mxu0
    %5953 = vdwg.mxu0
    %5954 = vmatprep.subr.mxu0 0.0
    %5955 = vmatpush1.msra.mxu0 %v5743
    %5956 = vmatprep.subr.mxu0 0.0
    %5957 = vmatpush1.msra.mxu0 %v5744
    %5958 = vmatprep.subr.mxu0 0.0
    %5959 = vmatpush1.msra.mxu0 %v5745
    %5960 = vmatprep.subr.mxu0 0.0
    %5961 = vmatpush1.msra.mxu0 %v5746
    %5962 = vmatprep.subr.mxu0 0.0
    %5963 = vmatpush1.msra.mxu0 %v5747
    %5964 = vmatprep.subr.mxu0 0.0
    %5965 = vmatpush1.msra.mxu0 %v5748
    %5966 = vmatprep.subr.mxu0 0.0
    %5967 = vmatpush1.msra.mxu0 %v5749
    %5968 = vmatprep.subr.mxu0 0.0
    %5969 = vmatpush1.msra.mxu0 %v5750
    %5970 = vmatprep.subr.mxu0 0.0
    %5971 = vmatpush1.msra.mxu0 %v5751
    %5972 = vmatprep.subr.mxu0 0.0
    %5973 = vmatpush1.msra.mxu0 %v5752
    %5974 = vmatprep.subr.mxu0 0.0
    %5975 = vmatpush1.msra.mxu0 %v5753
    %5976 = vmatprep.subr.mxu0 0.0
    %5977 = vmatpush1.msra.mxu0 %v5754
    %5978 = vmatprep.subr.mxu0 0.0
    %5979 = vmatpush1.msra.mxu0 %v5755
    %5980 = vmatprep.subr.mxu0 0.0
    %5981 = vmatpush1.msra.mxu0 %v5756
    %5982 = vmatprep.subr.mxu0 0.0
    %5983 = vmatpush1.msra.mxu0 %v5757
    %5984 = vmatprep.subr.mxu0 0.0
    %5985 = vmatpush1.msra.mxu0 %v5758
    %5986 = vmatprep.subr.mxu0 0.0
    %5987 = vmatpush1.msra.mxu0 %v5759
    %5988 = vmatprep.subr.mxu0 0.0
    %5989 = vmatpush1.msra.mxu0 %v5760
    %5990 = vmatprep.subr.mxu0 0.0
    %5991 = vmatpush1.msra.mxu0 %v5761
    %5992 = vmatprep.subr.mxu0 0.0
    %5993 = vmatpush1.msra.mxu0 %v5762
    %5994 = vmatprep.subr.mxu0 0.0
    %5995 = vmatpush1.msra.mxu0 %v5763
    %5996 = vmatprep.subr.mxu0 0.0
    %5997 = vmatpush1.msra.mxu0 %v5764
    %5998 = vmatprep.subr.mxu0 0.0
    %5999 = vmatpush1.msra.mxu0 %v5765
    %6000 = vmatprep.subr.mxu0 0.0
    %6001 = vmatpush1.msra.mxu0 %v5766
    %6002 = vmatprep.subr.mxu0 0.0
    %6003 = vmatpush1.msra.mxu0 %v5767
    %6004 = vmatprep.subr.mxu0 0.0
    %6005 = vmatpush1.msra.mxu0 %v5768
    %6006 = vmatprep.subr.mxu0 0.0
    %6007 = vmatpush1.msra.mxu0 %v5769
    %6008 = vmatprep.subr.mxu0 0.0
    %6009 = vmatpush1.msra.mxu0 %v5770
    %6010 = vmatprep.subr.mxu0 0.0
    %6011 = vmatpush1.msra.mxu0 %v5771
    %6012 = vmatprep.subr.mxu0 0.0
    %6013 = vmatpush1.msra.mxu0 %v5772
    %6014 = vmatprep.subr.mxu0 0.0
    %6015 = vmatpush1.msra.mxu0 %v5773
    %6016 = vmatprep.subr.mxu0 0.0
    %6017 = vmatpush1.msra.mxu0 %v5774
    %6018 = vmatprep.mubr.f32.mxu0 %v5676
    %6019 = vmatmul.mubr.f32.gmra.mrb[0].mxu0 %v5675
    %v6020 = vpop.f32.mrb[0].mxu0
    %v6021 = vadd.f32 %v5951, %v6020
    %v6022 = vpop.f32.mrb[0].mxu0
    %6023 = vdwg.mxu0
    %6024 = vmatprep.subr.mxu0 0.0
    %6025 = vmatpush1.msra.mxu0 %v5775
    %6026 = vmatprep.subr.mxu0 0.0
    %6027 = vmatpush1.msra.mxu0 %v5776
    %6028 = vmatprep.subr.mxu0 0.0
    %6029 = vmatpush1.msra.mxu0 %v5777
    %6030 = vmatprep.subr.mxu0 0.0
    %6031 = vmatpush1.msra.mxu0 %v5778
    %6032 = vmatprep.subr.mxu0 0.0
    %6033 = vmatpush1.msra.mxu0 %v5779
    %6034 = vmatprep.subr.mxu0 0.0
    %6035 = vmatpush1.msra.mxu0 %v5780
    %6036 = vmatprep.subr.mxu0 0.0
    %6037 = vmatpush1.msra.mxu0 %v5781
    %6038 = vmatprep.subr.mxu0 0.0
    %6039 = vmatpush1.msra.mxu0 %v5782
    %6040 = vmatprep.subr.mxu0 0.0
    %6041 = vmatpush1.msra.mxu0 %v5783
    %6042 = vmatprep.subr.mxu0 0.0
    %6043 = vmatpush1.msra.mxu0 %v5784
    %6044 = vmatprep.subr.mxu0 0.0
    %6045 = vmatpush1.msra.mxu0 %v5785
    %6046 = vmatprep.subr.mxu0 0.0
    %6047 = vmatpush1.msra.mxu0 %v5786
    %6048 = vmatprep.subr.mxu0 0.0
    %6049 = vmatpush1.msra.mxu0 %v5787
    %6050 = vmatprep.subr.mxu0 0.0
    %6051 = vmatpush1.msra.mxu0 %v5788
    %6052 = vmatprep.subr.mxu0 0.0
    %6053 = vmatpush1.msra.mxu0 %v5789
    %6054 = vmatprep.subr.mxu0 0.0
    %6055 = vmatpush1.msra.mxu0 %v5790
    %6056 = vmatprep.subr.mxu0 0.0
    %6057 = vmatpush1.msra.mxu0 %v5791
    %6058 = vmatprep.subr.mxu0 0.0
    %6059 = vmatpush1.msra.mxu0 %v5792
    %6060 = vmatprep.subr.mxu0 0.0
    %6061 = vmatpush1.msra.mxu0 %v5793
    %6062 = vmatprep.subr.mxu0 0.0
    %6063 = vmatpush1.msra.mxu0 %v5794
    %6064 = vmatprep.subr.mxu0 0.0
    %6065 = vmatpush1.msra.mxu0 %v5795
    %6066 = vmatprep.subr.mxu0 0.0
    %6067 = vmatpush1.msra.mxu0 %v5796
    %6068 = vmatprep.subr.mxu0 0.0
    %6069 = vmatpush1.msra.mxu0 %v5797
    %6070 = vmatprep.subr.mxu0 0.0
    %6071 = vmatpush1.msra.mxu0 %v5798
    %6072 = vmatprep.subr.mxu0 0.0
    %6073 = vmatpush1.msra.mxu0 %v5799
    %6074 = vmatprep.subr.mxu0 0.0
    %6075 = vmatpush1.msra.mxu0 %v5800
    %6076 = vmatprep.subr.mxu0 0.0
    %6077 = vmatpush1.msra.mxu0 %v5801
    %6078 = vmatprep.subr.mxu0 0.0
    %6079 = vmatpush1.msra.mxu0 %v5802
    %6080 = vmatprep.subr.mxu0 0.0
    %6081 = vmatpush1.msra.mxu0 %v5803
    %6082 = vmatprep.subr.mxu0 0.0
    %6083 = vmatpush1.msra.mxu0 %v5804
    %6084 = vmatprep.subr.mxu0 0.0
    %6085 = vmatpush1.msra.mxu0 %v5805
    %6086 = vmatprep.subr.mxu0 0.0
    %6087 = vmatpush1.msra.mxu0 %v5806
    %6088 = vmatprep.mubr.f32.mxu0 %v5678
    %6089 = vmatmul.mubr.f32.gmra.mrb[0].mxu0 %v5677
    %v6090 = vpop.f32.mrb[0].mxu0
    %v6091 = vadd.f32 %v6021, %v6090
    %v6092 = vpop.f32.mrb[0].mxu0
    %6093 = vdwg.mxu0
    %v6094 = vmax.f32 %v6091, 0.0
    %v6095 = vld [vmem:[#allocation14] sm:$0xff]
    %v6096 = vld [vmem:[#allocation14 + $0x8] sm:$0xff]
    %v6097 = vld [vmem:[#allocation14 + $0x10] sm:$0xff]
    %v6098 = vld [vmem:[#allocation14 + $0x18] sm:$0xff]
    %v6099 = vld [vmem:[#allocation14 + $0x20] sm:$0xff]
    %v6100 = vld [vmem:[#allocation14 + $0x28] sm:$0xff]
    %v6101 = vld [vmem:[#allocation14 + $0x30] sm:$0xff]
    %v6102 = vld [vmem:[#allocation14 + $0x38] sm:$0xff]
    %v6103 = vld [vmem:[#allocation14 + $0x40] sm:$0xff]
    %v6104 = vld [vmem:[#allocation14 + $0x48] sm:$0xff]
    %v6105 = vld [vmem:[#allocation14 + $0x50] sm:$0xff]
    %v6106 = vld [vmem:[#allocation14 + $0x58] sm:$0xff]
    %v6107 = vld [vmem:[#allocation14 + $0x60] sm:$0xff]
    %v6108 = vld [vmem:[#allocation14 + $0x68] sm:$0xff]
    %v6109 = vld [vmem:[#allocation14 + $0x70] sm:$0xff]
    %v6110 = vld [vmem:[#allocation14 + $0x78] sm:$0xff]
    %v6111 = vld [vmem:[#allocation16] sm:$0x1]
    %v6113 = vlaneseq
    %v6114 = vshrl.u32 %v6113, 7
    %v6115 = vsub.s32 0, %v6114
    %v6116 = vrot.slane %v6111, %v6115
    %6118 = vmatprep.subr.mxu0 0.0
    %6119 = vmatpush1.msra.mxu0 %v6095
    %6120 = vmatprep.subr.mxu0 0.0
    %6121 = vmatpush1.msra.mxu0 %v6096
    %6122 = vmatprep.subr.mxu0 0.0
    %6123 = vmatpush1.msra.mxu0 %v6097
    %6124 = vmatprep.subr.mxu0 0.0
    %6125 = vmatpush1.msra.mxu0 %v6098
    %6126 = vmatprep.subr.mxu0 0.0
    %6127 = vmatpush1.msra.mxu0 %v6099
    %6128 = vmatprep.subr.mxu0 0.0
    %6129 = vmatpush1.msra.mxu0 %v6100
    %6130 = vmatprep.subr.mxu0 0.0
    %6131 = vmatpush1.msra.mxu0 %v6101
    %6132 = vmatprep.subr.mxu0 0.0
    %6133 = vmatpush1.msra.mxu0 %v6102
    %6134 = vmatprep.subr.mxu0 0.0
    %6135 = vmatpush1.msra.mxu0 %v6103
    %6136 = vmatprep.subr.mxu0 0.0
    %6137 = vmatpush1.msra.mxu0 %v6104
    %6138 = vmatprep.subr.mxu0 0.0
    %6139 = vmatpush1.msra.mxu0 %v6105
    %6140 = vmatprep.subr.mxu0 0.0
    %6141 = vmatpush1.msra.mxu0 %v6106
    %6142 = vmatprep.subr.mxu0 0.0
    %6143 = vmatpush1.msra.mxu0 %v6107
    %6144 = vmatprep.subr.mxu0 0.0
    %6145 = vmatpush1.msra.mxu0 %v6108
    %6146 = vmatprep.subr.mxu0 0.0
    %6147 = vmatpush1.msra.mxu0 %v6109
    %6148 = vmatprep.subr.mxu0 0.0
    %6149 = vmatpush1.msra.mxu0 %v6110
    %6150 = vmatprep.subr.mxu0 0.0
    %6151 = vmatpush1.msra.mxu0 0.0
    %6152 = vmatprep.subr.mxu0 0.0
    %6153 = vmatpush1.msra.mxu0 0.0
    %6154 = vmatprep.subr.mxu0 0.0
    %6155 = vmatpush1.msra.mxu0 0.0
    %6156 = vmatprep.subr.mxu0 0.0
    %6157 = vmatpush1.msra.mxu0 0.0
    %6158 = vmatprep.subr.mxu0 0.0
    %6159 = vmatpush1.msra.mxu0 0.0
    %6160 = vmatprep.subr.mxu0 0.0
    %6161 = vmatpush1.msra.mxu0 0.0
    %6162 = vmatprep.subr.mxu0 0.0
    %6163 = vmatpush1.msra.mxu0 0.0
    %6164 = vmatprep.subr.mxu0 0.0
    %6165 = vmatpush1.msra.mxu0 0.0
    %6166 = vmatprep.subr.mxu0 0.0
    %6167 = vmatpush1.msra.mxu0 0.0
    %6168 = vmatprep.subr.mxu0 0.0
    %6169 = vmatpush1.msra.mxu0 0.0
    %6170 = vmatprep.subr.mxu0 0.0
    %6171 = vmatpush1.msra.mxu0 0.0
    %6172 = vmatprep.subr.mxu0 0.0
    %6173 = vmatpush1.msra.mxu0 0.0
    %6174 = vmatprep.subr.mxu0 0.0
    %6175 = vmatpush1.msra.mxu0 0.0
    %6176 = vmatprep.subr.mxu0 0.0
    %6177 = vmatpush1.msra.mxu0 0.0
    %6178 = vmatprep.subr.mxu0 0.0
    %6179 = vmatpush1.msra.mxu0 0.0
    %6180 = vmatprep.subr.mxu0 0.0
    %6181 = vmatpush1.msra.mxu0 0.0
    %6182 = vmatprep.mubr.f32.mxu0 0.0
    %6183 = vmatmul.mubr.f32.gmra.mrb[0].mxu0 %v6094
    %v6184 = vpop.f32.mrb[0].mxu0
    %v6185 = vadd.f32 %v6116, %v6184
    %v6186 = vpop.f32.mrb[0].mxu0
    %6187 = vdwg.mxu0
    %6188 = vst [vmem:[#allocation17] sm:$0xff] %v6185
    // Predicated region
    $region74: #{tpu_custom_call.1} parent=1 // pred_check
      _
    $region75: #{tpu_custom_call.1} parent=1 // pred_check_branch
      %6190 = sbr.rel (0) target = $region77
    $region76: #{tpu_custom_call.1} parent=1 // pred_region
      %s6192 = ssub.s32 128, 128
      %6193 = vsyncadd [#allocation4], %s6192
      %s6195 = sshll.u32 [#allocation17], 4
      %s6196 = int_to_ptr.vmem [resolvable:$true] %s6195
      %6198 = dma.vmem_to_hbm [thread:$0]  %s6196, 128, %s9, [#allocation4]
    $region77: #{tpu_custom_call.1} parent=1 // pred_fallthru
      _
    // Predicated region
    $region78: #{tpu_custom_call.1} parent=1 // pred_check
      _
    $region79: #{tpu_custom_call.1} parent=1 // pred_check_branch
      %6200 = sbr.rel (0) target = $region81
    $region80: #{tpu_custom_call.1} parent=1 // pred_region
      %6201 = dma.done [#allocation4], 128
    $region81: #{tpu_custom_call.1} parent=1 // pred_fallthru
      _
    %6202 = vsyncpa [#allocation3], 1
    %6203 = vsyncpa [#allocation6], 1
    %6204 = vsyncpa [#allocation9], 1
    %6205 = vsyncpa [#allocation12], 1
    %6206 = vsyncpa [#allocation15], 1
    %6207 = vsyncpa [#allocation4], 1

</llo_original>
